<compile_context>
chip_gen: v7x
topology: tpu7x:2x2x1
jax: 0.10.0
libtpu: 0.0.40
codegen_flags: <defaults>
</compile_context>

<pallas_src>
import functools

import numpy as np
import jax
import jax.numpy as jnp
from jax.experimental import pallas as pl
from jax.experimental.pallas import tpu as pltpu

LANES = 128  # padded channel width for intermediates / output (assumes 2*C <= 128)


def _fold_blur_matrix(n, n_out):
    """(n_out, n): reflect-pad(1) + [1,2,1]/4 blur + stride-2 subsample along one axis."""
    f = (0.25, 0.5, 0.25)
    m = np.zeros((n_out, n), np.float32)
    for i in range(n_out):
        for d in range(3):
            p = 2 * i + d                       # index into the reflect-padded axis
            src = 1 if p == 0 else (n - 2 if p == n + 1 else p - 1)
            m[i, src] += f[d]
    return m


def _residual_downsample_kernel(x_ref, w1_ref, w2_ref, w3_ref, wb_ref, alpha_ref,
                                sfold_ref, out_ref, ypad_ref, zbuf_ref, rbuf_ref,
                                *, H, W, Hd, Wd, CP, C2P, tfold):
    f32 = jnp.float32
    bf16 = jnp.bfloat16
    a1 = alpha_ref[0]                               # PReLU slopes (SMEM scalars)
    a2 = alpha_ref[1]

    x = x_ref[0]                                    # (H, W, Cin)  f32, Cin unpadded
    cin = x.shape[-1]
    xf = x.reshape(H * W, cin)
    xf_b = xf.astype(bf16)

    # ---- Conv1x1 (C -> C, lane-padded to CP) + PReLU --------------------------
    t1 = jnp.dot(xf_b, w1_ref[...], preferred_element_type=f32)          # (H*W, CP)
    t1 = jnp.maximum(t1, 0.0) + a1 * jnp.minimum(t1, 0.0)

    # ---- Conv3x3 (zero pad 1) as 9 shifted-slice MXU matmuls ------------------
    ypad_ref[...] = jnp.zeros_like(ypad_ref)
    ypad_ref[1:H + 1, 1:W + 1, :] = t1.reshape(H, W, CP)

    acc = jnp.zeros((H * W, CP), f32)
    for k in range(9):
        dy, dx = k // 3, k % 3
        patch = ypad_ref[dy:dy + H, dx:dx + W, :]                        # (H, W, CP)
        acc = acc + jnp.dot(patch.reshape(H * W, CP).astype(bf16), w2_ref[k],
                            preferred_element_type=f32)
    t2 = jnp.maximum(acc, 0.0) + a2 * jnp.minimum(acc, 0.0)

    # ---- Final 1x1 convs of both branches (C -> 2C) + add, still full res -----
    z = (jnp.dot(t2.astype(bf16), w3_ref[...], preferred_element_type=f32)
         + jnp.dot(xf_b, wb_ref[...], preferred_element_type=f32))       # (H*W, C2P)
    zbuf_ref[...] = z.reshape(H, W, C2P)

    # ---- Anti-alias blur + reflect pad + stride-2 downsample ------------------
    # out[i, j, c] = sum_{h, w} tfold[i, h] * sfold[j, w] * Z[h, w, c]
    s = sfold_ref[...]                                                   # (Wd, W)
    for h in range(H):                     # width contraction on the MXU
        rbuf_ref[h] = jnp.dot(s, zbuf_ref[h], preferred_element_type=f32)  # (Wd, C2P)
    for i in range(Hd):                    # height contraction: static-coeff combine
        row = jnp.zeros((Wd, C2P), f32)
        for h in range(H):
            c = float(tfold[i, h])
            if c != 0.0:                   # <=3 non-zeros per output row
                row = row + c * rbuf_ref[h]
        out_ref[0, i] = row.astype(out_ref.dtype)


@jax.jit
def residual_downsample_forward(x_nchw, params):
    N, C, H, W = x_nchw.shape
    C2 = 2 * C
    assert C2 <= LANES, "kernel assumes 2*in_channels <= 128"
    Hd = (H - 1) // 2 + 1
    Wd = (W - 1) // 2 + 1
    CP = C2P = LANES

    x = jnp.transpose(x_nchw, (0, 2, 3, 1))                   # NHWC, channels unpadded
    sfold = jnp.asarray(_fold_blur_matrix(W, Wd))              # (Wd, W) f32, kernel input
    tfold = _fold_blur_matrix(H, Hd)                           # static, baked into kernel

    kernel = functools.partial(_residual_downsample_kernel,
                               H=H, W=W, Hd=Hd, Wd=Wd, CP=CP, C2P=C2P, tfold=tfold)

    flops = N * (2 * H * W * C * CP + 9 * 2 * H * W * CP * CP
                 + 2 * H * W * CP * C2P + 2 * H * W * C * C2P
                 + 2 * H * Wd * W * C2P + 2 * Hd * H * Wd * C2P)
    bytes_accessed = (x.size * 4 + params["w1"].size * 2 + params["w2"].size * 2
                      + params["w3"].size * 2 + params["wb"].size * 2
                      + N * Hd * Wd * C2P * 4)

    out = pl.pallas_call(
        kernel,
        out_shape=jax.ShapeDtypeStruct((N, Hd, Wd, C2P), jnp.float32),
        grid=(N,),
        in_specs=[
            pl.BlockSpec((1, H, W, C), lambda n: (n, 0, 0, 0)),    # x: one image / step
            pl.BlockSpec((C, CP), lambda n: (0, 0)),               # w1  (Cin, CP)   bf16
            pl.BlockSpec((9, CP, CP), lambda n: (0, 0, 0)),        # w2  9 conv taps bf16
            pl.BlockSpec((CP, C2P), lambda n: (0, 0)),             # w3  (CP, C2P)   bf16
            pl.BlockSpec((C, C2P), lambda n: (0, 0)),              # wb  (Cin, C2P)  bf16
            pl.BlockSpec(memory_space=pltpu.MemorySpace.SMEM),     # PReLU alphas (2,)
            pl.BlockSpec((Wd, W), lambda n: (0, 0)),               # width fold matrix
        ],
        out_specs=pl.BlockSpec((1, Hd, Wd, C2P), lambda n: (n, 0, 0, 0)),
        scratch_shapes=[
            pltpu.VMEM((H + 2, W + 2, CP), jnp.float32),    # zero-padded conv3x3 input
            pltpu.VMEM((H, W, C2P), jnp.float32),           # Z (fused branch sum)
            pltpu.VMEM((H, Wd, C2P), jnp.float32),          # width-blurred rows
        ],
        compiler_params=pltpu.CompilerParams(
            dimension_semantics=("parallel",),
            vmem_limit_bytes=16 * 1024 * 1024),
        cost_estimate=pl.CostEstimate(flops=flops, transcendentals=0,
                                      bytes_accessed=bytes_accessed),
    )(x, params["w1"], params["w2"], params["w3"], params["wb"],
      params["alphas"], sfold)

    out = out[:, :, :, :C2]                                    # drop lane padding
    return jnp.transpose(out, (0, 3, 1, 2))                    # back to NCHW


def init_residual_downsample_params(key, c):
    c2 = 2 * c
    k1, k2, k3, k4 = jax.random.split(key, 4)
    # Raw PyTorch-layout (OIHW) weights, used by the pure-JAX reference.
    w1_raw = 0.1 * jax.random.normal(k1, (c, c, 1, 1), jnp.float32)
    w2_raw = 0.1 * jax.random.normal(k2, (c, c, 3, 3), jnp.float32)
    w3_raw = 0.1 * jax.random.normal(k3, (c2, c, 1, 1), jnp.float32)
    wb_raw = 0.1 * jax.random.normal(k4, (c2, c, 1, 1), jnp.float32)
    alphas = jnp.array([0.25, 0.1], jnp.float32)   # PReLU slopes (scalar per PReLU)

    def pad(mat, rows, cols):
        return jnp.zeros((rows, cols), jnp.float32).at[:mat.shape[0], :mat.shape[1]].set(mat)

    # Matmul-layout weights for the kernel: (Cin, Cout) zero-padded to 128 lanes, bf16.
    w1 = pad(w1_raw[:, :, 0, 0].T, c, LANES).astype(jnp.bfloat16)
    w2 = jnp.stack([pad(w2_raw[:, :, k // 3, k % 3].T, LANES, LANES) for k in range(9)],
                   axis=0).astype(jnp.bfloat16)
    w3 = pad(w3_raw[:, :, 0, 0].T, LANES, LANES).astype(jnp.bfloat16)
    wb = pad(wb_raw[:, :, 0, 0].T, c, LANES).astype(jnp.bfloat16)
    return dict(w1=w1, w2=w2, w3=w3, wb=wb, alphas=alphas,
                w1_raw=w1_raw, w2_raw=w2_raw, w3_raw=w3_raw, wb_raw=wb_raw)


# --------------------------- pure-JAX f32 reference ----------------------------

def _prelu(x, a):
    return jnp.maximum(x, 0.0) + a * jnp.minimum(x, 0.0)


def _conv_nhwc(x, w_oihw, padding=0):
    w_hwio = jnp.transpose(w_oihw, (2, 3, 1, 0))
    return jax.lax.conv_general_dilated(
        x, w_hwio, window_strides=(1, 1),
        padding=((padding, padding), (padding, padding)),
        dimension_numbers=("NHWC", "HWIO", "NHWC"))


def _blur_downsample_ref(x):
    c = x.shape[-1]
    f = jnp.array([1.0, 2.0, 1.0], jnp.float32)
    filt = (f[:, None] * f[None, :]) / 16.0
    w = jnp.broadcast_to(filt[:, :, None, None], (3, 3, 1, c))
    xp = jnp.pad(x, ((0, 0), (1, 1), (1, 1), (0, 0)), mode="reflect")
    return jax.lax.conv_general_dilated(
        xp, w, window_strides=(2, 2), padding="VALID",
        dimension_numbers=("NHWC", "HWIO", "NHWC"), feature_group_count=c)


def residual_downsample_reference(x_nchw, params):
    x = jnp.transpose(x_nchw, (0, 2, 3, 1))
    a1, a2 = params["alphas"][0], params["alphas"][1]
    t = _prelu(_conv_nhwc(x, params["w1_raw"]), a1)
    t = _prelu(_conv_nhwc(t, params["w2_raw"], padding=1), a2)
    top = _conv_nhwc(_blur_downsample_ref(t), params["w3_raw"])
    bot = _conv_nhwc(_blur_downsample_ref(x), params["wb_raw"])
    return jnp.transpose(top + bot, (0, 3, 1, 2))


# ------------------------------------ main --------------------------------------

if __name__ == "__main__":
    key = jax.random.PRNGKey(0)
    kx, kp = jax.random.split(key)

    N, C, H, W = 2, 4, 16, 16
    x = jax.random.normal(kx, (N, C, H, W), jnp.float32)      # NCHW like the module
    params = init_residual_downsample_params(kp, C)

    out = jax.block_until_ready(residual_downsample_forward(x, params))
    ref = jax.block_until_ready(residual_downsample_reference(x, params))

    assert out.shape == (N, 2 * C, H // 2, W // 2), out.shape
    max_err = float(jnp.max(jnp.abs(out - ref)))
    # Kernel runs bf16 matmul inputs with f32 accumulation; compare against f32 reference.
    assert jnp.allclose(out, ref, atol=2e-2, rtol=2e-2), f"max |err| = {max_err}"
    print("KERNEL_OK")
</pallas_src>

<mosaic_0001>
module attributes {stable_mosaic.version = 11 : i64} {
  func.func @_residual_downsample_kernel(%arg0: i32, %arg1: memref<1x16x16x4xf32, #tpu.memory_space<vmem>>, %arg2: memref<4x128xbf16, #tpu.memory_space<vmem>>, %arg3: memref<9x128x128xbf16, #tpu.memory_space<vmem>>, %arg4: memref<128x128xbf16, #tpu.memory_space<vmem>>, %arg5: memref<4x128xbf16, #tpu.memory_space<vmem>>, %arg6: memref<2xf32, #tpu.memory_space<smem>>, %arg7: memref<8x16xf32, #tpu.memory_space<vmem>>, %arg8: memref<1x8x8x128xf32, #tpu.memory_space<vmem>>, %arg9: memref<18x18x128xf32, #tpu.memory_space<vmem>>, %arg10: memref<16x16x128xf32, #tpu.memory_space<vmem>>, %arg11: memref<16x8x128xf32, #tpu.memory_space<vmem>>) attributes {dimension_semantics = [#tpu.dimension_semantics<parallel>], iteration_bounds = array<i64: 2>, scalar_prefetch = 0 : i64, scratch_operands = 3 : i64, tpu.core_type = #tpu.core_type<tc>, window_params = [{transform_indices = @transform_0, window_bounds = array<i64: 1, 16, 16, 4>}, {pipeline_mode = #tpu.pipeline_mode<synchronous>, transform_indices = @transform_1, window_bounds = array<i64: 4, 128>}, {pipeline_mode = #tpu.pipeline_mode<synchronous>, transform_indices = @transform_2, window_bounds = array<i64: 9, 128, 128>}, {pipeline_mode = #tpu.pipeline_mode<synchronous>, transform_indices = @transform_3, window_bounds = array<i64: 128, 128>}, {pipeline_mode = #tpu.pipeline_mode<synchronous>, transform_indices = @transform_4, window_bounds = array<i64: 4, 128>}, {transform_indices = @transform_5, window_bounds = array<i64: 2>}, {pipeline_mode = #tpu.pipeline_mode<synchronous>, transform_indices = @transform_6, window_bounds = array<i64: 8, 16>}, {transform_indices = @transform_7, window_bounds = array<i64: 1, 8, 8, 128>}]} {
    %c0 = arith.constant 0 : index
    %0 = memref.load %arg6[%c0] : memref<2xf32, #tpu.memory_space<smem>>
    %c1 = arith.constant 1 : index
    %1 = memref.load %arg6[%c1] : memref<2xf32, #tpu.memory_space<smem>>
    %c0_0 = arith.constant 0 : index
    %c0_1 = arith.constant 0 : index
    %c0_2 = arith.constant 0 : index
    %c0_3 = arith.constant 0 : index
    %2 = vector.load %arg1[%c0_0, %c0_1, %c0_2, %c0_3] : memref<1x16x16x4xf32, #tpu.memory_space<vmem>>, vector<1x16x16x4xf32>
    %3 = vector.shape_cast %2 : vector<1x16x16x4xf32> to vector<16x16x4xf32>
    %4 = vector.shape_cast %3 : vector<16x16x4xf32> to vector<256x4xf32>
    %5 = arith.truncf %4 : vector<256x4xf32> to vector<256x4xbf16>
    %c0_4 = arith.constant 0 : index
    %c0_5 = arith.constant 0 : index
    %6 = vector.load %arg2[%c0_4, %c0_5] : memref<4x128xbf16, #tpu.memory_space<vmem>>, vector<4x128xbf16>
    %cst = arith.constant dense<0.000000e+00> : vector<256x128xf32>
    %7 = tpu.matmul %5, %6, %cst {dimension_numbers = #tpu.dot_dimension_numbers<[1], [0], [0], [1], [0, 0, 1, 1], [], []>} : vector<256x4xbf16>, vector<4x128xbf16>, vector<256x128xf32> -> vector<256x128xf32>
    %cst_6 = arith.constant 0.000000e+00 : f32
    %8 = vector.broadcast %cst_6 : f32 to vector<256x128xf32>
    %9 = arith.maximumf %7, %8 : vector<256x128xf32>
    %cst_7 = arith.constant 0.000000e+00 : f32
    %10 = vector.broadcast %cst_7 : f32 to vector<256x128xf32>
    %11 = arith.minimumf %7, %10 : vector<256x128xf32>
    %12 = vector.broadcast %0 : f32 to vector<256x128xf32>
    %13 = arith.mulf %12, %11 : vector<256x128xf32>
    %14 = arith.addf %9, %13 : vector<256x128xf32>
    %cst_8 = arith.constant 0.000000e+00 : f32
    %15 = vector.broadcast %cst_8 : f32 to vector<18x18x128xf32>
    %c0_9 = arith.constant 0 : index
    %c0_10 = arith.constant 0 : index
    %c0_11 = arith.constant 0 : index
    %16 = vector.load %arg9[%c0_9, %c0_10, %c0_11] : memref<18x18x128xf32, #tpu.memory_space<vmem>>, vector<18x18x128xf32>
    tpu.vector_store %arg9[%c0_9, %c0_10, %c0_11], %15 {strides = array<i32>} : memref<18x18x128xf32, #tpu.memory_space<vmem>>, vector<18x18x128xf32>,
    %17 = vector.shape_cast %14 : vector<256x128xf32> to vector<16x16x128xf32>
    %c1_12 = arith.constant 1 : index
    %c1_13 = arith.constant 1 : index
    %c0_14 = arith.constant 0 : index
    %18 = vector.load %arg9[%c1_12, %c1_13, %c0_14] : memref<18x18x128xf32, #tpu.memory_space<vmem>>, vector<16x16x128xf32>
    tpu.vector_store %arg9[%c1_12, %c1_13, %c0_14], %17 {strides = array<i32>} : memref<18x18x128xf32, #tpu.memory_space<vmem>>, vector<16x16x128xf32>,
    %cst_15 = arith.constant 0.000000e+00 : f32
    %19 = vector.broadcast %cst_15 : f32 to vector<256x128xf32>
    %c0_16 = arith.constant 0 : index
    %c0_17 = arith.constant 0 : index
    %c0_18 = arith.constant 0 : index
    %20 = vector.load %arg9[%c0_16, %c0_17, %c0_18] : memref<18x18x128xf32, #tpu.memory_space<vmem>>, vector<16x16x128xf32>
    %21 = vector.shape_cast %20 : vector<16x16x128xf32> to vector<256x128xf32>
    %22 = arith.truncf %21 : vector<256x128xf32> to vector<256x128xbf16>
    %c0_19 = arith.constant 0 : index
    %c0_20 = arith.constant 0 : index
    %c0_21 = arith.constant 0 : index
    %23 = vector.load %arg3[%c0_19, %c0_20, %c0_21] : memref<9x128x128xbf16, #tpu.memory_space<vmem>>, vector<1x128x128xbf16>
    %24 = vector.shape_cast %23 : vector<1x128x128xbf16> to vector<128x128xbf16>
    %cst_22 = arith.constant dense<0.000000e+00> : vector<256x128xf32>
    %25 = tpu.matmul %22, %24, %cst_22 {dimension_numbers = #tpu.dot_dimension_numbers<[1], [0], [0], [1], [0, 0, 1, 1], [], []>} : vector<256x128xbf16>, vector<128x128xbf16>, vector<256x128xf32> -> vector<256x128xf32>
    %26 = arith.addf %19, %25 : vector<256x128xf32>
    %c0_23 = arith.constant 0 : index
    %c1_24 = arith.constant 1 : index
    %c0_25 = arith.constant 0 : index
    %27 = vector.load %arg9[%c0_23, %c1_24, %c0_25] : memref<18x18x128xf32, #tpu.memory_space<vmem>>, vector<16x16x128xf32>
    %28 = vector.shape_cast %27 : vector<16x16x128xf32> to vector<256x128xf32>
    %29 = arith.truncf %28 : vector<256x128xf32> to vector<256x128xbf16>
    %c1_26 = arith.constant 1 : index
    %c0_27 = arith.constant 0 : index
    %c0_28 = arith.constant 0 : index
    %30 = vector.load %arg3[%c1_26, %c0_27, %c0_28] : memref<9x128x128xbf16, #tpu.memory_space<vmem>>, vector<1x128x128xbf16>
    %31 = vector.shape_cast %30 : vector<1x128x128xbf16> to vector<128x128xbf16>
    %cst_29 = arith.constant dense<0.000000e+00> : vector<256x128xf32>
    %32 = tpu.matmul %29, %31, %cst_29 {dimension_numbers = #tpu.dot_dimension_numbers<[1], [0], [0], [1], [0, 0, 1, 1], [], []>} : vector<256x128xbf16>, vector<128x128xbf16>, vector<256x128xf32> -> vector<256x128xf32>
    %33 = arith.addf %26, %32 : vector<256x128xf32>
    %c0_30 = arith.constant 0 : index
    %c2 = arith.constant 2 : index
    %c0_31 = arith.constant 0 : index
    %34 = vector.load %arg9[%c0_30, %c2, %c0_31] : memref<18x18x128xf32, #tpu.memory_space<vmem>>, vector<16x16x128xf32>
    %35 = vector.shape_cast %34 : vector<16x16x128xf32> to vector<256x128xf32>
    %36 = arith.truncf %35 : vector<256x128xf32> to vector<256x128xbf16>
    %c2_32 = arith.constant 2 : index
    %c0_33 = arith.constant 0 : index
    %c0_34 = arith.constant 0 : index
    %37 = vector.load %arg3[%c2_32, %c0_33, %c0_34] : memref<9x128x128xbf16, #tpu.memory_space<vmem>>, vector<1x128x128xbf16>
    %38 = vector.shape_cast %37 : vector<1x128x128xbf16> to vector<128x128xbf16>
    %cst_35 = arith.constant dense<0.000000e+00> : vector<256x128xf32>
    %39 = tpu.matmul %36, %38, %cst_35 {dimension_numbers = #tpu.dot_dimension_numbers<[1], [0], [0], [1], [0, 0, 1, 1], [], []>} : vector<256x128xbf16>, vector<128x128xbf16>, vector<256x128xf32> -> vector<256x128xf32>
    %40 = arith.addf %33, %39 : vector<256x128xf32>
    %c1_36 = arith.constant 1 : index
    %c0_37 = arith.constant 0 : index
    %c0_38 = arith.constant 0 : index
    %41 = vector.load %arg9[%c1_36, %c0_37, %c0_38] : memref<18x18x128xf32, #tpu.memory_space<vmem>>, vector<16x16x128xf32>
    %42 = vector.shape_cast %41 : vector<16x16x128xf32> to vector<256x128xf32>
    %43 = arith.truncf %42 : vector<256x128xf32> to vector<256x128xbf16>
    %c3 = arith.constant 3 : index
    %c0_39 = arith.constant 0 : index
    %c0_40 = arith.constant 0 : index
    %44 = vector.load %arg3[%c3, %c0_39, %c0_40] : memref<9x128x128xbf16, #tpu.memory_space<vmem>>, vector<1x128x128xbf16>
    %45 = vector.shape_cast %44 : vector<1x128x128xbf16> to vector<128x128xbf16>
    %cst_41 = arith.constant dense<0.000000e+00> : vector<256x128xf32>
    %46 = tpu.matmul %43, %45, %cst_41 {dimension_numbers = #tpu.dot_dimension_numbers<[1], [0], [0], [1], [0, 0, 1, 1], [], []>} : vector<256x128xbf16>, vector<128x128xbf16>, vector<256x128xf32> -> vector<256x128xf32>
    %47 = arith.addf %40, %46 : vector<256x128xf32>
    %c1_42 = arith.constant 1 : index
    %c1_43 = arith.constant 1 : index
    %c0_44 = arith.constant 0 : index
    %48 = vector.load %arg9[%c1_42, %c1_43, %c0_44] : memref<18x18x128xf32, #tpu.memory_space<vmem>>, vector<16x16x128xf32>
    %49 = vector.shape_cast %48 : vector<16x16x128xf32> to vector<256x128xf32>
    %50 = arith.truncf %49 : vector<256x128xf32> to vector<256x128xbf16>
    %c4 = arith.constant 4 : index
    %c0_45 = arith.constant 0 : index
    %c0_46 = arith.constant 0 : index
    %51 = vector.load %arg3[%c4, %c0_45, %c0_46] : memref<9x128x128xbf16, #tpu.memory_space<vmem>>, vector<1x128x128xbf16>
    %52 = vector.shape_cast %51 : vector<1x128x128xbf16> to vector<128x128xbf16>
    %cst_47 = arith.constant dense<0.000000e+00> : vector<256x128xf32>
    %53 = tpu.matmul %50, %52, %cst_47 {dimension_numbers = #tpu.dot_dimension_numbers<[1], [0], [0], [1], [0, 0, 1, 1], [], []>} : vector<256x128xbf16>, vector<128x128xbf16>, vector<256x128xf32> -> vector<256x128xf32>
    %54 = arith.addf %47, %53 : vector<256x128xf32>
    %c1_48 = arith.constant 1 : index
    %c2_49 = arith.constant 2 : index
    %c0_50 = arith.constant 0 : index
    %55 = vector.load %arg9[%c1_48, %c2_49, %c0_50] : memref<18x18x128xf32, #tpu.memory_space<vmem>>, vector<16x16x128xf32>
    %56 = vector.shape_cast %55 : vector<16x16x128xf32> to vector<256x128xf32>
    %57 = arith.truncf %56 : vector<256x128xf32> to vector<256x128xbf16>
    %c5 = arith.constant 5 : index
    %c0_51 = arith.constant 0 : index
    %c0_52 = arith.constant 0 : index
    %58 = vector.load %arg3[%c5, %c0_51, %c0_52] : memref<9x128x128xbf16, #tpu.memory_space<vmem>>, vector<1x128x128xbf16>
    %59 = vector.shape_cast %58 : vector<1x128x128xbf16> to vector<128x128xbf16>
    %cst_53 = arith.constant dense<0.000000e+00> : vector<256x128xf32>
    %60 = tpu.matmul %57, %59, %cst_53 {dimension_numbers = #tpu.dot_dimension_numbers<[1], [0], [0], [1], [0, 0, 1, 1], [], []>} : vector<256x128xbf16>, vector<128x128xbf16>, vector<256x128xf32> -> vector<256x128xf32>
    %61 = arith.addf %54, %60 : vector<256x128xf32>
    %c2_54 = arith.constant 2 : index
    %c0_55 = arith.constant 0 : index
    %c0_56 = arith.constant 0 : index
    %62 = vector.load %arg9[%c2_54, %c0_55, %c0_56] : memref<18x18x128xf32, #tpu.memory_space<vmem>>, vector<16x16x128xf32>
    %63 = vector.shape_cast %62 : vector<16x16x128xf32> to vector<256x128xf32>
    %64 = arith.truncf %63 : vector<256x128xf32> to vector<256x128xbf16>
    %c6 = arith.constant 6 : index
    %c0_57 = arith.constant 0 : index
    %c0_58 = arith.constant 0 : index
    %65 = vector.load %arg3[%c6, %c0_57, %c0_58] : memref<9x128x128xbf16, #tpu.memory_space<vmem>>, vector<1x128x128xbf16>
    %66 = vector.shape_cast %65 : vector<1x128x128xbf16> to vector<128x128xbf16>
    %cst_59 = arith.constant dense<0.000000e+00> : vector<256x128xf32>
    %67 = tpu.matmul %64, %66, %cst_59 {dimension_numbers = #tpu.dot_dimension_numbers<[1], [0], [0], [1], [0, 0, 1, 1], [], []>} : vector<256x128xbf16>, vector<128x128xbf16>, vector<256x128xf32> -> vector<256x128xf32>
    %68 = arith.addf %61, %67 : vector<256x128xf32>
    %c2_60 = arith.constant 2 : index
    %c1_61 = arith.constant 1 : index
    %c0_62 = arith.constant 0 : index
    %69 = vector.load %arg9[%c2_60, %c1_61, %c0_62] : memref<18x18x128xf32, #tpu.memory_space<vmem>>, vector<16x16x128xf32>
    %70 = vector.shape_cast %69 : vector<16x16x128xf32> to vector<256x128xf32>
    %71 = arith.truncf %70 : vector<256x128xf32> to vector<256x128xbf16>
    %c7 = arith.constant 7 : index
    %c0_63 = arith.constant 0 : index
    %c0_64 = arith.constant 0 : index
    %72 = vector.load %arg3[%c7, %c0_63, %c0_64] : memref<9x128x128xbf16, #tpu.memory_space<vmem>>, vector<1x128x128xbf16>
    %73 = vector.shape_cast %72 : vector<1x128x128xbf16> to vector<128x128xbf16>
    %cst_65 = arith.constant dense<0.000000e+00> : vector<256x128xf32>
    %74 = tpu.matmul %71, %73, %cst_65 {dimension_numbers = #tpu.dot_dimension_numbers<[1], [0], [0], [1], [0, 0, 1, 1], [], []>} : vector<256x128xbf16>, vector<128x128xbf16>, vector<256x128xf32> -> vector<256x128xf32>
    %75 = arith.addf %68, %74 : vector<256x128xf32>
    %c2_66 = arith.constant 2 : index
    %c2_67 = arith.constant 2 : index
    %c0_68 = arith.constant 0 : index
    %76 = vector.load %arg9[%c2_66, %c2_67, %c0_68] : memref<18x18x128xf32, #tpu.memory_space<vmem>>, vector<16x16x128xf32>
    %77 = vector.shape_cast %76 : vector<16x16x128xf32> to vector<256x128xf32>
    %78 = arith.truncf %77 : vector<256x128xf32> to vector<256x128xbf16>
    %c8 = arith.constant 8 : index
    %c0_69 = arith.constant 0 : index
    %c0_70 = arith.constant 0 : index
    %79 = vector.load %arg3[%c8, %c0_69, %c0_70] : memref<9x128x128xbf16, #tpu.memory_space<vmem>>, vector<1x128x128xbf16>
    %80 = vector.shape_cast %79 : vector<1x128x128xbf16> to vector<128x128xbf16>
    %cst_71 = arith.constant dense<0.000000e+00> : vector<256x128xf32>
    %81 = tpu.matmul %78, %80, %cst_71 {dimension_numbers = #tpu.dot_dimension_numbers<[1], [0], [0], [1], [0, 0, 1, 1], [], []>} : vector<256x128xbf16>, vector<128x128xbf16>, vector<256x128xf32> -> vector<256x128xf32>
    %82 = arith.addf %75, %81 : vector<256x128xf32>
    %cst_72 = arith.constant 0.000000e+00 : f32
    %83 = vector.broadcast %cst_72 : f32 to vector<256x128xf32>
    %84 = arith.maximumf %82, %83 : vector<256x128xf32>
    %cst_73 = arith.constant 0.000000e+00 : f32
    %85 = vector.broadcast %cst_73 : f32 to vector<256x128xf32>
    %86 = arith.minimumf %82, %85 : vector<256x128xf32>
    %87 = vector.broadcast %1 : f32 to vector<256x128xf32>
    %88 = arith.mulf %87, %86 : vector<256x128xf32>
    %89 = arith.addf %84, %88 : vector<256x128xf32>
    %90 = arith.truncf %89 : vector<256x128xf32> to vector<256x128xbf16>
    %c0_74 = arith.constant 0 : index
    %c0_75 = arith.constant 0 : index
    %91 = vector.load %arg4[%c0_74, %c0_75] : memref<128x128xbf16, #tpu.memory_space<vmem>>, vector<128x128xbf16>
    %cst_76 = arith.constant dense<0.000000e+00> : vector<256x128xf32>
    %92 = tpu.matmul %90, %91, %cst_76 {dimension_numbers = #tpu.dot_dimension_numbers<[1], [0], [0], [1], [0, 0, 1, 1], [], []>} : vector<256x128xbf16>, vector<128x128xbf16>, vector<256x128xf32> -> vector<256x128xf32>
    %c0_77 = arith.constant 0 : index
    %c0_78 = arith.constant 0 : index
    %93 = vector.load %arg5[%c0_77, %c0_78] : memref<4x128xbf16, #tpu.memory_space<vmem>>, vector<4x128xbf16>
    %cst_79 = arith.constant dense<0.000000e+00> : vector<256x128xf32>
    %94 = tpu.matmul %5, %93, %cst_79 {dimension_numbers = #tpu.dot_dimension_numbers<[1], [0], [0], [1], [0, 0, 1, 1], [], []>} : vector<256x4xbf16>, vector<4x128xbf16>, vector<256x128xf32> -> vector<256x128xf32>
    %95 = arith.addf %92, %94 : vector<256x128xf32>
    %96 = vector.shape_cast %95 : vector<256x128xf32> to vector<16x16x128xf32>
    %c0_80 = arith.constant 0 : index
    %c0_81 = arith.constant 0 : index
    %c0_82 = arith.constant 0 : index
    %97 = vector.load %arg10[%c0_80, %c0_81, %c0_82] : memref<16x16x128xf32, #tpu.memory_space<vmem>>, vector<16x16x128xf32>
    tpu.vector_store %arg10[%c0_80, %c0_81, %c0_82], %96 {strides = array<i32>} : memref<16x16x128xf32, #tpu.memory_space<vmem>>, vector<16x16x128xf32>,
    %c0_83 = arith.constant 0 : index
    %c0_84 = arith.constant 0 : index
    %98 = vector.load %arg7[%c0_83, %c0_84] : memref<8x16xf32, #tpu.memory_space<vmem>>, vector<8x16xf32>
    %c0_85 = arith.constant 0 : index
    %c0_86 = arith.constant 0 : index
    %c0_87 = arith.constant 0 : index
    %99 = vector.load %arg10[%c0_85, %c0_86, %c0_87] : memref<16x16x128xf32, #tpu.memory_space<vmem>>, vector<1x16x128xf32>
    %100 = vector.shape_cast %99 : vector<1x16x128xf32> to vector<16x128xf32>
    %cst_88 = arith.constant dense<0.000000e+00> : vector<8x128xf32>
    %101 = tpu.matmul %98, %100, %cst_88 {dimension_numbers = #tpu.dot_dimension_numbers<[1], [0], [0], [1], [0, 0, 1, 1], [], []>} : vector<8x16xf32>, vector<16x128xf32>, vector<8x128xf32> -> vector<8x128xf32>
    %c0_89 = arith.constant 0 : index
    %c0_90 = arith.constant 0 : index
    %c0_91 = arith.constant 0 : index
    %102 = vector.load %arg11[%c0_89, %c0_90, %c0_91] : memref<16x8x128xf32, #tpu.memory_space<vmem>>, vector<1x8x128xf32>
    %103 = vector.shape_cast %102 : vector<1x8x128xf32> to vector<8x128xf32>
    %104 = vector.shape_cast %101 : vector<8x128xf32> to vector<1x8x128xf32>
    tpu.vector_store %arg11[%c0_89, %c0_90, %c0_91], %104 {strides = array<i32>} : memref<16x8x128xf32, #tpu.memory_space<vmem>>, vector<1x8x128xf32>,
    %c1_92 = arith.constant 1 : index
    %c0_93 = arith.constant 0 : index
    %c0_94 = arith.constant 0 : index
    %105 = vector.load %arg10[%c1_92, %c0_93, %c0_94] : memref<16x16x128xf32, #tpu.memory_space<vmem>>, vector<1x16x128xf32>
    %106 = vector.shape_cast %105 : vector<1x16x128xf32> to vector<16x128xf32>
    %cst_95 = arith.constant dense<0.000000e+00> : vector<8x128xf32>
    %107 = tpu.matmul %98, %106, %cst_95 {dimension_numbers = #tpu.dot_dimension_numbers<[1], [0], [0], [1], [0, 0, 1, 1], [], []>} : vector<8x16xf32>, vector<16x128xf32>, vector<8x128xf32> -> vector<8x128xf32>
    %c1_96 = arith.constant 1 : index
    %c0_97 = arith.constant 0 : index
    %c0_98 = arith.constant 0 : index
    %108 = vector.load %arg11[%c1_96, %c0_97, %c0_98] : memref<16x8x128xf32, #tpu.memory_space<vmem>>, vector<1x8x128xf32>
    %109 = vector.shape_cast %108 : vector<1x8x128xf32> to vector<8x128xf32>
    %110 = vector.shape_cast %107 : vector<8x128xf32> to vector<1x8x128xf32>
    tpu.vector_store %arg11[%c1_96, %c0_97, %c0_98], %110 {strides = array<i32>} : memref<16x8x128xf32, #tpu.memory_space<vmem>>, vector<1x8x128xf32>,
    %c2_99 = arith.constant 2 : index
    %c0_100 = arith.constant 0 : index
    %c0_101 = arith.constant 0 : index
    %111 = vector.load %arg10[%c2_99, %c0_100, %c0_101] : memref<16x16x128xf32, #tpu.memory_space<vmem>>, vector<1x16x128xf32>
    %112 = vector.shape_cast %111 : vector<1x16x128xf32> to vector<16x128xf32>
    %cst_102 = arith.constant dense<0.000000e+00> : vector<8x128xf32>
    %113 = tpu.matmul %98, %112, %cst_102 {dimension_numbers = #tpu.dot_dimension_numbers<[1], [0], [0], [1], [0, 0, 1, 1], [], []>} : vector<8x16xf32>, vector<16x128xf32>, vector<8x128xf32> -> vector<8x128xf32>
    %c2_103 = arith.constant 2 : index
    %c0_104 = arith.constant 0 : index
    %c0_105 = arith.constant 0 : index
    %114 = vector.load %arg11[%c2_103, %c0_104, %c0_105] : memref<16x8x128xf32, #tpu.memory_space<vmem>>, vector<1x8x128xf32>
    %115 = vector.shape_cast %114 : vector<1x8x128xf32> to vector<8x128xf32>
    %116 = vector.shape_cast %113 : vector<8x128xf32> to vector<1x8x128xf32>
    tpu.vector_store %arg11[%c2_103, %c0_104, %c0_105], %116 {strides = array<i32>} : memref<16x8x128xf32, #tpu.memory_space<vmem>>, vector<1x8x128xf32>,
    %c3_106 = arith.constant 3 : index
    %c0_107 = arith.constant 0 : index
    %c0_108 = arith.constant 0 : index
    %117 = vector.load %arg10[%c3_106, %c0_107, %c0_108] : memref<16x16x128xf32, #tpu.memory_space<vmem>>, vector<1x16x128xf32>
    %118 = vector.shape_cast %117 : vector<1x16x128xf32> to vector<16x128xf32>
    %cst_109 = arith.constant dense<0.000000e+00> : vector<8x128xf32>
    %119 = tpu.matmul %98, %118, %cst_109 {dimension_numbers = #tpu.dot_dimension_numbers<[1], [0], [0], [1], [0, 0, 1, 1], [], []>} : vector<8x16xf32>, vector<16x128xf32>, vector<8x128xf32> -> vector<8x128xf32>
    %c3_110 = arith.constant 3 : index
    %c0_111 = arith.constant 0 : index
    %c0_112 = arith.constant 0 : index
    %120 = vector.load %arg11[%c3_110, %c0_111, %c0_112] : memref<16x8x128xf32, #tpu.memory_space<vmem>>, vector<1x8x128xf32>
    %121 = vector.shape_cast %120 : vector<1x8x128xf32> to vector<8x128xf32>
    %122 = vector.shape_cast %119 : vector<8x128xf32> to vector<1x8x128xf32>
    tpu.vector_store %arg11[%c3_110, %c0_111, %c0_112], %122 {strides = array<i32>} : memref<16x8x128xf32, #tpu.memory_space<vmem>>, vector<1x8x128xf32>,
    %c4_113 = arith.constant 4 : index
    %c0_114 = arith.constant 0 : index
    %c0_115 = arith.constant 0 : index
    %123 = vector.load %arg10[%c4_113, %c0_114, %c0_115] : memref<16x16x128xf32, #tpu.memory_space<vmem>>, vector<1x16x128xf32>
    %124 = vector.shape_cast %123 : vector<1x16x128xf32> to vector<16x128xf32>
    %cst_116 = arith.constant dense<0.000000e+00> : vector<8x128xf32>
    %125 = tpu.matmul %98, %124, %cst_116 {dimension_numbers = #tpu.dot_dimension_numbers<[1], [0], [0], [1], [0, 0, 1, 1], [], []>} : vector<8x16xf32>, vector<16x128xf32>, vector<8x128xf32> -> vector<8x128xf32>
    %c4_117 = arith.constant 4 : index
    %c0_118 = arith.constant 0 : index
    %c0_119 = arith.constant 0 : index
    %126 = vector.load %arg11[%c4_117, %c0_118, %c0_119] : memref<16x8x128xf32, #tpu.memory_space<vmem>>, vector<1x8x128xf32>
    %127 = vector.shape_cast %126 : vector<1x8x128xf32> to vector<8x128xf32>
    %128 = vector.shape_cast %125 : vector<8x128xf32> to vector<1x8x128xf32>
    tpu.vector_store %arg11[%c4_117, %c0_118, %c0_119], %128 {strides = array<i32>} : memref<16x8x128xf32, #tpu.memory_space<vmem>>, vector<1x8x128xf32>,
    %c5_120 = arith.constant 5 : index
    %c0_121 = arith.constant 0 : index
    %c0_122 = arith.constant 0 : index
    %129 = vector.load %arg10[%c5_120, %c0_121, %c0_122] : memref<16x16x128xf32, #tpu.memory_space<vmem>>, vector<1x16x128xf32>
    %130 = vector.shape_cast %129 : vector<1x16x128xf32> to vector<16x128xf32>
    %cst_123 = arith.constant dense<0.000000e+00> : vector<8x128xf32>
    %131 = tpu.matmul %98, %130, %cst_123 {dimension_numbers = #tpu.dot_dimension_numbers<[1], [0], [0], [1], [0, 0, 1, 1], [], []>} : vector<8x16xf32>, vector<16x128xf32>, vector<8x128xf32> -> vector<8x128xf32>
    %c5_124 = arith.constant 5 : index
    %c0_125 = arith.constant 0 : index
    %c0_126 = arith.constant 0 : index
    %132 = vector.load %arg11[%c5_124, %c0_125, %c0_126] : memref<16x8x128xf32, #tpu.memory_space<vmem>>, vector<1x8x128xf32>
    %133 = vector.shape_cast %132 : vector<1x8x128xf32> to vector<8x128xf32>
    %134 = vector.shape_cast %131 : vector<8x128xf32> to vector<1x8x128xf32>
    tpu.vector_store %arg11[%c5_124, %c0_125, %c0_126], %134 {strides = array<i32>} : memref<16x8x128xf32, #tpu.memory_space<vmem>>, vector<1x8x128xf32>,
    %c6_127 = arith.constant 6 : index
    %c0_128 = arith.constant 0 : index
    %c0_129 = arith.constant 0 : index
    %135 = vector.load %arg10[%c6_127, %c0_128, %c0_129] : memref<16x16x128xf32, #tpu.memory_space<vmem>>, vector<1x16x128xf32>
    %136 = vector.shape_cast %135 : vector<1x16x128xf32> to vector<16x128xf32>
    %cst_130 = arith.constant dense<0.000000e+00> : vector<8x128xf32>
    %137 = tpu.matmul %98, %136, %cst_130 {dimension_numbers = #tpu.dot_dimension_numbers<[1], [0], [0], [1], [0, 0, 1, 1], [], []>} : vector<8x16xf32>, vector<16x128xf32>, vector<8x128xf32> -> vector<8x128xf32>
    %c6_131 = arith.constant 6 : index
    %c0_132 = arith.constant 0 : index
    %c0_133 = arith.constant 0 : index
    %138 = vector.load %arg11[%c6_131, %c0_132, %c0_133] : memref<16x8x128xf32, #tpu.memory_space<vmem>>, vector<1x8x128xf32>
    %139 = vector.shape_cast %138 : vector<1x8x128xf32> to vector<8x128xf32>
    %140 = vector.shape_cast %137 : vector<8x128xf32> to vector<1x8x128xf32>
    tpu.vector_store %arg11[%c6_131, %c0_132, %c0_133], %140 {strides = array<i32>} : memref<16x8x128xf32, #tpu.memory_space<vmem>>, vector<1x8x128xf32>,
    %c7_134 = arith.constant 7 : index
    %c0_135 = arith.constant 0 : index
    %c0_136 = arith.constant 0 : index
    %141 = vector.load %arg10[%c7_134, %c0_135, %c0_136] : memref<16x16x128xf32, #tpu.memory_space<vmem>>, vector<1x16x128xf32>
    %142 = vector.shape_cast %141 : vector<1x16x128xf32> to vector<16x128xf32>
    %cst_137 = arith.constant dense<0.000000e+00> : vector<8x128xf32>
    %143 = tpu.matmul %98, %142, %cst_137 {dimension_numbers = #tpu.dot_dimension_numbers<[1], [0], [0], [1], [0, 0, 1, 1], [], []>} : vector<8x16xf32>, vector<16x128xf32>, vector<8x128xf32> -> vector<8x128xf32>
    %c7_138 = arith.constant 7 : index
    %c0_139 = arith.constant 0 : index
    %c0_140 = arith.constant 0 : index
    %144 = vector.load %arg11[%c7_138, %c0_139, %c0_140] : memref<16x8x128xf32, #tpu.memory_space<vmem>>, vector<1x8x128xf32>
    %145 = vector.shape_cast %144 : vector<1x8x128xf32> to vector<8x128xf32>
    %146 = vector.shape_cast %143 : vector<8x128xf32> to vector<1x8x128xf32>
    tpu.vector_store %arg11[%c7_138, %c0_139, %c0_140], %146 {strides = array<i32>} : memref<16x8x128xf32, #tpu.memory_space<vmem>>, vector<1x8x128xf32>,
    %c8_141 = arith.constant 8 : index
    %c0_142 = arith.constant 0 : index
    %c0_143 = arith.constant 0 : index
    %147 = vector.load %arg10[%c8_141, %c0_142, %c0_143] : memref<16x16x128xf32, #tpu.memory_space<vmem>>, vector<1x16x128xf32>
    %148 = vector.shape_cast %147 : vector<1x16x128xf32> to vector<16x128xf32>
    %cst_144 = arith.constant dense<0.000000e+00> : vector<8x128xf32>
    %149 = tpu.matmul %98, %148, %cst_144 {dimension_numbers = #tpu.dot_dimension_numbers<[1], [0], [0], [1], [0, 0, 1, 1], [], []>} : vector<8x16xf32>, vector<16x128xf32>, vector<8x128xf32> -> vector<8x128xf32>
    %c8_145 = arith.constant 8 : index
    %c0_146 = arith.constant 0 : index
    %c0_147 = arith.constant 0 : index
    %150 = vector.load %arg11[%c8_145, %c0_146, %c0_147] : memref<16x8x128xf32, #tpu.memory_space<vmem>>, vector<1x8x128xf32>
    %151 = vector.shape_cast %150 : vector<1x8x128xf32> to vector<8x128xf32>
    %152 = vector.shape_cast %149 : vector<8x128xf32> to vector<1x8x128xf32>
    tpu.vector_store %arg11[%c8_145, %c0_146, %c0_147], %152 {strides = array<i32>} : memref<16x8x128xf32, #tpu.memory_space<vmem>>, vector<1x8x128xf32>,
    %c9 = arith.constant 9 : index
    %c0_148 = arith.constant 0 : index
    %c0_149 = arith.constant 0 : index
    %153 = vector.load %arg10[%c9, %c0_148, %c0_149] : memref<16x16x128xf32, #tpu.memory_space<vmem>>, vector<1x16x128xf32>
    %154 = vector.shape_cast %153 : vector<1x16x128xf32> to vector<16x128xf32>
    %cst_150 = arith.constant dense<0.000000e+00> : vector<8x128xf32>
    %155 = tpu.matmul %98, %154, %cst_150 {dimension_numbers = #tpu.dot_dimension_numbers<[1], [0], [0], [1], [0, 0, 1, 1], [], []>} : vector<8x16xf32>, vector<16x128xf32>, vector<8x128xf32> -> vector<8x128xf32>
    %c9_151 = arith.constant 9 : index
    %c0_152 = arith.constant 0 : index
    %c0_153 = arith.constant 0 : index
    %156 = vector.load %arg11[%c9_151, %c0_152, %c0_153] : memref<16x8x128xf32, #tpu.memory_space<vmem>>, vector<1x8x128xf32>
    %157 = vector.shape_cast %156 : vector<1x8x128xf32> to vector<8x128xf32>
    %158 = vector.shape_cast %155 : vector<8x128xf32> to vector<1x8x128xf32>
    tpu.vector_store %arg11[%c9_151, %c0_152, %c0_153], %158 {strides = array<i32>} : memref<16x8x128xf32, #tpu.memory_space<vmem>>, vector<1x8x128xf32>,
    %c10 = arith.constant 10 : index
    %c0_154 = arith.constant 0 : index
    %c0_155 = arith.constant 0 : index
    %159 = vector.load %arg10[%c10, %c0_154, %c0_155] : memref<16x16x128xf32, #tpu.memory_space<vmem>>, vector<1x16x128xf32>
    %160 = vector.shape_cast %159 : vector<1x16x128xf32> to vector<16x128xf32>
    %cst_156 = arith.constant dense<0.000000e+00> : vector<8x128xf32>
    %161 = tpu.matmul %98, %160, %cst_156 {dimension_numbers = #tpu.dot_dimension_numbers<[1], [0], [0], [1], [0, 0, 1, 1], [], []>} : vector<8x16xf32>, vector<16x128xf32>, vector<8x128xf32> -> vector<8x128xf32>
    %c10_157 = arith.constant 10 : index
    %c0_158 = arith.constant 0 : index
    %c0_159 = arith.constant 0 : index
    %162 = vector.load %arg11[%c10_157, %c0_158, %c0_159] : memref<16x8x128xf32, #tpu.memory_space<vmem>>, vector<1x8x128xf32>
    %163 = vector.shape_cast %162 : vector<1x8x128xf32> to vector<8x128xf32>
    %164 = vector.shape_cast %161 : vector<8x128xf32> to vector<1x8x128xf32>
    tpu.vector_store %arg11[%c10_157, %c0_158, %c0_159], %164 {strides = array<i32>} : memref<16x8x128xf32, #tpu.memory_space<vmem>>, vector<1x8x128xf32>,
    %c11 = arith.constant 11 : index
    %c0_160 = arith.constant 0 : index
    %c0_161 = arith.constant 0 : index
    %165 = vector.load %arg10[%c11, %c0_160, %c0_161] : memref<16x16x128xf32, #tpu.memory_space<vmem>>, vector<1x16x128xf32>
    %166 = vector.shape_cast %165 : vector<1x16x128xf32> to vector<16x128xf32>
    %cst_162 = arith.constant dense<0.000000e+00> : vector<8x128xf32>
    %167 = tpu.matmul %98, %166, %cst_162 {dimension_numbers = #tpu.dot_dimension_numbers<[1], [0], [0], [1], [0, 0, 1, 1], [], []>} : vector<8x16xf32>, vector<16x128xf32>, vector<8x128xf32> -> vector<8x128xf32>
    %c11_163 = arith.constant 11 : index
    %c0_164 = arith.constant 0 : index
    %c0_165 = arith.constant 0 : index
    %168 = vector.load %arg11[%c11_163, %c0_164, %c0_165] : memref<16x8x128xf32, #tpu.memory_space<vmem>>, vector<1x8x128xf32>
    %169 = vector.shape_cast %168 : vector<1x8x128xf32> to vector<8x128xf32>
    %170 = vector.shape_cast %167 : vector<8x128xf32> to vector<1x8x128xf32>
    tpu.vector_store %arg11[%c11_163, %c0_164, %c0_165], %170 {strides = array<i32>} : memref<16x8x128xf32, #tpu.memory_space<vmem>>, vector<1x8x128xf32>,
    %c12 = arith.constant 12 : index
    %c0_166 = arith.constant 0 : index
    %c0_167 = arith.constant 0 : index
    %171 = vector.load %arg10[%c12, %c0_166, %c0_167] : memref<16x16x128xf32, #tpu.memory_space<vmem>>, vector<1x16x128xf32>
    %172 = vector.shape_cast %171 : vector<1x16x128xf32> to vector<16x128xf32>
    %cst_168 = arith.constant dense<0.000000e+00> : vector<8x128xf32>
    %173 = tpu.matmul %98, %172, %cst_168 {dimension_numbers = #tpu.dot_dimension_numbers<[1], [0], [0], [1], [0, 0, 1, 1], [], []>} : vector<8x16xf32>, vector<16x128xf32>, vector<8x128xf32> -> vector<8x128xf32>
    %c12_169 = arith.constant 12 : index
    %c0_170 = arith.constant 0 : index
    %c0_171 = arith.constant 0 : index
    %174 = vector.load %arg11[%c12_169, %c0_170, %c0_171] : memref<16x8x128xf32, #tpu.memory_space<vmem>>, vector<1x8x128xf32>
    %175 = vector.shape_cast %174 : vector<1x8x128xf32> to vector<8x128xf32>
    %176 = vector.shape_cast %173 : vector<8x128xf32> to vector<1x8x128xf32>
    tpu.vector_store %arg11[%c12_169, %c0_170, %c0_171], %176 {strides = array<i32>} : memref<16x8x128xf32, #tpu.memory_space<vmem>>, vector<1x8x128xf32>,
    %c13 = arith.constant 13 : index
    %c0_172 = arith.constant 0 : index
    %c0_173 = arith.constant 0 : index
    %177 = vector.load %arg10[%c13, %c0_172, %c0_173] : memref<16x16x128xf32, #tpu.memory_space<vmem>>, vector<1x16x128xf32>
    %178 = vector.shape_cast %177 : vector<1x16x128xf32> to vector<16x128xf32>
    %cst_174 = arith.constant dense<0.000000e+00> : vector<8x128xf32>
    %179 = tpu.matmul %98, %178, %cst_174 {dimension_numbers = #tpu.dot_dimension_numbers<[1], [0], [0], [1], [0, 0, 1, 1], [], []>} : vector<8x16xf32>, vector<16x128xf32>, vector<8x128xf32> -> vector<8x128xf32>
    %c13_175 = arith.constant 13 : index
    %c0_176 = arith.constant 0 : index
    %c0_177 = arith.constant 0 : index
    %180 = vector.load %arg11[%c13_175, %c0_176, %c0_177] : memref<16x8x128xf32, #tpu.memory_space<vmem>>, vector<1x8x128xf32>
    %181 = vector.shape_cast %180 : vector<1x8x128xf32> to vector<8x128xf32>
    %182 = vector.shape_cast %179 : vector<8x128xf32> to vector<1x8x128xf32>
    tpu.vector_store %arg11[%c13_175, %c0_176, %c0_177], %182 {strides = array<i32>} : memref<16x8x128xf32, #tpu.memory_space<vmem>>, vector<1x8x128xf32>,
    %c14 = arith.constant 14 : index
    %c0_178 = arith.constant 0 : index
    %c0_179 = arith.constant 0 : index
    %183 = vector.load %arg10[%c14, %c0_178, %c0_179] : memref<16x16x128xf32, #tpu.memory_space<vmem>>, vector<1x16x128xf32>
    %184 = vector.shape_cast %183 : vector<1x16x128xf32> to vector<16x128xf32>
    %cst_180 = arith.constant dense<0.000000e+00> : vector<8x128xf32>
    %185 = tpu.matmul %98, %184, %cst_180 {dimension_numbers = #tpu.dot_dimension_numbers<[1], [0], [0], [1], [0, 0, 1, 1], [], []>} : vector<8x16xf32>, vector<16x128xf32>, vector<8x128xf32> -> vector<8x128xf32>
    %c14_181 = arith.constant 14 : index
    %c0_182 = arith.constant 0 : index
    %c0_183 = arith.constant 0 : index
    %186 = vector.load %arg11[%c14_181, %c0_182, %c0_183] : memref<16x8x128xf32, #tpu.memory_space<vmem>>, vector<1x8x128xf32>
    %187 = vector.shape_cast %186 : vector<1x8x128xf32> to vector<8x128xf32>
    %188 = vector.shape_cast %185 : vector<8x128xf32> to vector<1x8x128xf32>
    tpu.vector_store %arg11[%c14_181, %c0_182, %c0_183], %188 {strides = array<i32>} : memref<16x8x128xf32, #tpu.memory_space<vmem>>, vector<1x8x128xf32>,
    %c15 = arith.constant 15 : index
    %c0_184 = arith.constant 0 : index
    %c0_185 = arith.constant 0 : index
    %189 = vector.load %arg10[%c15, %c0_184, %c0_185] : memref<16x16x128xf32, #tpu.memory_space<vmem>>, vector<1x16x128xf32>
    %190 = vector.shape_cast %189 : vector<1x16x128xf32> to vector<16x128xf32>
    %cst_186 = arith.constant dense<0.000000e+00> : vector<8x128xf32>
    %191 = tpu.matmul %98, %190, %cst_186 {dimension_numbers = #tpu.dot_dimension_numbers<[1], [0], [0], [1], [0, 0, 1, 1], [], []>} : vector<8x16xf32>, vector<16x128xf32>, vector<8x128xf32> -> vector<8x128xf32>
    %c15_187 = arith.constant 15 : index
    %c0_188 = arith.constant 0 : index
    %c0_189 = arith.constant 0 : index
    %192 = vector.load %arg11[%c15_187, %c0_188, %c0_189] : memref<16x8x128xf32, #tpu.memory_space<vmem>>, vector<1x8x128xf32>
    %193 = vector.shape_cast %192 : vector<1x8x128xf32> to vector<8x128xf32>
    %194 = vector.shape_cast %191 : vector<8x128xf32> to vector<1x8x128xf32>
    tpu.vector_store %arg11[%c15_187, %c0_188, %c0_189], %194 {strides = array<i32>} : memref<16x8x128xf32, #tpu.memory_space<vmem>>, vector<1x8x128xf32>,
    %cst_190 = arith.constant 0.000000e+00 : f32
    %195 = vector.broadcast %cst_190 : f32 to vector<8x128xf32>
    %c0_191 = arith.constant 0 : index
    %c0_192 = arith.constant 0 : index
    %c0_193 = arith.constant 0 : index
    %196 = vector.load %arg11[%c0_191, %c0_192, %c0_193] : memref<16x8x128xf32, #tpu.memory_space<vmem>>, vector<1x8x128xf32>
    %197 = vector.shape_cast %196 : vector<1x8x128xf32> to vector<8x128xf32>
    %cst_194 = arith.constant 5.000000e-01 : f32
    %198 = vector.broadcast %cst_194 : f32 to vector<8x128xf32>
    %199 = arith.mulf %198, %197 : vector<8x128xf32>
    %200 = arith.addf %195, %199 : vector<8x128xf32>
    %c1_195 = arith.constant 1 : index
    %c0_196 = arith.constant 0 : index
    %c0_197 = arith.constant 0 : index
    %201 = vector.load %arg11[%c1_195, %c0_196, %c0_197] : memref<16x8x128xf32, #tpu.memory_space<vmem>>, vector<1x8x128xf32>
    %202 = vector.shape_cast %201 : vector<1x8x128xf32> to vector<8x128xf32>
    %cst_198 = arith.constant 5.000000e-01 : f32
    %203 = vector.broadcast %cst_198 : f32 to vector<8x128xf32>
    %204 = arith.mulf %203, %202 : vector<8x128xf32>
    %205 = arith.addf %200, %204 : vector<8x128xf32>
    %c0_199 = arith.constant 0 : index
    %c0_200 = arith.constant 0 : index
    %c0_201 = arith.constant 0 : index
    %c0_202 = arith.constant 0 : index
    %206 = vector.load %arg8[%c0_199, %c0_200, %c0_201, %c0_202] : memref<1x8x8x128xf32, #tpu.memory_space<vmem>>, vector<1x1x8x128xf32>
    %207 = vector.shape_cast %206 : vector<1x1x8x128xf32> to vector<8x128xf32>
    %208 = vector.shape_cast %205 : vector<8x128xf32> to vector<1x1x8x128xf32>
    tpu.vector_store %arg8[%c0_199, %c0_200, %c0_201, %c0_202], %208 {strides = array<i32>} : memref<1x8x8x128xf32, #tpu.memory_space<vmem>>, vector<1x1x8x128xf32>,
    %cst_203 = arith.constant 0.000000e+00 : f32
    %209 = vector.broadcast %cst_203 : f32 to vector<8x128xf32>
    %c1_204 = arith.constant 1 : index
    %c0_205 = arith.constant 0 : index
    %c0_206 = arith.constant 0 : index
    %210 = vector.load %arg11[%c1_204, %c0_205, %c0_206] : memref<16x8x128xf32, #tpu.memory_space<vmem>>, vector<1x8x128xf32>
    %211 = vector.shape_cast %210 : vector<1x8x128xf32> to vector<8x128xf32>
    %cst_207 = arith.constant 2.500000e-01 : f32
    %212 = vector.broadcast %cst_207 : f32 to vector<8x128xf32>
    %213 = arith.mulf %212, %211 : vector<8x128xf32>
    %214 = arith.addf %209, %213 : vector<8x128xf32>
    %c2_208 = arith.constant 2 : index
    %c0_209 = arith.constant 0 : index
    %c0_210 = arith.constant 0 : index
    %215 = vector.load %arg11[%c2_208, %c0_209, %c0_210] : memref<16x8x128xf32, #tpu.memory_space<vmem>>, vector<1x8x128xf32>
    %216 = vector.shape_cast %215 : vector<1x8x128xf32> to vector<8x128xf32>
    %cst_211 = arith.constant 5.000000e-01 : f32
    %217 = vector.broadcast %cst_211 : f32 to vector<8x128xf32>
    %218 = arith.mulf %217, %216 : vector<8x128xf32>
    %219 = arith.addf %214, %218 : vector<8x128xf32>
    %c3_212 = arith.constant 3 : index
    %c0_213 = arith.constant 0 : index
    %c0_214 = arith.constant 0 : index
    %220 = vector.load %arg11[%c3_212, %c0_213, %c0_214] : memref<16x8x128xf32, #tpu.memory_space<vmem>>, vector<1x8x128xf32>
    %221 = vector.shape_cast %220 : vector<1x8x128xf32> to vector<8x128xf32>
    %cst_215 = arith.constant 2.500000e-01 : f32
    %222 = vector.broadcast %cst_215 : f32 to vector<8x128xf32>
    %223 = arith.mulf %222, %221 : vector<8x128xf32>
    %224 = arith.addf %219, %223 : vector<8x128xf32>
    %c0_216 = arith.constant 0 : index
    %c1_217 = arith.constant 1 : index
    %c0_218 = arith.constant 0 : index
    %c0_219 = arith.constant 0 : index
    %225 = vector.load %arg8[%c0_216, %c1_217, %c0_218, %c0_219] : memref<1x8x8x128xf32, #tpu.memory_space<vmem>>, vector<1x1x8x128xf32>
    %226 = vector.shape_cast %225 : vector<1x1x8x128xf32> to vector<8x128xf32>
    %227 = vector.shape_cast %224 : vector<8x128xf32> to vector<1x1x8x128xf32>
    tpu.vector_store %arg8[%c0_216, %c1_217, %c0_218, %c0_219], %227 {strides = array<i32>} : memref<1x8x8x128xf32, #tpu.memory_space<vmem>>, vector<1x1x8x128xf32>,
    %cst_220 = arith.constant 0.000000e+00 : f32
    %228 = vector.broadcast %cst_220 : f32 to vector<8x128xf32>
    %c3_221 = arith.constant 3 : index
    %c0_222 = arith.constant 0 : index
    %c0_223 = arith.constant 0 : index
    %229 = vector.load %arg11[%c3_221, %c0_222, %c0_223] : memref<16x8x128xf32, #tpu.memory_space<vmem>>, vector<1x8x128xf32>
    %230 = vector.shape_cast %229 : vector<1x8x128xf32> to vector<8x128xf32>
    %cst_224 = arith.constant 2.500000e-01 : f32
    %231 = vector.broadcast %cst_224 : f32 to vector<8x128xf32>
    %232 = arith.mulf %231, %230 : vector<8x128xf32>
    %233 = arith.addf %228, %232 : vector<8x128xf32>
    %c4_225 = arith.constant 4 : index
    %c0_226 = arith.constant 0 : index
    %c0_227 = arith.constant 0 : index
    %234 = vector.load %arg11[%c4_225, %c0_226, %c0_227] : memref<16x8x128xf32, #tpu.memory_space<vmem>>, vector<1x8x128xf32>
    %235 = vector.shape_cast %234 : vector<1x8x128xf32> to vector<8x128xf32>
    %cst_228 = arith.constant 5.000000e-01 : f32
    %236 = vector.broadcast %cst_228 : f32 to vector<8x128xf32>
    %237 = arith.mulf %236, %235 : vector<8x128xf32>
    %238 = arith.addf %233, %237 : vector<8x128xf32>
    %c5_229 = arith.constant 5 : index
    %c0_230 = arith.constant 0 : index
    %c0_231 = arith.constant 0 : index
    %239 = vector.load %arg11[%c5_229, %c0_230, %c0_231] : memref<16x8x128xf32, #tpu.memory_space<vmem>>, vector<1x8x128xf32>
    %240 = vector.shape_cast %239 : vector<1x8x128xf32> to vector<8x128xf32>
    %cst_232 = arith.constant 2.500000e-01 : f32
    %241 = vector.broadcast %cst_232 : f32 to vector<8x128xf32>
    %242 = arith.mulf %241, %240 : vector<8x128xf32>
    %243 = arith.addf %238, %242 : vector<8x128xf32>
    %c0_233 = arith.constant 0 : index
    %c2_234 = arith.constant 2 : index
    %c0_235 = arith.constant 0 : index
    %c0_236 = arith.constant 0 : index
    %244 = vector.load %arg8[%c0_233, %c2_234, %c0_235, %c0_236] : memref<1x8x8x128xf32, #tpu.memory_space<vmem>>, vector<1x1x8x128xf32>
    %245 = vector.shape_cast %244 : vector<1x1x8x128xf32> to vector<8x128xf32>
    %246 = vector.shape_cast %243 : vector<8x128xf32> to vector<1x1x8x128xf32>
    tpu.vector_store %arg8[%c0_233, %c2_234, %c0_235, %c0_236], %246 {strides = array<i32>} : memref<1x8x8x128xf32, #tpu.memory_space<vmem>>, vector<1x1x8x128xf32>,
    %cst_237 = arith.constant 0.000000e+00 : f32
    %247 = vector.broadcast %cst_237 : f32 to vector<8x128xf32>
    %c5_238 = arith.constant 5 : index
    %c0_239 = arith.constant 0 : index
    %c0_240 = arith.constant 0 : index
    %248 = vector.load %arg11[%c5_238, %c0_239, %c0_240] : memref<16x8x128xf32, #tpu.memory_space<vmem>>, vector<1x8x128xf32>
    %249 = vector.shape_cast %248 : vector<1x8x128xf32> to vector<8x128xf32>
    %cst_241 = arith.constant 2.500000e-01 : f32
    %250 = vector.broadcast %cst_241 : f32 to vector<8x128xf32>
    %251 = arith.mulf %250, %249 : vector<8x128xf32>
    %252 = arith.addf %247, %251 : vector<8x128xf32>
    %c6_242 = arith.constant 6 : index
    %c0_243 = arith.constant 0 : index
    %c0_244 = arith.constant 0 : index
    %253 = vector.load %arg11[%c6_242, %c0_243, %c0_244] : memref<16x8x128xf32, #tpu.memory_space<vmem>>, vector<1x8x128xf32>
    %254 = vector.shape_cast %253 : vector<1x8x128xf32> to vector<8x128xf32>
    %cst_245 = arith.constant 5.000000e-01 : f32
    %255 = vector.broadcast %cst_245 : f32 to vector<8x128xf32>
    %256 = arith.mulf %255, %254 : vector<8x128xf32>
    %257 = arith.addf %252, %256 : vector<8x128xf32>
    %c7_246 = arith.constant 7 : index
    %c0_247 = arith.constant 0 : index
    %c0_248 = arith.constant 0 : index
    %258 = vector.load %arg11[%c7_246, %c0_247, %c0_248] : memref<16x8x128xf32, #tpu.memory_space<vmem>>, vector<1x8x128xf32>
    %259 = vector.shape_cast %258 : vector<1x8x128xf32> to vector<8x128xf32>
    %cst_249 = arith.constant 2.500000e-01 : f32
    %260 = vector.broadcast %cst_249 : f32 to vector<8x128xf32>
    %261 = arith.mulf %260, %259 : vector<8x128xf32>
    %262 = arith.addf %257, %261 : vector<8x128xf32>
    %c0_250 = arith.constant 0 : index
    %c3_251 = arith.constant 3 : index
    %c0_252 = arith.constant 0 : index
    %c0_253 = arith.constant 0 : index
    %263 = vector.load %arg8[%c0_250, %c3_251, %c0_252, %c0_253] : memref<1x8x8x128xf32, #tpu.memory_space<vmem>>, vector<1x1x8x128xf32>
    %264 = vector.shape_cast %263 : vector<1x1x8x128xf32> to vector<8x128xf32>
    %265 = vector.shape_cast %262 : vector<8x128xf32> to vector<1x1x8x128xf32>
    tpu.vector_store %arg8[%c0_250, %c3_251, %c0_252, %c0_253], %265 {strides = array<i32>} : memref<1x8x8x128xf32, #tpu.memory_space<vmem>>, vector<1x1x8x128xf32>,
    %cst_254 = arith.constant 0.000000e+00 : f32
    %266 = vector.broadcast %cst_254 : f32 to vector<8x128xf32>
    %c7_255 = arith.constant 7 : index
    %c0_256 = arith.constant 0 : index
    %c0_257 = arith.constant 0 : index
    %267 = vector.load %arg11[%c7_255, %c0_256, %c0_257] : memref<16x8x128xf32, #tpu.memory_space<vmem>>, vector<1x8x128xf32>
    %268 = vector.shape_cast %267 : vector<1x8x128xf32> to vector<8x128xf32>
    %cst_258 = arith.constant 2.500000e-01 : f32
    %269 = vector.broadcast %cst_258 : f32 to vector<8x128xf32>
    %270 = arith.mulf %269, %268 : vector<8x128xf32>
    %271 = arith.addf %266, %270 : vector<8x128xf32>
    %c8_259 = arith.constant 8 : index
    %c0_260 = arith.constant 0 : index
    %c0_261 = arith.constant 0 : index
    %272 = vector.load %arg11[%c8_259, %c0_260, %c0_261] : memref<16x8x128xf32, #tpu.memory_space<vmem>>, vector<1x8x128xf32>
    %273 = vector.shape_cast %272 : vector<1x8x128xf32> to vector<8x128xf32>
    %cst_262 = arith.constant 5.000000e-01 : f32
    %274 = vector.broadcast %cst_262 : f32 to vector<8x128xf32>
    %275 = arith.mulf %274, %273 : vector<8x128xf32>
    %276 = arith.addf %271, %275 : vector<8x128xf32>
    %c9_263 = arith.constant 9 : index
    %c0_264 = arith.constant 0 : index
    %c0_265 = arith.constant 0 : index
    %277 = vector.load %arg11[%c9_263, %c0_264, %c0_265] : memref<16x8x128xf32, #tpu.memory_space<vmem>>, vector<1x8x128xf32>
    %278 = vector.shape_cast %277 : vector<1x8x128xf32> to vector<8x128xf32>
    %cst_266 = arith.constant 2.500000e-01 : f32
    %279 = vector.broadcast %cst_266 : f32 to vector<8x128xf32>
    %280 = arith.mulf %279, %278 : vector<8x128xf32>
    %281 = arith.addf %276, %280 : vector<8x128xf32>
    %c0_267 = arith.constant 0 : index
    %c4_268 = arith.constant 4 : index
    %c0_269 = arith.constant 0 : index
    %c0_270 = arith.constant 0 : index
    %282 = vector.load %arg8[%c0_267, %c4_268, %c0_269, %c0_270] : memref<1x8x8x128xf32, #tpu.memory_space<vmem>>, vector<1x1x8x128xf32>
    %283 = vector.shape_cast %282 : vector<1x1x8x128xf32> to vector<8x128xf32>
    %284 = vector.shape_cast %281 : vector<8x128xf32> to vector<1x1x8x128xf32>
    tpu.vector_store %arg8[%c0_267, %c4_268, %c0_269, %c0_270], %284 {strides = array<i32>} : memref<1x8x8x128xf32, #tpu.memory_space<vmem>>, vector<1x1x8x128xf32>,
    %cst_271 = arith.constant 0.000000e+00 : f32
    %285 = vector.broadcast %cst_271 : f32 to vector<8x128xf32>
    %c9_272 = arith.constant 9 : index
    %c0_273 = arith.constant 0 : index
    %c0_274 = arith.constant 0 : index
    %286 = vector.load %arg11[%c9_272, %c0_273, %c0_274] : memref<16x8x128xf32, #tpu.memory_space<vmem>>, vector<1x8x128xf32>
    %287 = vector.shape_cast %286 : vector<1x8x128xf32> to vector<8x128xf32>
    %cst_275 = arith.constant 2.500000e-01 : f32
    %288 = vector.broadcast %cst_275 : f32 to vector<8x128xf32>
    %289 = arith.mulf %288, %287 : vector<8x128xf32>
    %290 = arith.addf %285, %289 : vector<8x128xf32>
    %c10_276 = arith.constant 10 : index
    %c0_277 = arith.constant 0 : index
    %c0_278 = arith.constant 0 : index
    %291 = vector.load %arg11[%c10_276, %c0_277, %c0_278] : memref<16x8x128xf32, #tpu.memory_space<vmem>>, vector<1x8x128xf32>
    %292 = vector.shape_cast %291 : vector<1x8x128xf32> to vector<8x128xf32>
    %cst_279 = arith.constant 5.000000e-01 : f32
    %293 = vector.broadcast %cst_279 : f32 to vector<8x128xf32>
    %294 = arith.mulf %293, %292 : vector<8x128xf32>
    %295 = arith.addf %290, %294 : vector<8x128xf32>
    %c11_280 = arith.constant 11 : index
    %c0_281 = arith.constant 0 : index
    %c0_282 = arith.constant 0 : index
    %296 = vector.load %arg11[%c11_280, %c0_281, %c0_282] : memref<16x8x128xf32, #tpu.memory_space<vmem>>, vector<1x8x128xf32>
    %297 = vector.shape_cast %296 : vector<1x8x128xf32> to vector<8x128xf32>
    %cst_283 = arith.constant 2.500000e-01 : f32
    %298 = vector.broadcast %cst_283 : f32 to vector<8x128xf32>
    %299 = arith.mulf %298, %297 : vector<8x128xf32>
    %300 = arith.addf %295, %299 : vector<8x128xf32>
    %c0_284 = arith.constant 0 : index
    %c5_285 = arith.constant 5 : index
    %c0_286 = arith.constant 0 : index
    %c0_287 = arith.constant 0 : index
    %301 = vector.load %arg8[%c0_284, %c5_285, %c0_286, %c0_287] : memref<1x8x8x128xf32, #tpu.memory_space<vmem>>, vector<1x1x8x128xf32>
    %302 = vector.shape_cast %301 : vector<1x1x8x128xf32> to vector<8x128xf32>
    %303 = vector.shape_cast %300 : vector<8x128xf32> to vector<1x1x8x128xf32>
    tpu.vector_store %arg8[%c0_284, %c5_285, %c0_286, %c0_287], %303 {strides = array<i32>} : memref<1x8x8x128xf32, #tpu.memory_space<vmem>>, vector<1x1x8x128xf32>,
    %cst_288 = arith.constant 0.000000e+00 : f32
    %304 = vector.broadcast %cst_288 : f32 to vector<8x128xf32>
    %c11_289 = arith.constant 11 : index
    %c0_290 = arith.constant 0 : index
    %c0_291 = arith.constant 0 : index
    %305 = vector.load %arg11[%c11_289, %c0_290, %c0_291] : memref<16x8x128xf32, #tpu.memory_space<vmem>>, vector<1x8x128xf32>
    %306 = vector.shape_cast %305 : vector<1x8x128xf32> to vector<8x128xf32>
    %cst_292 = arith.constant 2.500000e-01 : f32
    %307 = vector.broadcast %cst_292 : f32 to vector<8x128xf32>
    %308 = arith.mulf %307, %306 : vector<8x128xf32>
    %309 = arith.addf %304, %308 : vector<8x128xf32>
    %c12_293 = arith.constant 12 : index
    %c0_294 = arith.constant 0 : index
    %c0_295 = arith.constant 0 : index
    %310 = vector.load %arg11[%c12_293, %c0_294, %c0_295] : memref<16x8x128xf32, #tpu.memory_space<vmem>>, vector<1x8x128xf32>
    %311 = vector.shape_cast %310 : vector<1x8x128xf32> to vector<8x128xf32>
    %cst_296 = arith.constant 5.000000e-01 : f32
    %312 = vector.broadcast %cst_296 : f32 to vector<8x128xf32>
    %313 = arith.mulf %312, %311 : vector<8x128xf32>
    %314 = arith.addf %309, %313 : vector<8x128xf32>
    %c13_297 = arith.constant 13 : index
    %c0_298 = arith.constant 0 : index
    %c0_299 = arith.constant 0 : index
    %315 = vector.load %arg11[%c13_297, %c0_298, %c0_299] : memref<16x8x128xf32, #tpu.memory_space<vmem>>, vector<1x8x128xf32>
    %316 = vector.shape_cast %315 : vector<1x8x128xf32> to vector<8x128xf32>
    %cst_300 = arith.constant 2.500000e-01 : f32
    %317 = vector.broadcast %cst_300 : f32 to vector<8x128xf32>
    %318 = arith.mulf %317, %316 : vector<8x128xf32>
    %319 = arith.addf %314, %318 : vector<8x128xf32>
    %c0_301 = arith.constant 0 : index
    %c6_302 = arith.constant 6 : index
    %c0_303 = arith.constant 0 : index
    %c0_304 = arith.constant 0 : index
    %320 = vector.load %arg8[%c0_301, %c6_302, %c0_303, %c0_304] : memref<1x8x8x128xf32, #tpu.memory_space<vmem>>, vector<1x1x8x128xf32>
    %321 = vector.shape_cast %320 : vector<1x1x8x128xf32> to vector<8x128xf32>
    %322 = vector.shape_cast %319 : vector<8x128xf32> to vector<1x1x8x128xf32>
    tpu.vector_store %arg8[%c0_301, %c6_302, %c0_303, %c0_304], %322 {strides = array<i32>} : memref<1x8x8x128xf32, #tpu.memory_space<vmem>>, vector<1x1x8x128xf32>,
    %cst_305 = arith.constant 0.000000e+00 : f32
    %323 = vector.broadcast %cst_305 : f32 to vector<8x128xf32>
    %c13_306 = arith.constant 13 : index
    %c0_307 = arith.constant 0 : index
    %c0_308 = arith.constant 0 : index
    %324 = vector.load %arg11[%c13_306, %c0_307, %c0_308] : memref<16x8x128xf32, #tpu.memory_space<vmem>>, vector<1x8x128xf32>
    %325 = vector.shape_cast %324 : vector<1x8x128xf32> to vector<8x128xf32>
    %cst_309 = arith.constant 2.500000e-01 : f32
    %326 = vector.broadcast %cst_309 : f32 to vector<8x128xf32>
    %327 = arith.mulf %326, %325 : vector<8x128xf32>
    %328 = arith.addf %323, %327 : vector<8x128xf32>
    %c14_310 = arith.constant 14 : index
    %c0_311 = arith.constant 0 : index
    %c0_312 = arith.constant 0 : index
    %329 = vector.load %arg11[%c14_310, %c0_311, %c0_312] : memref<16x8x128xf32, #tpu.memory_space<vmem>>, vector<1x8x128xf32>
    %330 = vector.shape_cast %329 : vector<1x8x128xf32> to vector<8x128xf32>
    %cst_313 = arith.constant 5.000000e-01 : f32
    %331 = vector.broadcast %cst_313 : f32 to vector<8x128xf32>
    %332 = arith.mulf %331, %330 : vector<8x128xf32>
    %333 = arith.addf %328, %332 : vector<8x128xf32>
    %c15_314 = arith.constant 15 : index
    %c0_315 = arith.constant 0 : index
    %c0_316 = arith.constant 0 : index
    %334 = vector.load %arg11[%c15_314, %c0_315, %c0_316] : memref<16x8x128xf32, #tpu.memory_space<vmem>>, vector<1x8x128xf32>
    %335 = vector.shape_cast %334 : vector<1x8x128xf32> to vector<8x128xf32>
    %cst_317 = arith.constant 2.500000e-01 : f32
    %336 = vector.broadcast %cst_317 : f32 to vector<8x128xf32>
    %337 = arith.mulf %336, %335 : vector<8x128xf32>
    %338 = arith.addf %333, %337 : vector<8x128xf32>
    %c0_318 = arith.constant 0 : index
    %c7_319 = arith.constant 7 : index
    %c0_320 = arith.constant 0 : index
    %c0_321 = arith.constant 0 : index
    %339 = vector.load %arg8[%c0_318, %c7_319, %c0_320, %c0_321] : memref<1x8x8x128xf32, #tpu.memory_space<vmem>>, vector<1x1x8x128xf32>
    %340 = vector.shape_cast %339 : vector<1x1x8x128xf32> to vector<8x128xf32>
    %341 = vector.shape_cast %338 : vector<8x128xf32> to vector<1x1x8x128xf32>
    tpu.vector_store %arg8[%c0_318, %c7_319, %c0_320, %c0_321], %341 {strides = array<i32>} : memref<1x8x8x128xf32, #tpu.memory_space<vmem>>, vector<1x1x8x128xf32>,
    return
  }
  func.func @transform_0(%arg0: i32) -> (i32, i32, i32, i32) {
    %c0_i32 = arith.constant 0 : i32
    %c0_i32_0 = arith.constant 0 : i32
    %c0_i32_1 = arith.constant 0 : i32
    %c0_i32_2 = arith.constant 0 : i32
    return %arg0, %c0_i32, %c0_i32_0, %c0_i32_1 : i32, i32, i32, i32
  }
  func.func @transform_1(%arg0: i32) -> (i32, i32) {
    %c0_i32 = arith.constant 0 : i32
    %c0_i32_0 = arith.constant 0 : i32
    %c0_i32_1 = arith.constant 0 : i32
    return %c0_i32, %c0_i32_0 : i32, i32
  }
  func.func @transform_2(%arg0: i32) -> (i32, i32, i32) {
    %c0_i32 = arith.constant 0 : i32
    %c0_i32_0 = arith.constant 0 : i32
    %c0_i32_1 = arith.constant 0 : i32
    %c0_i32_2 = arith.constant 0 : i32
    return %c0_i32, %c0_i32_0, %c0_i32_1 : i32, i32, i32
  }
  func.func @transform_3(%arg0: i32) -> (i32, i32) {
    %c0_i32 = arith.constant 0 : i32
    %c0_i32_0 = arith.constant 0 : i32
    %c0_i32_1 = arith.constant 0 : i32
    return %c0_i32, %c0_i32_0 : i32, i32
  }
  func.func @transform_4(%arg0: i32) -> (i32, i32) {
    %c0_i32 = arith.constant 0 : i32
    %c0_i32_0 = arith.constant 0 : i32
    %c0_i32_1 = arith.constant 0 : i32
    return %c0_i32, %c0_i32_0 : i32, i32
  }
  func.func @transform_5(%arg0: i32) -> i32 {
    %c0_i32 = arith.constant 0 : i32
    %c0_i32_0 = arith.constant 0 : i32
    return %c0_i32 : i32
  }
  func.func @transform_6(%arg0: i32) -> (i32, i32) {
    %c0_i32 = arith.constant 0 : i32
    %c0_i32_0 = arith.constant 0 : i32
    %c0_i32_1 = arith.constant 0 : i32
    return %c0_i32, %c0_i32_0 : i32, i32
  }
  func.func @transform_7(%arg0: i32) -> (i32, i32, i32, i32) {
    %c0_i32 = arith.constant 0 : i32
    %c0_i32_0 = arith.constant 0 : i32
    %c0_i32_1 = arith.constant 0 : i32
    %c0_i32_2 = arith.constant 0 : i32
    return %arg0, %c0_i32, %c0_i32_0, %c0_i32_1 : i32, i32, i32, i32
  }
}

</mosaic_0001>

<llo_original>
// kernel: residual_downsample_forward.1
$region0: #{residual_downsample_forward.1}
  #allocation0 [shape = 'u32[]', space=smem, size = 0x4, offset = 0x4, fixed_abs, tag = 'smem constant byte address 0x4 - core index']
  #allocation1 [shape = 'u32[144,128]{1,0:T(1,128)}', space=vmem, size = 0x12000, scoped, tag = 'internal scratch']
  #allocation2 [shape = 'f32[18,18,128]{2,1,0:T(8,128)}', space=vmem, size = 0x36000, scoped, tag = 'scratch operand']
  #allocation3 [shape = 'f32[16,16,128]{2,1,0:T(8,128)}', space=vmem, size = 0x20000, scoped, tag = 'scratch operand']
  #allocation4 [shape = 'f32[16,8,128]{2,1,0:T(8,128)}', space=vmem, size = 0x10000, scoped, tag = 'scratch operand']
  %s0 = inlined_call_operand.vmem [shape: f32[2,16,16,4], index: 0, kind: input, shape index: {}]
  %s1 = inlined_call_operand.vmem [shape: bf16[4,128], index: 1, kind: input, shape index: {}]
  %s2 = inlined_call_operand.vmem [shape: bf16[9,128,128], index: 2, kind: input, shape index: {}]
  %s3 = inlined_call_operand.vmem [shape: bf16[128,128], index: 3, kind: input, shape index: {}]
  %s4 = inlined_call_operand.vmem [shape: bf16[4,128], index: 4, kind: input, shape index: {}]
  %s5 = inlined_call_operand.vmem [shape: f32[2], index: 5, kind: input, shape index: {}]
  %s6 = inlined_call_operand.vmem [shape: f32[8,16], index: 6, kind: input, shape index: {}]
  %s7 = inlined_call_operand.vmem [shape: f32[2,8,8,128], index: 7, kind: output, shape index: {}]
  %s8 = sld [smem:[#allocation0]]
  $region65: #{residual_downsample_forward.1} parent=0
    _
  %s10 = ssub.s32 1, %s8
  %s11 = scalar_select 0, %s10, %s8
  $region1: #{residual_downsample_forward.1} parent=0
    #allocation5 [shape = 'u8[512]{0}', space=smem, size = 0x200, scoped, tag = 'input window, operand 5, single buffered']
    #allocation6 [shape = 's32[2]{0}', space=sflag, size = 0x8, scoped, tag = 'scoped memory for residual_downsample_forward.1']
    %12 = vsyncpa [#allocation6], 0
    loop: start=0, step=1, limit=4
    $region2: #{residual_downsample_forward.1} parent=1 // loop_pre_header
      _
    $region3: #{residual_downsample_forward.1} parent=1 // loop_header
      %s14 = sphi 0, %s18
      %p15 = scmp.ge.s32.totalorder %s14, 4
      %s24 = sphi 0, %s26
      %s27 = sphi 0, %s24
      %s28 = sphi 0, %s27
      %s44 = sphi 0, %s28
      %s48 = sphi 0, %s48
      %s50 = sphi 0, %s48
      %s51 = sphi 0, %s50
      %s65 = sphi 0, %s51
      %s69 = sphi 0, %s69
      %s71 = sphi 0, %s69
      %s72 = sphi 0, %s71
      %s86 = sphi 0, %s72
      %s90 = sphi 0, %s90
      %s92 = sphi 0, %s90
      %s93 = sphi 0, %s92
      %s107 = sphi 0, %s93
      %s111 = sphi 0, %s111
      %s113 = sphi 0, %s111
      %s114 = sphi 0, %s113
      %s128 = sphi 0, %s114
      %s132 = sphi 0, %s132
      %s134 = sphi 0, %s132
      %s135 = sphi 0, %s134
      %s149 = sphi 0, %s135
      %s153 = sphi 0, %s153
      %s155 = sphi 0, %s153
      %s156 = sphi 0, %s155
      %s170 = sphi 0, %s156
      %s176 = sphi 0, %s178
      %s179 = sphi 0, %s176
      %s180 = sphi 0, %s179
      %s196 = sphi 0, %s180
    $region4: #{residual_downsample_forward.1} parent=1 // loop_header_branch
      %17 = sbr.rel (%p15) target = $region8
    $region5: #{residual_downsample_forward.1} parent=1 // loop_body
      %s19 = ssub.s32 %s14, 1
      %s20 = ssub.s32 %s14, 2
      %s21 = sadd.s32 %s14, 1
      %s22 = ssub.s32 %s14, %s21
      %p23 = scmp.eq.s32.totalorder %s22, 0
      %s25 = sadd.s32 %s24, 1
      %s26 = scalar_select %p23, %s24, %s25
      %p29 = pneg %p23
      %p30 = scmp.eq.s32.totalorder %s14, 1
      %p31 = por %p29, %p30
      %p32 = scmp.ne.s32.totalorder %s24, %s27
      %p33 = scmp.eq.s32.totalorder %s14, 0
      %p34 = por %p32, %p33
      %p35 = scmp.ne.s32.totalorder %s24, %s27
      %p36 = scmp.eq.s32.totalorder %s19, 1
      %p37 = por %p35, %p36
      %p38 = scmp.ne.s32.totalorder %s27, %s28
      %p39 = scmp.eq.s32.totalorder %s19, 0
      %p40 = por %p38, %p39
      %p41 = scmp.ne.s32.totalorder %s27, %s28
      %p42 = scmp.eq.s32.totalorder %s20, 1
      %p43 = por %p41, %p42
      %p45 = scmp.ne.s32.totalorder %s28, %s44
      %p46 = scmp.eq.s32.totalorder %s20, 0
      %p47 = por %p45, %p46
      %s49 = sadd.s32 %s48, 1
      %p52 = scmp.eq.s32.totalorder %s14, 1
      %p53 = scmp.ne.s32.totalorder %s48, %s50
      %p54 = scmp.eq.s32.totalorder %s14, 0
      %p55 = por %p53, %p54
      %p56 = scmp.ne.s32.totalorder %s48, %s50
      %p57 = scmp.eq.s32.totalorder %s19, 1
      %p58 = por %p56, %p57
      %p59 = scmp.ne.s32.totalorder %s50, %s51
      %p60 = scmp.eq.s32.totalorder %s19, 0
      %p61 = por %p59, %p60
      %p62 = scmp.ne.s32.totalorder %s50, %s51
      %p63 = scmp.eq.s32.totalorder %s20, 1
      %p64 = por %p62, %p63
      %p66 = scmp.ne.s32.totalorder %s51, %s65
      %p67 = scmp.eq.s32.totalorder %s20, 0
      %p68 = por %p66, %p67
      %s70 = sadd.s32 %s69, 1
      %p73 = scmp.eq.s32.totalorder %s14, 1
      %p74 = scmp.ne.s32.totalorder %s69, %s71
      %p75 = scmp.eq.s32.totalorder %s14, 0
      %p76 = por %p74, %p75
      %p77 = scmp.ne.s32.totalorder %s69, %s71
      %p78 = scmp.eq.s32.totalorder %s19, 1
      %p79 = por %p77, %p78
      %p80 = scmp.ne.s32.totalorder %s71, %s72
      %p81 = scmp.eq.s32.totalorder %s19, 0
      %p82 = por %p80, %p81
      %p83 = scmp.ne.s32.totalorder %s71, %s72
      %p84 = scmp.eq.s32.totalorder %s20, 1
      %p85 = por %p83, %p84
      %p87 = scmp.ne.s32.totalorder %s72, %s86
      %p88 = scmp.eq.s32.totalorder %s20, 0
      %p89 = por %p87, %p88
      %s91 = sadd.s32 %s90, 1
      %p94 = scmp.eq.s32.totalorder %s14, 1
      %p95 = scmp.ne.s32.totalorder %s90, %s92
      %p96 = scmp.eq.s32.totalorder %s14, 0
      %p97 = por %p95, %p96
      %p98 = scmp.ne.s32.totalorder %s90, %s92
      %p99 = scmp.eq.s32.totalorder %s19, 1
      %p100 = por %p98, %p99
      %p101 = scmp.ne.s32.totalorder %s92, %s93
      %p102 = scmp.eq.s32.totalorder %s19, 0
      %p103 = por %p101, %p102
      %p104 = scmp.ne.s32.totalorder %s92, %s93
      %p105 = scmp.eq.s32.totalorder %s20, 1
      %p106 = por %p104, %p105
      %p108 = scmp.ne.s32.totalorder %s93, %s107
      %p109 = scmp.eq.s32.totalorder %s20, 0
      %p110 = por %p108, %p109
      %s112 = sadd.s32 %s111, 1
      %p115 = scmp.eq.s32.totalorder %s14, 1
      %p116 = scmp.ne.s32.totalorder %s111, %s113
      %p117 = scmp.eq.s32.totalorder %s14, 0
      %p118 = por %p116, %p117
      %p119 = scmp.ne.s32.totalorder %s111, %s113
      %p120 = scmp.eq.s32.totalorder %s19, 1
      %p121 = por %p119, %p120
      %p122 = scmp.ne.s32.totalorder %s113, %s114
      %p123 = scmp.eq.s32.totalorder %s19, 0
      %p124 = por %p122, %p123
      %p125 = scmp.ne.s32.totalorder %s113, %s114
      %p126 = scmp.eq.s32.totalorder %s20, 1
      %p127 = por %p125, %p126
      %p129 = scmp.ne.s32.totalorder %s114, %s128
      %p130 = scmp.eq.s32.totalorder %s20, 0
      %p131 = por %p129, %p130
      %s133 = sadd.s32 %s132, 1
      %p136 = scmp.eq.s32.totalorder %s14, 1
      %p137 = scmp.ne.s32.totalorder %s132, %s134
      %p138 = scmp.eq.s32.totalorder %s14, 0
      %p139 = por %p137, %p138
      %p140 = scmp.ne.s32.totalorder %s132, %s134
      %p141 = scmp.eq.s32.totalorder %s19, 1
      %p142 = por %p140, %p141
      %p143 = scmp.ne.s32.totalorder %s134, %s135
      %p144 = scmp.eq.s32.totalorder %s19, 0
      %p145 = por %p143, %p144
      %p146 = scmp.ne.s32.totalorder %s134, %s135
      %p147 = scmp.eq.s32.totalorder %s20, 1
      %p148 = por %p146, %p147
      %p150 = scmp.ne.s32.totalorder %s135, %s149
      %p151 = scmp.eq.s32.totalorder %s20, 0
      %p152 = por %p150, %p151
      %s154 = sadd.s32 %s153, 1
      %p157 = scmp.eq.s32.totalorder %s14, 1
      %p158 = scmp.ne.s32.totalorder %s153, %s155
      %p159 = scmp.eq.s32.totalorder %s14, 0
      %p160 = por %p158, %p159
      %p161 = scmp.ne.s32.totalorder %s153, %s155
      %p162 = scmp.eq.s32.totalorder %s19, 1
      %p163 = por %p161, %p162
      %p164 = scmp.ne.s32.totalorder %s155, %s156
      %p165 = scmp.eq.s32.totalorder %s19, 0
      %p166 = por %p164, %p165
      %p167 = scmp.ne.s32.totalorder %s155, %s156
      %p168 = scmp.eq.s32.totalorder %s20, 1
      %p169 = por %p167, %p168
      %p171 = scmp.ne.s32.totalorder %s156, %s170
      %p172 = scmp.eq.s32.totalorder %s20, 0
      %p173 = por %p171, %p172
      %s174 = ssub.s32 %s14, %s21
      %p175 = scmp.eq.s32.totalorder %s174, 0
      %s177 = sadd.s32 %s176, 1
      %s178 = scalar_select %p175, %s176, %s177
      %p181 = pneg %p175
      %p182 = scmp.eq.s32.totalorder %s14, 1
      %p183 = por %p181, %p182
      %p184 = scmp.ne.s32.totalorder %s176, %s179
      %p185 = scmp.eq.s32.totalorder %s14, 0
      %p186 = por %p184, %p185
      %p187 = scmp.ne.s32.totalorder %s176, %s179
      %p188 = scmp.eq.s32.totalorder %s19, 1
      %p189 = por %p187, %p188
      %p190 = scmp.ne.s32.totalorder %s179, %s180
      %p191 = scmp.eq.s32.totalorder %s19, 0
      %p192 = por %p190, %p191
      %p193 = scmp.ne.s32.totalorder %s179, %s180
      %p194 = scmp.eq.s32.totalorder %s20, 1
      %p195 = por %p193, %p194
      %p197 = scmp.ne.s32.totalorder %s180, %s196
      %p198 = scmp.eq.s32.totalorder %s20, 0
      %p199 = por %p197, %p198
      %p200 = scmp.le.s32.totalorder 1, %s14
      %p201 = scmp.lt.s32.totalorder %s14, 3
      %p202 = pnand %p200, %p201
      %p203 = pneg %p202
      // Predicated region
      $region9: #{residual_downsample_forward.1} parent=5 // pred_check
        _
      $region10: #{residual_downsample_forward.1} parent=5 // pred_check_branch
        %205 = sbr.rel (%p202) target = $region12
      $region11: #{residual_downsample_forward.1} parent=5 // pred_region
        %s206 = ssub.s32 %s14, 1
        // Predicated region
        $region13: #{residual_downsample_forward.1} parent=11 // pred_check
          %p207 = pneg %p61
        $region14: #{residual_downsample_forward.1} parent=11 // pred_check_branch
          %209 = sbr.rel (%p207) target = $region16
        $region15: #{residual_downsample_forward.1} parent=11 // pred_region
          _
        $region16: #{residual_downsample_forward.1} parent=11 // pred_fallthru
          _
        // Predicated region
        $region17: #{residual_downsample_forward.1} parent=11 // pred_check
          %p210 = pneg %p82
        $region18: #{residual_downsample_forward.1} parent=11 // pred_check_branch
          %212 = sbr.rel (%p210) target = $region20
        $region19: #{residual_downsample_forward.1} parent=11 // pred_region
          _
        $region20: #{residual_downsample_forward.1} parent=11 // pred_fallthru
          _
        // Predicated region
        $region21: #{residual_downsample_forward.1} parent=11 // pred_check
          %p213 = pneg %p103
        $region22: #{residual_downsample_forward.1} parent=11 // pred_check_branch
          %215 = sbr.rel (%p213) target = $region24
        $region23: #{residual_downsample_forward.1} parent=11 // pred_region
          _
        $region24: #{residual_downsample_forward.1} parent=11 // pred_fallthru
          _
        // Predicated region
        $region25: #{residual_downsample_forward.1} parent=11 // pred_check
          %p216 = pneg %p124
        $region26: #{residual_downsample_forward.1} parent=11 // pred_check_branch
          %218 = sbr.rel (%p216) target = $region28
        $region27: #{residual_downsample_forward.1} parent=11 // pred_region
          _
        $region28: #{residual_downsample_forward.1} parent=11 // pred_fallthru
          _
        // Predicated region
        $region29: #{residual_downsample_forward.1} parent=11 // pred_check
          %p219 = pneg %p145
        $region30: #{residual_downsample_forward.1} parent=11 // pred_check_branch
          %221 = sbr.rel (%p219) target = $region32
        $region31: #{residual_downsample_forward.1} parent=11 // pred_region
          %s223 = ssub.s32 16, 16
          %224 = vsyncadd [#allocation6], %s223
          %s226 = sshll.u32 %s5, 4
          %s227 = int_to_ptr.vmem [resolvable:$true] %s226
          %229 = dma.vmem_to_smem %s227, 16, [#allocation5], [#allocation6]
        $region32: #{residual_downsample_forward.1} parent=11 // pred_fallthru
          _
        // Predicated region
        $region33: #{residual_downsample_forward.1} parent=11 // pred_check
          %p230 = pneg %p166
        $region34: #{residual_downsample_forward.1} parent=11 // pred_check_branch
          %232 = sbr.rel (%p230) target = $region36
        $region35: #{residual_downsample_forward.1} parent=11 // pred_region
          _
        $region36: #{residual_downsample_forward.1} parent=11 // pred_fallthru
          _
      $region12: #{residual_downsample_forward.1} parent=5 // pred_fallthru
        _
      %p233 = scmp.lt.s32.totalorder %s14, 2
      // Predicated region
      $region37: #{residual_downsample_forward.1} parent=5 // pred_check
        %p234 = pneg %p233
      $region38: #{residual_downsample_forward.1} parent=5 // pred_check_branch
        %236 = sbr.rel (%p234) target = $region40
      $region39: #{residual_downsample_forward.1} parent=5 // pred_region
        // Predicated region
        $region41: #{residual_downsample_forward.1} parent=39 // pred_check
          %p237 = pneg %p34
        $region42: #{residual_downsample_forward.1} parent=39 // pred_check_branch
          %239 = sbr.rel (%p237) target = $region44
        $region43: #{residual_downsample_forward.1} parent=39 // pred_region
          %p240 = scmp.lt.s32.totalorder %s14, 1
          %s241 = scalar_select %p240, %s14, 1
          %s242 = smul.addr %s241, 32
          %s243 = smul.addr %s242, 8
          %s244 = scalar_lea.vmem %s0, %s243
        $region44: #{residual_downsample_forward.1} parent=39 // pred_fallthru
          _
      $region40: #{residual_downsample_forward.1} parent=5 // pred_fallthru
        _
      %p245 = scmp.le.s32.totalorder 1, %s14
      %p246 = scmp.lt.s32.totalorder %s14, 3
      %p247 = pnand %p245, %p246
      %p248 = pneg %p247
      // Predicated region
      $region45: #{residual_downsample_forward.1} parent=5 // pred_check
        _
      $region46: #{residual_downsample_forward.1} parent=5 // pred_check_branch
        %250 = sbr.rel (%p247) target = $region48
      $region47: #{residual_downsample_forward.1} parent=5 // pred_region
        %s251 = ssub.s32 %s14, 1
        // Predicated region
        $region49: #{residual_downsample_forward.1} parent=47 // pred_check
          %p252 = pneg %p145
        $region50: #{residual_downsample_forward.1} parent=47 // pred_check_branch
          %254 = sbr.rel (%p252) target = $region52
        $region51: #{residual_downsample_forward.1} parent=47 // pred_region
          %255 = dma.done [#allocation6], 16
        $region52: #{residual_downsample_forward.1} parent=47 // pred_fallthru
          _
        %256 = sfence
        %p257 = scmp.lt.s32.totalorder %s19, 1
        %s258 = scalar_select %p257, %s19, 1
        %s259 = smul.addr %s258, 32
        %s260 = smul.addr %s259, 8
        %s261 = scalar_lea.vmem %s0, %s260
        %p262 = pneg %p40
        %p263 = pneg %p37
        %p264 = pneg %p61
        %p265 = pneg %p58
        %p266 = pneg %p82
        %p267 = pneg %p79
        %p268 = pneg %p103
        %p269 = pneg %p100
        %p270 = pneg %p124
        %p271 = pneg %p121
        %p272 = pneg %p145
        %p273 = pneg %p142
        %p274 = pneg %p166
        %p275 = pneg %p163
        %p276 = pneg %p192
        %p277 = pneg %p189
        %p278 = scmp.lt.s32.totalorder %s19, 1
        %s279 = scalar_select %p278, %s19, 1
        %s280 = smul.addr %s279, 8
        %s281 = smul.addr %s280, 8
        %s282 = scalar_lea.vmem %s7, %s281
        %p283 = scmp.lt.s32.totalorder %s19, 1
        %s284 = scalar_select %p283, %s19, 1
        %s285 = smul.addr %s284, 32
        %s286 = smul.addr %s285, 8
        %s287 = scalar_lea.vmem %s0, %s286
        %p288 = scmp.lt.s32.totalorder %s19, 1
        %s289 = scalar_select %p288, %s19, 1
        %s290 = smul.addr %s289, 8
        %s291 = smul.addr %s290, 8
        %s292 = scalar_lea.vmem %s7, %s291
        %s294 = sld [smem:[#allocation5]]
        %s295 = sld [smem:[#allocation5 + $0x1]]
        %v296 = vld [vmem:[%s287] sm:$0xff]
        %v297 = vld [vmem:[%s287 + $0x8] sm:$0xff]
        %v298 = vld [vmem:[%s287 + $0x10] sm:$0xff]
        %v299 = vld [vmem:[%s287 + $0x18] sm:$0xff]
        %v300 = vld [vmem:[%s287 + $0x20] sm:$0xff]
        %v301 = vld [vmem:[%s287 + $0x28] sm:$0xff]
        %v302 = vld [vmem:[%s287 + $0x30] sm:$0xff]
        %v303 = vld [vmem:[%s287 + $0x38] sm:$0xff]
        %v304 = vld [vmem:[%s287 + $0x40] sm:$0xff]
        %v305 = vld [vmem:[%s287 + $0x48] sm:$0xff]
        %v306 = vld [vmem:[%s287 + $0x50] sm:$0xff]
        %v307 = vld [vmem:[%s287 + $0x58] sm:$0xff]
        %v308 = vld [vmem:[%s287 + $0x60] sm:$0xff]
        %v309 = vld [vmem:[%s287 + $0x68] sm:$0xff]
        %v310 = vld [vmem:[%s287 + $0x70] sm:$0xff]
        %v311 = vld [vmem:[%s287 + $0x78] sm:$0xff]
        %v312 = vld [vmem:[%s287 + $0x80] sm:$0xff]
        %v313 = vld [vmem:[%s287 + $0x88] sm:$0xff]
        %v314 = vld [vmem:[%s287 + $0x90] sm:$0xff]
        %v315 = vld [vmem:[%s287 + $0x98] sm:$0xff]
        %v316 = vld [vmem:[%s287 + $0xa0] sm:$0xff]
        %v317 = vld [vmem:[%s287 + $0xa8] sm:$0xff]
        %v318 = vld [vmem:[%s287 + $0xb0] sm:$0xff]
        %v319 = vld [vmem:[%s287 + $0xb8] sm:$0xff]
        %v320 = vld [vmem:[%s287 + $0xc0] sm:$0xff]
        %v321 = vld [vmem:[%s287 + $0xc8] sm:$0xff]
        %v322 = vld [vmem:[%s287 + $0xd0] sm:$0xff]
        %v323 = vld [vmem:[%s287 + $0xd8] sm:$0xff]
        %v324 = vld [vmem:[%s287 + $0xe0] sm:$0xff]
        %v325 = vld [vmem:[%s287 + $0xe8] sm:$0xff]
        %v326 = vld [vmem:[%s287 + $0xf0] sm:$0xff]
        %v327 = vld [vmem:[%s287 + $0xf8] sm:$0xff]
        %v328 = vpack.c.bf16 %v297, %v296
        %v329 = vpack.c.bf16 %v299, %v298
        %v330 = vpack.c.bf16 %v301, %v300
        %v331 = vpack.c.bf16 %v303, %v302
        %v332 = vpack.c.bf16 %v305, %v304
        %v333 = vpack.c.bf16 %v307, %v306
        %v334 = vpack.c.bf16 %v309, %v308
        %v335 = vpack.c.bf16 %v311, %v310
        %v336 = vpack.c.bf16 %v313, %v312
        %v337 = vpack.c.bf16 %v315, %v314
        %v338 = vpack.c.bf16 %v317, %v316
        %v339 = vpack.c.bf16 %v319, %v318
        %v340 = vpack.c.bf16 %v321, %v320
        %v341 = vpack.c.bf16 %v323, %v322
        %v342 = vpack.c.bf16 %v325, %v324
        %v343 = vpack.c.bf16 %v327, %v326
        %v344 = vld [vmem:[%s1] sm:$0x3]
        %vm345 = vcmask 31744
        %v347 = vsel %vm345, %v328, 0
        %v350 = vsel %vm345, %v329, 0
        %v353 = vsel %vm345, %v330, 0
        %v356 = vsel %vm345, %v331, 0
        %v359 = vsel %vm345, %v332, 0
        %v362 = vsel %vm345, %v333, 0
        %v365 = vsel %vm345, %v334, 0
        %v368 = vsel %vm345, %v335, 0
        %v371 = vsel %vm345, %v336, 0
        %v374 = vsel %vm345, %v337, 0
        %v377 = vsel %vm345, %v338, 0
        %v380 = vsel %vm345, %v339, 0
        %v383 = vsel %vm345, %v340, 0
        %v386 = vsel %vm345, %v341, 0
        %v389 = vsel %vm345, %v342, 0
        %v392 = vsel %vm345, %v343, 0
        %vm394 = vcmask 1041408
        %v396 = vsel %vm394, %v344, 0
        %398 = vmatprep.subr.bf16.mxu0 0
        %399 = vmatpush1.bf16.msra.mxu0 %v396
        %400 = vmatprep.subr.bf16.mxu0 0
        %401 = vmatpush1.bf16.msra.mxu0 0
        %402 = vmatprep.subr.bf16.mxu0 0
        %403 = vmatpush1.bf16.msra.mxu0 0
        %404 = vmatprep.subr.bf16.mxu0 0
        %405 = vmatpush1.bf16.msra.mxu0 0
        %406 = vmatprep.subr.bf16.mxu0 0
        %407 = vmatpush1.bf16.msra.mxu0 0
        %408 = vmatprep.subr.bf16.mxu0 0
        %409 = vmatpush1.bf16.msra.mxu0 0
        %410 = vmatprep.subr.bf16.mxu0 0
        %411 = vmatpush1.bf16.msra.mxu0 0
        %412 = vmatprep.subr.bf16.mxu0 0
        %413 = vmatpush1.bf16.msra.mxu0 0
        %414 = vmatprep.subr.bf16.mxu0 0
        %415 = vmatpush1.bf16.msra.mxu0 0
        %416 = vmatprep.subr.bf16.mxu0 0
        %417 = vmatpush1.bf16.msra.mxu0 0
        %418 = vmatprep.subr.bf16.mxu0 0
        %419 = vmatpush1.bf16.msra.mxu0 0
        %420 = vmatprep.subr.bf16.mxu0 0
        %421 = vmatpush1.bf16.msra.mxu0 0
        %422 = vmatprep.subr.bf16.mxu0 0
        %423 = vmatpush1.bf16.msra.mxu0 0
        %424 = vmatprep.subr.bf16.mxu0 0
        %425 = vmatpush1.bf16.msra.mxu0 0
        %426 = vmatprep.subr.bf16.mxu0 0
        %427 = vmatpush1.bf16.msra.mxu0 0
        %428 = vmatprep.subr.bf16.mxu0 0
        %429 = vmatpush1.bf16.msra.mxu0 0
        %430 = vmatprep.mubr.bf16.mxu0 0
        %431 = vmatmul.mubr.bf16.gmra.mrb[0].mxu0 %v347
        %v432 = vpop.f32.mrb[0].mxu0
        %v433 = vadd.f32 0.0, %v432
        %v434 = vpop.f32.mrb[0].mxu0
        %v435 = vpop.f32.mrb[0].mxu0
        %v436 = vadd.f32 0.0, %v435
        %v437 = vpop.f32.mrb[0].mxu0
        %438 = vmatprep.mubr.bf16.mxu0 0
        %439 = vmatmul.mubr.bf16.gmra.mrb[0].mxu0 %v350
        %v440 = vpop.f32.mrb[0].mxu0
        %v441 = vadd.f32 0.0, %v440
        %v442 = vpop.f32.mrb[0].mxu0
        %v443 = vpop.f32.mrb[0].mxu0
        %v444 = vadd.f32 0.0, %v443
        %v445 = vpop.f32.mrb[0].mxu0
        %446 = vmatprep.mubr.bf16.mxu0 0
        %447 = vmatmul.mubr.bf16.gmra.mrb[0].mxu0 %v353
        %v448 = vpop.f32.mrb[0].mxu0
        %v449 = vadd.f32 0.0, %v448
        %v450 = vpop.f32.mrb[0].mxu0
        %v451 = vpop.f32.mrb[0].mxu0
        %v452 = vadd.f32 0.0, %v451
        %v453 = vpop.f32.mrb[0].mxu0
        %454 = vmatprep.mubr.bf16.mxu0 0
        %455 = vmatmul.mubr.bf16.gmra.mrb[0].mxu0 %v356
        %v456 = vpop.f32.mrb[0].mxu0
        %v457 = vadd.f32 0.0, %v456
        %v458 = vpop.f32.mrb[0].mxu0
        %v459 = vpop.f32.mrb[0].mxu0
        %v460 = vadd.f32 0.0, %v459
        %v461 = vpop.f32.mrb[0].mxu0
        %462 = vmatprep.mubr.bf16.mxu0 0
        %463 = vmatmul.mubr.bf16.gmra.mrb[0].mxu0 %v359
        %v464 = vpop.f32.mrb[0].mxu0
        %v465 = vadd.f32 0.0, %v464
        %v466 = vpop.f32.mrb[0].mxu0
        %v467 = vpop.f32.mrb[0].mxu0
        %v468 = vadd.f32 0.0, %v467
        %v469 = vpop.f32.mrb[0].mxu0
        %470 = vmatprep.mubr.bf16.mxu0 0
        %471 = vmatmul.mubr.bf16.gmra.mrb[0].mxu0 %v362
        %v472 = vpop.f32.mrb[0].mxu0
        %v473 = vadd.f32 0.0, %v472
        %v474 = vpop.f32.mrb[0].mxu0
        %v475 = vpop.f32.mrb[0].mxu0
        %v476 = vadd.f32 0.0, %v475
        %v477 = vpop.f32.mrb[0].mxu0
        %478 = vmatprep.mubr.bf16.mxu0 0
        %479 = vmatmul.mubr.bf16.gmra.mrb[0].mxu0 %v365
        %v480 = vpop.f32.mrb[0].mxu0
        %v481 = vadd.f32 0.0, %v480
        %v482 = vpop.f32.mrb[0].mxu0
        %v483 = vpop.f32.mrb[0].mxu0
        %v484 = vadd.f32 0.0, %v483
        %v485 = vpop.f32.mrb[0].mxu0
        %486 = vmatprep.mubr.bf16.mxu0 0
        %487 = vmatmul.mubr.bf16.gmra.mrb[0].mxu0 %v368
        %v488 = vpop.f32.mrb[0].mxu0
        %v489 = vadd.f32 0.0, %v488
        %v490 = vpop.f32.mrb[0].mxu0
        %v491 = vpop.f32.mrb[0].mxu0
        %v492 = vadd.f32 0.0, %v491
        %v493 = vpop.f32.mrb[0].mxu0
        %494 = vmatprep.mubr.bf16.mxu0 0
        %495 = vmatmul.mubr.bf16.gmra.mrb[0].mxu0 %v371
        %v496 = vpop.f32.mrb[0].mxu0
        %v497 = vadd.f32 0.0, %v496
        %v498 = vpop.f32.mrb[0].mxu0
        %v499 = vpop.f32.mrb[0].mxu0
        %v500 = vadd.f32 0.0, %v499
        %v501 = vpop.f32.mrb[0].mxu0
        %502 = vmatprep.mubr.bf16.mxu0 0
        %503 = vmatmul.mubr.bf16.gmra.mrb[0].mxu0 %v374
        %v504 = vpop.f32.mrb[0].mxu0
        %v505 = vadd.f32 0.0, %v504
        %v506 = vpop.f32.mrb[0].mxu0
        %v507 = vpop.f32.mrb[0].mxu0
        %v508 = vadd.f32 0.0, %v507
        %v509 = vpop.f32.mrb[0].mxu0
        %510 = vmatprep.mubr.bf16.mxu0 0
        %511 = vmatmul.mubr.bf16.gmra.mrb[0].mxu0 %v377
        %v512 = vpop.f32.mrb[0].mxu0
        %v513 = vadd.f32 0.0, %v512
        %v514 = vpop.f32.mrb[0].mxu0
        %v515 = vpop.f32.mrb[0].mxu0
        %v516 = vadd.f32 0.0, %v515
        %v517 = vpop.f32.mrb[0].mxu0
        %518 = vmatprep.mubr.bf16.mxu0 0
        %519 = vmatmul.mubr.bf16.gmra.mrb[0].mxu0 %v380
        %v520 = vpop.f32.mrb[0].mxu0
        %v521 = vadd.f32 0.0, %v520
        %v522 = vpop.f32.mrb[0].mxu0
        %v523 = vpop.f32.mrb[0].mxu0
        %v524 = vadd.f32 0.0, %v523
        %v525 = vpop.f32.mrb[0].mxu0
        %526 = vmatprep.mubr.bf16.mxu0 0
        %527 = vmatmul.mubr.bf16.gmra.mrb[0].mxu0 %v383
        %v528 = vpop.f32.mrb[0].mxu0
        %v529 = vadd.f32 0.0, %v528
        %v530 = vpop.f32.mrb[0].mxu0
        %v531 = vpop.f32.mrb[0].mxu0
        %v532 = vadd.f32 0.0, %v531
        %v533 = vpop.f32.mrb[0].mxu0
        %534 = vmatprep.mubr.bf16.mxu0 0
        %535 = vmatmul.mubr.bf16.gmra.mrb[0].mxu0 %v386
        %v536 = vpop.f32.mrb[0].mxu0
        %v537 = vadd.f32 0.0, %v536
        %v538 = vpop.f32.mrb[0].mxu0
        %v539 = vpop.f32.mrb[0].mxu0
        %v540 = vadd.f32 0.0, %v539
        %v541 = vpop.f32.mrb[0].mxu0
        %542 = vmatprep.mubr.bf16.mxu0 0
        %543 = vmatmul.mubr.bf16.gmra.mrb[0].mxu0 %v389
        %v544 = vpop.f32.mrb[0].mxu0
        %v545 = vadd.f32 0.0, %v544
        %v546 = vpop.f32.mrb[0].mxu0
        %v547 = vpop.f32.mrb[0].mxu0
        %v548 = vadd.f32 0.0, %v547
        %v549 = vpop.f32.mrb[0].mxu0
        %550 = vmatprep.mubr.bf16.mxu0 0
        %551 = vmatmul.mubr.bf16.gmra.mrb[0].mxu0 %v392
        %v552 = vpop.f32.mrb[0].mxu0
        %v553 = vadd.f32 0.0, %v552
        %v554 = vpop.f32.mrb[0].mxu0
        %v555 = vpop.f32.mrb[0].mxu0
        %v556 = vadd.f32 0.0, %v555
        %v557 = vpop.f32.mrb[0].mxu0
        %558 = vdwg.mxu0
        %v559 = vmax.f32 %v433, 0.0
        %v560 = vmax.f32 %v436, 0.0
        %v561 = vmax.f32 %v441, 0.0
        %v562 = vmax.f32 %v444, 0.0
        %v563 = vmax.f32 %v449, 0.0
        %v564 = vmax.f32 %v452, 0.0
        %v565 = vmax.f32 %v457, 0.0
        %v566 = vmax.f32 %v460, 0.0
        %v567 = vmax.f32 %v465, 0.0
        %v568 = vmax.f32 %v468, 0.0
        %v569 = vmax.f32 %v473, 0.0
        %v570 = vmax.f32 %v476, 0.0
        %v571 = vmax.f32 %v481, 0.0
        %v572 = vmax.f32 %v484, 0.0
        %v573 = vmax.f32 %v489, 0.0
        %v574 = vmax.f32 %v492, 0.0
        %v575 = vmax.f32 %v497, 0.0
        %v576 = vmax.f32 %v500, 0.0
        %v577 = vmax.f32 %v505, 0.0
        %v578 = vmax.f32 %v508, 0.0
        %v579 = vmax.f32 %v513, 0.0
        %v580 = vmax.f32 %v516, 0.0
        %v581 = vmax.f32 %v521, 0.0
        %v582 = vmax.f32 %v524, 0.0
        %v583 = vmax.f32 %v529, 0.0
        %v584 = vmax.f32 %v532, 0.0
        %v585 = vmax.f32 %v537, 0.0
        %v586 = vmax.f32 %v540, 0.0
        %v587 = vmax.f32 %v545, 0.0
        %v588 = vmax.f32 %v548, 0.0
        %v589 = vmax.f32 %v553, 0.0
        %v590 = vmax.f32 %v556, 0.0
        %v591 = vmin.f32 %v433, 0.0
        %v592 = vmin.f32 %v436, 0.0
        %v593 = vmin.f32 %v441, 0.0
        %v594 = vmin.f32 %v444, 0.0
        %v595 = vmin.f32 %v449, 0.0
        %v596 = vmin.f32 %v452, 0.0
        %v597 = vmin.f32 %v457, 0.0
        %v598 = vmin.f32 %v460, 0.0
        %v599 = vmin.f32 %v465, 0.0
        %v600 = vmin.f32 %v468, 0.0
        %v601 = vmin.f32 %v473, 0.0
        %v602 = vmin.f32 %v476, 0.0
        %v603 = vmin.f32 %v481, 0.0
        %v604 = vmin.f32 %v484, 0.0
        %v605 = vmin.f32 %v489, 0.0
        %v606 = vmin.f32 %v492, 0.0
        %v607 = vmin.f32 %v497, 0.0
        %v608 = vmin.f32 %v500, 0.0
        %v609 = vmin.f32 %v505, 0.0
        %v610 = vmin.f32 %v508, 0.0
        %v611 = vmin.f32 %v513, 0.0
        %v612 = vmin.f32 %v516, 0.0
        %v613 = vmin.f32 %v521, 0.0
        %v614 = vmin.f32 %v524, 0.0
        %v615 = vmin.f32 %v529, 0.0
        %v616 = vmin.f32 %v532, 0.0
        %v617 = vmin.f32 %v537, 0.0
        %v618 = vmin.f32 %v540, 0.0
        %v619 = vmin.f32 %v545, 0.0
        %v620 = vmin.f32 %v548, 0.0
        %v621 = vmin.f32 %v553, 0.0
        %v622 = vmin.f32 %v556, 0.0
        %v623 = vstv %s294
        %v624 = vmul.f32 %v623, %v591
        %v625 = vmul.f32 %v623, %v592
        %v626 = vmul.f32 %v623, %v593
        %v627 = vmul.f32 %v623, %v594
        %v628 = vmul.f32 %v623, %v595
        %v629 = vmul.f32 %v623, %v596
        %v630 = vmul.f32 %v623, %v597
        %v631 = vmul.f32 %v623, %v598
        %v632 = vmul.f32 %v623, %v599
        %v633 = vmul.f32 %v623, %v600
        %v634 = vmul.f32 %v623, %v601
        %v635 = vmul.f32 %v623, %v602
        %v636 = vmul.f32 %v623, %v603
        %v637 = vmul.f32 %v623, %v604
        %v638 = vmul.f32 %v623, %v605
        %v639 = vmul.f32 %v623, %v606
        %v640 = vmul.f32 %v623, %v607
        %v641 = vmul.f32 %v623, %v608
        %v642 = vmul.f32 %v623, %v609
        %v643 = vmul.f32 %v623, %v610
        %v644 = vmul.f32 %v623, %v611
        %v645 = vmul.f32 %v623, %v612
        %v646 = vmul.f32 %v623, %v613
        %v647 = vmul.f32 %v623, %v614
        %v648 = vmul.f32 %v623, %v615
        %v649 = vmul.f32 %v623, %v616
        %v650 = vmul.f32 %v623, %v617
        %v651 = vmul.f32 %v623, %v618
        %v652 = vmul.f32 %v623, %v619
        %v653 = vmul.f32 %v623, %v620
        %v654 = vmul.f32 %v623, %v621
        %v655 = vmul.f32 %v623, %v622
        %v656 = vadd.f32 %v559, %v624
        %v657 = vadd.f32 %v560, %v625
        %v658 = vadd.f32 %v561, %v626
        %v659 = vadd.f32 %v562, %v627
        %v660 = vadd.f32 %v563, %v628
        %v661 = vadd.f32 %v564, %v629
        %v662 = vadd.f32 %v565, %v630
        %v663 = vadd.f32 %v566, %v631
        %v664 = vadd.f32 %v567, %v632
        %v665 = vadd.f32 %v568, %v633
        %v666 = vadd.f32 %v569, %v634
        %v667 = vadd.f32 %v570, %v635
        %v668 = vadd.f32 %v571, %v636
        %v669 = vadd.f32 %v572, %v637
        %v670 = vadd.f32 %v573, %v638
        %v671 = vadd.f32 %v574, %v639
        %v672 = vadd.f32 %v575, %v640
        %v673 = vadd.f32 %v576, %v641
        %v674 = vadd.f32 %v577, %v642
        %v675 = vadd.f32 %v578, %v643
        %v676 = vadd.f32 %v579, %v644
        %v677 = vadd.f32 %v580, %v645
        %v678 = vadd.f32 %v581, %v646
        %v679 = vadd.f32 %v582, %v647
        %v680 = vadd.f32 %v583, %v648
        %v681 = vadd.f32 %v584, %v649
        %v682 = vadd.f32 %v585, %v650
        %v683 = vadd.f32 %v586, %v651
        %v684 = vadd.f32 %v587, %v652
        %v685 = vadd.f32 %v588, %v653
        %v686 = vadd.f32 %v589, %v654
        %v687 = vadd.f32 %v590, %v655
        %688 = vst [vmem:[#allocation2] sm:$0xff] 0.0
        %689 = vst [vmem:[#allocation2 + $0x8] sm:$0xff] 0.0
        %690 = vst [vmem:[#allocation2 + $0x10] sm:$0x3] 0.0
        %691 = vst [vmem:[#allocation2 + $0x18] sm:$0xff] 0.0
        %692 = vst [vmem:[#allocation2 + $0x20] sm:$0xff] 0.0
        %693 = vst [vmem:[#allocation2 + $0x28] sm:$0x3] 0.0
        %694 = vst [vmem:[#allocation2 + $0x30] sm:$0xff] 0.0
        %695 = vst [vmem:[#allocation2 + $0x38] sm:$0xff] 0.0
        %696 = vst [vmem:[#allocation2 + $0x40] sm:$0x3] 0.0
        %697 = vst [vmem:[#allocation2 + $0x48] sm:$0xff] 0.0
        %698 = vst [vmem:[#allocation2 + $0x50] sm:$0xff] 0.0
        %699 = vst [vmem:[#allocation2 + $0x58] sm:$0x3] 0.0
        %700 = vst [vmem:[#allocation2 + $0x60] sm:$0xff] 0.0
        %701 = vst [vmem:[#allocation2 + $0x68] sm:$0xff] 0.0
        %702 = vst [vmem:[#allocation2 + $0x70] sm:$0x3] 0.0
        %703 = vst [vmem:[#allocation2 + $0x78] sm:$0xff] 0.0
        %704 = vst [vmem:[#allocation2 + $0x80] sm:$0xff] 0.0
        %705 = vst [vmem:[#allocation2 + $0x88] sm:$0x3] 0.0
        %706 = vst [vmem:[#allocation2 + $0x90] sm:$0xff] 0.0
        %707 = vst [vmem:[#allocation2 + $0x98] sm:$0xff] 0.0
        %708 = vst [vmem:[#allocation2 + $0xa0] sm:$0x3] 0.0
        %709 = vst [vmem:[#allocation2 + $0xa8] sm:$0xff] 0.0
        %710 = vst [vmem:[#allocation2 + $0xb0] sm:$0xff] 0.0
        %711 = vst [vmem:[#allocation2 + $0xb8] sm:$0x3] 0.0
        %712 = vst [vmem:[#allocation2 + $0xc0] sm:$0xff] 0.0
        %713 = vst [vmem:[#allocation2 + $0xc8] sm:$0xff] 0.0
        %714 = vst [vmem:[#allocation2 + $0xd0] sm:$0x3] 0.0
        %715 = vst [vmem:[#allocation2 + $0xd8] sm:$0xff] 0.0
        %716 = vst [vmem:[#allocation2 + $0xe0] sm:$0xff] 0.0
        %717 = vst [vmem:[#allocation2 + $0xe8] sm:$0x3] 0.0
        %718 = vst [vmem:[#allocation2 + $0xf0] sm:$0xff] 0.0
        %719 = vst [vmem:[#allocation2 + $0xf8] sm:$0xff] 0.0
        %720 = vst [vmem:[#allocation2 + $0x100] sm:$0x3] 0.0
        %721 = vst [vmem:[#allocation2 + $0x108] sm:$0xff] 0.0
        %722 = vst [vmem:[#allocation2 + $0x110] sm:$0xff] 0.0
        %723 = vst [vmem:[#allocation2 + $0x118] sm:$0x3] 0.0
        %724 = vst [vmem:[#allocation2 + $0x120] sm:$0xff] 0.0
        %725 = vst [vmem:[#allocation2 + $0x128] sm:$0xff] 0.0
        %726 = vst [vmem:[#allocation2 + $0x130] sm:$0x3] 0.0
        %727 = vst [vmem:[#allocation2 + $0x138] sm:$0xff] 0.0
        %728 = vst [vmem:[#allocation2 + $0x140] sm:$0xff] 0.0
        %729 = vst [vmem:[#allocation2 + $0x148] sm:$0x3] 0.0
        %730 = vst [vmem:[#allocation2 + $0x150] sm:$0xff] 0.0
        %731 = vst [vmem:[#allocation2 + $0x158] sm:$0xff] 0.0
        %732 = vst [vmem:[#allocation2 + $0x160] sm:$0x3] 0.0
        %733 = vst [vmem:[#allocation2 + $0x168] sm:$0xff] 0.0
        %734 = vst [vmem:[#allocation2 + $0x170] sm:$0xff] 0.0
        %735 = vst [vmem:[#allocation2 + $0x178] sm:$0x3] 0.0
        %736 = vst [vmem:[#allocation2 + $0x180] sm:$0xff] 0.0
        %737 = vst [vmem:[#allocation2 + $0x188] sm:$0xff] 0.0
        %738 = vst [vmem:[#allocation2 + $0x190] sm:$0x3] 0.0
        %739 = vst [vmem:[#allocation2 + $0x198] sm:$0xff] 0.0
        %740 = vst [vmem:[#allocation2 + $0x1a0] sm:$0xff] 0.0
        %741 = vst [vmem:[#allocation2 + $0x1a8] sm:$0x3] 0.0
        %s742 = scalar_lea.vmem [#allocation2], 24
        %743 = vst [vmem:[%s742 + $0x1] sm:$0xff] %v656
        %744 = vst [vmem:[%s742 + $0x9] sm:$0xff] %v657
        %745 = vst [vmem:[%s742 + $0x19] sm:$0xff] %v658
        %746 = vst [vmem:[%s742 + $0x21] sm:$0xff] %v659
        %747 = vst [vmem:[%s742 + $0x31] sm:$0xff] %v660
        %748 = vst [vmem:[%s742 + $0x39] sm:$0xff] %v661
        %749 = vst [vmem:[%s742 + $0x49] sm:$0xff] %v662
        %750 = vst [vmem:[%s742 + $0x51] sm:$0xff] %v663
        %751 = vst [vmem:[%s742 + $0x61] sm:$0xff] %v664
        %752 = vst [vmem:[%s742 + $0x69] sm:$0xff] %v665
        %753 = vst [vmem:[%s742 + $0x79] sm:$0xff] %v666
        %754 = vst [vmem:[%s742 + $0x81] sm:$0xff] %v667
        %755 = vst [vmem:[%s742 + $0x91] sm:$0xff] %v668
        %756 = vst [vmem:[%s742 + $0x99] sm:$0xff] %v669
        %757 = vst [vmem:[%s742 + $0xa9] sm:$0xff] %v670
        %758 = vst [vmem:[%s742 + $0xb1] sm:$0xff] %v671
        %759 = vst [vmem:[%s742 + $0xc1] sm:$0xff] %v672
        %760 = vst [vmem:[%s742 + $0xc9] sm:$0xff] %v673
        %761 = vst [vmem:[%s742 + $0xd9] sm:$0xff] %v674
        %762 = vst [vmem:[%s742 + $0xe1] sm:$0xff] %v675
        %763 = vst [vmem:[%s742 + $0xf1] sm:$0xff] %v676
        %764 = vst [vmem:[%s742 + $0xf9] sm:$0xff] %v677
        %765 = vst [vmem:[%s742 + $0x109] sm:$0xff] %v678
        %766 = vst [vmem:[%s742 + $0x111] sm:$0xff] %v679
        %767 = vst [vmem:[%s742 + $0x121] sm:$0xff] %v680
        %768 = vst [vmem:[%s742 + $0x129] sm:$0xff] %v681
        %769 = vst [vmem:[%s742 + $0x139] sm:$0xff] %v682
        %770 = vst [vmem:[%s742 + $0x141] sm:$0xff] %v683
        %771 = vst [vmem:[%s742 + $0x151] sm:$0xff] %v684
        %772 = vst [vmem:[%s742 + $0x159] sm:$0xff] %v685
        %773 = vst [vmem:[%s742 + $0x169] sm:$0xff] %v686
        %774 = vst [vmem:[%s742 + $0x171] sm:$0xff] %v687
        %v775 = vld [vmem:[#allocation2] sm:$0xff]
        %v776 = vld [vmem:[#allocation2 + $0x8] sm:$0xff]
        %v777 = vld [vmem:[#allocation2 + $0x18] sm:$0xff]
        %v778 = vld [vmem:[#allocation2 + $0x20] sm:$0xff]
        %v779 = vld [vmem:[#allocation2 + $0x30] sm:$0xff]
        %v780 = vld [vmem:[#allocation2 + $0x38] sm:$0xff]
        %v781 = vld [vmem:[#allocation2 + $0x48] sm:$0xff]
        %v782 = vld [vmem:[#allocation2 + $0x50] sm:$0xff]
        %v783 = vld [vmem:[#allocation2 + $0x60] sm:$0xff]
        %v784 = vld [vmem:[#allocation2 + $0x68] sm:$0xff]
        %v785 = vld [vmem:[#allocation2 + $0x78] sm:$0xff]
        %v786 = vld [vmem:[#allocation2 + $0x80] sm:$0xff]
        %v787 = vld [vmem:[#allocation2 + $0x90] sm:$0xff]
        %v788 = vld [vmem:[#allocation2 + $0x98] sm:$0xff]
        %v789 = vld [vmem:[#allocation2 + $0xa8] sm:$0xff]
        %v790 = vld [vmem:[#allocation2 + $0xb0] sm:$0xff]
        %v791 = vld [vmem:[#allocation2 + $0xc0] sm:$0xff]
        %v792 = vld [vmem:[#allocation2 + $0xc8] sm:$0xff]
        %v793 = vld [vmem:[#allocation2 + $0xd8] sm:$0xff]
        %v794 = vld [vmem:[#allocation2 + $0xe0] sm:$0xff]
        %v795 = vld [vmem:[#allocation2 + $0xf0] sm:$0xff]
        %v796 = vld [vmem:[#allocation2 + $0xf8] sm:$0xff]
        %v797 = vld [vmem:[#allocation2 + $0x108] sm:$0xff]
        %v798 = vld [vmem:[#allocation2 + $0x110] sm:$0xff]
        %v799 = vld [vmem:[#allocation2 + $0x120] sm:$0xff]
        %v800 = vld [vmem:[#allocation2 + $0x128] sm:$0xff]
        %v801 = vld [vmem:[#allocation2 + $0x138] sm:$0xff]
        %v802 = vld [vmem:[#allocation2 + $0x140] sm:$0xff]
        %v803 = vld [vmem:[#allocation2 + $0x150] sm:$0xff]
        %v804 = vld [vmem:[#allocation2 + $0x158] sm:$0xff]
        %v805 = vld [vmem:[#allocation2 + $0x168] sm:$0xff]
        %v806 = vld [vmem:[#allocation2 + $0x170] sm:$0xff]
        %v807 = vpack.c.bf16 %v776, %v775
        %v808 = vpack.c.bf16 %v778, %v777
        %v809 = vpack.c.bf16 %v780, %v779
        %v810 = vpack.c.bf16 %v782, %v781
        %v811 = vpack.c.bf16 %v784, %v783
        %v812 = vpack.c.bf16 %v786, %v785
        %v813 = vpack.c.bf16 %v788, %v787
        %v814 = vpack.c.bf16 %v790, %v789
        %v815 = vpack.c.bf16 %v792, %v791
        %v816 = vpack.c.bf16 %v794, %v793
        %v817 = vpack.c.bf16 %v796, %v795
        %v818 = vpack.c.bf16 %v798, %v797
        %v819 = vpack.c.bf16 %v800, %v799
        %v820 = vpack.c.bf16 %v802, %v801
        %v821 = vpack.c.bf16 %v804, %v803
        %v822 = vpack.c.bf16 %v806, %v805
        %v823 = vld [vmem:[%s2] sm:$0xf]
        %v824 = vld [vmem:[%s2 + $0x4] sm:$0xf]
        %v825 = vld [vmem:[%s2 + $0x8] sm:$0xf]
        %v826 = vld [vmem:[%s2 + $0xc] sm:$0xf]
        %v827 = vld [vmem:[%s2 + $0x10] sm:$0xf]
        %v828 = vld [vmem:[%s2 + $0x14] sm:$0xf]
        %v829 = vld [vmem:[%s2 + $0x18] sm:$0xf]
        %v830 = vld [vmem:[%s2 + $0x1c] sm:$0xf]
        %v831 = vld [vmem:[%s2 + $0x20] sm:$0xf]
        %v832 = vld [vmem:[%s2 + $0x24] sm:$0xf]
        %v833 = vld [vmem:[%s2 + $0x28] sm:$0xf]
        %v834 = vld [vmem:[%s2 + $0x2c] sm:$0xf]
        %v835 = vld [vmem:[%s2 + $0x30] sm:$0xf]
        %v836 = vld [vmem:[%s2 + $0x34] sm:$0xf]
        %v837 = vld [vmem:[%s2 + $0x38] sm:$0xf]
        %v838 = vld [vmem:[%s2 + $0x3c] sm:$0xf]
        %v839 = vld [vmem:[#allocation2 + $0x1] sm:$0xff]
        %v840 = vld [vmem:[#allocation2 + $0x9] sm:$0xff]
        %v841 = vld [vmem:[#allocation2 + $0x19] sm:$0xff]
        %v842 = vld [vmem:[#allocation2 + $0x21] sm:$0xff]
        %v843 = vld [vmem:[#allocation2 + $0x31] sm:$0xff]
        %v844 = vld [vmem:[#allocation2 + $0x39] sm:$0xff]
        %v845 = vld [vmem:[#allocation2 + $0x49] sm:$0xff]
        %v846 = vld [vmem:[#allocation2 + $0x51] sm:$0xff]
        %v847 = vld [vmem:[#allocation2 + $0x61] sm:$0xff]
        %v848 = vld [vmem:[#allocation2 + $0x69] sm:$0xff]
        %v849 = vld [vmem:[#allocation2 + $0x79] sm:$0xff]
        %v850 = vld [vmem:[#allocation2 + $0x81] sm:$0xff]
        %v851 = vld [vmem:[#allocation2 + $0x91] sm:$0xff]
        %v852 = vld [vmem:[#allocation2 + $0x99] sm:$0xff]
        %v853 = vld [vmem:[#allocation2 + $0xa9] sm:$0xff]
        %v854 = vld [vmem:[#allocation2 + $0xb1] sm:$0xff]
        %v855 = vld [vmem:[#allocation2 + $0xc1] sm:$0xff]
        %v856 = vld [vmem:[#allocation2 + $0xc9] sm:$0xff]
        %v857 = vld [vmem:[#allocation2 + $0xd9] sm:$0xff]
        %v858 = vld [vmem:[#allocation2 + $0xe1] sm:$0xff]
        %v859 = vld [vmem:[#allocation2 + $0xf1] sm:$0xff]
        %v860 = vld [vmem:[#allocation2 + $0xf9] sm:$0xff]
        %v861 = vld [vmem:[#allocation2 + $0x109] sm:$0xff]
        %v862 = vld [vmem:[#allocation2 + $0x111] sm:$0xff]
        %v863 = vld [vmem:[#allocation2 + $0x121] sm:$0xff]
        %v864 = vld [vmem:[#allocation2 + $0x129] sm:$0xff]
        %v865 = vld [vmem:[#allocation2 + $0x139] sm:$0xff]
        %v866 = vld [vmem:[#allocation2 + $0x141] sm:$0xff]
        %v867 = vld [vmem:[#allocation2 + $0x151] sm:$0xff]
        %v868 = vld [vmem:[#allocation2 + $0x159] sm:$0xff]
        %v869 = vld [vmem:[#allocation2 + $0x169] sm:$0xff]
        %v870 = vld [vmem:[#allocation2 + $0x171] sm:$0xff]
        %v871 = vpack.c.bf16 %v840, %v839
        %v872 = vpack.c.bf16 %v842, %v841
        %v873 = vpack.c.bf16 %v844, %v843
        %v874 = vpack.c.bf16 %v846, %v845
        %v875 = vpack.c.bf16 %v848, %v847
        %v876 = vpack.c.bf16 %v850, %v849
        %v877 = vpack.c.bf16 %v852, %v851
        %v878 = vpack.c.bf16 %v854, %v853
        %v879 = vpack.c.bf16 %v856, %v855
        %v880 = vpack.c.bf16 %v858, %v857
        %v881 = vpack.c.bf16 %v860, %v859
        %v882 = vpack.c.bf16 %v862, %v861
        %v883 = vpack.c.bf16 %v864, %v863
        %v884 = vpack.c.bf16 %v866, %v865
        %v885 = vpack.c.bf16 %v868, %v867
        %v886 = vpack.c.bf16 %v870, %v869
        %s887 = scalar_lea.vmem %s2, 64
        %v888 = vld [vmem:[%s887] sm:$0xf]
        %v889 = vld [vmem:[%s887 + $0x4] sm:$0xf]
        %v890 = vld [vmem:[%s887 + $0x8] sm:$0xf]
        %v891 = vld [vmem:[%s887 + $0xc] sm:$0xf]
        %v892 = vld [vmem:[%s887 + $0x10] sm:$0xf]
        %v893 = vld [vmem:[%s887 + $0x14] sm:$0xf]
        %v894 = vld [vmem:[%s887 + $0x18] sm:$0xf]
        %v895 = vld [vmem:[%s887 + $0x1c] sm:$0xf]
        %v896 = vld [vmem:[%s887 + $0x20] sm:$0xf]
        %v897 = vld [vmem:[%s887 + $0x24] sm:$0xf]
        %v898 = vld [vmem:[%s887 + $0x28] sm:$0xf]
        %v899 = vld [vmem:[%s887 + $0x2c] sm:$0xf]
        %v900 = vld [vmem:[%s887 + $0x30] sm:$0xf]
        %v901 = vld [vmem:[%s887 + $0x34] sm:$0xf]
        %v902 = vld [vmem:[%s887 + $0x38] sm:$0xf]
        %v903 = vld [vmem:[%s887 + $0x3c] sm:$0xf]
        %v920 = vunpack.c.l.b16 %v888
        %v921 = vunpack.c.l.b16 %v889
        %v922 = vunpack.c.l.b16 %v890
        %v923 = vunpack.c.l.b16 %v891
        %v924 = vunpack.c.l.b16 %v892
        %v925 = vunpack.c.l.b16 %v893
        %v926 = vunpack.c.l.b16 %v894
        %v927 = vunpack.c.l.b16 %v895
        %v928 = vunpack.c.l.b16 %v896
        %v929 = vunpack.c.l.b16 %v897
        %v930 = vunpack.c.l.b16 %v898
        %v931 = vunpack.c.l.b16 %v899
        %v932 = vunpack.c.l.b16 %v900
        %v933 = vunpack.c.l.b16 %v901
        %v934 = vunpack.c.l.b16 %v902
        %v935 = vunpack.c.l.b16 %v903
        %v936 = vpack.c.b16 %v921, %v920
        %v937 = vpack.c.b16 %v923, %v922
        %v938 = vpack.c.b16 %v925, %v924
        %v939 = vpack.c.b16 %v927, %v926
        %v940 = vpack.c.b16 %v929, %v928
        %v941 = vpack.c.b16 %v931, %v930
        %v942 = vpack.c.b16 %v933, %v932
        %v943 = vpack.c.b16 %v935, %v934
        %952 = vmatprep.subr.bf16.mxu0 0
        %953 = vmatpush1.bf16.msra.mxu0 %v936
        %954 = vmatprep.subr.bf16.mxu0 0
        %955 = vmatpush1.bf16.msra.mxu0 %v937
        %956 = vmatprep.subr.bf16.mxu0 0
        %957 = vmatpush1.bf16.msra.mxu0 %v938
        %958 = vmatprep.subr.bf16.mxu0 0
        %959 = vmatpush1.bf16.msra.mxu0 %v939
        %960 = vmatprep.subr.bf16.mxu0 0
        %961 = vmatpush1.bf16.msra.mxu0 %v940
        %962 = vmatprep.subr.bf16.mxu0 0
        %963 = vmatpush1.bf16.msra.mxu0 %v941
        %964 = vmatprep.subr.bf16.mxu0 0
        %965 = vmatpush1.bf16.msra.mxu0 %v942
        %966 = vmatprep.subr.bf16.mxu0 0
        %967 = vmatpush1.bf16.msra.mxu0 %v943
        %968 = vmatprep.subr.bf16.mxu0 0
        %969 = vmatpush1.bf16.msra.mxu0 0
        %970 = vmatprep.subr.bf16.mxu0 0
        %971 = vmatpush1.bf16.msra.mxu0 0
        %972 = vmatprep.subr.bf16.mxu0 0
        %973 = vmatpush1.bf16.msra.mxu0 0
        %974 = vmatprep.subr.bf16.mxu0 0
        %975 = vmatpush1.bf16.msra.mxu0 0
        %976 = vmatprep.subr.bf16.mxu0 0
        %977 = vmatpush1.bf16.msra.mxu0 0
        %978 = vmatprep.subr.bf16.mxu0 0
        %979 = vmatpush1.bf16.msra.mxu0 0
        %980 = vmatprep.subr.bf16.mxu0 0
        %981 = vmatpush1.bf16.msra.mxu0 0
        %982 = vmatprep.subr.bf16.mxu0 0
        %983 = vmatpush1.bf16.msra.mxu0 0
        %984 = vmatprep.mubr.bf16.mxu0 0
        %985 = vmatmul.mubr.bf16.gmra.mrb[0].mxu0 %v871
        %v986 = vpop.f32.mrb[0].mxu0
        %v987 = vadd.f32 0.0, %v986
        %v988 = vpop.f32.mrb[0].mxu0
        %v989 = vpop.f32.mrb[0].mxu0
        %v990 = vadd.f32 0.0, %v989
        %v991 = vpop.f32.mrb[0].mxu0
        %992 = vmatprep.mubr.bf16.mxu0 0
        %993 = vmatmul.mubr.bf16.gmra.mrb[0].mxu0 %v872
        %v994 = vpop.f32.mrb[0].mxu0
        %v995 = vadd.f32 0.0, %v994
        %v996 = vpop.f32.mrb[0].mxu0
        %v997 = vpop.f32.mrb[0].mxu0
        %v998 = vadd.f32 0.0, %v997
        %v999 = vpop.f32.mrb[0].mxu0
        %1000 = vmatprep.mubr.bf16.mxu0 0
        %1001 = vmatmul.mubr.bf16.gmra.mrb[0].mxu0 %v873
        %v1002 = vpop.f32.mrb[0].mxu0
        %v1003 = vadd.f32 0.0, %v1002
        %v1004 = vpop.f32.mrb[0].mxu0
        %v1005 = vpop.f32.mrb[0].mxu0
        %v1006 = vadd.f32 0.0, %v1005
        %v1007 = vpop.f32.mrb[0].mxu0
        %1008 = vmatprep.mubr.bf16.mxu0 0
        %1009 = vmatmul.mubr.bf16.gmra.mrb[0].mxu0 %v874
        %v1010 = vpop.f32.mrb[0].mxu0
        %v1011 = vadd.f32 0.0, %v1010
        %v1012 = vpop.f32.mrb[0].mxu0
        %v1013 = vpop.f32.mrb[0].mxu0
        %v1014 = vadd.f32 0.0, %v1013
        %v1015 = vpop.f32.mrb[0].mxu0
        %1016 = vmatprep.mubr.bf16.mxu0 0
        %1017 = vmatmul.mubr.bf16.gmra.mrb[0].mxu0 %v875
        %v1018 = vpop.f32.mrb[0].mxu0
        %v1019 = vadd.f32 0.0, %v1018
        %v1020 = vpop.f32.mrb[0].mxu0
        %v1021 = vpop.f32.mrb[0].mxu0
        %v1022 = vadd.f32 0.0, %v1021
        %v1023 = vpop.f32.mrb[0].mxu0
        %1024 = vmatprep.mubr.bf16.mxu0 0
        %1025 = vmatmul.mubr.bf16.gmra.mrb[0].mxu0 %v876
        %v1026 = vpop.f32.mrb[0].mxu0
        %v1027 = vadd.f32 0.0, %v1026
        %v1028 = vpop.f32.mrb[0].mxu0
        %v1029 = vpop.f32.mrb[0].mxu0
        %v1030 = vadd.f32 0.0, %v1029
        %v1031 = vpop.f32.mrb[0].mxu0
        %1032 = vmatprep.mubr.bf16.mxu0 0
        %1033 = vmatmul.mubr.bf16.gmra.mrb[0].mxu0 %v877
        %v1034 = vpop.f32.mrb[0].mxu0
        %v1035 = vadd.f32 0.0, %v1034
        %v1036 = vpop.f32.mrb[0].mxu0
        %v1037 = vpop.f32.mrb[0].mxu0
        %v1038 = vadd.f32 0.0, %v1037
        %v1039 = vpop.f32.mrb[0].mxu0
        %1040 = vmatprep.mubr.bf16.mxu0 0
        %1041 = vmatmul.mubr.bf16.gmra.mrb[0].mxu0 %v878
        %v1042 = vpop.f32.mrb[0].mxu0
        %v1043 = vadd.f32 0.0, %v1042
        %v1044 = vpop.f32.mrb[0].mxu0
        %v1045 = vpop.f32.mrb[0].mxu0
        %v1046 = vadd.f32 0.0, %v1045
        %v1047 = vpop.f32.mrb[0].mxu0
        %1048 = vmatprep.mubr.bf16.mxu0 0
        %1049 = vmatmul.mubr.bf16.gmra.mrb[0].mxu0 %v879
        %v1050 = vpop.f32.mrb[0].mxu0
        %v1051 = vadd.f32 0.0, %v1050
        %v1052 = vpop.f32.mrb[0].mxu0
        %v1053 = vpop.f32.mrb[0].mxu0
        %v1054 = vadd.f32 0.0, %v1053
        %v1055 = vpop.f32.mrb[0].mxu0
        %1056 = vmatprep.mubr.bf16.mxu0 0
        %1057 = vmatmul.mubr.bf16.gmra.mrb[0].mxu0 %v880
        %v1058 = vpop.f32.mrb[0].mxu0
        %v1059 = vadd.f32 0.0, %v1058
        %v1060 = vpop.f32.mrb[0].mxu0
        %v1061 = vpop.f32.mrb[0].mxu0
        %v1062 = vadd.f32 0.0, %v1061
        %v1063 = vpop.f32.mrb[0].mxu0
        %1064 = vmatprep.mubr.bf16.mxu0 0
        %1065 = vmatmul.mubr.bf16.gmra.mrb[0].mxu0 %v881
        %v1066 = vpop.f32.mrb[0].mxu0
        %v1067 = vadd.f32 0.0, %v1066
        %v1068 = vpop.f32.mrb[0].mxu0
        %v1069 = vpop.f32.mrb[0].mxu0
        %v1070 = vadd.f32 0.0, %v1069
        %v1071 = vpop.f32.mrb[0].mxu0
        %1072 = vmatprep.mubr.bf16.mxu0 0
        %1073 = vmatmul.mubr.bf16.gmra.mrb[0].mxu0 %v882
        %v1074 = vpop.f32.mrb[0].mxu0
        %v1075 = vadd.f32 0.0, %v1074
        %v1076 = vpop.f32.mrb[0].mxu0
        %v1077 = vpop.f32.mrb[0].mxu0
        %v1078 = vadd.f32 0.0, %v1077
        %v1079 = vpop.f32.mrb[0].mxu0
        %1080 = vmatprep.mubr.bf16.mxu0 0
        %1081 = vmatmul.mubr.bf16.gmra.mrb[0].mxu0 %v883
        %v1082 = vpop.f32.mrb[0].mxu0
        %v1083 = vadd.f32 0.0, %v1082
        %v1084 = vpop.f32.mrb[0].mxu0
        %v1085 = vpop.f32.mrb[0].mxu0
        %v1086 = vadd.f32 0.0, %v1085
        %v1087 = vpop.f32.mrb[0].mxu0
        %1088 = vmatprep.mubr.bf16.mxu0 0
        %1089 = vmatmul.mubr.bf16.gmra.mrb[0].mxu0 %v884
        %v1090 = vpop.f32.mrb[0].mxu0
        %v1091 = vadd.f32 0.0, %v1090
        %v1092 = vpop.f32.mrb[0].mxu0
        %v1093 = vpop.f32.mrb[0].mxu0
        %v1094 = vadd.f32 0.0, %v1093
        %v1095 = vpop.f32.mrb[0].mxu0
        %1096 = vmatprep.mubr.bf16.mxu0 0
        %1097 = vmatmul.mubr.bf16.gmra.mrb[0].mxu0 %v885
        %v1098 = vpop.f32.mrb[0].mxu0
        %v1099 = vadd.f32 0.0, %v1098
        %v1100 = vpop.f32.mrb[0].mxu0
        %v1101 = vpop.f32.mrb[0].mxu0
        %v1102 = vadd.f32 0.0, %v1101
        %v1103 = vpop.f32.mrb[0].mxu0
        %1104 = vmatprep.mubr.bf16.mxu0 0
        %1105 = vmatmul.mubr.bf16.gmra.mrb[0].mxu0 %v886
        %v1106 = vpop.f32.mrb[0].mxu0
        %v1107 = vadd.f32 0.0, %v1106
        %v1108 = vpop.f32.mrb[0].mxu0
        %v1109 = vpop.f32.mrb[0].mxu0
        %v1110 = vadd.f32 0.0, %v1109
        %v1111 = vpop.f32.mrb[0].mxu0
        %1112 = vdwg.mxu0
        %v1129 = vunpack.c.l.b16 %v823
        %v1130 = vunpack.c.l.b16 %v824
        %v1131 = vunpack.c.l.b16 %v825
        %v1132 = vunpack.c.l.b16 %v826
        %v1133 = vunpack.c.l.b16 %v827
        %v1134 = vunpack.c.l.b16 %v828
        %v1135 = vunpack.c.l.b16 %v829
        %v1136 = vunpack.c.l.b16 %v830
        %v1137 = vunpack.c.l.b16 %v831
        %v1138 = vunpack.c.l.b16 %v832
        %v1139 = vunpack.c.l.b16 %v833
        %v1140 = vunpack.c.l.b16 %v834
        %v1141 = vunpack.c.l.b16 %v835
        %v1142 = vunpack.c.l.b16 %v836
        %v1143 = vunpack.c.l.b16 %v837
        %v1144 = vunpack.c.l.b16 %v838
        %v1145 = vpack.c.b16 %v1130, %v1129
        %v1146 = vpack.c.b16 %v1132, %v1131
        %v1147 = vpack.c.b16 %v1134, %v1133
        %v1148 = vpack.c.b16 %v1136, %v1135
        %v1149 = vpack.c.b16 %v1138, %v1137
        %v1150 = vpack.c.b16 %v1140, %v1139
        %v1151 = vpack.c.b16 %v1142, %v1141
        %v1152 = vpack.c.b16 %v1144, %v1143
        %1161 = vmatprep.subr.bf16.mxu0 0
        %1162 = vmatpush1.bf16.msra.mxu0 %v1145
        %1163 = vmatprep.subr.bf16.mxu0 0
        %1164 = vmatpush1.bf16.msra.mxu0 %v1146
        %1165 = vmatprep.subr.bf16.mxu0 0
        %1166 = vmatpush1.bf16.msra.mxu0 %v1147
        %1167 = vmatprep.subr.bf16.mxu0 0
        %1168 = vmatpush1.bf16.msra.mxu0 %v1148
        %1169 = vmatprep.subr.bf16.mxu0 0
        %1170 = vmatpush1.bf16.msra.mxu0 %v1149
        %1171 = vmatprep.subr.bf16.mxu0 0
        %1172 = vmatpush1.bf16.msra.mxu0 %v1150
        %1173 = vmatprep.subr.bf16.mxu0 0
        %1174 = vmatpush1.bf16.msra.mxu0 %v1151
        %1175 = vmatprep.subr.bf16.mxu0 0
        %1176 = vmatpush1.bf16.msra.mxu0 %v1152
        %1177 = vmatprep.subr.bf16.mxu0 0
        %1178 = vmatpush1.bf16.msra.mxu0 0
        %1179 = vmatprep.subr.bf16.mxu0 0
        %1180 = vmatpush1.bf16.msra.mxu0 0
        %1181 = vmatprep.subr.bf16.mxu0 0
        %1182 = vmatpush1.bf16.msra.mxu0 0
        %1183 = vmatprep.subr.bf16.mxu0 0
        %1184 = vmatpush1.bf16.msra.mxu0 0
        %1185 = vmatprep.subr.bf16.mxu0 0
        %1186 = vmatpush1.bf16.msra.mxu0 0
        %1187 = vmatprep.subr.bf16.mxu0 0
        %1188 = vmatpush1.bf16.msra.mxu0 0
        %1189 = vmatprep.subr.bf16.mxu0 0
        %1190 = vmatpush1.bf16.msra.mxu0 0
        %1191 = vmatprep.subr.bf16.mxu0 0
        %1192 = vmatpush1.bf16.msra.mxu0 0
        %1193 = vmatprep.mubr.bf16.mxu0 0
        %1194 = vmatmul.mubr.bf16.gmra.mrb[0].mxu0 %v807
        %v1195 = vpop.f32.mrb[0].mxu0
        %v1196 = vadd.f32 %v987, %v1195
        %v1197 = vpop.f32.mrb[0].mxu0
        %v1198 = vpop.f32.mrb[0].mxu0
        %v1199 = vadd.f32 %v990, %v1198
        %v1200 = vpop.f32.mrb[0].mxu0
        %1201 = vmatprep.mubr.bf16.mxu0 0
        %1202 = vmatmul.mubr.bf16.gmra.mrb[0].mxu0 %v808
        %v1203 = vpop.f32.mrb[0].mxu0
        %v1204 = vadd.f32 %v995, %v1203
        %v1205 = vpop.f32.mrb[0].mxu0
        %v1206 = vpop.f32.mrb[0].mxu0
        %v1207 = vadd.f32 %v998, %v1206
        %v1208 = vpop.f32.mrb[0].mxu0
        %1209 = vmatprep.mubr.bf16.mxu0 0
        %1210 = vmatmul.mubr.bf16.gmra.mrb[0].mxu0 %v809
        %v1211 = vpop.f32.mrb[0].mxu0
        %v1212 = vadd.f32 %v1003, %v1211
        %v1213 = vpop.f32.mrb[0].mxu0
        %v1214 = vpop.f32.mrb[0].mxu0
        %v1215 = vadd.f32 %v1006, %v1214
        %v1216 = vpop.f32.mrb[0].mxu0
        %1217 = vmatprep.mubr.bf16.mxu0 0
        %1218 = vmatmul.mubr.bf16.gmra.mrb[0].mxu0 %v810
        %v1219 = vpop.f32.mrb[0].mxu0
        %v1220 = vadd.f32 %v1011, %v1219
        %v1221 = vpop.f32.mrb[0].mxu0
        %v1222 = vpop.f32.mrb[0].mxu0
        %v1223 = vadd.f32 %v1014, %v1222
        %v1224 = vpop.f32.mrb[0].mxu0
        %1225 = vmatprep.mubr.bf16.mxu0 0
        %1226 = vmatmul.mubr.bf16.gmra.mrb[0].mxu0 %v811
        %v1227 = vpop.f32.mrb[0].mxu0
        %v1228 = vadd.f32 %v1019, %v1227
        %v1229 = vpop.f32.mrb[0].mxu0
        %v1230 = vpop.f32.mrb[0].mxu0
        %v1231 = vadd.f32 %v1022, %v1230
        %v1232 = vpop.f32.mrb[0].mxu0
        %1233 = vmatprep.mubr.bf16.mxu0 0
        %1234 = vmatmul.mubr.bf16.gmra.mrb[0].mxu0 %v812
        %v1235 = vpop.f32.mrb[0].mxu0
        %v1236 = vadd.f32 %v1027, %v1235
        %v1237 = vpop.f32.mrb[0].mxu0
        %v1238 = vpop.f32.mrb[0].mxu0
        %v1239 = vadd.f32 %v1030, %v1238
        %v1240 = vpop.f32.mrb[0].mxu0
        %1241 = vmatprep.mubr.bf16.mxu0 0
        %1242 = vmatmul.mubr.bf16.gmra.mrb[0].mxu0 %v813
        %v1243 = vpop.f32.mrb[0].mxu0
        %v1244 = vadd.f32 %v1035, %v1243
        %v1245 = vpop.f32.mrb[0].mxu0
        %v1246 = vpop.f32.mrb[0].mxu0
        %v1247 = vadd.f32 %v1038, %v1246
        %v1248 = vpop.f32.mrb[0].mxu0
        %1249 = vmatprep.mubr.bf16.mxu0 0
        %1250 = vmatmul.mubr.bf16.gmra.mrb[0].mxu0 %v814
        %v1251 = vpop.f32.mrb[0].mxu0
        %v1252 = vadd.f32 %v1043, %v1251
        %v1253 = vpop.f32.mrb[0].mxu0
        %v1254 = vpop.f32.mrb[0].mxu0
        %v1255 = vadd.f32 %v1046, %v1254
        %v1256 = vpop.f32.mrb[0].mxu0
        %1257 = vmatprep.mubr.bf16.mxu0 0
        %1258 = vmatmul.mubr.bf16.gmra.mrb[0].mxu0 %v815
        %v1259 = vpop.f32.mrb[0].mxu0
        %v1260 = vadd.f32 %v1051, %v1259
        %v1261 = vpop.f32.mrb[0].mxu0
        %v1262 = vpop.f32.mrb[0].mxu0
        %v1263 = vadd.f32 %v1054, %v1262
        %v1264 = vpop.f32.mrb[0].mxu0
        %1265 = vmatprep.mubr.bf16.mxu0 0
        %1266 = vmatmul.mubr.bf16.gmra.mrb[0].mxu0 %v816
        %v1267 = vpop.f32.mrb[0].mxu0
        %v1268 = vadd.f32 %v1059, %v1267
        %v1269 = vpop.f32.mrb[0].mxu0
        %v1270 = vpop.f32.mrb[0].mxu0
        %v1271 = vadd.f32 %v1062, %v1270
        %v1272 = vpop.f32.mrb[0].mxu0
        %1273 = vmatprep.mubr.bf16.mxu0 0
        %1274 = vmatmul.mubr.bf16.gmra.mrb[0].mxu0 %v817
        %v1275 = vpop.f32.mrb[0].mxu0
        %v1276 = vadd.f32 %v1067, %v1275
        %v1277 = vpop.f32.mrb[0].mxu0
        %v1278 = vpop.f32.mrb[0].mxu0
        %v1279 = vadd.f32 %v1070, %v1278
        %v1280 = vpop.f32.mrb[0].mxu0
        %1281 = vmatprep.mubr.bf16.mxu0 0
        %1282 = vmatmul.mubr.bf16.gmra.mrb[0].mxu0 %v818
        %v1283 = vpop.f32.mrb[0].mxu0
        %v1284 = vadd.f32 %v1075, %v1283
        %v1285 = vpop.f32.mrb[0].mxu0
        %v1286 = vpop.f32.mrb[0].mxu0
        %v1287 = vadd.f32 %v1078, %v1286
        %v1288 = vpop.f32.mrb[0].mxu0
        %1289 = vmatprep.mubr.bf16.mxu0 0
        %1290 = vmatmul.mubr.bf16.gmra.mrb[0].mxu0 %v819
        %v1291 = vpop.f32.mrb[0].mxu0
        %v1292 = vadd.f32 %v1083, %v1291
        %v1293 = vpop.f32.mrb[0].mxu0
        %v1294 = vpop.f32.mrb[0].mxu0
        %v1295 = vadd.f32 %v1086, %v1294
        %v1296 = vpop.f32.mrb[0].mxu0
        %1297 = vmatprep.mubr.bf16.mxu0 0
        %1298 = vmatmul.mubr.bf16.gmra.mrb[0].mxu0 %v820
        %v1299 = vpop.f32.mrb[0].mxu0
        %v1300 = vadd.f32 %v1091, %v1299
        %v1301 = vpop.f32.mrb[0].mxu0
        %v1302 = vpop.f32.mrb[0].mxu0
        %v1303 = vadd.f32 %v1094, %v1302
        %v1304 = vpop.f32.mrb[0].mxu0
        %1305 = vmatprep.mubr.bf16.mxu0 0
        %1306 = vmatmul.mubr.bf16.gmra.mrb[0].mxu0 %v821
        %v1307 = vpop.f32.mrb[0].mxu0
        %v1308 = vadd.f32 %v1099, %v1307
        %v1309 = vpop.f32.mrb[0].mxu0
        %v1310 = vpop.f32.mrb[0].mxu0
        %v1311 = vadd.f32 %v1102, %v1310
        %v1312 = vpop.f32.mrb[0].mxu0
        %1313 = vmatprep.mubr.bf16.mxu0 0
        %1314 = vmatmul.mubr.bf16.gmra.mrb[0].mxu0 %v822
        %v1315 = vpop.f32.mrb[0].mxu0
        %v1316 = vadd.f32 %v1107, %v1315
        %v1317 = vpop.f32.mrb[0].mxu0
        %v1318 = vpop.f32.mrb[0].mxu0
        %v1319 = vadd.f32 %v1110, %v1318
        %v1320 = vpop.f32.mrb[0].mxu0
        %1321 = vdwg.mxu0
        %v1322 = vld [vmem:[#allocation2 + $0x2] sm:$0xff]
        %v1323 = vld [vmem:[#allocation2 + $0xa] sm:$0xff]
        %v1324 = vld [vmem:[#allocation2 + $0x1a] sm:$0xff]
        %v1325 = vld [vmem:[#allocation2 + $0x22] sm:$0xff]
        %v1326 = vld [vmem:[#allocation2 + $0x32] sm:$0xff]
        %v1327 = vld [vmem:[#allocation2 + $0x3a] sm:$0xff]
        %v1328 = vld [vmem:[#allocation2 + $0x4a] sm:$0xff]
        %v1329 = vld [vmem:[#allocation2 + $0x52] sm:$0xff]
        %v1330 = vld [vmem:[#allocation2 + $0x62] sm:$0xff]
        %v1331 = vld [vmem:[#allocation2 + $0x6a] sm:$0xff]
        %v1332 = vld [vmem:[#allocation2 + $0x7a] sm:$0xff]
        %v1333 = vld [vmem:[#allocation2 + $0x82] sm:$0xff]
        %v1334 = vld [vmem:[#allocation2 + $0x92] sm:$0xff]
        %v1335 = vld [vmem:[#allocation2 + $0x9a] sm:$0xff]
        %v1336 = vld [vmem:[#allocation2 + $0xaa] sm:$0xff]
        %v1337 = vld [vmem:[#allocation2 + $0xb2] sm:$0xff]
        %v1338 = vld [vmem:[#allocation2 + $0xc2] sm:$0xff]
        %v1339 = vld [vmem:[#allocation2 + $0xca] sm:$0xff]
        %v1340 = vld [vmem:[#allocation2 + $0xda] sm:$0xff]
        %v1341 = vld [vmem:[#allocation2 + $0xe2] sm:$0xff]
        %v1342 = vld [vmem:[#allocation2 + $0xf2] sm:$0xff]
        %v1343 = vld [vmem:[#allocation2 + $0xfa] sm:$0xff]
        %v1344 = vld [vmem:[#allocation2 + $0x10a] sm:$0xff]
        %v1345 = vld [vmem:[#allocation2 + $0x112] sm:$0xff]
        %v1346 = vld [vmem:[#allocation2 + $0x122] sm:$0xff]
        %v1347 = vld [vmem:[#allocation2 + $0x12a] sm:$0xff]
        %v1348 = vld [vmem:[#allocation2 + $0x13a] sm:$0xff]
        %v1349 = vld [vmem:[#allocation2 + $0x142] sm:$0xff]
        %v1350 = vld [vmem:[#allocation2 + $0x152] sm:$0xff]
        %v1351 = vld [vmem:[#allocation2 + $0x15a] sm:$0xff]
        %v1352 = vld [vmem:[#allocation2 + $0x16a] sm:$0xff]
        %v1353 = vld [vmem:[#allocation2 + $0x172] sm:$0xff]
        %v1354 = vpack.c.bf16 %v1323, %v1322
        %v1355 = vpack.c.bf16 %v1325, %v1324
        %v1356 = vpack.c.bf16 %v1327, %v1326
        %v1357 = vpack.c.bf16 %v1329, %v1328
        %v1358 = vpack.c.bf16 %v1331, %v1330
        %v1359 = vpack.c.bf16 %v1333, %v1332
        %v1360 = vpack.c.bf16 %v1335, %v1334
        %v1361 = vpack.c.bf16 %v1337, %v1336
        %v1362 = vpack.c.bf16 %v1339, %v1338
        %v1363 = vpack.c.bf16 %v1341, %v1340
        %v1364 = vpack.c.bf16 %v1343, %v1342
        %v1365 = vpack.c.bf16 %v1345, %v1344
        %v1366 = vpack.c.bf16 %v1347, %v1346
        %v1367 = vpack.c.bf16 %v1349, %v1348
        %v1368 = vpack.c.bf16 %v1351, %v1350
        %v1369 = vpack.c.bf16 %v1353, %v1352
        %s1370 = scalar_lea.vmem %s2, 128
        %v1371 = vld [vmem:[%s1370] sm:$0xf]
        %v1372 = vld [vmem:[%s1370 + $0x4] sm:$0xf]
        %v1373 = vld [vmem:[%s1370 + $0x8] sm:$0xf]
        %v1374 = vld [vmem:[%s1370 + $0xc] sm:$0xf]
        %v1375 = vld [vmem:[%s1370 + $0x10] sm:$0xf]
        %v1376 = vld [vmem:[%s1370 + $0x14] sm:$0xf]
        %v1377 = vld [vmem:[%s1370 + $0x18] sm:$0xf]
        %v1378 = vld [vmem:[%s1370 + $0x1c] sm:$0xf]
        %v1379 = vld [vmem:[%s1370 + $0x20] sm:$0xf]
        %v1380 = vld [vmem:[%s1370 + $0x24] sm:$0xf]
        %v1381 = vld [vmem:[%s1370 + $0x28] sm:$0xf]
        %v1382 = vld [vmem:[%s1370 + $0x2c] sm:$0xf]
        %v1383 = vld [vmem:[%s1370 + $0x30] sm:$0xf]
        %v1384 = vld [vmem:[%s1370 + $0x34] sm:$0xf]
        %v1385 = vld [vmem:[%s1370 + $0x38] sm:$0xf]
        %v1386 = vld [vmem:[%s1370 + $0x3c] sm:$0xf]
        %v1403 = vunpack.c.l.b16 %v1371
        %v1404 = vunpack.c.l.b16 %v1372
        %v1405 = vunpack.c.l.b16 %v1373
        %v1406 = vunpack.c.l.b16 %v1374
        %v1407 = vunpack.c.l.b16 %v1375
        %v1408 = vunpack.c.l.b16 %v1376
        %v1409 = vunpack.c.l.b16 %v1377
        %v1410 = vunpack.c.l.b16 %v1378
        %v1411 = vunpack.c.l.b16 %v1379
        %v1412 = vunpack.c.l.b16 %v1380
        %v1413 = vunpack.c.l.b16 %v1381
        %v1414 = vunpack.c.l.b16 %v1382
        %v1415 = vunpack.c.l.b16 %v1383
        %v1416 = vunpack.c.l.b16 %v1384
        %v1417 = vunpack.c.l.b16 %v1385
        %v1418 = vunpack.c.l.b16 %v1386
        %v1419 = vpack.c.b16 %v1404, %v1403
        %v1420 = vpack.c.b16 %v1406, %v1405
        %v1421 = vpack.c.b16 %v1408, %v1407
        %v1422 = vpack.c.b16 %v1410, %v1409
        %v1423 = vpack.c.b16 %v1412, %v1411
        %v1424 = vpack.c.b16 %v1414, %v1413
        %v1425 = vpack.c.b16 %v1416, %v1415
        %v1426 = vpack.c.b16 %v1418, %v1417
        %1435 = vmatprep.subr.bf16.mxu0 0
        %1436 = vmatpush1.bf16.msra.mxu0 %v1419
        %1437 = vmatprep.subr.bf16.mxu0 0
        %1438 = vmatpush1.bf16.msra.mxu0 %v1420
        %1439 = vmatprep.subr.bf16.mxu0 0
        %1440 = vmatpush1.bf16.msra.mxu0 %v1421
        %1441 = vmatprep.subr.bf16.mxu0 0
        %1442 = vmatpush1.bf16.msra.mxu0 %v1422
        %1443 = vmatprep.subr.bf16.mxu0 0
        %1444 = vmatpush1.bf16.msra.mxu0 %v1423
        %1445 = vmatprep.subr.bf16.mxu0 0
        %1446 = vmatpush1.bf16.msra.mxu0 %v1424
        %1447 = vmatprep.subr.bf16.mxu0 0
        %1448 = vmatpush1.bf16.msra.mxu0 %v1425
        %1449 = vmatprep.subr.bf16.mxu0 0
        %1450 = vmatpush1.bf16.msra.mxu0 %v1426
        %1451 = vmatprep.subr.bf16.mxu0 0
        %1452 = vmatpush1.bf16.msra.mxu0 0
        %1453 = vmatprep.subr.bf16.mxu0 0
        %1454 = vmatpush1.bf16.msra.mxu0 0
        %1455 = vmatprep.subr.bf16.mxu0 0
        %1456 = vmatpush1.bf16.msra.mxu0 0
        %1457 = vmatprep.subr.bf16.mxu0 0
        %1458 = vmatpush1.bf16.msra.mxu0 0
        %1459 = vmatprep.subr.bf16.mxu0 0
        %1460 = vmatpush1.bf16.msra.mxu0 0
        %1461 = vmatprep.subr.bf16.mxu0 0
        %1462 = vmatpush1.bf16.msra.mxu0 0
        %1463 = vmatprep.subr.bf16.mxu0 0
        %1464 = vmatpush1.bf16.msra.mxu0 0
        %1465 = vmatprep.subr.bf16.mxu0 0
        %1466 = vmatpush1.bf16.msra.mxu0 0
        %1467 = vmatprep.mubr.bf16.mxu0 0
        %1468 = vmatmul.mubr.bf16.gmra.mrb[0].mxu0 %v1354
        %v1469 = vpop.f32.mrb[0].mxu0
        %v1470 = vadd.f32 0.0, %v1469
        %v1471 = vpop.f32.mrb[0].mxu0
        %v1472 = vpop.f32.mrb[0].mxu0
        %v1473 = vadd.f32 0.0, %v1472
        %v1474 = vpop.f32.mrb[0].mxu0
        %1475 = vmatprep.mubr.bf16.mxu0 0
        %1476 = vmatmul.mubr.bf16.gmra.mrb[0].mxu0 %v1355
        %v1477 = vpop.f32.mrb[0].mxu0
        %v1478 = vadd.f32 0.0, %v1477
        %v1479 = vpop.f32.mrb[0].mxu0
        %v1480 = vpop.f32.mrb[0].mxu0
        %v1481 = vadd.f32 0.0, %v1480
        %v1482 = vpop.f32.mrb[0].mxu0
        %1483 = vmatprep.mubr.bf16.mxu0 0
        %1484 = vmatmul.mubr.bf16.gmra.mrb[0].mxu0 %v1356
        %v1485 = vpop.f32.mrb[0].mxu0
        %v1486 = vadd.f32 0.0, %v1485
        %v1487 = vpop.f32.mrb[0].mxu0
        %v1488 = vpop.f32.mrb[0].mxu0
        %v1489 = vadd.f32 0.0, %v1488
        %v1490 = vpop.f32.mrb[0].mxu0
        %1491 = vmatprep.mubr.bf16.mxu0 0
        %1492 = vmatmul.mubr.bf16.gmra.mrb[0].mxu0 %v1357
        %v1493 = vpop.f32.mrb[0].mxu0
        %v1494 = vadd.f32 0.0, %v1493
        %v1495 = vpop.f32.mrb[0].mxu0
        %v1496 = vpop.f32.mrb[0].mxu0
        %v1497 = vadd.f32 0.0, %v1496
        %v1498 = vpop.f32.mrb[0].mxu0
        %1499 = vmatprep.mubr.bf16.mxu0 0
        %1500 = vmatmul.mubr.bf16.gmra.mrb[0].mxu0 %v1358
        %v1501 = vpop.f32.mrb[0].mxu0
        %v1502 = vadd.f32 0.0, %v1501
        %v1503 = vpop.f32.mrb[0].mxu0
        %v1504 = vpop.f32.mrb[0].mxu0
        %v1505 = vadd.f32 0.0, %v1504
        %v1506 = vpop.f32.mrb[0].mxu0
        %1507 = vmatprep.mubr.bf16.mxu0 0
        %1508 = vmatmul.mubr.bf16.gmra.mrb[0].mxu0 %v1359
        %v1509 = vpop.f32.mrb[0].mxu0
        %v1510 = vadd.f32 0.0, %v1509
        %v1511 = vpop.f32.mrb[0].mxu0
        %v1512 = vpop.f32.mrb[0].mxu0
        %v1513 = vadd.f32 0.0, %v1512
        %v1514 = vpop.f32.mrb[0].mxu0
        %1515 = vmatprep.mubr.bf16.mxu0 0
        %1516 = vmatmul.mubr.bf16.gmra.mrb[0].mxu0 %v1360
        %v1517 = vpop.f32.mrb[0].mxu0
        %v1518 = vadd.f32 0.0, %v1517
        %v1519 = vpop.f32.mrb[0].mxu0
        %v1520 = vpop.f32.mrb[0].mxu0
        %v1521 = vadd.f32 0.0, %v1520
        %v1522 = vpop.f32.mrb[0].mxu0
        %1523 = vmatprep.mubr.bf16.mxu0 0
        %1524 = vmatmul.mubr.bf16.gmra.mrb[0].mxu0 %v1361
        %v1525 = vpop.f32.mrb[0].mxu0
        %v1526 = vadd.f32 0.0, %v1525
        %v1527 = vpop.f32.mrb[0].mxu0
        %v1528 = vpop.f32.mrb[0].mxu0
        %v1529 = vadd.f32 0.0, %v1528
        %v1530 = vpop.f32.mrb[0].mxu0
        %1531 = vmatprep.mubr.bf16.mxu0 0
        %1532 = vmatmul.mubr.bf16.gmra.mrb[0].mxu0 %v1362
        %v1533 = vpop.f32.mrb[0].mxu0
        %v1534 = vadd.f32 0.0, %v1533
        %v1535 = vpop.f32.mrb[0].mxu0
        %v1536 = vpop.f32.mrb[0].mxu0
        %v1537 = vadd.f32 0.0, %v1536
        %v1538 = vpop.f32.mrb[0].mxu0
        %1539 = vmatprep.mubr.bf16.mxu0 0
        %1540 = vmatmul.mubr.bf16.gmra.mrb[0].mxu0 %v1363
        %v1541 = vpop.f32.mrb[0].mxu0
        %v1542 = vadd.f32 0.0, %v1541
        %v1543 = vpop.f32.mrb[0].mxu0
        %v1544 = vpop.f32.mrb[0].mxu0
        %v1545 = vadd.f32 0.0, %v1544
        %v1546 = vpop.f32.mrb[0].mxu0
        %1547 = vmatprep.mubr.bf16.mxu0 0
        %1548 = vmatmul.mubr.bf16.gmra.mrb[0].mxu0 %v1364
        %v1549 = vpop.f32.mrb[0].mxu0
        %v1550 = vadd.f32 0.0, %v1549
        %v1551 = vpop.f32.mrb[0].mxu0
        %v1552 = vpop.f32.mrb[0].mxu0
        %v1553 = vadd.f32 0.0, %v1552
        %v1554 = vpop.f32.mrb[0].mxu0
        %1555 = vmatprep.mubr.bf16.mxu0 0
        %1556 = vmatmul.mubr.bf16.gmra.mrb[0].mxu0 %v1365
        %v1557 = vpop.f32.mrb[0].mxu0
        %v1558 = vadd.f32 0.0, %v1557
        %v1559 = vpop.f32.mrb[0].mxu0
        %v1560 = vpop.f32.mrb[0].mxu0
        %v1561 = vadd.f32 0.0, %v1560
        %v1562 = vpop.f32.mrb[0].mxu0
        %1563 = vmatprep.mubr.bf16.mxu0 0
        %1564 = vmatmul.mubr.bf16.gmra.mrb[0].mxu0 %v1366
        %v1565 = vpop.f32.mrb[0].mxu0
        %v1566 = vadd.f32 0.0, %v1565
        %v1567 = vpop.f32.mrb[0].mxu0
        %v1568 = vpop.f32.mrb[0].mxu0
        %v1569 = vadd.f32 0.0, %v1568
        %v1570 = vpop.f32.mrb[0].mxu0
        %1571 = vmatprep.mubr.bf16.mxu0 0
        %1572 = vmatmul.mubr.bf16.gmra.mrb[0].mxu0 %v1367
        %v1573 = vpop.f32.mrb[0].mxu0
        %v1574 = vadd.f32 0.0, %v1573
        %v1575 = vpop.f32.mrb[0].mxu0
        %v1576 = vpop.f32.mrb[0].mxu0
        %v1577 = vadd.f32 0.0, %v1576
        %v1578 = vpop.f32.mrb[0].mxu0
        %1579 = vmatprep.mubr.bf16.mxu0 0
        %1580 = vmatmul.mubr.bf16.gmra.mrb[0].mxu0 %v1368
        %v1581 = vpop.f32.mrb[0].mxu0
        %v1582 = vadd.f32 0.0, %v1581
        %v1583 = vpop.f32.mrb[0].mxu0
        %v1584 = vpop.f32.mrb[0].mxu0
        %v1585 = vadd.f32 0.0, %v1584
        %v1586 = vpop.f32.mrb[0].mxu0
        %1587 = vmatprep.mubr.bf16.mxu0 0
        %1588 = vmatmul.mubr.bf16.gmra.mrb[0].mxu0 %v1369
        %v1589 = vpop.f32.mrb[0].mxu0
        %v1590 = vadd.f32 0.0, %v1589
        %v1591 = vpop.f32.mrb[0].mxu0
        %v1592 = vpop.f32.mrb[0].mxu0
        %v1593 = vadd.f32 0.0, %v1592
        %v1594 = vpop.f32.mrb[0].mxu0
        %1595 = vdwg.mxu0
        %v1596 = vadd.f32 %v1196, %v1470
        %v1597 = vadd.f32 %v1199, %v1473
        %v1598 = vadd.f32 %v1204, %v1478
        %v1599 = vadd.f32 %v1207, %v1481
        %v1600 = vadd.f32 %v1212, %v1486
        %v1601 = vadd.f32 %v1215, %v1489
        %v1602 = vadd.f32 %v1220, %v1494
        %v1603 = vadd.f32 %v1223, %v1497
        %v1604 = vadd.f32 %v1228, %v1502
        %v1605 = vadd.f32 %v1231, %v1505
        %v1606 = vadd.f32 %v1236, %v1510
        %v1607 = vadd.f32 %v1239, %v1513
        %v1608 = vadd.f32 %v1244, %v1518
        %v1609 = vadd.f32 %v1247, %v1521
        %v1610 = vadd.f32 %v1252, %v1526
        %v1611 = vadd.f32 %v1255, %v1529
        %v1612 = vadd.f32 %v1260, %v1534
        %v1613 = vadd.f32 %v1263, %v1537
        %v1614 = vadd.f32 %v1268, %v1542
        %v1615 = vadd.f32 %v1271, %v1545
        %v1616 = vadd.f32 %v1276, %v1550
        %v1617 = vadd.f32 %v1279, %v1553
        %v1618 = vadd.f32 %v1284, %v1558
        %v1619 = vadd.f32 %v1287, %v1561
        %v1620 = vadd.f32 %v1292, %v1566
        %v1621 = vadd.f32 %v1295, %v1569
        %v1622 = vadd.f32 %v1300, %v1574
        %v1623 = vadd.f32 %v1303, %v1577
        %v1624 = vadd.f32 %v1308, %v1582
        %v1625 = vadd.f32 %v1311, %v1585
        %v1626 = vadd.f32 %v1316, %v1590
        %v1627 = vadd.f32 %v1319, %v1593
        %v1628 = vld [vmem:[%s742] sm:$0xff]
        %v1629 = vld [vmem:[%s742 + $0x8] sm:$0xff]
        %v1630 = vld [vmem:[%s742 + $0x18] sm:$0xff]
        %v1631 = vld [vmem:[%s742 + $0x20] sm:$0xff]
        %v1632 = vld [vmem:[%s742 + $0x30] sm:$0xff]
        %v1633 = vld [vmem:[%s742 + $0x38] sm:$0xff]
        %v1634 = vld [vmem:[%s742 + $0x48] sm:$0xff]
        %v1635 = vld [vmem:[%s742 + $0x50] sm:$0xff]
        %v1636 = vld [vmem:[%s742 + $0x60] sm:$0xff]
        %v1637 = vld [vmem:[%s742 + $0x68] sm:$0xff]
        %v1638 = vld [vmem:[%s742 + $0x78] sm:$0xff]
        %v1639 = vld [vmem:[%s742 + $0x80] sm:$0xff]
        %v1640 = vld [vmem:[%s742 + $0x90] sm:$0xff]
        %v1641 = vld [vmem:[%s742 + $0x98] sm:$0xff]
        %v1642 = vld [vmem:[%s742 + $0xa8] sm:$0xff]
        %v1643 = vld [vmem:[%s742 + $0xb0] sm:$0xff]
        %v1644 = vld [vmem:[%s742 + $0xc0] sm:$0xff]
        %v1645 = vld [vmem:[%s742 + $0xc8] sm:$0xff]
        %v1646 = vld [vmem:[%s742 + $0xd8] sm:$0xff]
        %v1647 = vld [vmem:[%s742 + $0xe0] sm:$0xff]
        %v1648 = vld [vmem:[%s742 + $0xf0] sm:$0xff]
        %v1649 = vld [vmem:[%s742 + $0xf8] sm:$0xff]
        %v1650 = vld [vmem:[%s742 + $0x108] sm:$0xff]
        %v1651 = vld [vmem:[%s742 + $0x110] sm:$0xff]
        %v1652 = vld [vmem:[%s742 + $0x120] sm:$0xff]
        %v1653 = vld [vmem:[%s742 + $0x128] sm:$0xff]
        %v1654 = vld [vmem:[%s742 + $0x138] sm:$0xff]
        %v1655 = vld [vmem:[%s742 + $0x140] sm:$0xff]
        %v1656 = vld [vmem:[%s742 + $0x150] sm:$0xff]
        %v1657 = vld [vmem:[%s742 + $0x158] sm:$0xff]
        %v1658 = vld [vmem:[%s742 + $0x168] sm:$0xff]
        %v1659 = vld [vmem:[%s742 + $0x170] sm:$0xff]
        %v1660 = vpack.c.bf16 %v1629, %v1628
        %v1661 = vpack.c.bf16 %v1631, %v1630
        %v1662 = vpack.c.bf16 %v1633, %v1632
        %v1663 = vpack.c.bf16 %v1635, %v1634
        %v1664 = vpack.c.bf16 %v1637, %v1636
        %v1665 = vpack.c.bf16 %v1639, %v1638
        %v1666 = vpack.c.bf16 %v1641, %v1640
        %v1667 = vpack.c.bf16 %v1643, %v1642
        %v1668 = vpack.c.bf16 %v1645, %v1644
        %v1669 = vpack.c.bf16 %v1647, %v1646
        %v1670 = vpack.c.bf16 %v1649, %v1648
        %v1671 = vpack.c.bf16 %v1651, %v1650
        %v1672 = vpack.c.bf16 %v1653, %v1652
        %v1673 = vpack.c.bf16 %v1655, %v1654
        %v1674 = vpack.c.bf16 %v1657, %v1656
        %v1675 = vpack.c.bf16 %v1659, %v1658
        %s1676 = scalar_lea.vmem %s2, 192
        %v1677 = vld [vmem:[%s1676] sm:$0xf]
        %v1678 = vld [vmem:[%s1676 + $0x4] sm:$0xf]
        %v1679 = vld [vmem:[%s1676 + $0x8] sm:$0xf]
        %v1680 = vld [vmem:[%s1676 + $0xc] sm:$0xf]
        %v1681 = vld [vmem:[%s1676 + $0x10] sm:$0xf]
        %v1682 = vld [vmem:[%s1676 + $0x14] sm:$0xf]
        %v1683 = vld [vmem:[%s1676 + $0x18] sm:$0xf]
        %v1684 = vld [vmem:[%s1676 + $0x1c] sm:$0xf]
        %v1685 = vld [vmem:[%s1676 + $0x20] sm:$0xf]
        %v1686 = vld [vmem:[%s1676 + $0x24] sm:$0xf]
        %v1687 = vld [vmem:[%s1676 + $0x28] sm:$0xf]
        %v1688 = vld [vmem:[%s1676 + $0x2c] sm:$0xf]
        %v1689 = vld [vmem:[%s1676 + $0x30] sm:$0xf]
        %v1690 = vld [vmem:[%s1676 + $0x34] sm:$0xf]
        %v1691 = vld [vmem:[%s1676 + $0x38] sm:$0xf]
        %v1692 = vld [vmem:[%s1676 + $0x3c] sm:$0xf]
        %v1709 = vunpack.c.l.b16 %v1677
        %v1710 = vunpack.c.l.b16 %v1678
        %v1711 = vunpack.c.l.b16 %v1679
        %v1712 = vunpack.c.l.b16 %v1680
        %v1713 = vunpack.c.l.b16 %v1681
        %v1714 = vunpack.c.l.b16 %v1682
        %v1715 = vunpack.c.l.b16 %v1683
        %v1716 = vunpack.c.l.b16 %v1684
        %v1717 = vunpack.c.l.b16 %v1685
        %v1718 = vunpack.c.l.b16 %v1686
        %v1719 = vunpack.c.l.b16 %v1687
        %v1720 = vunpack.c.l.b16 %v1688
        %v1721 = vunpack.c.l.b16 %v1689
        %v1722 = vunpack.c.l.b16 %v1690
        %v1723 = vunpack.c.l.b16 %v1691
        %v1724 = vunpack.c.l.b16 %v1692
        %v1725 = vpack.c.b16 %v1710, %v1709
        %v1726 = vpack.c.b16 %v1712, %v1711
        %v1727 = vpack.c.b16 %v1714, %v1713
        %v1728 = vpack.c.b16 %v1716, %v1715
        %v1729 = vpack.c.b16 %v1718, %v1717
        %v1730 = vpack.c.b16 %v1720, %v1719
        %v1731 = vpack.c.b16 %v1722, %v1721
        %v1732 = vpack.c.b16 %v1724, %v1723
        %1741 = vmatprep.subr.bf16.mxu0 0
        %1742 = vmatpush1.bf16.msra.mxu0 %v1725
        %1743 = vmatprep.subr.bf16.mxu0 0
        %1744 = vmatpush1.bf16.msra.mxu0 %v1726
        %1745 = vmatprep.subr.bf16.mxu0 0
        %1746 = vmatpush1.bf16.msra.mxu0 %v1727
        %1747 = vmatprep.subr.bf16.mxu0 0
        %1748 = vmatpush1.bf16.msra.mxu0 %v1728
        %1749 = vmatprep.subr.bf16.mxu0 0
        %1750 = vmatpush1.bf16.msra.mxu0 %v1729
        %1751 = vmatprep.subr.bf16.mxu0 0
        %1752 = vmatpush1.bf16.msra.mxu0 %v1730
        %1753 = vmatprep.subr.bf16.mxu0 0
        %1754 = vmatpush1.bf16.msra.mxu0 %v1731
        %1755 = vmatprep.subr.bf16.mxu0 0
        %1756 = vmatpush1.bf16.msra.mxu0 %v1732
        %1757 = vmatprep.subr.bf16.mxu0 0
        %1758 = vmatpush1.bf16.msra.mxu0 0
        %1759 = vmatprep.subr.bf16.mxu0 0
        %1760 = vmatpush1.bf16.msra.mxu0 0
        %1761 = vmatprep.subr.bf16.mxu0 0
        %1762 = vmatpush1.bf16.msra.mxu0 0
        %1763 = vmatprep.subr.bf16.mxu0 0
        %1764 = vmatpush1.bf16.msra.mxu0 0
        %1765 = vmatprep.subr.bf16.mxu0 0
        %1766 = vmatpush1.bf16.msra.mxu0 0
        %1767 = vmatprep.subr.bf16.mxu0 0
        %1768 = vmatpush1.bf16.msra.mxu0 0
        %1769 = vmatprep.subr.bf16.mxu0 0
        %1770 = vmatpush1.bf16.msra.mxu0 0
        %1771 = vmatprep.subr.bf16.mxu0 0
        %1772 = vmatpush1.bf16.msra.mxu0 0
        %1773 = vmatprep.mubr.bf16.mxu0 0
        %1774 = vmatmul.mubr.bf16.gmra.mrb[0].mxu0 %v1660
        %v1775 = vpop.f32.mrb[0].mxu0
        %v1776 = vadd.f32 0.0, %v1775
        %v1777 = vpop.f32.mrb[0].mxu0
        %v1778 = vpop.f32.mrb[0].mxu0
        %v1779 = vadd.f32 0.0, %v1778
        %v1780 = vpop.f32.mrb[0].mxu0
        %1781 = vmatprep.mubr.bf16.mxu0 0
        %1782 = vmatmul.mubr.bf16.gmra.mrb[0].mxu0 %v1661
        %v1783 = vpop.f32.mrb[0].mxu0
        %v1784 = vadd.f32 0.0, %v1783
        %v1785 = vpop.f32.mrb[0].mxu0
        %v1786 = vpop.f32.mrb[0].mxu0
        %v1787 = vadd.f32 0.0, %v1786
        %v1788 = vpop.f32.mrb[0].mxu0
        %1789 = vmatprep.mubr.bf16.mxu0 0
        %1790 = vmatmul.mubr.bf16.gmra.mrb[0].mxu0 %v1662
        %v1791 = vpop.f32.mrb[0].mxu0
        %v1792 = vadd.f32 0.0, %v1791
        %v1793 = vpop.f32.mrb[0].mxu0
        %v1794 = vpop.f32.mrb[0].mxu0
        %v1795 = vadd.f32 0.0, %v1794
        %v1796 = vpop.f32.mrb[0].mxu0
        %1797 = vmatprep.mubr.bf16.mxu0 0
        %1798 = vmatmul.mubr.bf16.gmra.mrb[0].mxu0 %v1663
        %v1799 = vpop.f32.mrb[0].mxu0
        %v1800 = vadd.f32 0.0, %v1799
        %v1801 = vpop.f32.mrb[0].mxu0
        %v1802 = vpop.f32.mrb[0].mxu0
        %v1803 = vadd.f32 0.0, %v1802
        %v1804 = vpop.f32.mrb[0].mxu0
        %1805 = vmatprep.mubr.bf16.mxu0 0
        %1806 = vmatmul.mubr.bf16.gmra.mrb[0].mxu0 %v1664
        %v1807 = vpop.f32.mrb[0].mxu0
        %v1808 = vadd.f32 0.0, %v1807
        %v1809 = vpop.f32.mrb[0].mxu0
        %v1810 = vpop.f32.mrb[0].mxu0
        %v1811 = vadd.f32 0.0, %v1810
        %v1812 = vpop.f32.mrb[0].mxu0
        %1813 = vmatprep.mubr.bf16.mxu0 0
        %1814 = vmatmul.mubr.bf16.gmra.mrb[0].mxu0 %v1665
        %v1815 = vpop.f32.mrb[0].mxu0
        %v1816 = vadd.f32 0.0, %v1815
        %v1817 = vpop.f32.mrb[0].mxu0
        %v1818 = vpop.f32.mrb[0].mxu0
        %v1819 = vadd.f32 0.0, %v1818
        %v1820 = vpop.f32.mrb[0].mxu0
        %1821 = vmatprep.mubr.bf16.mxu0 0
        %1822 = vmatmul.mubr.bf16.gmra.mrb[0].mxu0 %v1666
        %v1823 = vpop.f32.mrb[0].mxu0
        %v1824 = vadd.f32 0.0, %v1823
        %v1825 = vpop.f32.mrb[0].mxu0
        %v1826 = vpop.f32.mrb[0].mxu0
        %v1827 = vadd.f32 0.0, %v1826
        %v1828 = vpop.f32.mrb[0].mxu0
        %1829 = vmatprep.mubr.bf16.mxu0 0
        %1830 = vmatmul.mubr.bf16.gmra.mrb[0].mxu0 %v1667
        %v1831 = vpop.f32.mrb[0].mxu0
        %v1832 = vadd.f32 0.0, %v1831
        %v1833 = vpop.f32.mrb[0].mxu0
        %v1834 = vpop.f32.mrb[0].mxu0
        %v1835 = vadd.f32 0.0, %v1834
        %v1836 = vpop.f32.mrb[0].mxu0
        %1837 = vmatprep.mubr.bf16.mxu0 0
        %1838 = vmatmul.mubr.bf16.gmra.mrb[0].mxu0 %v1668
        %v1839 = vpop.f32.mrb[0].mxu0
        %v1840 = vadd.f32 0.0, %v1839
        %v1841 = vpop.f32.mrb[0].mxu0
        %v1842 = vpop.f32.mrb[0].mxu0
        %v1843 = vadd.f32 0.0, %v1842
        %v1844 = vpop.f32.mrb[0].mxu0
        %1845 = vmatprep.mubr.bf16.mxu0 0
        %1846 = vmatmul.mubr.bf16.gmra.mrb[0].mxu0 %v1669
        %v1847 = vpop.f32.mrb[0].mxu0
        %v1848 = vadd.f32 0.0, %v1847
        %v1849 = vpop.f32.mrb[0].mxu0
        %v1850 = vpop.f32.mrb[0].mxu0
        %v1851 = vadd.f32 0.0, %v1850
        %v1852 = vpop.f32.mrb[0].mxu0
        %1853 = vmatprep.mubr.bf16.mxu0 0
        %1854 = vmatmul.mubr.bf16.gmra.mrb[0].mxu0 %v1670
        %v1855 = vpop.f32.mrb[0].mxu0
        %v1856 = vadd.f32 0.0, %v1855
        %v1857 = vpop.f32.mrb[0].mxu0
        %v1858 = vpop.f32.mrb[0].mxu0
        %v1859 = vadd.f32 0.0, %v1858
        %v1860 = vpop.f32.mrb[0].mxu0
        %1861 = vmatprep.mubr.bf16.mxu0 0
        %1862 = vmatmul.mubr.bf16.gmra.mrb[0].mxu0 %v1671
        %v1863 = vpop.f32.mrb[0].mxu0
        %v1864 = vadd.f32 0.0, %v1863
        %v1865 = vpop.f32.mrb[0].mxu0
        %v1866 = vpop.f32.mrb[0].mxu0
        %v1867 = vadd.f32 0.0, %v1866
        %v1868 = vpop.f32.mrb[0].mxu0
        %1869 = vmatprep.mubr.bf16.mxu0 0
        %1870 = vmatmul.mubr.bf16.gmra.mrb[0].mxu0 %v1672
        %v1871 = vpop.f32.mrb[0].mxu0
        %v1872 = vadd.f32 0.0, %v1871
        %v1873 = vpop.f32.mrb[0].mxu0
        %v1874 = vpop.f32.mrb[0].mxu0
        %v1875 = vadd.f32 0.0, %v1874
        %v1876 = vpop.f32.mrb[0].mxu0
        %1877 = vmatprep.mubr.bf16.mxu0 0
        %1878 = vmatmul.mubr.bf16.gmra.mrb[0].mxu0 %v1673
        %v1879 = vpop.f32.mrb[0].mxu0
        %v1880 = vadd.f32 0.0, %v1879
        %v1881 = vpop.f32.mrb[0].mxu0
        %v1882 = vpop.f32.mrb[0].mxu0
        %v1883 = vadd.f32 0.0, %v1882
        %v1884 = vpop.f32.mrb[0].mxu0
        %1885 = vmatprep.mubr.bf16.mxu0 0
        %1886 = vmatmul.mubr.bf16.gmra.mrb[0].mxu0 %v1674
        %v1887 = vpop.f32.mrb[0].mxu0
        %v1888 = vadd.f32 0.0, %v1887
        %v1889 = vpop.f32.mrb[0].mxu0
        %v1890 = vpop.f32.mrb[0].mxu0
        %v1891 = vadd.f32 0.0, %v1890
        %v1892 = vpop.f32.mrb[0].mxu0
        %1893 = vmatprep.mubr.bf16.mxu0 0
        %1894 = vmatmul.mubr.bf16.gmra.mrb[0].mxu0 %v1675
        %v1895 = vpop.f32.mrb[0].mxu0
        %v1896 = vadd.f32 0.0, %v1895
        %v1897 = vpop.f32.mrb[0].mxu0
        %v1898 = vpop.f32.mrb[0].mxu0
        %v1899 = vadd.f32 0.0, %v1898
        %v1900 = vpop.f32.mrb[0].mxu0
        %1901 = vdwg.mxu0
        %v1902 = vadd.f32 %v1596, %v1776
        %v1903 = vadd.f32 %v1597, %v1779
        %v1904 = vadd.f32 %v1598, %v1784
        %v1905 = vadd.f32 %v1599, %v1787
        %v1906 = vadd.f32 %v1600, %v1792
        %v1907 = vadd.f32 %v1601, %v1795
        %v1908 = vadd.f32 %v1602, %v1800
        %v1909 = vadd.f32 %v1603, %v1803
        %v1910 = vadd.f32 %v1604, %v1808
        %v1911 = vadd.f32 %v1605, %v1811
        %v1912 = vadd.f32 %v1606, %v1816
        %v1913 = vadd.f32 %v1607, %v1819
        %v1914 = vadd.f32 %v1608, %v1824
        %v1915 = vadd.f32 %v1609, %v1827
        %v1916 = vadd.f32 %v1610, %v1832
        %v1917 = vadd.f32 %v1611, %v1835
        %v1918 = vadd.f32 %v1612, %v1840
        %v1919 = vadd.f32 %v1613, %v1843
        %v1920 = vadd.f32 %v1614, %v1848
        %v1921 = vadd.f32 %v1615, %v1851
        %v1922 = vadd.f32 %v1616, %v1856
        %v1923 = vadd.f32 %v1617, %v1859
        %v1924 = vadd.f32 %v1618, %v1864
        %v1925 = vadd.f32 %v1619, %v1867
        %v1926 = vadd.f32 %v1620, %v1872
        %v1927 = vadd.f32 %v1621, %v1875
        %v1928 = vadd.f32 %v1622, %v1880
        %v1929 = vadd.f32 %v1623, %v1883
        %v1930 = vadd.f32 %v1624, %v1888
        %v1931 = vadd.f32 %v1625, %v1891
        %v1932 = vadd.f32 %v1626, %v1896
        %v1933 = vadd.f32 %v1627, %v1899
        %v1934 = vld [vmem:[%s742 + $0x1] sm:$0xff]
        %v1935 = vld [vmem:[%s742 + $0x9] sm:$0xff]
        %v1936 = vld [vmem:[%s742 + $0x19] sm:$0xff]
        %v1937 = vld [vmem:[%s742 + $0x21] sm:$0xff]
        %v1938 = vld [vmem:[%s742 + $0x31] sm:$0xff]
        %v1939 = vld [vmem:[%s742 + $0x39] sm:$0xff]
        %v1940 = vld [vmem:[%s742 + $0x49] sm:$0xff]
        %v1941 = vld [vmem:[%s742 + $0x51] sm:$0xff]
        %v1942 = vld [vmem:[%s742 + $0x61] sm:$0xff]
        %v1943 = vld [vmem:[%s742 + $0x69] sm:$0xff]
        %v1944 = vld [vmem:[%s742 + $0x79] sm:$0xff]
        %v1945 = vld [vmem:[%s742 + $0x81] sm:$0xff]
        %v1946 = vld [vmem:[%s742 + $0x91] sm:$0xff]
        %v1947 = vld [vmem:[%s742 + $0x99] sm:$0xff]
        %v1948 = vld [vmem:[%s742 + $0xa9] sm:$0xff]
        %v1949 = vld [vmem:[%s742 + $0xb1] sm:$0xff]
        %v1950 = vld [vmem:[%s742 + $0xc1] sm:$0xff]
        %v1951 = vld [vmem:[%s742 + $0xc9] sm:$0xff]
        %v1952 = vld [vmem:[%s742 + $0xd9] sm:$0xff]
        %v1953 = vld [vmem:[%s742 + $0xe1] sm:$0xff]
        %v1954 = vld [vmem:[%s742 + $0xf1] sm:$0xff]
        %v1955 = vld [vmem:[%s742 + $0xf9] sm:$0xff]
        %v1956 = vld [vmem:[%s742 + $0x109] sm:$0xff]
        %v1957 = vld [vmem:[%s742 + $0x111] sm:$0xff]
        %v1958 = vld [vmem:[%s742 + $0x121] sm:$0xff]
        %v1959 = vld [vmem:[%s742 + $0x129] sm:$0xff]
        %v1960 = vld [vmem:[%s742 + $0x139] sm:$0xff]
        %v1961 = vld [vmem:[%s742 + $0x141] sm:$0xff]
        %v1962 = vld [vmem:[%s742 + $0x151] sm:$0xff]
        %v1963 = vld [vmem:[%s742 + $0x159] sm:$0xff]
        %v1964 = vld [vmem:[%s742 + $0x169] sm:$0xff]
        %v1965 = vld [vmem:[%s742 + $0x171] sm:$0xff]
        %v1966 = vpack.c.bf16 %v1935, %v1934
        %v1967 = vpack.c.bf16 %v1937, %v1936
        %v1968 = vpack.c.bf16 %v1939, %v1938
        %v1969 = vpack.c.bf16 %v1941, %v1940
        %v1970 = vpack.c.bf16 %v1943, %v1942
        %v1971 = vpack.c.bf16 %v1945, %v1944
        %v1972 = vpack.c.bf16 %v1947, %v1946
        %v1973 = vpack.c.bf16 %v1949, %v1948
        %v1974 = vpack.c.bf16 %v1951, %v1950
        %v1975 = vpack.c.bf16 %v1953, %v1952
        %v1976 = vpack.c.bf16 %v1955, %v1954
        %v1977 = vpack.c.bf16 %v1957, %v1956
        %v1978 = vpack.c.bf16 %v1959, %v1958
        %v1979 = vpack.c.bf16 %v1961, %v1960
        %v1980 = vpack.c.bf16 %v1963, %v1962
        %v1981 = vpack.c.bf16 %v1965, %v1964
        %s1982 = scalar_lea.vmem %s2, 256
        %v1983 = vld [vmem:[%s1982] sm:$0xf]
        %v1984 = vld [vmem:[%s1982 + $0x4] sm:$0xf]
        %v1985 = vld [vmem:[%s1982 + $0x8] sm:$0xf]
        %v1986 = vld [vmem:[%s1982 + $0xc] sm:$0xf]
        %v1987 = vld [vmem:[%s1982 + $0x10] sm:$0xf]
        %v1988 = vld [vmem:[%s1982 + $0x14] sm:$0xf]
        %v1989 = vld [vmem:[%s1982 + $0x18] sm:$0xf]
        %v1990 = vld [vmem:[%s1982 + $0x1c] sm:$0xf]
        %v1991 = vld [vmem:[%s1982 + $0x20] sm:$0xf]
        %v1992 = vld [vmem:[%s1982 + $0x24] sm:$0xf]
        %v1993 = vld [vmem:[%s1982 + $0x28] sm:$0xf]
        %v1994 = vld [vmem:[%s1982 + $0x2c] sm:$0xf]
        %v1995 = vld [vmem:[%s1982 + $0x30] sm:$0xf]
        %v1996 = vld [vmem:[%s1982 + $0x34] sm:$0xf]
        %v1997 = vld [vmem:[%s1982 + $0x38] sm:$0xf]
        %v1998 = vld [vmem:[%s1982 + $0x3c] sm:$0xf]
        %v2015 = vunpack.c.l.b16 %v1983
        %v2016 = vunpack.c.l.b16 %v1984
        %v2017 = vunpack.c.l.b16 %v1985
        %v2018 = vunpack.c.l.b16 %v1986
        %v2019 = vunpack.c.l.b16 %v1987
        %v2020 = vunpack.c.l.b16 %v1988
        %v2021 = vunpack.c.l.b16 %v1989
        %v2022 = vunpack.c.l.b16 %v1990
        %v2023 = vunpack.c.l.b16 %v1991
        %v2024 = vunpack.c.l.b16 %v1992
        %v2025 = vunpack.c.l.b16 %v1993
        %v2026 = vunpack.c.l.b16 %v1994
        %v2027 = vunpack.c.l.b16 %v1995
        %v2028 = vunpack.c.l.b16 %v1996
        %v2029 = vunpack.c.l.b16 %v1997
        %v2030 = vunpack.c.l.b16 %v1998
        %v2031 = vpack.c.b16 %v2016, %v2015
        %v2032 = vpack.c.b16 %v2018, %v2017
        %v2033 = vpack.c.b16 %v2020, %v2019
        %v2034 = vpack.c.b16 %v2022, %v2021
        %v2035 = vpack.c.b16 %v2024, %v2023
        %v2036 = vpack.c.b16 %v2026, %v2025
        %v2037 = vpack.c.b16 %v2028, %v2027
        %v2038 = vpack.c.b16 %v2030, %v2029
        %2047 = vmatprep.subr.bf16.mxu0 0
        %2048 = vmatpush1.bf16.msra.mxu0 %v2031
        %2049 = vmatprep.subr.bf16.mxu0 0
        %2050 = vmatpush1.bf16.msra.mxu0 %v2032
        %2051 = vmatprep.subr.bf16.mxu0 0
        %2052 = vmatpush1.bf16.msra.mxu0 %v2033
        %2053 = vmatprep.subr.bf16.mxu0 0
        %2054 = vmatpush1.bf16.msra.mxu0 %v2034
        %2055 = vmatprep.subr.bf16.mxu0 0
        %2056 = vmatpush1.bf16.msra.mxu0 %v2035
        %2057 = vmatprep.subr.bf16.mxu0 0
        %2058 = vmatpush1.bf16.msra.mxu0 %v2036
        %2059 = vmatprep.subr.bf16.mxu0 0
        %2060 = vmatpush1.bf16.msra.mxu0 %v2037
        %2061 = vmatprep.subr.bf16.mxu0 0
        %2062 = vmatpush1.bf16.msra.mxu0 %v2038
        %2063 = vmatprep.subr.bf16.mxu0 0
        %2064 = vmatpush1.bf16.msra.mxu0 0
        %2065 = vmatprep.subr.bf16.mxu0 0
        %2066 = vmatpush1.bf16.msra.mxu0 0
        %2067 = vmatprep.subr.bf16.mxu0 0
        %2068 = vmatpush1.bf16.msra.mxu0 0
        %2069 = vmatprep.subr.bf16.mxu0 0
        %2070 = vmatpush1.bf16.msra.mxu0 0
        %2071 = vmatprep.subr.bf16.mxu0 0
        %2072 = vmatpush1.bf16.msra.mxu0 0
        %2073 = vmatprep.subr.bf16.mxu0 0
        %2074 = vmatpush1.bf16.msra.mxu0 0
        %2075 = vmatprep.subr.bf16.mxu0 0
        %2076 = vmatpush1.bf16.msra.mxu0 0
        %2077 = vmatprep.subr.bf16.mxu0 0
        %2078 = vmatpush1.bf16.msra.mxu0 0
        %2079 = vmatprep.mubr.bf16.mxu0 0
        %2080 = vmatmul.mubr.bf16.gmra.mrb[0].mxu0 %v1966
        %v2081 = vpop.f32.mrb[0].mxu0
        %v2082 = vadd.f32 0.0, %v2081
        %v2083 = vpop.f32.mrb[0].mxu0
        %v2084 = vpop.f32.mrb[0].mxu0
        %v2085 = vadd.f32 0.0, %v2084
        %v2086 = vpop.f32.mrb[0].mxu0
        %2087 = vmatprep.mubr.bf16.mxu0 0
        %2088 = vmatmul.mubr.bf16.gmra.mrb[0].mxu0 %v1967
        %v2089 = vpop.f32.mrb[0].mxu0
        %v2090 = vadd.f32 0.0, %v2089
        %v2091 = vpop.f32.mrb[0].mxu0
        %v2092 = vpop.f32.mrb[0].mxu0
        %v2093 = vadd.f32 0.0, %v2092
        %v2094 = vpop.f32.mrb[0].mxu0
        %2095 = vmatprep.mubr.bf16.mxu0 0
        %2096 = vmatmul.mubr.bf16.gmra.mrb[0].mxu0 %v1968
        %v2097 = vpop.f32.mrb[0].mxu0
        %v2098 = vadd.f32 0.0, %v2097
        %v2099 = vpop.f32.mrb[0].mxu0
        %v2100 = vpop.f32.mrb[0].mxu0
        %v2101 = vadd.f32 0.0, %v2100
        %v2102 = vpop.f32.mrb[0].mxu0
        %2103 = vmatprep.mubr.bf16.mxu0 0
        %2104 = vmatmul.mubr.bf16.gmra.mrb[0].mxu0 %v1969
        %v2105 = vpop.f32.mrb[0].mxu0
        %v2106 = vadd.f32 0.0, %v2105
        %v2107 = vpop.f32.mrb[0].mxu0
        %v2108 = vpop.f32.mrb[0].mxu0
        %v2109 = vadd.f32 0.0, %v2108
        %v2110 = vpop.f32.mrb[0].mxu0
        %2111 = vmatprep.mubr.bf16.mxu0 0
        %2112 = vmatmul.mubr.bf16.gmra.mrb[0].mxu0 %v1970
        %v2113 = vpop.f32.mrb[0].mxu0
        %v2114 = vadd.f32 0.0, %v2113
        %v2115 = vpop.f32.mrb[0].mxu0
        %v2116 = vpop.f32.mrb[0].mxu0
        %v2117 = vadd.f32 0.0, %v2116
        %v2118 = vpop.f32.mrb[0].mxu0
        %2119 = vmatprep.mubr.bf16.mxu0 0
        %2120 = vmatmul.mubr.bf16.gmra.mrb[0].mxu0 %v1971
        %v2121 = vpop.f32.mrb[0].mxu0
        %v2122 = vadd.f32 0.0, %v2121
        %v2123 = vpop.f32.mrb[0].mxu0
        %v2124 = vpop.f32.mrb[0].mxu0
        %v2125 = vadd.f32 0.0, %v2124
        %v2126 = vpop.f32.mrb[0].mxu0
        %2127 = vmatprep.mubr.bf16.mxu0 0
        %2128 = vmatmul.mubr.bf16.gmra.mrb[0].mxu0 %v1972
        %v2129 = vpop.f32.mrb[0].mxu0
        %v2130 = vadd.f32 0.0, %v2129
        %v2131 = vpop.f32.mrb[0].mxu0
        %v2132 = vpop.f32.mrb[0].mxu0
        %v2133 = vadd.f32 0.0, %v2132
        %v2134 = vpop.f32.mrb[0].mxu0
        %2135 = vmatprep.mubr.bf16.mxu0 0
        %2136 = vmatmul.mubr.bf16.gmra.mrb[0].mxu0 %v1973
        %v2137 = vpop.f32.mrb[0].mxu0
        %v2138 = vadd.f32 0.0, %v2137
        %v2139 = vpop.f32.mrb[0].mxu0
        %v2140 = vpop.f32.mrb[0].mxu0
        %v2141 = vadd.f32 0.0, %v2140
        %v2142 = vpop.f32.mrb[0].mxu0
        %2143 = vmatprep.mubr.bf16.mxu0 0
        %2144 = vmatmul.mubr.bf16.gmra.mrb[0].mxu0 %v1974
        %v2145 = vpop.f32.mrb[0].mxu0
        %v2146 = vadd.f32 0.0, %v2145
        %v2147 = vpop.f32.mrb[0].mxu0
        %v2148 = vpop.f32.mrb[0].mxu0
        %v2149 = vadd.f32 0.0, %v2148
        %v2150 = vpop.f32.mrb[0].mxu0
        %2151 = vmatprep.mubr.bf16.mxu0 0
        %2152 = vmatmul.mubr.bf16.gmra.mrb[0].mxu0 %v1975
        %v2153 = vpop.f32.mrb[0].mxu0
        %v2154 = vadd.f32 0.0, %v2153
        %v2155 = vpop.f32.mrb[0].mxu0
        %v2156 = vpop.f32.mrb[0].mxu0
        %v2157 = vadd.f32 0.0, %v2156
        %v2158 = vpop.f32.mrb[0].mxu0
        %2159 = vmatprep.mubr.bf16.mxu0 0
        %2160 = vmatmul.mubr.bf16.gmra.mrb[0].mxu0 %v1976
        %v2161 = vpop.f32.mrb[0].mxu0
        %v2162 = vadd.f32 0.0, %v2161
        %v2163 = vpop.f32.mrb[0].mxu0
        %v2164 = vpop.f32.mrb[0].mxu0
        %v2165 = vadd.f32 0.0, %v2164
        %v2166 = vpop.f32.mrb[0].mxu0
        %2167 = vmatprep.mubr.bf16.mxu0 0
        %2168 = vmatmul.mubr.bf16.gmra.mrb[0].mxu0 %v1977
        %v2169 = vpop.f32.mrb[0].mxu0
        %v2170 = vadd.f32 0.0, %v2169
        %v2171 = vpop.f32.mrb[0].mxu0
        %v2172 = vpop.f32.mrb[0].mxu0
        %v2173 = vadd.f32 0.0, %v2172
        %v2174 = vpop.f32.mrb[0].mxu0
        %2175 = vmatprep.mubr.bf16.mxu0 0
        %2176 = vmatmul.mubr.bf16.gmra.mrb[0].mxu0 %v1978
        %v2177 = vpop.f32.mrb[0].mxu0
        %v2178 = vadd.f32 0.0, %v2177
        %v2179 = vpop.f32.mrb[0].mxu0
        %v2180 = vpop.f32.mrb[0].mxu0
        %v2181 = vadd.f32 0.0, %v2180
        %v2182 = vpop.f32.mrb[0].mxu0
        %2183 = vmatprep.mubr.bf16.mxu0 0
        %2184 = vmatmul.mubr.bf16.gmra.mrb[0].mxu0 %v1979
        %v2185 = vpop.f32.mrb[0].mxu0
        %v2186 = vadd.f32 0.0, %v2185
        %v2187 = vpop.f32.mrb[0].mxu0
        %v2188 = vpop.f32.mrb[0].mxu0
        %v2189 = vadd.f32 0.0, %v2188
        %v2190 = vpop.f32.mrb[0].mxu0
        %2191 = vmatprep.mubr.bf16.mxu0 0
        %2192 = vmatmul.mubr.bf16.gmra.mrb[0].mxu0 %v1980
        %v2193 = vpop.f32.mrb[0].mxu0
        %v2194 = vadd.f32 0.0, %v2193
        %v2195 = vpop.f32.mrb[0].mxu0
        %v2196 = vpop.f32.mrb[0].mxu0
        %v2197 = vadd.f32 0.0, %v2196
        %v2198 = vpop.f32.mrb[0].mxu0
        %2199 = vmatprep.mubr.bf16.mxu0 0
        %2200 = vmatmul.mubr.bf16.gmra.mrb[0].mxu0 %v1981
        %v2201 = vpop.f32.mrb[0].mxu0
        %v2202 = vadd.f32 0.0, %v2201
        %v2203 = vpop.f32.mrb[0].mxu0
        %v2204 = vpop.f32.mrb[0].mxu0
        %v2205 = vadd.f32 0.0, %v2204
        %v2206 = vpop.f32.mrb[0].mxu0
        %2207 = vdwg.mxu0
        %v2208 = vadd.f32 %v1902, %v2082
        %v2209 = vadd.f32 %v1903, %v2085
        %v2210 = vadd.f32 %v1904, %v2090
        %v2211 = vadd.f32 %v1905, %v2093
        %v2212 = vadd.f32 %v1906, %v2098
        %v2213 = vadd.f32 %v1907, %v2101
        %v2214 = vadd.f32 %v1908, %v2106
        %v2215 = vadd.f32 %v1909, %v2109
        %v2216 = vadd.f32 %v1910, %v2114
        %v2217 = vadd.f32 %v1911, %v2117
        %v2218 = vadd.f32 %v1912, %v2122
        %v2219 = vadd.f32 %v1913, %v2125
        %v2220 = vadd.f32 %v1914, %v2130
        %v2221 = vadd.f32 %v1915, %v2133
        %v2222 = vadd.f32 %v1916, %v2138
        %v2223 = vadd.f32 %v1917, %v2141
        %v2224 = vadd.f32 %v1918, %v2146
        %v2225 = vadd.f32 %v1919, %v2149
        %v2226 = vadd.f32 %v1920, %v2154
        %v2227 = vadd.f32 %v1921, %v2157
        %v2228 = vadd.f32 %v1922, %v2162
        %v2229 = vadd.f32 %v1923, %v2165
        %v2230 = vadd.f32 %v1924, %v2170
        %v2231 = vadd.f32 %v1925, %v2173
        %v2232 = vadd.f32 %v1926, %v2178
        %v2233 = vadd.f32 %v1927, %v2181
        %v2234 = vadd.f32 %v1928, %v2186
        %v2235 = vadd.f32 %v1929, %v2189
        %v2236 = vadd.f32 %v1930, %v2194
        %v2237 = vadd.f32 %v1931, %v2197
        %v2238 = vadd.f32 %v1932, %v2202
        %v2239 = vadd.f32 %v1933, %v2205
        %v2240 = vld [vmem:[%s742 + $0x2] sm:$0xff]
        %v2241 = vld [vmem:[%s742 + $0xa] sm:$0xff]
        %v2242 = vld [vmem:[%s742 + $0x1a] sm:$0xff]
        %v2243 = vld [vmem:[%s742 + $0x22] sm:$0xff]
        %v2244 = vld [vmem:[%s742 + $0x32] sm:$0xff]
        %v2245 = vld [vmem:[%s742 + $0x3a] sm:$0xff]
        %v2246 = vld [vmem:[%s742 + $0x4a] sm:$0xff]
        %v2247 = vld [vmem:[%s742 + $0x52] sm:$0xff]
        %v2248 = vld [vmem:[%s742 + $0x62] sm:$0xff]
        %v2249 = vld [vmem:[%s742 + $0x6a] sm:$0xff]
        %v2250 = vld [vmem:[%s742 + $0x7a] sm:$0xff]
        %v2251 = vld [vmem:[%s742 + $0x82] sm:$0xff]
        %v2252 = vld [vmem:[%s742 + $0x92] sm:$0xff]
        %v2253 = vld [vmem:[%s742 + $0x9a] sm:$0xff]
        %v2254 = vld [vmem:[%s742 + $0xaa] sm:$0xff]
        %v2255 = vld [vmem:[%s742 + $0xb2] sm:$0xff]
        %v2256 = vld [vmem:[%s742 + $0xc2] sm:$0xff]
        %v2257 = vld [vmem:[%s742 + $0xca] sm:$0xff]
        %v2258 = vld [vmem:[%s742 + $0xda] sm:$0xff]
        %v2259 = vld [vmem:[%s742 + $0xe2] sm:$0xff]
        %v2260 = vld [vmem:[%s742 + $0xf2] sm:$0xff]
        %v2261 = vld [vmem:[%s742 + $0xfa] sm:$0xff]
        %v2262 = vld [vmem:[%s742 + $0x10a] sm:$0xff]
        %v2263 = vld [vmem:[%s742 + $0x112] sm:$0xff]
        %v2264 = vld [vmem:[%s742 + $0x122] sm:$0xff]
        %v2265 = vld [vmem:[%s742 + $0x12a] sm:$0xff]
        %v2266 = vld [vmem:[%s742 + $0x13a] sm:$0xff]
        %v2267 = vld [vmem:[%s742 + $0x142] sm:$0xff]
        %v2268 = vld [vmem:[%s742 + $0x152] sm:$0xff]
        %v2269 = vld [vmem:[%s742 + $0x15a] sm:$0xff]
        %v2270 = vld [vmem:[%s742 + $0x16a] sm:$0xff]
        %v2271 = vld [vmem:[%s742 + $0x172] sm:$0xff]
        %v2272 = vpack.c.bf16 %v2241, %v2240
        %v2273 = vpack.c.bf16 %v2243, %v2242
        %v2274 = vpack.c.bf16 %v2245, %v2244
        %v2275 = vpack.c.bf16 %v2247, %v2246
        %v2276 = vpack.c.bf16 %v2249, %v2248
        %v2277 = vpack.c.bf16 %v2251, %v2250
        %v2278 = vpack.c.bf16 %v2253, %v2252
        %v2279 = vpack.c.bf16 %v2255, %v2254
        %v2280 = vpack.c.bf16 %v2257, %v2256
        %v2281 = vpack.c.bf16 %v2259, %v2258
        %v2282 = vpack.c.bf16 %v2261, %v2260
        %v2283 = vpack.c.bf16 %v2263, %v2262
        %v2284 = vpack.c.bf16 %v2265, %v2264
        %v2285 = vpack.c.bf16 %v2267, %v2266
        %v2286 = vpack.c.bf16 %v2269, %v2268
        %v2287 = vpack.c.bf16 %v2271, %v2270
        %s2288 = scalar_lea.vmem %s2, 320
        %v2289 = vld [vmem:[%s2288] sm:$0xf]
        %v2290 = vld [vmem:[%s2288 + $0x4] sm:$0xf]
        %v2291 = vld [vmem:[%s2288 + $0x8] sm:$0xf]
        %v2292 = vld [vmem:[%s2288 + $0xc] sm:$0xf]
        %v2293 = vld [vmem:[%s2288 + $0x10] sm:$0xf]
        %v2294 = vld [vmem:[%s2288 + $0x14] sm:$0xf]
        %v2295 = vld [vmem:[%s2288 + $0x18] sm:$0xf]
        %v2296 = vld [vmem:[%s2288 + $0x1c] sm:$0xf]
        %v2297 = vld [vmem:[%s2288 + $0x20] sm:$0xf]
        %v2298 = vld [vmem:[%s2288 + $0x24] sm:$0xf]
        %v2299 = vld [vmem:[%s2288 + $0x28] sm:$0xf]
        %v2300 = vld [vmem:[%s2288 + $0x2c] sm:$0xf]
        %v2301 = vld [vmem:[%s2288 + $0x30] sm:$0xf]
        %v2302 = vld [vmem:[%s2288 + $0x34] sm:$0xf]
        %v2303 = vld [vmem:[%s2288 + $0x38] sm:$0xf]
        %v2304 = vld [vmem:[%s2288 + $0x3c] sm:$0xf]
        %v2321 = vunpack.c.l.b16 %v2289
        %v2322 = vunpack.c.l.b16 %v2290
        %v2323 = vunpack.c.l.b16 %v2291
        %v2324 = vunpack.c.l.b16 %v2292
        %v2325 = vunpack.c.l.b16 %v2293
        %v2326 = vunpack.c.l.b16 %v2294
        %v2327 = vunpack.c.l.b16 %v2295
        %v2328 = vunpack.c.l.b16 %v2296
        %v2329 = vunpack.c.l.b16 %v2297
        %v2330 = vunpack.c.l.b16 %v2298
        %v2331 = vunpack.c.l.b16 %v2299
        %v2332 = vunpack.c.l.b16 %v2300
        %v2333 = vunpack.c.l.b16 %v2301
        %v2334 = vunpack.c.l.b16 %v2302
        %v2335 = vunpack.c.l.b16 %v2303
        %v2336 = vunpack.c.l.b16 %v2304
        %v2337 = vpack.c.b16 %v2322, %v2321
        %v2338 = vpack.c.b16 %v2324, %v2323
        %v2339 = vpack.c.b16 %v2326, %v2325
        %v2340 = vpack.c.b16 %v2328, %v2327
        %v2341 = vpack.c.b16 %v2330, %v2329
        %v2342 = vpack.c.b16 %v2332, %v2331
        %v2343 = vpack.c.b16 %v2334, %v2333
        %v2344 = vpack.c.b16 %v2336, %v2335
        %2353 = vmatprep.subr.bf16.mxu0 0
        %2354 = vmatpush1.bf16.msra.mxu0 %v2337
        %2355 = vmatprep.subr.bf16.mxu0 0
        %2356 = vmatpush1.bf16.msra.mxu0 %v2338
        %2357 = vmatprep.subr.bf16.mxu0 0
        %2358 = vmatpush1.bf16.msra.mxu0 %v2339
        %2359 = vmatprep.subr.bf16.mxu0 0
        %2360 = vmatpush1.bf16.msra.mxu0 %v2340
        %2361 = vmatprep.subr.bf16.mxu0 0
        %2362 = vmatpush1.bf16.msra.mxu0 %v2341
        %2363 = vmatprep.subr.bf16.mxu0 0
        %2364 = vmatpush1.bf16.msra.mxu0 %v2342
        %2365 = vmatprep.subr.bf16.mxu0 0
        %2366 = vmatpush1.bf16.msra.mxu0 %v2343
        %2367 = vmatprep.subr.bf16.mxu0 0
        %2368 = vmatpush1.bf16.msra.mxu0 %v2344
        %2369 = vmatprep.subr.bf16.mxu0 0
        %2370 = vmatpush1.bf16.msra.mxu0 0
        %2371 = vmatprep.subr.bf16.mxu0 0
        %2372 = vmatpush1.bf16.msra.mxu0 0
        %2373 = vmatprep.subr.bf16.mxu0 0
        %2374 = vmatpush1.bf16.msra.mxu0 0
        %2375 = vmatprep.subr.bf16.mxu0 0
        %2376 = vmatpush1.bf16.msra.mxu0 0
        %2377 = vmatprep.subr.bf16.mxu0 0
        %2378 = vmatpush1.bf16.msra.mxu0 0
        %2379 = vmatprep.subr.bf16.mxu0 0
        %2380 = vmatpush1.bf16.msra.mxu0 0
        %2381 = vmatprep.subr.bf16.mxu0 0
        %2382 = vmatpush1.bf16.msra.mxu0 0
        %2383 = vmatprep.subr.bf16.mxu0 0
        %2384 = vmatpush1.bf16.msra.mxu0 0
        %2385 = vmatprep.mubr.bf16.mxu0 0
        %2386 = vmatmul.mubr.bf16.gmra.mrb[0].mxu0 %v2272
        %v2387 = vpop.f32.mrb[0].mxu0
        %v2388 = vadd.f32 0.0, %v2387
        %v2389 = vpop.f32.mrb[0].mxu0
        %v2390 = vpop.f32.mrb[0].mxu0
        %v2391 = vadd.f32 0.0, %v2390
        %v2392 = vpop.f32.mrb[0].mxu0
        %2393 = vmatprep.mubr.bf16.mxu0 0
        %2394 = vmatmul.mubr.bf16.gmra.mrb[0].mxu0 %v2273
        %v2395 = vpop.f32.mrb[0].mxu0
        %v2396 = vadd.f32 0.0, %v2395
        %v2397 = vpop.f32.mrb[0].mxu0
        %v2398 = vpop.f32.mrb[0].mxu0
        %v2399 = vadd.f32 0.0, %v2398
        %v2400 = vpop.f32.mrb[0].mxu0
        %2401 = vmatprep.mubr.bf16.mxu0 0
        %2402 = vmatmul.mubr.bf16.gmra.mrb[0].mxu0 %v2274
        %v2403 = vpop.f32.mrb[0].mxu0
        %v2404 = vadd.f32 0.0, %v2403
        %v2405 = vpop.f32.mrb[0].mxu0
        %v2406 = vpop.f32.mrb[0].mxu0
        %v2407 = vadd.f32 0.0, %v2406
        %v2408 = vpop.f32.mrb[0].mxu0
        %2409 = vmatprep.mubr.bf16.mxu0 0
        %2410 = vmatmul.mubr.bf16.gmra.mrb[0].mxu0 %v2275
        %v2411 = vpop.f32.mrb[0].mxu0
        %v2412 = vadd.f32 0.0, %v2411
        %v2413 = vpop.f32.mrb[0].mxu0
        %v2414 = vpop.f32.mrb[0].mxu0
        %v2415 = vadd.f32 0.0, %v2414
        %v2416 = vpop.f32.mrb[0].mxu0
        %2417 = vmatprep.mubr.bf16.mxu0 0
        %2418 = vmatmul.mubr.bf16.gmra.mrb[0].mxu0 %v2276
        %v2419 = vpop.f32.mrb[0].mxu0
        %v2420 = vadd.f32 0.0, %v2419
        %v2421 = vpop.f32.mrb[0].mxu0
        %v2422 = vpop.f32.mrb[0].mxu0
        %v2423 = vadd.f32 0.0, %v2422
        %v2424 = vpop.f32.mrb[0].mxu0
        %2425 = vmatprep.mubr.bf16.mxu0 0
        %2426 = vmatmul.mubr.bf16.gmra.mrb[0].mxu0 %v2277
        %v2427 = vpop.f32.mrb[0].mxu0
        %v2428 = vadd.f32 0.0, %v2427
        %v2429 = vpop.f32.mrb[0].mxu0
        %v2430 = vpop.f32.mrb[0].mxu0
        %v2431 = vadd.f32 0.0, %v2430
        %v2432 = vpop.f32.mrb[0].mxu0
        %2433 = vmatprep.mubr.bf16.mxu0 0
        %2434 = vmatmul.mubr.bf16.gmra.mrb[0].mxu0 %v2278
        %v2435 = vpop.f32.mrb[0].mxu0
        %v2436 = vadd.f32 0.0, %v2435
        %v2437 = vpop.f32.mrb[0].mxu0
        %v2438 = vpop.f32.mrb[0].mxu0
        %v2439 = vadd.f32 0.0, %v2438
        %v2440 = vpop.f32.mrb[0].mxu0
        %2441 = vmatprep.mubr.bf16.mxu0 0
        %2442 = vmatmul.mubr.bf16.gmra.mrb[0].mxu0 %v2279
        %v2443 = vpop.f32.mrb[0].mxu0
        %v2444 = vadd.f32 0.0, %v2443
        %v2445 = vpop.f32.mrb[0].mxu0
        %v2446 = vpop.f32.mrb[0].mxu0
        %v2447 = vadd.f32 0.0, %v2446
        %v2448 = vpop.f32.mrb[0].mxu0
        %2449 = vmatprep.mubr.bf16.mxu0 0
        %2450 = vmatmul.mubr.bf16.gmra.mrb[0].mxu0 %v2280
        %v2451 = vpop.f32.mrb[0].mxu0
        %v2452 = vadd.f32 0.0, %v2451
        %v2453 = vpop.f32.mrb[0].mxu0
        %v2454 = vpop.f32.mrb[0].mxu0
        %v2455 = vadd.f32 0.0, %v2454
        %v2456 = vpop.f32.mrb[0].mxu0
        %2457 = vmatprep.mubr.bf16.mxu0 0
        %2458 = vmatmul.mubr.bf16.gmra.mrb[0].mxu0 %v2281
        %v2459 = vpop.f32.mrb[0].mxu0
        %v2460 = vadd.f32 0.0, %v2459
        %v2461 = vpop.f32.mrb[0].mxu0
        %v2462 = vpop.f32.mrb[0].mxu0
        %v2463 = vadd.f32 0.0, %v2462
        %v2464 = vpop.f32.mrb[0].mxu0
        %2465 = vmatprep.mubr.bf16.mxu0 0
        %2466 = vmatmul.mubr.bf16.gmra.mrb[0].mxu0 %v2282
        %v2467 = vpop.f32.mrb[0].mxu0
        %v2468 = vadd.f32 0.0, %v2467
        %v2469 = vpop.f32.mrb[0].mxu0
        %v2470 = vpop.f32.mrb[0].mxu0
        %v2471 = vadd.f32 0.0, %v2470
        %v2472 = vpop.f32.mrb[0].mxu0
        %2473 = vmatprep.mubr.bf16.mxu0 0
        %2474 = vmatmul.mubr.bf16.gmra.mrb[0].mxu0 %v2283
        %v2475 = vpop.f32.mrb[0].mxu0
        %v2476 = vadd.f32 0.0, %v2475
        %v2477 = vpop.f32.mrb[0].mxu0
        %v2478 = vpop.f32.mrb[0].mxu0
        %v2479 = vadd.f32 0.0, %v2478
        %v2480 = vpop.f32.mrb[0].mxu0
        %2481 = vmatprep.mubr.bf16.mxu0 0
        %2482 = vmatmul.mubr.bf16.gmra.mrb[0].mxu0 %v2284
        %v2483 = vpop.f32.mrb[0].mxu0
        %v2484 = vadd.f32 0.0, %v2483
        %v2485 = vpop.f32.mrb[0].mxu0
        %v2486 = vpop.f32.mrb[0].mxu0
        %v2487 = vadd.f32 0.0, %v2486
        %v2488 = vpop.f32.mrb[0].mxu0
        %2489 = vmatprep.mubr.bf16.mxu0 0
        %2490 = vmatmul.mubr.bf16.gmra.mrb[0].mxu0 %v2285
        %v2491 = vpop.f32.mrb[0].mxu0
        %v2492 = vadd.f32 0.0, %v2491
        %v2493 = vpop.f32.mrb[0].mxu0
        %v2494 = vpop.f32.mrb[0].mxu0
        %v2495 = vadd.f32 0.0, %v2494
        %v2496 = vpop.f32.mrb[0].mxu0
        %2497 = vmatprep.mubr.bf16.mxu0 0
        %2498 = vmatmul.mubr.bf16.gmra.mrb[0].mxu0 %v2286
        %v2499 = vpop.f32.mrb[0].mxu0
        %v2500 = vadd.f32 0.0, %v2499
        %v2501 = vpop.f32.mrb[0].mxu0
        %v2502 = vpop.f32.mrb[0].mxu0
        %v2503 = vadd.f32 0.0, %v2502
        %v2504 = vpop.f32.mrb[0].mxu0
        %2505 = vmatprep.mubr.bf16.mxu0 0
        %2506 = vmatmul.mubr.bf16.gmra.mrb[0].mxu0 %v2287
        %v2507 = vpop.f32.mrb[0].mxu0
        %v2508 = vadd.f32 0.0, %v2507
        %v2509 = vpop.f32.mrb[0].mxu0
        %v2510 = vpop.f32.mrb[0].mxu0
        %v2511 = vadd.f32 0.0, %v2510
        %v2512 = vpop.f32.mrb[0].mxu0
        %2513 = vdwg.mxu0
        %v2514 = vadd.f32 %v2208, %v2388
        %v2515 = vadd.f32 %v2209, %v2391
        %v2516 = vadd.f32 %v2210, %v2396
        %v2517 = vadd.f32 %v2211, %v2399
        %v2518 = vadd.f32 %v2212, %v2404
        %v2519 = vadd.f32 %v2213, %v2407
        %v2520 = vadd.f32 %v2214, %v2412
        %v2521 = vadd.f32 %v2215, %v2415
        %v2522 = vadd.f32 %v2216, %v2420
        %v2523 = vadd.f32 %v2217, %v2423
        %v2524 = vadd.f32 %v2218, %v2428
        %v2525 = vadd.f32 %v2219, %v2431
        %v2526 = vadd.f32 %v2220, %v2436
        %v2527 = vadd.f32 %v2221, %v2439
        %v2528 = vadd.f32 %v2222, %v2444
        %v2529 = vadd.f32 %v2223, %v2447
        %v2530 = vadd.f32 %v2224, %v2452
        %v2531 = vadd.f32 %v2225, %v2455
        %v2532 = vadd.f32 %v2226, %v2460
        %v2533 = vadd.f32 %v2227, %v2463
        %v2534 = vadd.f32 %v2228, %v2468
        %v2535 = vadd.f32 %v2229, %v2471
        %v2536 = vadd.f32 %v2230, %v2476
        %v2537 = vadd.f32 %v2231, %v2479
        %v2538 = vadd.f32 %v2232, %v2484
        %v2539 = vadd.f32 %v2233, %v2487
        %v2540 = vadd.f32 %v2234, %v2492
        %v2541 = vadd.f32 %v2235, %v2495
        %v2542 = vadd.f32 %v2236, %v2500
        %v2543 = vadd.f32 %v2237, %v2503
        %v2544 = vadd.f32 %v2238, %v2508
        %v2545 = vadd.f32 %v2239, %v2511
        %s2546 = scalar_lea.vmem [#allocation2], 48
        %v2547 = vld [vmem:[%s2546] sm:$0xff]
        %v2548 = vld [vmem:[%s2546 + $0x8] sm:$0xff]
        %v2549 = vld [vmem:[%s2546 + $0x18] sm:$0xff]
        %v2550 = vld [vmem:[%s2546 + $0x20] sm:$0xff]
        %v2551 = vld [vmem:[%s2546 + $0x30] sm:$0xff]
        %v2552 = vld [vmem:[%s2546 + $0x38] sm:$0xff]
        %v2553 = vld [vmem:[%s2546 + $0x48] sm:$0xff]
        %v2554 = vld [vmem:[%s2546 + $0x50] sm:$0xff]
        %v2555 = vld [vmem:[%s2546 + $0x60] sm:$0xff]
        %v2556 = vld [vmem:[%s2546 + $0x68] sm:$0xff]
        %v2557 = vld [vmem:[%s2546 + $0x78] sm:$0xff]
        %v2558 = vld [vmem:[%s2546 + $0x80] sm:$0xff]
        %v2559 = vld [vmem:[%s2546 + $0x90] sm:$0xff]
        %v2560 = vld [vmem:[%s2546 + $0x98] sm:$0xff]
        %v2561 = vld [vmem:[%s2546 + $0xa8] sm:$0xff]
        %v2562 = vld [vmem:[%s2546 + $0xb0] sm:$0xff]
        %v2563 = vld [vmem:[%s2546 + $0xc0] sm:$0xff]
        %v2564 = vld [vmem:[%s2546 + $0xc8] sm:$0xff]
        %v2565 = vld [vmem:[%s2546 + $0xd8] sm:$0xff]
        %v2566 = vld [vmem:[%s2546 + $0xe0] sm:$0xff]
        %v2567 = vld [vmem:[%s2546 + $0xf0] sm:$0xff]
        %v2568 = vld [vmem:[%s2546 + $0xf8] sm:$0xff]
        %v2569 = vld [vmem:[%s2546 + $0x108] sm:$0xff]
        %v2570 = vld [vmem:[%s2546 + $0x110] sm:$0xff]
        %v2571 = vld [vmem:[%s2546 + $0x120] sm:$0xff]
        %v2572 = vld [vmem:[%s2546 + $0x128] sm:$0xff]
        %v2573 = vld [vmem:[%s2546 + $0x138] sm:$0xff]
        %v2574 = vld [vmem:[%s2546 + $0x140] sm:$0xff]
        %v2575 = vld [vmem:[%s2546 + $0x150] sm:$0xff]
        %v2576 = vld [vmem:[%s2546 + $0x158] sm:$0xff]
        %v2577 = vld [vmem:[%s2546 + $0x168] sm:$0xff]
        %v2578 = vld [vmem:[%s2546 + $0x170] sm:$0xff]
        %v2579 = vpack.c.bf16 %v2548, %v2547
        %v2580 = vpack.c.bf16 %v2550, %v2549
        %v2581 = vpack.c.bf16 %v2552, %v2551
        %v2582 = vpack.c.bf16 %v2554, %v2553
        %v2583 = vpack.c.bf16 %v2556, %v2555
        %v2584 = vpack.c.bf16 %v2558, %v2557
        %v2585 = vpack.c.bf16 %v2560, %v2559
        %v2586 = vpack.c.bf16 %v2562, %v2561
        %v2587 = vpack.c.bf16 %v2564, %v2563
        %v2588 = vpack.c.bf16 %v2566, %v2565
        %v2589 = vpack.c.bf16 %v2568, %v2567
        %v2590 = vpack.c.bf16 %v2570, %v2569
        %v2591 = vpack.c.bf16 %v2572, %v2571
        %v2592 = vpack.c.bf16 %v2574, %v2573
        %v2593 = vpack.c.bf16 %v2576, %v2575
        %v2594 = vpack.c.bf16 %v2578, %v2577
        %s2595 = scalar_lea.vmem %s2, 384
        %v2596 = vld [vmem:[%s2595] sm:$0xf]
        %v2597 = vld [vmem:[%s2595 + $0x4] sm:$0xf]
        %v2598 = vld [vmem:[%s2595 + $0x8] sm:$0xf]
        %v2599 = vld [vmem:[%s2595 + $0xc] sm:$0xf]
        %v2600 = vld [vmem:[%s2595 + $0x10] sm:$0xf]
        %v2601 = vld [vmem:[%s2595 + $0x14] sm:$0xf]
        %v2602 = vld [vmem:[%s2595 + $0x18] sm:$0xf]
        %v2603 = vld [vmem:[%s2595 + $0x1c] sm:$0xf]
        %v2604 = vld [vmem:[%s2595 + $0x20] sm:$0xf]
        %v2605 = vld [vmem:[%s2595 + $0x24] sm:$0xf]
        %v2606 = vld [vmem:[%s2595 + $0x28] sm:$0xf]
        %v2607 = vld [vmem:[%s2595 + $0x2c] sm:$0xf]
        %v2608 = vld [vmem:[%s2595 + $0x30] sm:$0xf]
        %v2609 = vld [vmem:[%s2595 + $0x34] sm:$0xf]
        %v2610 = vld [vmem:[%s2595 + $0x38] sm:$0xf]
        %v2611 = vld [vmem:[%s2595 + $0x3c] sm:$0xf]
        %v2628 = vunpack.c.l.b16 %v2596
        %v2629 = vunpack.c.l.b16 %v2597
        %v2630 = vunpack.c.l.b16 %v2598
        %v2631 = vunpack.c.l.b16 %v2599
        %v2632 = vunpack.c.l.b16 %v2600
        %v2633 = vunpack.c.l.b16 %v2601
        %v2634 = vunpack.c.l.b16 %v2602
        %v2635 = vunpack.c.l.b16 %v2603
        %v2636 = vunpack.c.l.b16 %v2604
        %v2637 = vunpack.c.l.b16 %v2605
        %v2638 = vunpack.c.l.b16 %v2606
        %v2639 = vunpack.c.l.b16 %v2607
        %v2640 = vunpack.c.l.b16 %v2608
        %v2641 = vunpack.c.l.b16 %v2609
        %v2642 = vunpack.c.l.b16 %v2610
        %v2643 = vunpack.c.l.b16 %v2611
        %v2644 = vpack.c.b16 %v2629, %v2628
        %v2645 = vpack.c.b16 %v2631, %v2630
        %v2646 = vpack.c.b16 %v2633, %v2632
        %v2647 = vpack.c.b16 %v2635, %v2634
        %v2648 = vpack.c.b16 %v2637, %v2636
        %v2649 = vpack.c.b16 %v2639, %v2638
        %v2650 = vpack.c.b16 %v2641, %v2640
        %v2651 = vpack.c.b16 %v2643, %v2642
        %2660 = vmatprep.subr.bf16.mxu0 0
        %2661 = vmatpush1.bf16.msra.mxu0 %v2644
        %2662 = vmatprep.subr.bf16.mxu0 0
        %2663 = vmatpush1.bf16.msra.mxu0 %v2645
        %2664 = vmatprep.subr.bf16.mxu0 0
        %2665 = vmatpush1.bf16.msra.mxu0 %v2646
        %2666 = vmatprep.subr.bf16.mxu0 0
        %2667 = vmatpush1.bf16.msra.mxu0 %v2647
        %2668 = vmatprep.subr.bf16.mxu0 0
        %2669 = vmatpush1.bf16.msra.mxu0 %v2648
        %2670 = vmatprep.subr.bf16.mxu0 0
        %2671 = vmatpush1.bf16.msra.mxu0 %v2649
        %2672 = vmatprep.subr.bf16.mxu0 0
        %2673 = vmatpush1.bf16.msra.mxu0 %v2650
        %2674 = vmatprep.subr.bf16.mxu0 0
        %2675 = vmatpush1.bf16.msra.mxu0 %v2651
        %2676 = vmatprep.subr.bf16.mxu0 0
        %2677 = vmatpush1.bf16.msra.mxu0 0
        %2678 = vmatprep.subr.bf16.mxu0 0
        %2679 = vmatpush1.bf16.msra.mxu0 0
        %2680 = vmatprep.subr.bf16.mxu0 0
        %2681 = vmatpush1.bf16.msra.mxu0 0
        %2682 = vmatprep.subr.bf16.mxu0 0
        %2683 = vmatpush1.bf16.msra.mxu0 0
        %2684 = vmatprep.subr.bf16.mxu0 0
        %2685 = vmatpush1.bf16.msra.mxu0 0
        %2686 = vmatprep.subr.bf16.mxu0 0
        %2687 = vmatpush1.bf16.msra.mxu0 0
        %2688 = vmatprep.subr.bf16.mxu0 0
        %2689 = vmatpush1.bf16.msra.mxu0 0
        %2690 = vmatprep.subr.bf16.mxu0 0
        %2691 = vmatpush1.bf16.msra.mxu0 0
        %2692 = vmatprep.mubr.bf16.mxu0 0
        %2693 = vmatmul.mubr.bf16.gmra.mrb[0].mxu0 %v2579
        %v2694 = vpop.f32.mrb[0].mxu0
        %v2695 = vadd.f32 0.0, %v2694
        %v2696 = vpop.f32.mrb[0].mxu0
        %v2697 = vpop.f32.mrb[0].mxu0
        %v2698 = vadd.f32 0.0, %v2697
        %v2699 = vpop.f32.mrb[0].mxu0
        %2700 = vmatprep.mubr.bf16.mxu0 0
        %2701 = vmatmul.mubr.bf16.gmra.mrb[0].mxu0 %v2580
        %v2702 = vpop.f32.mrb[0].mxu0
        %v2703 = vadd.f32 0.0, %v2702
        %v2704 = vpop.f32.mrb[0].mxu0
        %v2705 = vpop.f32.mrb[0].mxu0
        %v2706 = vadd.f32 0.0, %v2705
        %v2707 = vpop.f32.mrb[0].mxu0
        %2708 = vmatprep.mubr.bf16.mxu0 0
        %2709 = vmatmul.mubr.bf16.gmra.mrb[0].mxu0 %v2581
        %v2710 = vpop.f32.mrb[0].mxu0
        %v2711 = vadd.f32 0.0, %v2710
        %v2712 = vpop.f32.mrb[0].mxu0
        %v2713 = vpop.f32.mrb[0].mxu0
        %v2714 = vadd.f32 0.0, %v2713
        %v2715 = vpop.f32.mrb[0].mxu0
        %2716 = vmatprep.mubr.bf16.mxu0 0
        %2717 = vmatmul.mubr.bf16.gmra.mrb[0].mxu0 %v2582
        %v2718 = vpop.f32.mrb[0].mxu0
        %v2719 = vadd.f32 0.0, %v2718
        %v2720 = vpop.f32.mrb[0].mxu0
        %v2721 = vpop.f32.mrb[0].mxu0
        %v2722 = vadd.f32 0.0, %v2721
        %v2723 = vpop.f32.mrb[0].mxu0
        %2724 = vmatprep.mubr.bf16.mxu0 0
        %2725 = vmatmul.mubr.bf16.gmra.mrb[0].mxu0 %v2583
        %v2726 = vpop.f32.mrb[0].mxu0
        %v2727 = vadd.f32 0.0, %v2726
        %v2728 = vpop.f32.mrb[0].mxu0
        %v2729 = vpop.f32.mrb[0].mxu0
        %v2730 = vadd.f32 0.0, %v2729
        %v2731 = vpop.f32.mrb[0].mxu0
        %2732 = vmatprep.mubr.bf16.mxu0 0
        %2733 = vmatmul.mubr.bf16.gmra.mrb[0].mxu0 %v2584
        %v2734 = vpop.f32.mrb[0].mxu0
        %v2735 = vadd.f32 0.0, %v2734
        %v2736 = vpop.f32.mrb[0].mxu0
        %v2737 = vpop.f32.mrb[0].mxu0
        %v2738 = vadd.f32 0.0, %v2737
        %v2739 = vpop.f32.mrb[0].mxu0
        %2740 = vmatprep.mubr.bf16.mxu0 0
        %2741 = vmatmul.mubr.bf16.gmra.mrb[0].mxu0 %v2585
        %v2742 = vpop.f32.mrb[0].mxu0
        %v2743 = vadd.f32 0.0, %v2742
        %v2744 = vpop.f32.mrb[0].mxu0
        %v2745 = vpop.f32.mrb[0].mxu0
        %v2746 = vadd.f32 0.0, %v2745
        %v2747 = vpop.f32.mrb[0].mxu0
        %2748 = vmatprep.mubr.bf16.mxu0 0
        %2749 = vmatmul.mubr.bf16.gmra.mrb[0].mxu0 %v2586
        %v2750 = vpop.f32.mrb[0].mxu0
        %v2751 = vadd.f32 0.0, %v2750
        %v2752 = vpop.f32.mrb[0].mxu0
        %v2753 = vpop.f32.mrb[0].mxu0
        %v2754 = vadd.f32 0.0, %v2753
        %v2755 = vpop.f32.mrb[0].mxu0
        %2756 = vmatprep.mubr.bf16.mxu0 0
        %2757 = vmatmul.mubr.bf16.gmra.mrb[0].mxu0 %v2587
        %v2758 = vpop.f32.mrb[0].mxu0
        %v2759 = vadd.f32 0.0, %v2758
        %v2760 = vpop.f32.mrb[0].mxu0
        %v2761 = vpop.f32.mrb[0].mxu0
        %v2762 = vadd.f32 0.0, %v2761
        %v2763 = vpop.f32.mrb[0].mxu0
        %2764 = vmatprep.mubr.bf16.mxu0 0
        %2765 = vmatmul.mubr.bf16.gmra.mrb[0].mxu0 %v2588
        %v2766 = vpop.f32.mrb[0].mxu0
        %v2767 = vadd.f32 0.0, %v2766
        %v2768 = vpop.f32.mrb[0].mxu0
        %v2769 = vpop.f32.mrb[0].mxu0
        %v2770 = vadd.f32 0.0, %v2769
        %v2771 = vpop.f32.mrb[0].mxu0
        %2772 = vmatprep.mubr.bf16.mxu0 0
        %2773 = vmatmul.mubr.bf16.gmra.mrb[0].mxu0 %v2589
        %v2774 = vpop.f32.mrb[0].mxu0
        %v2775 = vadd.f32 0.0, %v2774
        %v2776 = vpop.f32.mrb[0].mxu0
        %v2777 = vpop.f32.mrb[0].mxu0
        %v2778 = vadd.f32 0.0, %v2777
        %v2779 = vpop.f32.mrb[0].mxu0
        %2780 = vmatprep.mubr.bf16.mxu0 0
        %2781 = vmatmul.mubr.bf16.gmra.mrb[0].mxu0 %v2590
        %v2782 = vpop.f32.mrb[0].mxu0
        %v2783 = vadd.f32 0.0, %v2782
        %v2784 = vpop.f32.mrb[0].mxu0
        %v2785 = vpop.f32.mrb[0].mxu0
        %v2786 = vadd.f32 0.0, %v2785
        %v2787 = vpop.f32.mrb[0].mxu0
        %2788 = vmatprep.mubr.bf16.mxu0 0
        %2789 = vmatmul.mubr.bf16.gmra.mrb[0].mxu0 %v2591
        %v2790 = vpop.f32.mrb[0].mxu0
        %v2791 = vadd.f32 0.0, %v2790
        %v2792 = vpop.f32.mrb[0].mxu0
        %v2793 = vpop.f32.mrb[0].mxu0
        %v2794 = vadd.f32 0.0, %v2793
        %v2795 = vpop.f32.mrb[0].mxu0
        %2796 = vmatprep.mubr.bf16.mxu0 0
        %2797 = vmatmul.mubr.bf16.gmra.mrb[0].mxu0 %v2592
        %v2798 = vpop.f32.mrb[0].mxu0
        %v2799 = vadd.f32 0.0, %v2798
        %v2800 = vpop.f32.mrb[0].mxu0
        %v2801 = vpop.f32.mrb[0].mxu0
        %v2802 = vadd.f32 0.0, %v2801
        %v2803 = vpop.f32.mrb[0].mxu0
        %2804 = vmatprep.mubr.bf16.mxu0 0
        %2805 = vmatmul.mubr.bf16.gmra.mrb[0].mxu0 %v2593
        %v2806 = vpop.f32.mrb[0].mxu0
        %v2807 = vadd.f32 0.0, %v2806
        %v2808 = vpop.f32.mrb[0].mxu0
        %v2809 = vpop.f32.mrb[0].mxu0
        %v2810 = vadd.f32 0.0, %v2809
        %v2811 = vpop.f32.mrb[0].mxu0
        %2812 = vmatprep.mubr.bf16.mxu0 0
        %2813 = vmatmul.mubr.bf16.gmra.mrb[0].mxu0 %v2594
        %v2814 = vpop.f32.mrb[0].mxu0
        %v2815 = vadd.f32 0.0, %v2814
        %v2816 = vpop.f32.mrb[0].mxu0
        %v2817 = vpop.f32.mrb[0].mxu0
        %v2818 = vadd.f32 0.0, %v2817
        %v2819 = vpop.f32.mrb[0].mxu0
        %2820 = vdwg.mxu0
        %v2821 = vadd.f32 %v2514, %v2695
        %v2822 = vadd.f32 %v2515, %v2698
        %v2823 = vadd.f32 %v2516, %v2703
        %v2824 = vadd.f32 %v2517, %v2706
        %v2825 = vadd.f32 %v2518, %v2711
        %v2826 = vadd.f32 %v2519, %v2714
        %v2827 = vadd.f32 %v2520, %v2719
        %v2828 = vadd.f32 %v2521, %v2722
        %v2829 = vadd.f32 %v2522, %v2727
        %v2830 = vadd.f32 %v2523, %v2730
        %v2831 = vadd.f32 %v2524, %v2735
        %v2832 = vadd.f32 %v2525, %v2738
        %v2833 = vadd.f32 %v2526, %v2743
        %v2834 = vadd.f32 %v2527, %v2746
        %v2835 = vadd.f32 %v2528, %v2751
        %v2836 = vadd.f32 %v2529, %v2754
        %v2837 = vadd.f32 %v2530, %v2759
        %v2838 = vadd.f32 %v2531, %v2762
        %v2839 = vadd.f32 %v2532, %v2767
        %v2840 = vadd.f32 %v2533, %v2770
        %v2841 = vadd.f32 %v2534, %v2775
        %v2842 = vadd.f32 %v2535, %v2778
        %v2843 = vadd.f32 %v2536, %v2783
        %v2844 = vadd.f32 %v2537, %v2786
        %v2845 = vadd.f32 %v2538, %v2791
        %v2846 = vadd.f32 %v2539, %v2794
        %v2847 = vadd.f32 %v2540, %v2799
        %v2848 = vadd.f32 %v2541, %v2802
        %v2849 = vadd.f32 %v2542, %v2807
        %v2850 = vadd.f32 %v2543, %v2810
        %v2851 = vadd.f32 %v2544, %v2815
        %v2852 = vadd.f32 %v2545, %v2818
        %v2853 = vld [vmem:[%s2546 + $0x1] sm:$0xff]
        %v2854 = vld [vmem:[%s2546 + $0x9] sm:$0xff]
        %v2855 = vld [vmem:[%s2546 + $0x19] sm:$0xff]
        %v2856 = vld [vmem:[%s2546 + $0x21] sm:$0xff]
        %v2857 = vld [vmem:[%s2546 + $0x31] sm:$0xff]
        %v2858 = vld [vmem:[%s2546 + $0x39] sm:$0xff]
        %v2859 = vld [vmem:[%s2546 + $0x49] sm:$0xff]
        %v2860 = vld [vmem:[%s2546 + $0x51] sm:$0xff]
        %v2861 = vld [vmem:[%s2546 + $0x61] sm:$0xff]
        %v2862 = vld [vmem:[%s2546 + $0x69] sm:$0xff]
        %v2863 = vld [vmem:[%s2546 + $0x79] sm:$0xff]
        %v2864 = vld [vmem:[%s2546 + $0x81] sm:$0xff]
        %v2865 = vld [vmem:[%s2546 + $0x91] sm:$0xff]
        %v2866 = vld [vmem:[%s2546 + $0x99] sm:$0xff]
        %v2867 = vld [vmem:[%s2546 + $0xa9] sm:$0xff]
        %v2868 = vld [vmem:[%s2546 + $0xb1] sm:$0xff]
        %v2869 = vld [vmem:[%s2546 + $0xc1] sm:$0xff]
        %v2870 = vld [vmem:[%s2546 + $0xc9] sm:$0xff]
        %v2871 = vld [vmem:[%s2546 + $0xd9] sm:$0xff]
        %v2872 = vld [vmem:[%s2546 + $0xe1] sm:$0xff]
        %v2873 = vld [vmem:[%s2546 + $0xf1] sm:$0xff]
        %v2874 = vld [vmem:[%s2546 + $0xf9] sm:$0xff]
        %v2875 = vld [vmem:[%s2546 + $0x109] sm:$0xff]
        %v2876 = vld [vmem:[%s2546 + $0x111] sm:$0xff]
        %v2877 = vld [vmem:[%s2546 + $0x121] sm:$0xff]
        %v2878 = vld [vmem:[%s2546 + $0x129] sm:$0xff]
        %v2879 = vld [vmem:[%s2546 + $0x139] sm:$0xff]
        %v2880 = vld [vmem:[%s2546 + $0x141] sm:$0xff]
        %v2881 = vld [vmem:[%s2546 + $0x151] sm:$0xff]
        %v2882 = vld [vmem:[%s2546 + $0x159] sm:$0xff]
        %v2883 = vld [vmem:[%s2546 + $0x169] sm:$0xff]
        %v2884 = vld [vmem:[%s2546 + $0x171] sm:$0xff]
        %v2885 = vpack.c.bf16 %v2854, %v2853
        %v2886 = vpack.c.bf16 %v2856, %v2855
        %v2887 = vpack.c.bf16 %v2858, %v2857
        %v2888 = vpack.c.bf16 %v2860, %v2859
        %v2889 = vpack.c.bf16 %v2862, %v2861
        %v2890 = vpack.c.bf16 %v2864, %v2863
        %v2891 = vpack.c.bf16 %v2866, %v2865
        %v2892 = vpack.c.bf16 %v2868, %v2867
        %v2893 = vpack.c.bf16 %v2870, %v2869
        %v2894 = vpack.c.bf16 %v2872, %v2871
        %v2895 = vpack.c.bf16 %v2874, %v2873
        %v2896 = vpack.c.bf16 %v2876, %v2875
        %v2897 = vpack.c.bf16 %v2878, %v2877
        %v2898 = vpack.c.bf16 %v2880, %v2879
        %v2899 = vpack.c.bf16 %v2882, %v2881
        %v2900 = vpack.c.bf16 %v2884, %v2883
        %s2901 = scalar_lea.vmem %s2, 448
        %v2902 = vld [vmem:[%s2901] sm:$0xf]
        %v2903 = vld [vmem:[%s2901 + $0x4] sm:$0xf]
        %v2904 = vld [vmem:[%s2901 + $0x8] sm:$0xf]
        %v2905 = vld [vmem:[%s2901 + $0xc] sm:$0xf]
        %v2906 = vld [vmem:[%s2901 + $0x10] sm:$0xf]
        %v2907 = vld [vmem:[%s2901 + $0x14] sm:$0xf]
        %v2908 = vld [vmem:[%s2901 + $0x18] sm:$0xf]
        %v2909 = vld [vmem:[%s2901 + $0x1c] sm:$0xf]
        %v2910 = vld [vmem:[%s2901 + $0x20] sm:$0xf]
        %v2911 = vld [vmem:[%s2901 + $0x24] sm:$0xf]
        %v2912 = vld [vmem:[%s2901 + $0x28] sm:$0xf]
        %v2913 = vld [vmem:[%s2901 + $0x2c] sm:$0xf]
        %v2914 = vld [vmem:[%s2901 + $0x30] sm:$0xf]
        %v2915 = vld [vmem:[%s2901 + $0x34] sm:$0xf]
        %v2916 = vld [vmem:[%s2901 + $0x38] sm:$0xf]
        %v2917 = vld [vmem:[%s2901 + $0x3c] sm:$0xf]
        %v2934 = vunpack.c.l.b16 %v2902
        %v2935 = vunpack.c.l.b16 %v2903
        %v2936 = vunpack.c.l.b16 %v2904
        %v2937 = vunpack.c.l.b16 %v2905
        %v2938 = vunpack.c.l.b16 %v2906
        %v2939 = vunpack.c.l.b16 %v2907
        %v2940 = vunpack.c.l.b16 %v2908
        %v2941 = vunpack.c.l.b16 %v2909
        %v2942 = vunpack.c.l.b16 %v2910
        %v2943 = vunpack.c.l.b16 %v2911
        %v2944 = vunpack.c.l.b16 %v2912
        %v2945 = vunpack.c.l.b16 %v2913
        %v2946 = vunpack.c.l.b16 %v2914
        %v2947 = vunpack.c.l.b16 %v2915
        %v2948 = vunpack.c.l.b16 %v2916
        %v2949 = vunpack.c.l.b16 %v2917
        %v2950 = vpack.c.b16 %v2935, %v2934
        %v2951 = vpack.c.b16 %v2937, %v2936
        %v2952 = vpack.c.b16 %v2939, %v2938
        %v2953 = vpack.c.b16 %v2941, %v2940
        %v2954 = vpack.c.b16 %v2943, %v2942
        %v2955 = vpack.c.b16 %v2945, %v2944
        %v2956 = vpack.c.b16 %v2947, %v2946
        %v2957 = vpack.c.b16 %v2949, %v2948
        %2966 = vmatprep.subr.bf16.mxu0 0
        %2967 = vmatpush1.bf16.msra.mxu0 %v2950
        %2968 = vmatprep.subr.bf16.mxu0 0
        %2969 = vmatpush1.bf16.msra.mxu0 %v2951
        %2970 = vmatprep.subr.bf16.mxu0 0
        %2971 = vmatpush1.bf16.msra.mxu0 %v2952
        %2972 = vmatprep.subr.bf16.mxu0 0
        %2973 = vmatpush1.bf16.msra.mxu0 %v2953
        %2974 = vmatprep.subr.bf16.mxu0 0
        %2975 = vmatpush1.bf16.msra.mxu0 %v2954
        %2976 = vmatprep.subr.bf16.mxu0 0
        %2977 = vmatpush1.bf16.msra.mxu0 %v2955
        %2978 = vmatprep.subr.bf16.mxu0 0
        %2979 = vmatpush1.bf16.msra.mxu0 %v2956
        %2980 = vmatprep.subr.bf16.mxu0 0
        %2981 = vmatpush1.bf16.msra.mxu0 %v2957
        %2982 = vmatprep.subr.bf16.mxu0 0
        %2983 = vmatpush1.bf16.msra.mxu0 0
        %2984 = vmatprep.subr.bf16.mxu0 0
        %2985 = vmatpush1.bf16.msra.mxu0 0
        %2986 = vmatprep.subr.bf16.mxu0 0
        %2987 = vmatpush1.bf16.msra.mxu0 0
        %2988 = vmatprep.subr.bf16.mxu0 0
        %2989 = vmatpush1.bf16.msra.mxu0 0
        %2990 = vmatprep.subr.bf16.mxu0 0
        %2991 = vmatpush1.bf16.msra.mxu0 0
        %2992 = vmatprep.subr.bf16.mxu0 0
        %2993 = vmatpush1.bf16.msra.mxu0 0
        %2994 = vmatprep.subr.bf16.mxu0 0
        %2995 = vmatpush1.bf16.msra.mxu0 0
        %2996 = vmatprep.subr.bf16.mxu0 0
        %2997 = vmatpush1.bf16.msra.mxu0 0
        %2998 = vmatprep.mubr.bf16.mxu0 0
        %2999 = vmatmul.mubr.bf16.gmra.mrb[0].mxu0 %v2885
        %v3000 = vpop.f32.mrb[0].mxu0
        %v3001 = vadd.f32 0.0, %v3000
        %v3002 = vpop.f32.mrb[0].mxu0
        %v3003 = vpop.f32.mrb[0].mxu0
        %v3004 = vadd.f32 0.0, %v3003
        %v3005 = vpop.f32.mrb[0].mxu0
        %3006 = vmatprep.mubr.bf16.mxu0 0
        %3007 = vmatmul.mubr.bf16.gmra.mrb[0].mxu0 %v2886
        %v3008 = vpop.f32.mrb[0].mxu0
        %v3009 = vadd.f32 0.0, %v3008
        %v3010 = vpop.f32.mrb[0].mxu0
        %v3011 = vpop.f32.mrb[0].mxu0
        %v3012 = vadd.f32 0.0, %v3011
        %v3013 = vpop.f32.mrb[0].mxu0
        %3014 = vmatprep.mubr.bf16.mxu0 0
        %3015 = vmatmul.mubr.bf16.gmra.mrb[0].mxu0 %v2887
        %v3016 = vpop.f32.mrb[0].mxu0
        %v3017 = vadd.f32 0.0, %v3016
        %v3018 = vpop.f32.mrb[0].mxu0
        %v3019 = vpop.f32.mrb[0].mxu0
        %v3020 = vadd.f32 0.0, %v3019
        %v3021 = vpop.f32.mrb[0].mxu0
        %3022 = vmatprep.mubr.bf16.mxu0 0
        %3023 = vmatmul.mubr.bf16.gmra.mrb[0].mxu0 %v2888
        %v3024 = vpop.f32.mrb[0].mxu0
        %v3025 = vadd.f32 0.0, %v3024
        %v3026 = vpop.f32.mrb[0].mxu0
        %v3027 = vpop.f32.mrb[0].mxu0
        %v3028 = vadd.f32 0.0, %v3027
        %v3029 = vpop.f32.mrb[0].mxu0
        %3030 = vmatprep.mubr.bf16.mxu0 0
        %3031 = vmatmul.mubr.bf16.gmra.mrb[0].mxu0 %v2889
        %v3032 = vpop.f32.mrb[0].mxu0
        %v3033 = vadd.f32 0.0, %v3032
        %v3034 = vpop.f32.mrb[0].mxu0
        %v3035 = vpop.f32.mrb[0].mxu0
        %v3036 = vadd.f32 0.0, %v3035
        %v3037 = vpop.f32.mrb[0].mxu0
        %3038 = vmatprep.mubr.bf16.mxu0 0
        %3039 = vmatmul.mubr.bf16.gmra.mrb[0].mxu0 %v2890
        %v3040 = vpop.f32.mrb[0].mxu0
        %v3041 = vadd.f32 0.0, %v3040
        %v3042 = vpop.f32.mrb[0].mxu0
        %v3043 = vpop.f32.mrb[0].mxu0
        %v3044 = vadd.f32 0.0, %v3043
        %v3045 = vpop.f32.mrb[0].mxu0
        %3046 = vmatprep.mubr.bf16.mxu0 0
        %3047 = vmatmul.mubr.bf16.gmra.mrb[0].mxu0 %v2891
        %v3048 = vpop.f32.mrb[0].mxu0
        %v3049 = vadd.f32 0.0, %v3048
        %v3050 = vpop.f32.mrb[0].mxu0
        %v3051 = vpop.f32.mrb[0].mxu0
        %v3052 = vadd.f32 0.0, %v3051
        %v3053 = vpop.f32.mrb[0].mxu0
        %3054 = vmatprep.mubr.bf16.mxu0 0
        %3055 = vmatmul.mubr.bf16.gmra.mrb[0].mxu0 %v2892
        %v3056 = vpop.f32.mrb[0].mxu0
        %v3057 = vadd.f32 0.0, %v3056
        %v3058 = vpop.f32.mrb[0].mxu0
        %v3059 = vpop.f32.mrb[0].mxu0
        %v3060 = vadd.f32 0.0, %v3059
        %v3061 = vpop.f32.mrb[0].mxu0
        %3062 = vmatprep.mubr.bf16.mxu0 0
        %3063 = vmatmul.mubr.bf16.gmra.mrb[0].mxu0 %v2893
        %v3064 = vpop.f32.mrb[0].mxu0
        %v3065 = vadd.f32 0.0, %v3064
        %v3066 = vpop.f32.mrb[0].mxu0
        %v3067 = vpop.f32.mrb[0].mxu0
        %v3068 = vadd.f32 0.0, %v3067
        %v3069 = vpop.f32.mrb[0].mxu0
        %3070 = vmatprep.mubr.bf16.mxu0 0
        %3071 = vmatmul.mubr.bf16.gmra.mrb[0].mxu0 %v2894
        %v3072 = vpop.f32.mrb[0].mxu0
        %v3073 = vadd.f32 0.0, %v3072
        %v3074 = vpop.f32.mrb[0].mxu0
        %v3075 = vpop.f32.mrb[0].mxu0
        %v3076 = vadd.f32 0.0, %v3075
        %v3077 = vpop.f32.mrb[0].mxu0
        %3078 = vmatprep.mubr.bf16.mxu0 0
        %3079 = vmatmul.mubr.bf16.gmra.mrb[0].mxu0 %v2895
        %v3080 = vpop.f32.mrb[0].mxu0
        %v3081 = vadd.f32 0.0, %v3080
        %v3082 = vpop.f32.mrb[0].mxu0
        %v3083 = vpop.f32.mrb[0].mxu0
        %v3084 = vadd.f32 0.0, %v3083
        %v3085 = vpop.f32.mrb[0].mxu0
        %3086 = vmatprep.mubr.bf16.mxu0 0
        %3087 = vmatmul.mubr.bf16.gmra.mrb[0].mxu0 %v2896
        %v3088 = vpop.f32.mrb[0].mxu0
        %v3089 = vadd.f32 0.0, %v3088
        %v3090 = vpop.f32.mrb[0].mxu0
        %v3091 = vpop.f32.mrb[0].mxu0
        %v3092 = vadd.f32 0.0, %v3091
        %v3093 = vpop.f32.mrb[0].mxu0
        %3094 = vmatprep.mubr.bf16.mxu0 0
        %3095 = vmatmul.mubr.bf16.gmra.mrb[0].mxu0 %v2897
        %v3096 = vpop.f32.mrb[0].mxu0
        %v3097 = vadd.f32 0.0, %v3096
        %v3098 = vpop.f32.mrb[0].mxu0
        %v3099 = vpop.f32.mrb[0].mxu0
        %v3100 = vadd.f32 0.0, %v3099
        %v3101 = vpop.f32.mrb[0].mxu0
        %3102 = vmatprep.mubr.bf16.mxu0 0
        %3103 = vmatmul.mubr.bf16.gmra.mrb[0].mxu0 %v2898
        %v3104 = vpop.f32.mrb[0].mxu0
        %v3105 = vadd.f32 0.0, %v3104
        %v3106 = vpop.f32.mrb[0].mxu0
        %v3107 = vpop.f32.mrb[0].mxu0
        %v3108 = vadd.f32 0.0, %v3107
        %v3109 = vpop.f32.mrb[0].mxu0
        %3110 = vmatprep.mubr.bf16.mxu0 0
        %3111 = vmatmul.mubr.bf16.gmra.mrb[0].mxu0 %v2899
        %v3112 = vpop.f32.mrb[0].mxu0
        %v3113 = vadd.f32 0.0, %v3112
        %v3114 = vpop.f32.mrb[0].mxu0
        %v3115 = vpop.f32.mrb[0].mxu0
        %v3116 = vadd.f32 0.0, %v3115
        %v3117 = vpop.f32.mrb[0].mxu0
        %3118 = vmatprep.mubr.bf16.mxu0 0
        %3119 = vmatmul.mubr.bf16.gmra.mrb[0].mxu0 %v2900
        %v3120 = vpop.f32.mrb[0].mxu0
        %v3121 = vadd.f32 0.0, %v3120
        %v3122 = vpop.f32.mrb[0].mxu0
        %v3123 = vpop.f32.mrb[0].mxu0
        %v3124 = vadd.f32 0.0, %v3123
        %v3125 = vpop.f32.mrb[0].mxu0
        %3126 = vdwg.mxu0
        %v3127 = vadd.f32 %v2821, %v3001
        %v3128 = vadd.f32 %v2822, %v3004
        %v3129 = vadd.f32 %v2823, %v3009
        %v3130 = vadd.f32 %v2824, %v3012
        %v3131 = vadd.f32 %v2825, %v3017
        %v3132 = vadd.f32 %v2826, %v3020
        %v3133 = vadd.f32 %v2827, %v3025
        %v3134 = vadd.f32 %v2828, %v3028
        %v3135 = vadd.f32 %v2829, %v3033
        %v3136 = vadd.f32 %v2830, %v3036
        %v3137 = vadd.f32 %v2831, %v3041
        %v3138 = vadd.f32 %v2832, %v3044
        %v3139 = vadd.f32 %v2833, %v3049
        %v3140 = vadd.f32 %v2834, %v3052
        %v3141 = vadd.f32 %v2835, %v3057
        %v3142 = vadd.f32 %v2836, %v3060
        %v3143 = vadd.f32 %v2837, %v3065
        %v3144 = vadd.f32 %v2838, %v3068
        %v3145 = vadd.f32 %v2839, %v3073
        %v3146 = vadd.f32 %v2840, %v3076
        %v3147 = vadd.f32 %v2841, %v3081
        %v3148 = vadd.f32 %v2842, %v3084
        %v3149 = vadd.f32 %v2843, %v3089
        %v3150 = vadd.f32 %v2844, %v3092
        %v3151 = vadd.f32 %v2845, %v3097
        %v3152 = vadd.f32 %v2846, %v3100
        %v3153 = vadd.f32 %v2847, %v3105
        %v3154 = vadd.f32 %v2848, %v3108
        %v3155 = vadd.f32 %v2849, %v3113
        %v3156 = vadd.f32 %v2850, %v3116
        %v3157 = vadd.f32 %v2851, %v3121
        %v3158 = vadd.f32 %v2852, %v3124
        %v3159 = vld [vmem:[%s2546 + $0x2] sm:$0xff]
        %v3160 = vld [vmem:[%s2546 + $0xa] sm:$0xff]
        %v3161 = vld [vmem:[%s2546 + $0x1a] sm:$0xff]
        %v3162 = vld [vmem:[%s2546 + $0x22] sm:$0xff]
        %v3163 = vld [vmem:[%s2546 + $0x32] sm:$0xff]
        %v3164 = vld [vmem:[%s2546 + $0x3a] sm:$0xff]
        %v3165 = vld [vmem:[%s2546 + $0x4a] sm:$0xff]
        %v3166 = vld [vmem:[%s2546 + $0x52] sm:$0xff]
        %v3167 = vld [vmem:[%s2546 + $0x62] sm:$0xff]
        %v3168 = vld [vmem:[%s2546 + $0x6a] sm:$0xff]
        %v3169 = vld [vmem:[%s2546 + $0x7a] sm:$0xff]
        %v3170 = vld [vmem:[%s2546 + $0x82] sm:$0xff]
        %v3171 = vld [vmem:[%s2546 + $0x92] sm:$0xff]
        %v3172 = vld [vmem:[%s2546 + $0x9a] sm:$0xff]
        %v3173 = vld [vmem:[%s2546 + $0xaa] sm:$0xff]
        %v3174 = vld [vmem:[%s2546 + $0xb2] sm:$0xff]
        %v3175 = vld [vmem:[%s2546 + $0xc2] sm:$0xff]
        %v3176 = vld [vmem:[%s2546 + $0xca] sm:$0xff]
        %v3177 = vld [vmem:[%s2546 + $0xda] sm:$0xff]
        %v3178 = vld [vmem:[%s2546 + $0xe2] sm:$0xff]
        %v3179 = vld [vmem:[%s2546 + $0xf2] sm:$0xff]
        %v3180 = vld [vmem:[%s2546 + $0xfa] sm:$0xff]
        %v3181 = vld [vmem:[%s2546 + $0x10a] sm:$0xff]
        %v3182 = vld [vmem:[%s2546 + $0x112] sm:$0xff]
        %v3183 = vld [vmem:[%s2546 + $0x122] sm:$0xff]
        %v3184 = vld [vmem:[%s2546 + $0x12a] sm:$0xff]
        %v3185 = vld [vmem:[%s2546 + $0x13a] sm:$0xff]
        %v3186 = vld [vmem:[%s2546 + $0x142] sm:$0xff]
        %v3187 = vld [vmem:[%s2546 + $0x152] sm:$0xff]
        %v3188 = vld [vmem:[%s2546 + $0x15a] sm:$0xff]
        %v3189 = vld [vmem:[%s2546 + $0x16a] sm:$0xff]
        %v3190 = vld [vmem:[%s2546 + $0x172] sm:$0xff]
        %v3191 = vpack.c.bf16 %v3160, %v3159
        %v3192 = vpack.c.bf16 %v3162, %v3161
        %v3193 = vpack.c.bf16 %v3164, %v3163
        %v3194 = vpack.c.bf16 %v3166, %v3165
        %v3195 = vpack.c.bf16 %v3168, %v3167
        %v3196 = vpack.c.bf16 %v3170, %v3169
        %v3197 = vpack.c.bf16 %v3172, %v3171
        %v3198 = vpack.c.bf16 %v3174, %v3173
        %v3199 = vpack.c.bf16 %v3176, %v3175
        %v3200 = vpack.c.bf16 %v3178, %v3177
        %v3201 = vpack.c.bf16 %v3180, %v3179
        %v3202 = vpack.c.bf16 %v3182, %v3181
        %v3203 = vpack.c.bf16 %v3184, %v3183
        %v3204 = vpack.c.bf16 %v3186, %v3185
        %v3205 = vpack.c.bf16 %v3188, %v3187
        %v3206 = vpack.c.bf16 %v3190, %v3189
        %s3207 = scalar_lea.vmem %s2, 512
        %v3208 = vld [vmem:[%s3207] sm:$0xf]
        %v3209 = vld [vmem:[%s3207 + $0x4] sm:$0xf]
        %v3210 = vld [vmem:[%s3207 + $0x8] sm:$0xf]
        %v3211 = vld [vmem:[%s3207 + $0xc] sm:$0xf]
        %v3212 = vld [vmem:[%s3207 + $0x10] sm:$0xf]
        %v3213 = vld [vmem:[%s3207 + $0x14] sm:$0xf]
        %v3214 = vld [vmem:[%s3207 + $0x18] sm:$0xf]
        %v3215 = vld [vmem:[%s3207 + $0x1c] sm:$0xf]
        %v3216 = vld [vmem:[%s3207 + $0x20] sm:$0xf]
        %v3217 = vld [vmem:[%s3207 + $0x24] sm:$0xf]
        %v3218 = vld [vmem:[%s3207 + $0x28] sm:$0xf]
        %v3219 = vld [vmem:[%s3207 + $0x2c] sm:$0xf]
        %v3220 = vld [vmem:[%s3207 + $0x30] sm:$0xf]
        %v3221 = vld [vmem:[%s3207 + $0x34] sm:$0xf]
        %v3222 = vld [vmem:[%s3207 + $0x38] sm:$0xf]
        %v3223 = vld [vmem:[%s3207 + $0x3c] sm:$0xf]
        %v3240 = vunpack.c.l.b16 %v3208
        %v3241 = vunpack.c.l.b16 %v3209
        %v3242 = vunpack.c.l.b16 %v3210
        %v3243 = vunpack.c.l.b16 %v3211
        %v3244 = vunpack.c.l.b16 %v3212
        %v3245 = vunpack.c.l.b16 %v3213
        %v3246 = vunpack.c.l.b16 %v3214
        %v3247 = vunpack.c.l.b16 %v3215
        %v3248 = vunpack.c.l.b16 %v3216
        %v3249 = vunpack.c.l.b16 %v3217
        %v3250 = vunpack.c.l.b16 %v3218
        %v3251 = vunpack.c.l.b16 %v3219
        %v3252 = vunpack.c.l.b16 %v3220
        %v3253 = vunpack.c.l.b16 %v3221
        %v3254 = vunpack.c.l.b16 %v3222
        %v3255 = vunpack.c.l.b16 %v3223
        %v3256 = vpack.c.b16 %v3241, %v3240
        %v3257 = vpack.c.b16 %v3243, %v3242
        %v3258 = vpack.c.b16 %v3245, %v3244
        %v3259 = vpack.c.b16 %v3247, %v3246
        %v3260 = vpack.c.b16 %v3249, %v3248
        %v3261 = vpack.c.b16 %v3251, %v3250
        %v3262 = vpack.c.b16 %v3253, %v3252
        %v3263 = vpack.c.b16 %v3255, %v3254
        %3272 = vmatprep.subr.bf16.mxu0 0
        %3273 = vmatpush1.bf16.msra.mxu0 %v3256
        %3274 = vmatprep.subr.bf16.mxu0 0
        %3275 = vmatpush1.bf16.msra.mxu0 %v3257
        %3276 = vmatprep.subr.bf16.mxu0 0
        %3277 = vmatpush1.bf16.msra.mxu0 %v3258
        %3278 = vmatprep.subr.bf16.mxu0 0
        %3279 = vmatpush1.bf16.msra.mxu0 %v3259
        %3280 = vmatprep.subr.bf16.mxu0 0
        %3281 = vmatpush1.bf16.msra.mxu0 %v3260
        %3282 = vmatprep.subr.bf16.mxu0 0
        %3283 = vmatpush1.bf16.msra.mxu0 %v3261
        %3284 = vmatprep.subr.bf16.mxu0 0
        %3285 = vmatpush1.bf16.msra.mxu0 %v3262
        %3286 = vmatprep.subr.bf16.mxu0 0
        %3287 = vmatpush1.bf16.msra.mxu0 %v3263
        %3288 = vmatprep.subr.bf16.mxu0 0
        %3289 = vmatpush1.bf16.msra.mxu0 0
        %3290 = vmatprep.subr.bf16.mxu0 0
        %3291 = vmatpush1.bf16.msra.mxu0 0
        %3292 = vmatprep.subr.bf16.mxu0 0
        %3293 = vmatpush1.bf16.msra.mxu0 0
        %3294 = vmatprep.subr.bf16.mxu0 0
        %3295 = vmatpush1.bf16.msra.mxu0 0
        %3296 = vmatprep.subr.bf16.mxu0 0
        %3297 = vmatpush1.bf16.msra.mxu0 0
        %3298 = vmatprep.subr.bf16.mxu0 0
        %3299 = vmatpush1.bf16.msra.mxu0 0
        %3300 = vmatprep.subr.bf16.mxu0 0
        %3301 = vmatpush1.bf16.msra.mxu0 0
        %3302 = vmatprep.subr.bf16.mxu0 0
        %3303 = vmatpush1.bf16.msra.mxu0 0
        %3304 = vmatprep.mubr.bf16.mxu0 0
        %3305 = vmatmul.mubr.bf16.gmra.mrb[0].mxu0 %v3191
        %v3306 = vpop.f32.mrb[0].mxu0
        %v3307 = vadd.f32 0.0, %v3306
        %v3308 = vpop.f32.mrb[0].mxu0
        %v3309 = vpop.f32.mrb[0].mxu0
        %v3310 = vadd.f32 0.0, %v3309
        %v3311 = vpop.f32.mrb[0].mxu0
        %3312 = vmatprep.mubr.bf16.mxu0 0
        %3313 = vmatmul.mubr.bf16.gmra.mrb[0].mxu0 %v3192
        %v3314 = vpop.f32.mrb[0].mxu0
        %v3315 = vadd.f32 0.0, %v3314
        %v3316 = vpop.f32.mrb[0].mxu0
        %v3317 = vpop.f32.mrb[0].mxu0
        %v3318 = vadd.f32 0.0, %v3317
        %v3319 = vpop.f32.mrb[0].mxu0
        %3320 = vmatprep.mubr.bf16.mxu0 0
        %3321 = vmatmul.mubr.bf16.gmra.mrb[0].mxu0 %v3193
        %v3322 = vpop.f32.mrb[0].mxu0
        %v3323 = vadd.f32 0.0, %v3322
        %v3324 = vpop.f32.mrb[0].mxu0
        %v3325 = vpop.f32.mrb[0].mxu0
        %v3326 = vadd.f32 0.0, %v3325
        %v3327 = vpop.f32.mrb[0].mxu0
        %3328 = vmatprep.mubr.bf16.mxu0 0
        %3329 = vmatmul.mubr.bf16.gmra.mrb[0].mxu0 %v3194
        %v3330 = vpop.f32.mrb[0].mxu0
        %v3331 = vadd.f32 0.0, %v3330
        %v3332 = vpop.f32.mrb[0].mxu0
        %v3333 = vpop.f32.mrb[0].mxu0
        %v3334 = vadd.f32 0.0, %v3333
        %v3335 = vpop.f32.mrb[0].mxu0
        %3336 = vmatprep.mubr.bf16.mxu0 0
        %3337 = vmatmul.mubr.bf16.gmra.mrb[0].mxu0 %v3195
        %v3338 = vpop.f32.mrb[0].mxu0
        %v3339 = vadd.f32 0.0, %v3338
        %v3340 = vpop.f32.mrb[0].mxu0
        %v3341 = vpop.f32.mrb[0].mxu0
        %v3342 = vadd.f32 0.0, %v3341
        %v3343 = vpop.f32.mrb[0].mxu0
        %3344 = vmatprep.mubr.bf16.mxu0 0
        %3345 = vmatmul.mubr.bf16.gmra.mrb[0].mxu0 %v3196
        %v3346 = vpop.f32.mrb[0].mxu0
        %v3347 = vadd.f32 0.0, %v3346
        %v3348 = vpop.f32.mrb[0].mxu0
        %v3349 = vpop.f32.mrb[0].mxu0
        %v3350 = vadd.f32 0.0, %v3349
        %v3351 = vpop.f32.mrb[0].mxu0
        %3352 = vmatprep.mubr.bf16.mxu0 0
        %3353 = vmatmul.mubr.bf16.gmra.mrb[0].mxu0 %v3197
        %v3354 = vpop.f32.mrb[0].mxu0
        %v3355 = vadd.f32 0.0, %v3354
        %v3356 = vpop.f32.mrb[0].mxu0
        %v3357 = vpop.f32.mrb[0].mxu0
        %v3358 = vadd.f32 0.0, %v3357
        %v3359 = vpop.f32.mrb[0].mxu0
        %3360 = vmatprep.mubr.bf16.mxu0 0
        %3361 = vmatmul.mubr.bf16.gmra.mrb[0].mxu0 %v3198
        %v3362 = vpop.f32.mrb[0].mxu0
        %v3363 = vadd.f32 0.0, %v3362
        %v3364 = vpop.f32.mrb[0].mxu0
        %v3365 = vpop.f32.mrb[0].mxu0
        %v3366 = vadd.f32 0.0, %v3365
        %v3367 = vpop.f32.mrb[0].mxu0
        %3368 = vmatprep.mubr.bf16.mxu0 0
        %3369 = vmatmul.mubr.bf16.gmra.mrb[0].mxu0 %v3199
        %v3370 = vpop.f32.mrb[0].mxu0
        %v3371 = vadd.f32 0.0, %v3370
        %v3372 = vpop.f32.mrb[0].mxu0
        %v3373 = vpop.f32.mrb[0].mxu0
        %v3374 = vadd.f32 0.0, %v3373
        %v3375 = vpop.f32.mrb[0].mxu0
        %3376 = vmatprep.mubr.bf16.mxu0 0
        %3377 = vmatmul.mubr.bf16.gmra.mrb[0].mxu0 %v3200
        %v3378 = vpop.f32.mrb[0].mxu0
        %v3379 = vadd.f32 0.0, %v3378
        %v3380 = vpop.f32.mrb[0].mxu0
        %v3381 = vpop.f32.mrb[0].mxu0
        %v3382 = vadd.f32 0.0, %v3381
        %v3383 = vpop.f32.mrb[0].mxu0
        %3384 = vmatprep.mubr.bf16.mxu0 0
        %3385 = vmatmul.mubr.bf16.gmra.mrb[0].mxu0 %v3201
        %v3386 = vpop.f32.mrb[0].mxu0
        %v3387 = vadd.f32 0.0, %v3386
        %v3388 = vpop.f32.mrb[0].mxu0
        %v3389 = vpop.f32.mrb[0].mxu0
        %v3390 = vadd.f32 0.0, %v3389
        %v3391 = vpop.f32.mrb[0].mxu0
        %3392 = vmatprep.mubr.bf16.mxu0 0
        %3393 = vmatmul.mubr.bf16.gmra.mrb[0].mxu0 %v3202
        %v3394 = vpop.f32.mrb[0].mxu0
        %v3395 = vadd.f32 0.0, %v3394
        %v3396 = vpop.f32.mrb[0].mxu0
        %v3397 = vpop.f32.mrb[0].mxu0
        %v3398 = vadd.f32 0.0, %v3397
        %v3399 = vpop.f32.mrb[0].mxu0
        %3400 = vmatprep.mubr.bf16.mxu0 0
        %3401 = vmatmul.mubr.bf16.gmra.mrb[0].mxu0 %v3203
        %v3402 = vpop.f32.mrb[0].mxu0
        %v3403 = vadd.f32 0.0, %v3402
        %v3404 = vpop.f32.mrb[0].mxu0
        %v3405 = vpop.f32.mrb[0].mxu0
        %v3406 = vadd.f32 0.0, %v3405
        %v3407 = vpop.f32.mrb[0].mxu0
        %3408 = vmatprep.mubr.bf16.mxu0 0
        %3409 = vmatmul.mubr.bf16.gmra.mrb[0].mxu0 %v3204
        %v3410 = vpop.f32.mrb[0].mxu0
        %v3411 = vadd.f32 0.0, %v3410
        %v3412 = vpop.f32.mrb[0].mxu0
        %v3413 = vpop.f32.mrb[0].mxu0
        %v3414 = vadd.f32 0.0, %v3413
        %v3415 = vpop.f32.mrb[0].mxu0
        %3416 = vmatprep.mubr.bf16.mxu0 0
        %3417 = vmatmul.mubr.bf16.gmra.mrb[0].mxu0 %v3205
        %v3418 = vpop.f32.mrb[0].mxu0
        %v3419 = vadd.f32 0.0, %v3418
        %v3420 = vpop.f32.mrb[0].mxu0
        %v3421 = vpop.f32.mrb[0].mxu0
        %v3422 = vadd.f32 0.0, %v3421
        %v3423 = vpop.f32.mrb[0].mxu0
        %3424 = vmatprep.mubr.bf16.mxu0 0
        %3425 = vmatmul.mubr.bf16.gmra.mrb[0].mxu0 %v3206
        %v3426 = vpop.f32.mrb[0].mxu0
        %v3427 = vadd.f32 0.0, %v3426
        %v3428 = vpop.f32.mrb[0].mxu0
        %v3429 = vpop.f32.mrb[0].mxu0
        %v3430 = vadd.f32 0.0, %v3429
        %v3431 = vpop.f32.mrb[0].mxu0
        %3432 = vdwg.mxu0
        %v3433 = vadd.f32 %v3127, %v3307
        %v3434 = vadd.f32 %v3128, %v3310
        %v3435 = vadd.f32 %v3129, %v3315
        %v3436 = vadd.f32 %v3130, %v3318
        %v3437 = vadd.f32 %v3131, %v3323
        %v3438 = vadd.f32 %v3132, %v3326
        %v3439 = vadd.f32 %v3133, %v3331
        %v3440 = vadd.f32 %v3134, %v3334
        %v3441 = vadd.f32 %v3135, %v3339
        %v3442 = vadd.f32 %v3136, %v3342
        %v3443 = vadd.f32 %v3137, %v3347
        %v3444 = vadd.f32 %v3138, %v3350
        %v3445 = vadd.f32 %v3139, %v3355
        %v3446 = vadd.f32 %v3140, %v3358
        %v3447 = vadd.f32 %v3141, %v3363
        %v3448 = vadd.f32 %v3142, %v3366
        %v3449 = vadd.f32 %v3143, %v3371
        %v3450 = vadd.f32 %v3144, %v3374
        %v3451 = vadd.f32 %v3145, %v3379
        %v3452 = vadd.f32 %v3146, %v3382
        %v3453 = vadd.f32 %v3147, %v3387
        %v3454 = vadd.f32 %v3148, %v3390
        %v3455 = vadd.f32 %v3149, %v3395
        %v3456 = vadd.f32 %v3150, %v3398
        %v3457 = vadd.f32 %v3151, %v3403
        %v3458 = vadd.f32 %v3152, %v3406
        %v3459 = vadd.f32 %v3153, %v3411
        %v3460 = vadd.f32 %v3154, %v3414
        %v3461 = vadd.f32 %v3155, %v3419
        %v3462 = vadd.f32 %v3156, %v3422
        %v3463 = vadd.f32 %v3157, %v3427
        %v3464 = vadd.f32 %v3158, %v3430
        %v3465 = vmax.f32 %v3433, 0.0
        %v3466 = vmax.f32 %v3434, 0.0
        %v3467 = vmax.f32 %v3435, 0.0
        %v3468 = vmax.f32 %v3436, 0.0
        %v3469 = vmax.f32 %v3437, 0.0
        %v3470 = vmax.f32 %v3438, 0.0
        %v3471 = vmax.f32 %v3439, 0.0
        %v3472 = vmax.f32 %v3440, 0.0
        %v3473 = vmax.f32 %v3441, 0.0
        %v3474 = vmax.f32 %v3442, 0.0
        %v3475 = vmax.f32 %v3443, 0.0
        %v3476 = vmax.f32 %v3444, 0.0
        %v3477 = vmax.f32 %v3445, 0.0
        %v3478 = vmax.f32 %v3446, 0.0
        %v3479 = vmax.f32 %v3447, 0.0
        %v3480 = vmax.f32 %v3448, 0.0
        %v3481 = vmax.f32 %v3449, 0.0
        %v3482 = vmax.f32 %v3450, 0.0
        %v3483 = vmax.f32 %v3451, 0.0
        %v3484 = vmax.f32 %v3452, 0.0
        %v3485 = vmax.f32 %v3453, 0.0
        %v3486 = vmax.f32 %v3454, 0.0
        %v3487 = vmax.f32 %v3455, 0.0
        %v3488 = vmax.f32 %v3456, 0.0
        %v3489 = vmax.f32 %v3457, 0.0
        %v3490 = vmax.f32 %v3458, 0.0
        %v3491 = vmax.f32 %v3459, 0.0
        %v3492 = vmax.f32 %v3460, 0.0
        %v3493 = vmax.f32 %v3461, 0.0
        %v3494 = vmax.f32 %v3462, 0.0
        %v3495 = vmax.f32 %v3463, 0.0
        %v3496 = vmax.f32 %v3464, 0.0
        %v3497 = vmin.f32 %v3433, 0.0
        %v3498 = vmin.f32 %v3434, 0.0
        %v3499 = vmin.f32 %v3435, 0.0
        %v3500 = vmin.f32 %v3436, 0.0
        %v3501 = vmin.f32 %v3437, 0.0
        %v3502 = vmin.f32 %v3438, 0.0
        %v3503 = vmin.f32 %v3439, 0.0
        %v3504 = vmin.f32 %v3440, 0.0
        %v3505 = vmin.f32 %v3441, 0.0
        %v3506 = vmin.f32 %v3442, 0.0
        %v3507 = vmin.f32 %v3443, 0.0
        %v3508 = vmin.f32 %v3444, 0.0
        %v3509 = vmin.f32 %v3445, 0.0
        %v3510 = vmin.f32 %v3446, 0.0
        %v3511 = vmin.f32 %v3447, 0.0
        %v3512 = vmin.f32 %v3448, 0.0
        %v3513 = vmin.f32 %v3449, 0.0
        %v3514 = vmin.f32 %v3450, 0.0
        %v3515 = vmin.f32 %v3451, 0.0
        %v3516 = vmin.f32 %v3452, 0.0
        %v3517 = vmin.f32 %v3453, 0.0
        %v3518 = vmin.f32 %v3454, 0.0
        %v3519 = vmin.f32 %v3455, 0.0
        %v3520 = vmin.f32 %v3456, 0.0
        %v3521 = vmin.f32 %v3457, 0.0
        %v3522 = vmin.f32 %v3458, 0.0
        %v3523 = vmin.f32 %v3459, 0.0
        %v3524 = vmin.f32 %v3460, 0.0
        %v3525 = vmin.f32 %v3461, 0.0
        %v3526 = vmin.f32 %v3462, 0.0
        %v3527 = vmin.f32 %v3463, 0.0
        %v3528 = vmin.f32 %v3464, 0.0
        %v3529 = vstv %s295
        %v3530 = vmul.f32 %v3529, %v3497
        %v3531 = vmul.f32 %v3529, %v3498
        %v3532 = vmul.f32 %v3529, %v3499
        %v3533 = vmul.f32 %v3529, %v3500
        %v3534 = vmul.f32 %v3529, %v3501
        %v3535 = vmul.f32 %v3529, %v3502
        %v3536 = vmul.f32 %v3529, %v3503
        %v3537 = vmul.f32 %v3529, %v3504
        %v3538 = vmul.f32 %v3529, %v3505
        %v3539 = vmul.f32 %v3529, %v3506
        %v3540 = vmul.f32 %v3529, %v3507
        %v3541 = vmul.f32 %v3529, %v3508
        %v3542 = vmul.f32 %v3529, %v3509
        %v3543 = vmul.f32 %v3529, %v3510
        %v3544 = vmul.f32 %v3529, %v3511
        %v3545 = vmul.f32 %v3529, %v3512
        %v3546 = vmul.f32 %v3529, %v3513
        %v3547 = vmul.f32 %v3529, %v3514
        %v3548 = vmul.f32 %v3529, %v3515
        %v3549 = vmul.f32 %v3529, %v3516
        %v3550 = vmul.f32 %v3529, %v3517
        %v3551 = vmul.f32 %v3529, %v3518
        %v3552 = vmul.f32 %v3529, %v3519
        %v3553 = vmul.f32 %v3529, %v3520
        %v3554 = vmul.f32 %v3529, %v3521
        %v3555 = vmul.f32 %v3529, %v3522
        %v3556 = vmul.f32 %v3529, %v3523
        %v3557 = vmul.f32 %v3529, %v3524
        %v3558 = vmul.f32 %v3529, %v3525
        %v3559 = vmul.f32 %v3529, %v3526
        %v3560 = vmul.f32 %v3529, %v3527
        %v3561 = vmul.f32 %v3529, %v3528
        %v3562 = vadd.f32 %v3465, %v3530
        %v3563 = vadd.f32 %v3466, %v3531
        %v3564 = vadd.f32 %v3467, %v3532
        %v3565 = vadd.f32 %v3468, %v3533
        %v3566 = vadd.f32 %v3469, %v3534
        %v3567 = vadd.f32 %v3470, %v3535
        %v3568 = vadd.f32 %v3471, %v3536
        %v3569 = vadd.f32 %v3472, %v3537
        %v3570 = vadd.f32 %v3473, %v3538
        %v3571 = vadd.f32 %v3474, %v3539
        %v3572 = vadd.f32 %v3475, %v3540
        %v3573 = vadd.f32 %v3476, %v3541
        %v3574 = vadd.f32 %v3477, %v3542
        %v3575 = vadd.f32 %v3478, %v3543
        %v3576 = vadd.f32 %v3479, %v3544
        %v3577 = vadd.f32 %v3480, %v3545
        %v3578 = vadd.f32 %v3481, %v3546
        %v3579 = vadd.f32 %v3482, %v3547
        %v3580 = vadd.f32 %v3483, %v3548
        %v3581 = vadd.f32 %v3484, %v3549
        %v3582 = vadd.f32 %v3485, %v3550
        %v3583 = vadd.f32 %v3486, %v3551
        %v3584 = vadd.f32 %v3487, %v3552
        %v3585 = vadd.f32 %v3488, %v3553
        %v3586 = vadd.f32 %v3489, %v3554
        %v3587 = vadd.f32 %v3490, %v3555
        %v3588 = vadd.f32 %v3491, %v3556
        %v3589 = vadd.f32 %v3492, %v3557
        %v3590 = vadd.f32 %v3493, %v3558
        %v3591 = vadd.f32 %v3494, %v3559
        %v3592 = vadd.f32 %v3495, %v3560
        %v3593 = vadd.f32 %v3496, %v3561
        %v3594 = vpack.c.bf16 %v3563, %v3562
        %v3595 = vpack.c.bf16 %v3565, %v3564
        %v3596 = vpack.c.bf16 %v3567, %v3566
        %v3597 = vpack.c.bf16 %v3569, %v3568
        %v3598 = vpack.c.bf16 %v3571, %v3570
        %v3599 = vpack.c.bf16 %v3573, %v3572
        %v3600 = vpack.c.bf16 %v3575, %v3574
        %v3601 = vpack.c.bf16 %v3577, %v3576
        %v3602 = vpack.c.bf16 %v3579, %v3578
        %v3603 = vpack.c.bf16 %v3581, %v3580
        %v3604 = vpack.c.bf16 %v3583, %v3582
        %v3605 = vpack.c.bf16 %v3585, %v3584
        %v3606 = vpack.c.bf16 %v3587, %v3586
        %v3607 = vpack.c.bf16 %v3589, %v3588
        %v3608 = vpack.c.bf16 %v3591, %v3590
        %v3609 = vpack.c.bf16 %v3593, %v3592
        %v3610 = vld [vmem:[%s3] sm:$0xf]
        %v3611 = vld [vmem:[%s3 + $0x4] sm:$0xf]
        %v3612 = vld [vmem:[%s3 + $0x8] sm:$0xf]
        %v3613 = vld [vmem:[%s3 + $0xc] sm:$0xf]
        %v3614 = vld [vmem:[%s3 + $0x10] sm:$0xf]
        %v3615 = vld [vmem:[%s3 + $0x14] sm:$0xf]
        %v3616 = vld [vmem:[%s3 + $0x18] sm:$0xf]
        %v3617 = vld [vmem:[%s3 + $0x1c] sm:$0xf]
        %v3618 = vld [vmem:[%s3 + $0x20] sm:$0xf]
        %v3619 = vld [vmem:[%s3 + $0x24] sm:$0xf]
        %v3620 = vld [vmem:[%s3 + $0x28] sm:$0xf]
        %v3621 = vld [vmem:[%s3 + $0x2c] sm:$0xf]
        %v3622 = vld [vmem:[%s3 + $0x30] sm:$0xf]
        %v3623 = vld [vmem:[%s3 + $0x34] sm:$0xf]
        %v3624 = vld [vmem:[%s3 + $0x38] sm:$0xf]
        %v3625 = vld [vmem:[%s3 + $0x3c] sm:$0xf]
        %v3626 = vld [vmem:[%s4] sm:$0x3]
        %v3628 = vsel %vm394, %v3626, 0
        %3630 = vmatprep.subr.bf16.mxu0 0
        %3631 = vmatpush1.bf16.msra.mxu0 %v3628
        %3632 = vmatprep.subr.bf16.mxu0 0
        %3633 = vmatpush1.bf16.msra.mxu0 0
        %3634 = vmatprep.subr.bf16.mxu0 0
        %3635 = vmatpush1.bf16.msra.mxu0 0
        %3636 = vmatprep.subr.bf16.mxu0 0
        %3637 = vmatpush1.bf16.msra.mxu0 0
        %3638 = vmatprep.subr.bf16.mxu0 0
        %3639 = vmatpush1.bf16.msra.mxu0 0
        %3640 = vmatprep.subr.bf16.mxu0 0
        %3641 = vmatpush1.bf16.msra.mxu0 0
        %3642 = vmatprep.subr.bf16.mxu0 0
        %3643 = vmatpush1.bf16.msra.mxu0 0
        %3644 = vmatprep.subr.bf16.mxu0 0
        %3645 = vmatpush1.bf16.msra.mxu0 0
        %3646 = vmatprep.subr.bf16.mxu0 0
        %3647 = vmatpush1.bf16.msra.mxu0 0
        %3648 = vmatprep.subr.bf16.mxu0 0
        %3649 = vmatpush1.bf16.msra.mxu0 0
        %3650 = vmatprep.subr.bf16.mxu0 0
        %3651 = vmatpush1.bf16.msra.mxu0 0
        %3652 = vmatprep.subr.bf16.mxu0 0
        %3653 = vmatpush1.bf16.msra.mxu0 0
        %3654 = vmatprep.subr.bf16.mxu0 0
        %3655 = vmatpush1.bf16.msra.mxu0 0
        %3656 = vmatprep.subr.bf16.mxu0 0
        %3657 = vmatpush1.bf16.msra.mxu0 0
        %3658 = vmatprep.subr.bf16.mxu0 0
        %3659 = vmatpush1.bf16.msra.mxu0 0
        %3660 = vmatprep.subr.bf16.mxu0 0
        %3661 = vmatpush1.bf16.msra.mxu0 0
        %3662 = vmatprep.mubr.bf16.mxu0 0
        %3663 = vmatmul.mubr.bf16.gmra.mrb[0].mxu0 %v347
        %v3664 = vpop.f32.mrb[0].mxu0
        %v3665 = vadd.f32 0.0, %v3664
        %v3666 = vpop.f32.mrb[0].mxu0
        %v3667 = vpop.f32.mrb[0].mxu0
        %v3668 = vadd.f32 0.0, %v3667
        %v3669 = vpop.f32.mrb[0].mxu0
        %3670 = vmatprep.mubr.bf16.mxu0 0
        %3671 = vmatmul.mubr.bf16.gmra.mrb[0].mxu0 %v350
        %v3672 = vpop.f32.mrb[0].mxu0
        %v3673 = vadd.f32 0.0, %v3672
        %v3674 = vpop.f32.mrb[0].mxu0
        %v3675 = vpop.f32.mrb[0].mxu0
        %v3676 = vadd.f32 0.0, %v3675
        %v3677 = vpop.f32.mrb[0].mxu0
        %3678 = vmatprep.mubr.bf16.mxu0 0
        %3679 = vmatmul.mubr.bf16.gmra.mrb[0].mxu0 %v353
        %v3680 = vpop.f32.mrb[0].mxu0
        %v3681 = vadd.f32 0.0, %v3680
        %v3682 = vpop.f32.mrb[0].mxu0
        %v3683 = vpop.f32.mrb[0].mxu0
        %v3684 = vadd.f32 0.0, %v3683
        %v3685 = vpop.f32.mrb[0].mxu0
        %3686 = vmatprep.mubr.bf16.mxu0 0
        %3687 = vmatmul.mubr.bf16.gmra.mrb[0].mxu0 %v356
        %v3688 = vpop.f32.mrb[0].mxu0
        %v3689 = vadd.f32 0.0, %v3688
        %v3690 = vpop.f32.mrb[0].mxu0
        %v3691 = vpop.f32.mrb[0].mxu0
        %v3692 = vadd.f32 0.0, %v3691
        %v3693 = vpop.f32.mrb[0].mxu0
        %3694 = vmatprep.mubr.bf16.mxu0 0
        %3695 = vmatmul.mubr.bf16.gmra.mrb[0].mxu0 %v359
        %v3696 = vpop.f32.mrb[0].mxu0
        %v3697 = vadd.f32 0.0, %v3696
        %v3698 = vpop.f32.mrb[0].mxu0
        %v3699 = vpop.f32.mrb[0].mxu0
        %v3700 = vadd.f32 0.0, %v3699
        %v3701 = vpop.f32.mrb[0].mxu0
        %3702 = vmatprep.mubr.bf16.mxu0 0
        %3703 = vmatmul.mubr.bf16.gmra.mrb[0].mxu0 %v362
        %v3704 = vpop.f32.mrb[0].mxu0
        %v3705 = vadd.f32 0.0, %v3704
        %v3706 = vpop.f32.mrb[0].mxu0
        %v3707 = vpop.f32.mrb[0].mxu0
        %v3708 = vadd.f32 0.0, %v3707
        %v3709 = vpop.f32.mrb[0].mxu0
        %3710 = vmatprep.mubr.bf16.mxu0 0
        %3711 = vmatmul.mubr.bf16.gmra.mrb[0].mxu0 %v365
        %v3712 = vpop.f32.mrb[0].mxu0
        %v3713 = vadd.f32 0.0, %v3712
        %v3714 = vpop.f32.mrb[0].mxu0
        %v3715 = vpop.f32.mrb[0].mxu0
        %v3716 = vadd.f32 0.0, %v3715
        %v3717 = vpop.f32.mrb[0].mxu0
        %3718 = vmatprep.mubr.bf16.mxu0 0
        %3719 = vmatmul.mubr.bf16.gmra.mrb[0].mxu0 %v368
        %v3720 = vpop.f32.mrb[0].mxu0
        %v3721 = vadd.f32 0.0, %v3720
        %v3722 = vpop.f32.mrb[0].mxu0
        %v3723 = vpop.f32.mrb[0].mxu0
        %v3724 = vadd.f32 0.0, %v3723
        %v3725 = vpop.f32.mrb[0].mxu0
        %3726 = vmatprep.mubr.bf16.mxu0 0
        %3727 = vmatmul.mubr.bf16.gmra.mrb[0].mxu0 %v371
        %v3728 = vpop.f32.mrb[0].mxu0
        %v3729 = vadd.f32 0.0, %v3728
        %v3730 = vpop.f32.mrb[0].mxu0
        %v3731 = vpop.f32.mrb[0].mxu0
        %v3732 = vadd.f32 0.0, %v3731
        %v3733 = vpop.f32.mrb[0].mxu0
        %3734 = vmatprep.mubr.bf16.mxu0 0
        %3735 = vmatmul.mubr.bf16.gmra.mrb[0].mxu0 %v374
        %v3736 = vpop.f32.mrb[0].mxu0
        %v3737 = vadd.f32 0.0, %v3736
        %v3738 = vpop.f32.mrb[0].mxu0
        %v3739 = vpop.f32.mrb[0].mxu0
        %v3740 = vadd.f32 0.0, %v3739
        %v3741 = vpop.f32.mrb[0].mxu0
        %3742 = vmatprep.mubr.bf16.mxu0 0
        %3743 = vmatmul.mubr.bf16.gmra.mrb[0].mxu0 %v377
        %v3744 = vpop.f32.mrb[0].mxu0
        %v3745 = vadd.f32 0.0, %v3744
        %v3746 = vpop.f32.mrb[0].mxu0
        %v3747 = vpop.f32.mrb[0].mxu0
        %v3748 = vadd.f32 0.0, %v3747
        %v3749 = vpop.f32.mrb[0].mxu0
        %3750 = vmatprep.mubr.bf16.mxu0 0
        %3751 = vmatmul.mubr.bf16.gmra.mrb[0].mxu0 %v380
        %v3752 = vpop.f32.mrb[0].mxu0
        %v3753 = vadd.f32 0.0, %v3752
        %v3754 = vpop.f32.mrb[0].mxu0
        %v3755 = vpop.f32.mrb[0].mxu0
        %v3756 = vadd.f32 0.0, %v3755
        %v3757 = vpop.f32.mrb[0].mxu0
        %3758 = vmatprep.mubr.bf16.mxu0 0
        %3759 = vmatmul.mubr.bf16.gmra.mrb[0].mxu0 %v383
        %v3760 = vpop.f32.mrb[0].mxu0
        %v3761 = vadd.f32 0.0, %v3760
        %v3762 = vpop.f32.mrb[0].mxu0
        %v3763 = vpop.f32.mrb[0].mxu0
        %v3764 = vadd.f32 0.0, %v3763
        %v3765 = vpop.f32.mrb[0].mxu0
        %3766 = vmatprep.mubr.bf16.mxu0 0
        %3767 = vmatmul.mubr.bf16.gmra.mrb[0].mxu0 %v386
        %v3768 = vpop.f32.mrb[0].mxu0
        %v3769 = vadd.f32 0.0, %v3768
        %v3770 = vpop.f32.mrb[0].mxu0
        %v3771 = vpop.f32.mrb[0].mxu0
        %v3772 = vadd.f32 0.0, %v3771
        %v3773 = vpop.f32.mrb[0].mxu0
        %3774 = vmatprep.mubr.bf16.mxu0 0
        %3775 = vmatmul.mubr.bf16.gmra.mrb[0].mxu0 %v389
        %v3776 = vpop.f32.mrb[0].mxu0
        %v3777 = vadd.f32 0.0, %v3776
        %v3778 = vpop.f32.mrb[0].mxu0
        %v3779 = vpop.f32.mrb[0].mxu0
        %v3780 = vadd.f32 0.0, %v3779
        %v3781 = vpop.f32.mrb[0].mxu0
        %3782 = vmatprep.mubr.bf16.mxu0 0
        %3783 = vmatmul.mubr.bf16.gmra.mrb[0].mxu0 %v392
        %v3784 = vpop.f32.mrb[0].mxu0
        %v3785 = vadd.f32 0.0, %v3784
        %v3786 = vpop.f32.mrb[0].mxu0
        %v3787 = vpop.f32.mrb[0].mxu0
        %v3788 = vadd.f32 0.0, %v3787
        %v3789 = vpop.f32.mrb[0].mxu0
        %3790 = vdwg.mxu0
        %v3807 = vunpack.c.l.b16 %v3610
        %v3808 = vunpack.c.l.b16 %v3611
        %v3809 = vunpack.c.l.b16 %v3612
        %v3810 = vunpack.c.l.b16 %v3613
        %v3811 = vunpack.c.l.b16 %v3614
        %v3812 = vunpack.c.l.b16 %v3615
        %v3813 = vunpack.c.l.b16 %v3616
        %v3814 = vunpack.c.l.b16 %v3617
        %v3815 = vunpack.c.l.b16 %v3618
        %v3816 = vunpack.c.l.b16 %v3619
        %v3817 = vunpack.c.l.b16 %v3620
        %v3818 = vunpack.c.l.b16 %v3621
        %v3819 = vunpack.c.l.b16 %v3622
        %v3820 = vunpack.c.l.b16 %v3623
        %v3821 = vunpack.c.l.b16 %v3624
        %v3822 = vunpack.c.l.b16 %v3625
        %v3823 = vpack.c.b16 %v3808, %v3807
        %v3824 = vpack.c.b16 %v3810, %v3809
        %v3825 = vpack.c.b16 %v3812, %v3811
        %v3826 = vpack.c.b16 %v3814, %v3813
        %v3827 = vpack.c.b16 %v3816, %v3815
        %v3828 = vpack.c.b16 %v3818, %v3817
        %v3829 = vpack.c.b16 %v3820, %v3819
        %v3830 = vpack.c.b16 %v3822, %v3821
        %3839 = vmatprep.subr.bf16.mxu0 0
        %3840 = vmatpush1.bf16.msra.mxu0 %v3823
        %3841 = vmatprep.subr.bf16.mxu0 0
        %3842 = vmatpush1.bf16.msra.mxu0 %v3824
        %3843 = vmatprep.subr.bf16.mxu0 0
        %3844 = vmatpush1.bf16.msra.mxu0 %v3825
        %3845 = vmatprep.subr.bf16.mxu0 0
        %3846 = vmatpush1.bf16.msra.mxu0 %v3826
        %3847 = vmatprep.subr.bf16.mxu0 0
        %3848 = vmatpush1.bf16.msra.mxu0 %v3827
        %3849 = vmatprep.subr.bf16.mxu0 0
        %3850 = vmatpush1.bf16.msra.mxu0 %v3828
        %3851 = vmatprep.subr.bf16.mxu0 0
        %3852 = vmatpush1.bf16.msra.mxu0 %v3829
        %3853 = vmatprep.subr.bf16.mxu0 0
        %3854 = vmatpush1.bf16.msra.mxu0 %v3830
        %3855 = vmatprep.subr.bf16.mxu0 0
        %3856 = vmatpush1.bf16.msra.mxu0 0
        %3857 = vmatprep.subr.bf16.mxu0 0
        %3858 = vmatpush1.bf16.msra.mxu0 0
        %3859 = vmatprep.subr.bf16.mxu0 0
        %3860 = vmatpush1.bf16.msra.mxu0 0
        %3861 = vmatprep.subr.bf16.mxu0 0
        %3862 = vmatpush1.bf16.msra.mxu0 0
        %3863 = vmatprep.subr.bf16.mxu0 0
        %3864 = vmatpush1.bf16.msra.mxu0 0
        %3865 = vmatprep.subr.bf16.mxu0 0
        %3866 = vmatpush1.bf16.msra.mxu0 0
        %3867 = vmatprep.subr.bf16.mxu0 0
        %3868 = vmatpush1.bf16.msra.mxu0 0
        %3869 = vmatprep.subr.bf16.mxu0 0
        %3870 = vmatpush1.bf16.msra.mxu0 0
        %3871 = vmatprep.mubr.bf16.mxu0 0
        %3872 = vmatmul.mubr.bf16.gmra.mrb[0].mxu0 %v3594
        %v3873 = vpop.f32.mrb[0].mxu0
        %v3874 = vadd.f32 %v3665, %v3873
        %v3875 = vpop.f32.mrb[0].mxu0
        %v3876 = vpop.f32.mrb[0].mxu0
        %v3877 = vadd.f32 %v3668, %v3876
        %v3878 = vpop.f32.mrb[0].mxu0
        %3879 = vmatprep.mubr.bf16.mxu0 0
        %3880 = vmatmul.mubr.bf16.gmra.mrb[0].mxu0 %v3595
        %v3881 = vpop.f32.mrb[0].mxu0
        %v3882 = vadd.f32 %v3673, %v3881
        %v3883 = vpop.f32.mrb[0].mxu0
        %v3884 = vpop.f32.mrb[0].mxu0
        %v3885 = vadd.f32 %v3676, %v3884
        %v3886 = vpop.f32.mrb[0].mxu0
        %3887 = vmatprep.mubr.bf16.mxu0 0
        %3888 = vmatmul.mubr.bf16.gmra.mrb[0].mxu0 %v3596
        %v3889 = vpop.f32.mrb[0].mxu0
        %v3890 = vadd.f32 %v3681, %v3889
        %v3891 = vpop.f32.mrb[0].mxu0
        %v3892 = vpop.f32.mrb[0].mxu0
        %v3893 = vadd.f32 %v3684, %v3892
        %v3894 = vpop.f32.mrb[0].mxu0
        %3895 = vmatprep.mubr.bf16.mxu0 0
        %3896 = vmatmul.mubr.bf16.gmra.mrb[0].mxu0 %v3597
        %v3897 = vpop.f32.mrb[0].mxu0
        %v3898 = vadd.f32 %v3689, %v3897
        %v3899 = vpop.f32.mrb[0].mxu0
        %v3900 = vpop.f32.mrb[0].mxu0
        %v3901 = vadd.f32 %v3692, %v3900
        %v3902 = vpop.f32.mrb[0].mxu0
        %3903 = vmatprep.mubr.bf16.mxu0 0
        %3904 = vmatmul.mubr.bf16.gmra.mrb[0].mxu0 %v3598
        %v3905 = vpop.f32.mrb[0].mxu0
        %v3906 = vadd.f32 %v3697, %v3905
        %v3907 = vpop.f32.mrb[0].mxu0
        %v3908 = vpop.f32.mrb[0].mxu0
        %v3909 = vadd.f32 %v3700, %v3908
        %v3910 = vpop.f32.mrb[0].mxu0
        %3911 = vmatprep.mubr.bf16.mxu0 0
        %3912 = vmatmul.mubr.bf16.gmra.mrb[0].mxu0 %v3599
        %v3913 = vpop.f32.mrb[0].mxu0
        %v3914 = vadd.f32 %v3705, %v3913
        %v3915 = vpop.f32.mrb[0].mxu0
        %v3916 = vpop.f32.mrb[0].mxu0
        %v3917 = vadd.f32 %v3708, %v3916
        %v3918 = vpop.f32.mrb[0].mxu0
        %3919 = vmatprep.mubr.bf16.mxu0 0
        %3920 = vmatmul.mubr.bf16.gmra.mrb[0].mxu0 %v3600
        %v3921 = vpop.f32.mrb[0].mxu0
        %v3922 = vadd.f32 %v3713, %v3921
        %v3923 = vpop.f32.mrb[0].mxu0
        %v3924 = vpop.f32.mrb[0].mxu0
        %v3925 = vadd.f32 %v3716, %v3924
        %v3926 = vpop.f32.mrb[0].mxu0
        %3927 = vmatprep.mubr.bf16.mxu0 0
        %3928 = vmatmul.mubr.bf16.gmra.mrb[0].mxu0 %v3601
        %v3929 = vpop.f32.mrb[0].mxu0
        %v3930 = vadd.f32 %v3721, %v3929
        %v3931 = vpop.f32.mrb[0].mxu0
        %v3932 = vpop.f32.mrb[0].mxu0
        %v3933 = vadd.f32 %v3724, %v3932
        %v3934 = vpop.f32.mrb[0].mxu0
        %3935 = vmatprep.mubr.bf16.mxu0 0
        %3936 = vmatmul.mubr.bf16.gmra.mrb[0].mxu0 %v3602
        %v3937 = vpop.f32.mrb[0].mxu0
        %v3938 = vadd.f32 %v3729, %v3937
        %v3939 = vpop.f32.mrb[0].mxu0
        %v3940 = vpop.f32.mrb[0].mxu0
        %v3941 = vadd.f32 %v3732, %v3940
        %v3942 = vpop.f32.mrb[0].mxu0
        %3943 = vmatprep.mubr.bf16.mxu0 0
        %3944 = vmatmul.mubr.bf16.gmra.mrb[0].mxu0 %v3603
        %v3945 = vpop.f32.mrb[0].mxu0
        %v3946 = vadd.f32 %v3737, %v3945
        %v3947 = vpop.f32.mrb[0].mxu0
        %v3948 = vpop.f32.mrb[0].mxu0
        %v3949 = vadd.f32 %v3740, %v3948
        %v3950 = vpop.f32.mrb[0].mxu0
        %3951 = vmatprep.mubr.bf16.mxu0 0
        %3952 = vmatmul.mubr.bf16.gmra.mrb[0].mxu0 %v3604
        %v3953 = vpop.f32.mrb[0].mxu0
        %v3954 = vadd.f32 %v3745, %v3953
        %v3955 = vpop.f32.mrb[0].mxu0
        %v3956 = vpop.f32.mrb[0].mxu0
        %v3957 = vadd.f32 %v3748, %v3956
        %v3958 = vpop.f32.mrb[0].mxu0
        %3959 = vmatprep.mubr.bf16.mxu0 0
        %3960 = vmatmul.mubr.bf16.gmra.mrb[0].mxu0 %v3605
        %v3961 = vpop.f32.mrb[0].mxu0
        %v3962 = vadd.f32 %v3753, %v3961
        %v3963 = vpop.f32.mrb[0].mxu0
        %v3964 = vpop.f32.mrb[0].mxu0
        %v3965 = vadd.f32 %v3756, %v3964
        %v3966 = vpop.f32.mrb[0].mxu0
        %3967 = vmatprep.mubr.bf16.mxu0 0
        %3968 = vmatmul.mubr.bf16.gmra.mrb[0].mxu0 %v3606
        %v3969 = vpop.f32.mrb[0].mxu0
        %v3970 = vadd.f32 %v3761, %v3969
        %v3971 = vpop.f32.mrb[0].mxu0
        %v3972 = vpop.f32.mrb[0].mxu0
        %v3973 = vadd.f32 %v3764, %v3972
        %v3974 = vpop.f32.mrb[0].mxu0
        %3975 = vmatprep.mubr.bf16.mxu0 0
        %3976 = vmatmul.mubr.bf16.gmra.mrb[0].mxu0 %v3607
        %v3977 = vpop.f32.mrb[0].mxu0
        %v3978 = vadd.f32 %v3769, %v3977
        %v3979 = vpop.f32.mrb[0].mxu0
        %v3980 = vpop.f32.mrb[0].mxu0
        %v3981 = vadd.f32 %v3772, %v3980
        %v3982 = vpop.f32.mrb[0].mxu0
        %3983 = vmatprep.mubr.bf16.mxu0 0
        %3984 = vmatmul.mubr.bf16.gmra.mrb[0].mxu0 %v3608
        %v3985 = vpop.f32.mrb[0].mxu0
        %v3986 = vadd.f32 %v3777, %v3985
        %v3987 = vpop.f32.mrb[0].mxu0
        %v3988 = vpop.f32.mrb[0].mxu0
        %v3989 = vadd.f32 %v3780, %v3988
        %v3990 = vpop.f32.mrb[0].mxu0
        %3991 = vmatprep.mubr.bf16.mxu0 0
        %3992 = vmatmul.mubr.bf16.gmra.mrb[0].mxu0 %v3609
        %v3993 = vpop.f32.mrb[0].mxu0
        %v3994 = vadd.f32 %v3785, %v3993
        %v3995 = vpop.f32.mrb[0].mxu0
        %v3996 = vpop.f32.mrb[0].mxu0
        %v3997 = vadd.f32 %v3788, %v3996
        %v3998 = vpop.f32.mrb[0].mxu0
        %3999 = vdwg.mxu0
        %4000 = vst [vmem:[#allocation3] sm:$0xff] %v3874
        %4001 = vst [vmem:[#allocation3 + $0x8] sm:$0xff] %v3877
        %4002 = vst [vmem:[#allocation3 + $0x10] sm:$0xff] %v3882
        %4003 = vst [vmem:[#allocation3 + $0x18] sm:$0xff] %v3885
        %4004 = vst [vmem:[#allocation3 + $0x20] sm:$0xff] %v3890
        %4005 = vst [vmem:[#allocation3 + $0x28] sm:$0xff] %v3893
        %4006 = vst [vmem:[#allocation3 + $0x30] sm:$0xff] %v3898
        %4007 = vst [vmem:[#allocation3 + $0x38] sm:$0xff] %v3901
        %4008 = vst [vmem:[#allocation3 + $0x40] sm:$0xff] %v3906
        %4009 = vst [vmem:[#allocation3 + $0x48] sm:$0xff] %v3909
        %4010 = vst [vmem:[#allocation3 + $0x50] sm:$0xff] %v3914
        %4011 = vst [vmem:[#allocation3 + $0x58] sm:$0xff] %v3917
        %4012 = vst [vmem:[#allocation3 + $0x60] sm:$0xff] %v3922
        %4013 = vst [vmem:[#allocation3 + $0x68] sm:$0xff] %v3925
        %4014 = vst [vmem:[#allocation3 + $0x70] sm:$0xff] %v3930
        %4015 = vst [vmem:[#allocation3 + $0x78] sm:$0xff] %v3933
        %4016 = vst [vmem:[#allocation3 + $0x80] sm:$0xff] %v3938
        %4017 = vst [vmem:[#allocation3 + $0x88] sm:$0xff] %v3941
        %4018 = vst [vmem:[#allocation3 + $0x90] sm:$0xff] %v3946
        %4019 = vst [vmem:[#allocation3 + $0x98] sm:$0xff] %v3949
        %4020 = vst [vmem:[#allocation3 + $0xa0] sm:$0xff] %v3954
        %4021 = vst [vmem:[#allocation3 + $0xa8] sm:$0xff] %v3957
        %4022 = vst [vmem:[#allocation3 + $0xb0] sm:$0xff] %v3962
        %4023 = vst [vmem:[#allocation3 + $0xb8] sm:$0xff] %v3965
        %4024 = vst [vmem:[#allocation3 + $0xc0] sm:$0xff] %v3970
        %4025 = vst [vmem:[#allocation3 + $0xc8] sm:$0xff] %v3973
        %4026 = vst [vmem:[#allocation3 + $0xd0] sm:$0xff] %v3978
        %4027 = vst [vmem:[#allocation3 + $0xd8] sm:$0xff] %v3981
        %4028 = vst [vmem:[#allocation3 + $0xe0] sm:$0xff] %v3986
        %4029 = vst [vmem:[#allocation3 + $0xe8] sm:$0xff] %v3989
        %4030 = vst [vmem:[#allocation3 + $0xf0] sm:$0xff] %v3994
        %4031 = vst [vmem:[#allocation3 + $0xf8] sm:$0xff] %v3997
        %v4032 = vld [vmem:[%s6] sm:$0xff]
        %v4033 = vld [vmem:[#allocation3] sm:$0xff]
        %v4034 = vld [vmem:[#allocation3 + $0x8] sm:$0xff]
        %vm4035 = vcmask 130048
        %v4037 = vsel %vm4035, %v4032, 0
        %4039 = vmatprep.subr.mxu0 0.0
        %4040 = vmatpush1.msra.mxu0 %v4033
        %4041 = vmatprep.subr.mxu0 0.0
        %4042 = vmatpush1.msra.mxu0 %v4034
        %4043 = vmatprep.subr.mxu0 0.0
        %4044 = vmatpush1.msra.mxu0 0.0
        %4045 = vmatprep.subr.mxu0 0.0
        %4046 = vmatpush1.msra.mxu0 0.0
        %4047 = vmatprep.subr.mxu0 0.0
        %4048 = vmatpush1.msra.mxu0 0.0
        %4049 = vmatprep.subr.mxu0 0.0
        %4050 = vmatpush1.msra.mxu0 0.0
        %4051 = vmatprep.subr.mxu0 0.0
        %4052 = vmatpush1.msra.mxu0 0.0
        %4053 = vmatprep.subr.mxu0 0.0
        %4054 = vmatpush1.msra.mxu0 0.0
        %4055 = vmatprep.subr.mxu0 0.0
        %4056 = vmatpush1.msra.mxu0 0.0
        %4057 = vmatprep.subr.mxu0 0.0
        %4058 = vmatpush1.msra.mxu0 0.0
        %4059 = vmatprep.subr.mxu0 0.0
        %4060 = vmatpush1.msra.mxu0 0.0
        %4061 = vmatprep.subr.mxu0 0.0
        %4062 = vmatpush1.msra.mxu0 0.0
        %4063 = vmatprep.subr.mxu0 0.0
        %4064 = vmatpush1.msra.mxu0 0.0
        %4065 = vmatprep.subr.mxu0 0.0
        %4066 = vmatpush1.msra.mxu0 0.0
        %4067 = vmatprep.subr.mxu0 0.0
        %4068 = vmatpush1.msra.mxu0 0.0
        %4069 = vmatprep.subr.mxu0 0.0
        %4070 = vmatpush1.msra.mxu0 0.0
        %4071 = vmatprep.subr.mxu0 0.0
        %4072 = vmatpush1.msra.mxu0 0.0
        %4073 = vmatprep.subr.mxu0 0.0
        %4074 = vmatpush1.msra.mxu0 0.0
        %4075 = vmatprep.subr.mxu0 0.0
        %4076 = vmatpush1.msra.mxu0 0.0
        %4077 = vmatprep.subr.mxu0 0.0
        %4078 = vmatpush1.msra.mxu0 0.0
        %4079 = vmatprep.subr.mxu0 0.0
        %4080 = vmatpush1.msra.mxu0 0.0
        %4081 = vmatprep.subr.mxu0 0.0
        %4082 = vmatpush1.msra.mxu0 0.0
        %4083 = vmatprep.subr.mxu0 0.0
        %4084 = vmatpush1.msra.mxu0 0.0
        %4085 = vmatprep.subr.mxu0 0.0
        %4086 = vmatpush1.msra.mxu0 0.0
        %4087 = vmatprep.subr.mxu0 0.0
        %4088 = vmatpush1.msra.mxu0 0.0
        %4089 = vmatprep.subr.mxu0 0.0
        %4090 = vmatpush1.msra.mxu0 0.0
        %4091 = vmatprep.subr.mxu0 0.0
        %4092 = vmatpush1.msra.mxu0 0.0
        %4093 = vmatprep.subr.mxu0 0.0
        %4094 = vmatpush1.msra.mxu0 0.0
        %4095 = vmatprep.subr.mxu0 0.0
        %4096 = vmatpush1.msra.mxu0 0.0
        %4097 = vmatprep.subr.mxu0 0.0
        %4098 = vmatpush1.msra.mxu0 0.0
        %4099 = vmatprep.subr.mxu0 0.0
        %4100 = vmatpush1.msra.mxu0 0.0
        %4101 = vmatprep.subr.mxu0 0.0
        %4102 = vmatpush1.msra.mxu0 0.0
        %4103 = vmatprep.mubr.f32.mxu0 0.0
        %4104 = vmatmul.mubr.f32.gmra.mrb[0].mxu0 %v4037
        %v4105 = vpop.f32.mrb[0].mxu0
        %v4106 = vadd.f32 0.0, %v4105
        %v4107 = vpop.f32.mrb[0].mxu0
        %4108 = vdwg.mxu0
        %4109 = vst [vmem:[#allocation4] sm:$0xff] %v4106
        %s4110 = scalar_lea.vmem [#allocation3], 16
        %v4111 = vld [vmem:[%s4110] sm:$0xff]
        %v4112 = vld [vmem:[%s4110 + $0x8] sm:$0xff]
        %4113 = vmatprep.subr.mxu0 0.0
        %4114 = vmatpush1.msra.mxu0 %v4111
        %4115 = vmatprep.subr.mxu0 0.0
        %4116 = vmatpush1.msra.mxu0 %v4112
        %4117 = vmatprep.subr.mxu0 0.0
        %4118 = vmatpush1.msra.mxu0 0.0
        %4119 = vmatprep.subr.mxu0 0.0
        %4120 = vmatpush1.msra.mxu0 0.0
        %4121 = vmatprep.subr.mxu0 0.0
        %4122 = vmatpush1.msra.mxu0 0.0
        %4123 = vmatprep.subr.mxu0 0.0
        %4124 = vmatpush1.msra.mxu0 0.0
        %4125 = vmatprep.subr.mxu0 0.0
        %4126 = vmatpush1.msra.mxu0 0.0
        %4127 = vmatprep.subr.mxu0 0.0
        %4128 = vmatpush1.msra.mxu0 0.0
        %4129 = vmatprep.subr.mxu0 0.0
        %4130 = vmatpush1.msra.mxu0 0.0
        %4131 = vmatprep.subr.mxu0 0.0
        %4132 = vmatpush1.msra.mxu0 0.0
        %4133 = vmatprep.subr.mxu0 0.0
        %4134 = vmatpush1.msra.mxu0 0.0
        %4135 = vmatprep.subr.mxu0 0.0
        %4136 = vmatpush1.msra.mxu0 0.0
        %4137 = vmatprep.subr.mxu0 0.0
        %4138 = vmatpush1.msra.mxu0 0.0
        %4139 = vmatprep.subr.mxu0 0.0
        %4140 = vmatpush1.msra.mxu0 0.0
        %4141 = vmatprep.subr.mxu0 0.0
        %4142 = vmatpush1.msra.mxu0 0.0
        %4143 = vmatprep.subr.mxu0 0.0
        %4144 = vmatpush1.msra.mxu0 0.0
        %4145 = vmatprep.subr.mxu0 0.0
        %4146 = vmatpush1.msra.mxu0 0.0
        %4147 = vmatprep.subr.mxu0 0.0
        %4148 = vmatpush1.msra.mxu0 0.0
        %4149 = vmatprep.subr.mxu0 0.0
        %4150 = vmatpush1.msra.mxu0 0.0
        %4151 = vmatprep.subr.mxu0 0.0
        %4152 = vmatpush1.msra.mxu0 0.0
        %4153 = vmatprep.subr.mxu0 0.0
        %4154 = vmatpush1.msra.mxu0 0.0
        %4155 = vmatprep.subr.mxu0 0.0
        %4156 = vmatpush1.msra.mxu0 0.0
        %4157 = vmatprep.subr.mxu0 0.0
        %4158 = vmatpush1.msra.mxu0 0.0
        %4159 = vmatprep.subr.mxu0 0.0
        %4160 = vmatpush1.msra.mxu0 0.0
        %4161 = vmatprep.subr.mxu0 0.0
        %4162 = vmatpush1.msra.mxu0 0.0
        %4163 = vmatprep.subr.mxu0 0.0
        %4164 = vmatpush1.msra.mxu0 0.0
        %4165 = vmatprep.subr.mxu0 0.0
        %4166 = vmatpush1.msra.mxu0 0.0
        %4167 = vmatprep.subr.mxu0 0.0
        %4168 = vmatpush1.msra.mxu0 0.0
        %4169 = vmatprep.subr.mxu0 0.0
        %4170 = vmatpush1.msra.mxu0 0.0
        %4171 = vmatprep.subr.mxu0 0.0
        %4172 = vmatpush1.msra.mxu0 0.0
        %4173 = vmatprep.subr.mxu0 0.0
        %4174 = vmatpush1.msra.mxu0 0.0
        %4175 = vmatprep.subr.mxu0 0.0
        %4176 = vmatpush1.msra.mxu0 0.0
        %4177 = vmatprep.mubr.f32.mxu0 0.0
        %4178 = vmatmul.mubr.f32.gmra.mrb[0].mxu0 %v4037
        %v4179 = vpop.f32.mrb[0].mxu0
        %v4180 = vadd.f32 0.0, %v4179
        %v4181 = vpop.f32.mrb[0].mxu0
        %4182 = vdwg.mxu0
        %s4183 = scalar_lea.vmem [#allocation4], 8
        %4184 = vst [vmem:[%s4183] sm:$0xff] %v4180
        %s4185 = scalar_lea.vmem [#allocation3], 32
        %v4186 = vld [vmem:[%s4185] sm:$0xff]
        %v4187 = vld [vmem:[%s4185 + $0x8] sm:$0xff]
        %4188 = vmatprep.subr.mxu0 0.0
        %4189 = vmatpush1.msra.mxu0 %v4186
        %4190 = vmatprep.subr.mxu0 0.0
        %4191 = vmatpush1.msra.mxu0 %v4187
        %4192 = vmatprep.subr.mxu0 0.0
        %4193 = vmatpush1.msra.mxu0 0.0
        %4194 = vmatprep.subr.mxu0 0.0
        %4195 = vmatpush1.msra.mxu0 0.0
        %4196 = vmatprep.subr.mxu0 0.0
        %4197 = vmatpush1.msra.mxu0 0.0
        %4198 = vmatprep.subr.mxu0 0.0
        %4199 = vmatpush1.msra.mxu0 0.0
        %4200 = vmatprep.subr.mxu0 0.0
        %4201 = vmatpush1.msra.mxu0 0.0
        %4202 = vmatprep.subr.mxu0 0.0
        %4203 = vmatpush1.msra.mxu0 0.0
        %4204 = vmatprep.subr.mxu0 0.0
        %4205 = vmatpush1.msra.mxu0 0.0
        %4206 = vmatprep.subr.mxu0 0.0
        %4207 = vmatpush1.msra.mxu0 0.0
        %4208 = vmatprep.subr.mxu0 0.0
        %4209 = vmatpush1.msra.mxu0 0.0
        %4210 = vmatprep.subr.mxu0 0.0
        %4211 = vmatpush1.msra.mxu0 0.0
        %4212 = vmatprep.subr.mxu0 0.0
        %4213 = vmatpush1.msra.mxu0 0.0
        %4214 = vmatprep.subr.mxu0 0.0
        %4215 = vmatpush1.msra.mxu0 0.0
        %4216 = vmatprep.subr.mxu0 0.0
        %4217 = vmatpush1.msra.mxu0 0.0
        %4218 = vmatprep.subr.mxu0 0.0
        %4219 = vmatpush1.msra.mxu0 0.0
        %4220 = vmatprep.subr.mxu0 0.0
        %4221 = vmatpush1.msra.mxu0 0.0
        %4222 = vmatprep.subr.mxu0 0.0
        %4223 = vmatpush1.msra.mxu0 0.0
        %4224 = vmatprep.subr.mxu0 0.0
        %4225 = vmatpush1.msra.mxu0 0.0
        %4226 = vmatprep.subr.mxu0 0.0
        %4227 = vmatpush1.msra.mxu0 0.0
        %4228 = vmatprep.subr.mxu0 0.0
        %4229 = vmatpush1.msra.mxu0 0.0
        %4230 = vmatprep.subr.mxu0 0.0
        %4231 = vmatpush1.msra.mxu0 0.0
        %4232 = vmatprep.subr.mxu0 0.0
        %4233 = vmatpush1.msra.mxu0 0.0
        %4234 = vmatprep.subr.mxu0 0.0
        %4235 = vmatpush1.msra.mxu0 0.0
        %4236 = vmatprep.subr.mxu0 0.0
        %4237 = vmatpush1.msra.mxu0 0.0
        %4238 = vmatprep.subr.mxu0 0.0
        %4239 = vmatpush1.msra.mxu0 0.0
        %4240 = vmatprep.subr.mxu0 0.0
        %4241 = vmatpush1.msra.mxu0 0.0
        %4242 = vmatprep.subr.mxu0 0.0
        %4243 = vmatpush1.msra.mxu0 0.0
        %4244 = vmatprep.subr.mxu0 0.0
        %4245 = vmatpush1.msra.mxu0 0.0
        %4246 = vmatprep.subr.mxu0 0.0
        %4247 = vmatpush1.msra.mxu0 0.0
        %4248 = vmatprep.subr.mxu0 0.0
        %4249 = vmatpush1.msra.mxu0 0.0
        %4250 = vmatprep.subr.mxu0 0.0
        %4251 = vmatpush1.msra.mxu0 0.0
        %4252 = vmatprep.mubr.f32.mxu0 0.0
        %4253 = vmatmul.mubr.f32.gmra.mrb[0].mxu0 %v4037
        %v4254 = vpop.f32.mrb[0].mxu0
        %v4255 = vadd.f32 0.0, %v4254
        %v4256 = vpop.f32.mrb[0].mxu0
        %4257 = vdwg.mxu0
        %s4258 = scalar_lea.vmem [#allocation4], 16
        %4259 = vst [vmem:[%s4258] sm:$0xff] %v4255
        %s4260 = scalar_lea.vmem [#allocation3], 48
        %v4261 = vld [vmem:[%s4260] sm:$0xff]
        %v4262 = vld [vmem:[%s4260 + $0x8] sm:$0xff]
        %4263 = vmatprep.subr.mxu0 0.0
        %4264 = vmatpush1.msra.mxu0 %v4261
        %4265 = vmatprep.subr.mxu0 0.0
        %4266 = vmatpush1.msra.mxu0 %v4262
        %4267 = vmatprep.subr.mxu0 0.0
        %4268 = vmatpush1.msra.mxu0 0.0
        %4269 = vmatprep.subr.mxu0 0.0
        %4270 = vmatpush1.msra.mxu0 0.0
        %4271 = vmatprep.subr.mxu0 0.0
        %4272 = vmatpush1.msra.mxu0 0.0
        %4273 = vmatprep.subr.mxu0 0.0
        %4274 = vmatpush1.msra.mxu0 0.0
        %4275 = vmatprep.subr.mxu0 0.0
        %4276 = vmatpush1.msra.mxu0 0.0
        %4277 = vmatprep.subr.mxu0 0.0
        %4278 = vmatpush1.msra.mxu0 0.0
        %4279 = vmatprep.subr.mxu0 0.0
        %4280 = vmatpush1.msra.mxu0 0.0
        %4281 = vmatprep.subr.mxu0 0.0
        %4282 = vmatpush1.msra.mxu0 0.0
        %4283 = vmatprep.subr.mxu0 0.0
        %4284 = vmatpush1.msra.mxu0 0.0
        %4285 = vmatprep.subr.mxu0 0.0
        %4286 = vmatpush1.msra.mxu0 0.0
        %4287 = vmatprep.subr.mxu0 0.0
        %4288 = vmatpush1.msra.mxu0 0.0
        %4289 = vmatprep.subr.mxu0 0.0
        %4290 = vmatpush1.msra.mxu0 0.0
        %4291 = vmatprep.subr.mxu0 0.0
        %4292 = vmatpush1.msra.mxu0 0.0
        %4293 = vmatprep.subr.mxu0 0.0
        %4294 = vmatpush1.msra.mxu0 0.0
        %4295 = vmatprep.subr.mxu0 0.0
        %4296 = vmatpush1.msra.mxu0 0.0
        %4297 = vmatprep.subr.mxu0 0.0
        %4298 = vmatpush1.msra.mxu0 0.0
        %4299 = vmatprep.subr.mxu0 0.0
        %4300 = vmatpush1.msra.mxu0 0.0
        %4301 = vmatprep.subr.mxu0 0.0
        %4302 = vmatpush1.msra.mxu0 0.0
        %4303 = vmatprep.subr.mxu0 0.0
        %4304 = vmatpush1.msra.mxu0 0.0
        %4305 = vmatprep.subr.mxu0 0.0
        %4306 = vmatpush1.msra.mxu0 0.0
        %4307 = vmatprep.subr.mxu0 0.0
        %4308 = vmatpush1.msra.mxu0 0.0
        %4309 = vmatprep.subr.mxu0 0.0
        %4310 = vmatpush1.msra.mxu0 0.0
        %4311 = vmatprep.subr.mxu0 0.0
        %4312 = vmatpush1.msra.mxu0 0.0
        %4313 = vmatprep.subr.mxu0 0.0
        %4314 = vmatpush1.msra.mxu0 0.0
        %4315 = vmatprep.subr.mxu0 0.0
        %4316 = vmatpush1.msra.mxu0 0.0
        %4317 = vmatprep.subr.mxu0 0.0
        %4318 = vmatpush1.msra.mxu0 0.0
        %4319 = vmatprep.subr.mxu0 0.0
        %4320 = vmatpush1.msra.mxu0 0.0
        %4321 = vmatprep.subr.mxu0 0.0
        %4322 = vmatpush1.msra.mxu0 0.0
        %4323 = vmatprep.subr.mxu0 0.0
        %4324 = vmatpush1.msra.mxu0 0.0
        %4325 = vmatprep.subr.mxu0 0.0
        %4326 = vmatpush1.msra.mxu0 0.0
        %4327 = vmatprep.mubr.f32.mxu0 0.0
        %4328 = vmatmul.mubr.f32.gmra.mrb[0].mxu0 %v4037
        %v4329 = vpop.f32.mrb[0].mxu0
        %v4330 = vadd.f32 0.0, %v4329
        %v4331 = vpop.f32.mrb[0].mxu0
        %4332 = vdwg.mxu0
        %s4333 = scalar_lea.vmem [#allocation4], 24
        %4334 = vst [vmem:[%s4333] sm:$0xff] %v4330
        %s4335 = scalar_lea.vmem [#allocation3], 64
        %v4336 = vld [vmem:[%s4335] sm:$0xff]
        %v4337 = vld [vmem:[%s4335 + $0x8] sm:$0xff]
        %4338 = vmatprep.subr.mxu0 0.0
        %4339 = vmatpush1.msra.mxu0 %v4336
        %4340 = vmatprep.subr.mxu0 0.0
        %4341 = vmatpush1.msra.mxu0 %v4337
        %4342 = vmatprep.subr.mxu0 0.0
        %4343 = vmatpush1.msra.mxu0 0.0
        %4344 = vmatprep.subr.mxu0 0.0
        %4345 = vmatpush1.msra.mxu0 0.0
        %4346 = vmatprep.subr.mxu0 0.0
        %4347 = vmatpush1.msra.mxu0 0.0
        %4348 = vmatprep.subr.mxu0 0.0
        %4349 = vmatpush1.msra.mxu0 0.0
        %4350 = vmatprep.subr.mxu0 0.0
        %4351 = vmatpush1.msra.mxu0 0.0
        %4352 = vmatprep.subr.mxu0 0.0
        %4353 = vmatpush1.msra.mxu0 0.0
        %4354 = vmatprep.subr.mxu0 0.0
        %4355 = vmatpush1.msra.mxu0 0.0
        %4356 = vmatprep.subr.mxu0 0.0
        %4357 = vmatpush1.msra.mxu0 0.0
        %4358 = vmatprep.subr.mxu0 0.0
        %4359 = vmatpush1.msra.mxu0 0.0
        %4360 = vmatprep.subr.mxu0 0.0
        %4361 = vmatpush1.msra.mxu0 0.0
        %4362 = vmatprep.subr.mxu0 0.0
        %4363 = vmatpush1.msra.mxu0 0.0
        %4364 = vmatprep.subr.mxu0 0.0
        %4365 = vmatpush1.msra.mxu0 0.0
        %4366 = vmatprep.subr.mxu0 0.0
        %4367 = vmatpush1.msra.mxu0 0.0
        %4368 = vmatprep.subr.mxu0 0.0
        %4369 = vmatpush1.msra.mxu0 0.0
        %4370 = vmatprep.subr.mxu0 0.0
        %4371 = vmatpush1.msra.mxu0 0.0
        %4372 = vmatprep.subr.mxu0 0.0
        %4373 = vmatpush1.msra.mxu0 0.0
        %4374 = vmatprep.subr.mxu0 0.0
        %4375 = vmatpush1.msra.mxu0 0.0
        %4376 = vmatprep.subr.mxu0 0.0
        %4377 = vmatpush1.msra.mxu0 0.0
        %4378 = vmatprep.subr.mxu0 0.0
        %4379 = vmatpush1.msra.mxu0 0.0
        %4380 = vmatprep.subr.mxu0 0.0
        %4381 = vmatpush1.msra.mxu0 0.0
        %4382 = vmatprep.subr.mxu0 0.0
        %4383 = vmatpush1.msra.mxu0 0.0
        %4384 = vmatprep.subr.mxu0 0.0
        %4385 = vmatpush1.msra.mxu0 0.0
        %4386 = vmatprep.subr.mxu0 0.0
        %4387 = vmatpush1.msra.mxu0 0.0
        %4388 = vmatprep.subr.mxu0 0.0
        %4389 = vmatpush1.msra.mxu0 0.0
        %4390 = vmatprep.subr.mxu0 0.0
        %4391 = vmatpush1.msra.mxu0 0.0
        %4392 = vmatprep.subr.mxu0 0.0
        %4393 = vmatpush1.msra.mxu0 0.0
        %4394 = vmatprep.subr.mxu0 0.0
        %4395 = vmatpush1.msra.mxu0 0.0
        %4396 = vmatprep.subr.mxu0 0.0
        %4397 = vmatpush1.msra.mxu0 0.0
        %4398 = vmatprep.subr.mxu0 0.0
        %4399 = vmatpush1.msra.mxu0 0.0
        %4400 = vmatprep.subr.mxu0 0.0
        %4401 = vmatpush1.msra.mxu0 0.0
        %4402 = vmatprep.mubr.f32.mxu0 0.0
        %4403 = vmatmul.mubr.f32.gmra.mrb[0].mxu0 %v4037
        %v4404 = vpop.f32.mrb[0].mxu0
        %v4405 = vadd.f32 0.0, %v4404
        %v4406 = vpop.f32.mrb[0].mxu0
        %4407 = vdwg.mxu0
        %s4408 = scalar_lea.vmem [#allocation4], 32
        %4409 = vst [vmem:[%s4408] sm:$0xff] %v4405
        %s4410 = scalar_lea.vmem [#allocation3], 80
        %v4411 = vld [vmem:[%s4410] sm:$0xff]
        %v4412 = vld [vmem:[%s4410 + $0x8] sm:$0xff]
        %4413 = vmatprep.subr.mxu0 0.0
        %4414 = vmatpush1.msra.mxu0 %v4411
        %4415 = vmatprep.subr.mxu0 0.0
        %4416 = vmatpush1.msra.mxu0 %v4412
        %4417 = vmatprep.subr.mxu0 0.0
        %4418 = vmatpush1.msra.mxu0 0.0
        %4419 = vmatprep.subr.mxu0 0.0
        %4420 = vmatpush1.msra.mxu0 0.0
        %4421 = vmatprep.subr.mxu0 0.0
        %4422 = vmatpush1.msra.mxu0 0.0
        %4423 = vmatprep.subr.mxu0 0.0
        %4424 = vmatpush1.msra.mxu0 0.0
        %4425 = vmatprep.subr.mxu0 0.0
        %4426 = vmatpush1.msra.mxu0 0.0
        %4427 = vmatprep.subr.mxu0 0.0
        %4428 = vmatpush1.msra.mxu0 0.0
        %4429 = vmatprep.subr.mxu0 0.0
        %4430 = vmatpush1.msra.mxu0 0.0
        %4431 = vmatprep.subr.mxu0 0.0
        %4432 = vmatpush1.msra.mxu0 0.0
        %4433 = vmatprep.subr.mxu0 0.0
        %4434 = vmatpush1.msra.mxu0 0.0
        %4435 = vmatprep.subr.mxu0 0.0
        %4436 = vmatpush1.msra.mxu0 0.0
        %4437 = vmatprep.subr.mxu0 0.0
        %4438 = vmatpush1.msra.mxu0 0.0
        %4439 = vmatprep.subr.mxu0 0.0
        %4440 = vmatpush1.msra.mxu0 0.0
        %4441 = vmatprep.subr.mxu0 0.0
        %4442 = vmatpush1.msra.mxu0 0.0
        %4443 = vmatprep.subr.mxu0 0.0
        %4444 = vmatpush1.msra.mxu0 0.0
        %4445 = vmatprep.subr.mxu0 0.0
        %4446 = vmatpush1.msra.mxu0 0.0
        %4447 = vmatprep.subr.mxu0 0.0
        %4448 = vmatpush1.msra.mxu0 0.0
        %4449 = vmatprep.subr.mxu0 0.0
        %4450 = vmatpush1.msra.mxu0 0.0
        %4451 = vmatprep.subr.mxu0 0.0
        %4452 = vmatpush1.msra.mxu0 0.0
        %4453 = vmatprep.subr.mxu0 0.0
        %4454 = vmatpush1.msra.mxu0 0.0
        %4455 = vmatprep.subr.mxu0 0.0
        %4456 = vmatpush1.msra.mxu0 0.0
        %4457 = vmatprep.subr.mxu0 0.0
        %4458 = vmatpush1.msra.mxu0 0.0
        %4459 = vmatprep.subr.mxu0 0.0
        %4460 = vmatpush1.msra.mxu0 0.0
        %4461 = vmatprep.subr.mxu0 0.0
        %4462 = vmatpush1.msra.mxu0 0.0
        %4463 = vmatprep.subr.mxu0 0.0
        %4464 = vmatpush1.msra.mxu0 0.0
        %4465 = vmatprep.subr.mxu0 0.0
        %4466 = vmatpush1.msra.mxu0 0.0
        %4467 = vmatprep.subr.mxu0 0.0
        %4468 = vmatpush1.msra.mxu0 0.0
        %4469 = vmatprep.subr.mxu0 0.0
        %4470 = vmatpush1.msra.mxu0 0.0
        %4471 = vmatprep.subr.mxu0 0.0
        %4472 = vmatpush1.msra.mxu0 0.0
        %4473 = vmatprep.subr.mxu0 0.0
        %4474 = vmatpush1.msra.mxu0 0.0
        %4475 = vmatprep.subr.mxu0 0.0
        %4476 = vmatpush1.msra.mxu0 0.0
        %4477 = vmatprep.mubr.f32.mxu0 0.0
        %4478 = vmatmul.mubr.f32.gmra.mrb[0].mxu0 %v4037
        %v4479 = vpop.f32.mrb[0].mxu0
        %v4480 = vadd.f32 0.0, %v4479
        %v4481 = vpop.f32.mrb[0].mxu0
        %4482 = vdwg.mxu0
        %s4483 = scalar_lea.vmem [#allocation4], 40
        %4484 = vst [vmem:[%s4483] sm:$0xff] %v4480
        %s4485 = scalar_lea.vmem [#allocation3], 96
        %v4486 = vld [vmem:[%s4485] sm:$0xff]
        %v4487 = vld [vmem:[%s4485 + $0x8] sm:$0xff]
        %4488 = vmatprep.subr.mxu0 0.0
        %4489 = vmatpush1.msra.mxu0 %v4486
        %4490 = vmatprep.subr.mxu0 0.0
        %4491 = vmatpush1.msra.mxu0 %v4487
        %4492 = vmatprep.subr.mxu0 0.0
        %4493 = vmatpush1.msra.mxu0 0.0
        %4494 = vmatprep.subr.mxu0 0.0
        %4495 = vmatpush1.msra.mxu0 0.0
        %4496 = vmatprep.subr.mxu0 0.0
        %4497 = vmatpush1.msra.mxu0 0.0
        %4498 = vmatprep.subr.mxu0 0.0
        %4499 = vmatpush1.msra.mxu0 0.0
        %4500 = vmatprep.subr.mxu0 0.0
        %4501 = vmatpush1.msra.mxu0 0.0
        %4502 = vmatprep.subr.mxu0 0.0
        %4503 = vmatpush1.msra.mxu0 0.0
        %4504 = vmatprep.subr.mxu0 0.0
        %4505 = vmatpush1.msra.mxu0 0.0
        %4506 = vmatprep.subr.mxu0 0.0
        %4507 = vmatpush1.msra.mxu0 0.0
        %4508 = vmatprep.subr.mxu0 0.0
        %4509 = vmatpush1.msra.mxu0 0.0
        %4510 = vmatprep.subr.mxu0 0.0
        %4511 = vmatpush1.msra.mxu0 0.0
        %4512 = vmatprep.subr.mxu0 0.0
        %4513 = vmatpush1.msra.mxu0 0.0
        %4514 = vmatprep.subr.mxu0 0.0
        %4515 = vmatpush1.msra.mxu0 0.0
        %4516 = vmatprep.subr.mxu0 0.0
        %4517 = vmatpush1.msra.mxu0 0.0
        %4518 = vmatprep.subr.mxu0 0.0
        %4519 = vmatpush1.msra.mxu0 0.0
        %4520 = vmatprep.subr.mxu0 0.0
        %4521 = vmatpush1.msra.mxu0 0.0
        %4522 = vmatprep.subr.mxu0 0.0
        %4523 = vmatpush1.msra.mxu0 0.0
        %4524 = vmatprep.subr.mxu0 0.0
        %4525 = vmatpush1.msra.mxu0 0.0
        %4526 = vmatprep.subr.mxu0 0.0
        %4527 = vmatpush1.msra.mxu0 0.0
        %4528 = vmatprep.subr.mxu0 0.0
        %4529 = vmatpush1.msra.mxu0 0.0
        %4530 = vmatprep.subr.mxu0 0.0
        %4531 = vmatpush1.msra.mxu0 0.0
        %4532 = vmatprep.subr.mxu0 0.0
        %4533 = vmatpush1.msra.mxu0 0.0
        %4534 = vmatprep.subr.mxu0 0.0
        %4535 = vmatpush1.msra.mxu0 0.0
        %4536 = vmatprep.subr.mxu0 0.0
        %4537 = vmatpush1.msra.mxu0 0.0
        %4538 = vmatprep.subr.mxu0 0.0
        %4539 = vmatpush1.msra.mxu0 0.0
        %4540 = vmatprep.subr.mxu0 0.0
        %4541 = vmatpush1.msra.mxu0 0.0
        %4542 = vmatprep.subr.mxu0 0.0
        %4543 = vmatpush1.msra.mxu0 0.0
        %4544 = vmatprep.subr.mxu0 0.0
        %4545 = vmatpush1.msra.mxu0 0.0
        %4546 = vmatprep.subr.mxu0 0.0
        %4547 = vmatpush1.msra.mxu0 0.0
        %4548 = vmatprep.subr.mxu0 0.0
        %4549 = vmatpush1.msra.mxu0 0.0
        %4550 = vmatprep.subr.mxu0 0.0
        %4551 = vmatpush1.msra.mxu0 0.0
        %4552 = vmatprep.mubr.f32.mxu0 0.0
        %4553 = vmatmul.mubr.f32.gmra.mrb[0].mxu0 %v4037
        %v4554 = vpop.f32.mrb[0].mxu0
        %v4555 = vadd.f32 0.0, %v4554
        %v4556 = vpop.f32.mrb[0].mxu0
        %4557 = vdwg.mxu0
        %s4558 = scalar_lea.vmem [#allocation4], 48
        %4559 = vst [vmem:[%s4558] sm:$0xff] %v4555
        %s4560 = scalar_lea.vmem [#allocation3], 112
        %v4561 = vld [vmem:[%s4560] sm:$0xff]
        %v4562 = vld [vmem:[%s4560 + $0x8] sm:$0xff]
        %4563 = vmatprep.subr.mxu0 0.0
        %4564 = vmatpush1.msra.mxu0 %v4561
        %4565 = vmatprep.subr.mxu0 0.0
        %4566 = vmatpush1.msra.mxu0 %v4562
        %4567 = vmatprep.subr.mxu0 0.0
        %4568 = vmatpush1.msra.mxu0 0.0
        %4569 = vmatprep.subr.mxu0 0.0
        %4570 = vmatpush1.msra.mxu0 0.0
        %4571 = vmatprep.subr.mxu0 0.0
        %4572 = vmatpush1.msra.mxu0 0.0
        %4573 = vmatprep.subr.mxu0 0.0
        %4574 = vmatpush1.msra.mxu0 0.0
        %4575 = vmatprep.subr.mxu0 0.0
        %4576 = vmatpush1.msra.mxu0 0.0
        %4577 = vmatprep.subr.mxu0 0.0
        %4578 = vmatpush1.msra.mxu0 0.0
        %4579 = vmatprep.subr.mxu0 0.0
        %4580 = vmatpush1.msra.mxu0 0.0
        %4581 = vmatprep.subr.mxu0 0.0
        %4582 = vmatpush1.msra.mxu0 0.0
        %4583 = vmatprep.subr.mxu0 0.0
        %4584 = vmatpush1.msra.mxu0 0.0
        %4585 = vmatprep.subr.mxu0 0.0
        %4586 = vmatpush1.msra.mxu0 0.0
        %4587 = vmatprep.subr.mxu0 0.0
        %4588 = vmatpush1.msra.mxu0 0.0
        %4589 = vmatprep.subr.mxu0 0.0
        %4590 = vmatpush1.msra.mxu0 0.0
        %4591 = vmatprep.subr.mxu0 0.0
        %4592 = vmatpush1.msra.mxu0 0.0
        %4593 = vmatprep.subr.mxu0 0.0
        %4594 = vmatpush1.msra.mxu0 0.0
        %4595 = vmatprep.subr.mxu0 0.0
        %4596 = vmatpush1.msra.mxu0 0.0
        %4597 = vmatprep.subr.mxu0 0.0
        %4598 = vmatpush1.msra.mxu0 0.0
        %4599 = vmatprep.subr.mxu0 0.0
        %4600 = vmatpush1.msra.mxu0 0.0
        %4601 = vmatprep.subr.mxu0 0.0
        %4602 = vmatpush1.msra.mxu0 0.0
        %4603 = vmatprep.subr.mxu0 0.0
        %4604 = vmatpush1.msra.mxu0 0.0
        %4605 = vmatprep.subr.mxu0 0.0
        %4606 = vmatpush1.msra.mxu0 0.0
        %4607 = vmatprep.subr.mxu0 0.0
        %4608 = vmatpush1.msra.mxu0 0.0
        %4609 = vmatprep.subr.mxu0 0.0
        %4610 = vmatpush1.msra.mxu0 0.0
        %4611 = vmatprep.subr.mxu0 0.0
        %4612 = vmatpush1.msra.mxu0 0.0
        %4613 = vmatprep.subr.mxu0 0.0
        %4614 = vmatpush1.msra.mxu0 0.0
        %4615 = vmatprep.subr.mxu0 0.0
        %4616 = vmatpush1.msra.mxu0 0.0
        %4617 = vmatprep.subr.mxu0 0.0
        %4618 = vmatpush1.msra.mxu0 0.0
        %4619 = vmatprep.subr.mxu0 0.0
        %4620 = vmatpush1.msra.mxu0 0.0
        %4621 = vmatprep.subr.mxu0 0.0
        %4622 = vmatpush1.msra.mxu0 0.0
        %4623 = vmatprep.subr.mxu0 0.0
        %4624 = vmatpush1.msra.mxu0 0.0
        %4625 = vmatprep.subr.mxu0 0.0
        %4626 = vmatpush1.msra.mxu0 0.0
        %4627 = vmatprep.mubr.f32.mxu0 0.0
        %4628 = vmatmul.mubr.f32.gmra.mrb[0].mxu0 %v4037
        %v4629 = vpop.f32.mrb[0].mxu0
        %v4630 = vadd.f32 0.0, %v4629
        %v4631 = vpop.f32.mrb[0].mxu0
        %4632 = vdwg.mxu0
        %s4633 = scalar_lea.vmem [#allocation4], 56
        %4634 = vst [vmem:[%s4633] sm:$0xff] %v4630
        %s4635 = scalar_lea.vmem [#allocation3], 128
        %v4636 = vld [vmem:[%s4635] sm:$0xff]
        %v4637 = vld [vmem:[%s4635 + $0x8] sm:$0xff]
        %4638 = vmatprep.subr.mxu0 0.0
        %4639 = vmatpush1.msra.mxu0 %v4636
        %4640 = vmatprep.subr.mxu0 0.0
        %4641 = vmatpush1.msra.mxu0 %v4637
        %4642 = vmatprep.subr.mxu0 0.0
        %4643 = vmatpush1.msra.mxu0 0.0
        %4644 = vmatprep.subr.mxu0 0.0
        %4645 = vmatpush1.msra.mxu0 0.0
        %4646 = vmatprep.subr.mxu0 0.0
        %4647 = vmatpush1.msra.mxu0 0.0
        %4648 = vmatprep.subr.mxu0 0.0
        %4649 = vmatpush1.msra.mxu0 0.0
        %4650 = vmatprep.subr.mxu0 0.0
        %4651 = vmatpush1.msra.mxu0 0.0
        %4652 = vmatprep.subr.mxu0 0.0
        %4653 = vmatpush1.msra.mxu0 0.0
        %4654 = vmatprep.subr.mxu0 0.0
        %4655 = vmatpush1.msra.mxu0 0.0
        %4656 = vmatprep.subr.mxu0 0.0
        %4657 = vmatpush1.msra.mxu0 0.0
        %4658 = vmatprep.subr.mxu0 0.0
        %4659 = vmatpush1.msra.mxu0 0.0
        %4660 = vmatprep.subr.mxu0 0.0
        %4661 = vmatpush1.msra.mxu0 0.0
        %4662 = vmatprep.subr.mxu0 0.0
        %4663 = vmatpush1.msra.mxu0 0.0
        %4664 = vmatprep.subr.mxu0 0.0
        %4665 = vmatpush1.msra.mxu0 0.0
        %4666 = vmatprep.subr.mxu0 0.0
        %4667 = vmatpush1.msra.mxu0 0.0
        %4668 = vmatprep.subr.mxu0 0.0
        %4669 = vmatpush1.msra.mxu0 0.0
        %4670 = vmatprep.subr.mxu0 0.0
        %4671 = vmatpush1.msra.mxu0 0.0
        %4672 = vmatprep.subr.mxu0 0.0
        %4673 = vmatpush1.msra.mxu0 0.0
        %4674 = vmatprep.subr.mxu0 0.0
        %4675 = vmatpush1.msra.mxu0 0.0
        %4676 = vmatprep.subr.mxu0 0.0
        %4677 = vmatpush1.msra.mxu0 0.0
        %4678 = vmatprep.subr.mxu0 0.0
        %4679 = vmatpush1.msra.mxu0 0.0
        %4680 = vmatprep.subr.mxu0 0.0
        %4681 = vmatpush1.msra.mxu0 0.0
        %4682 = vmatprep.subr.mxu0 0.0
        %4683 = vmatpush1.msra.mxu0 0.0
        %4684 = vmatprep.subr.mxu0 0.0
        %4685 = vmatpush1.msra.mxu0 0.0
        %4686 = vmatprep.subr.mxu0 0.0
        %4687 = vmatpush1.msra.mxu0 0.0
        %4688 = vmatprep.subr.mxu0 0.0
        %4689 = vmatpush1.msra.mxu0 0.0
        %4690 = vmatprep.subr.mxu0 0.0
        %4691 = vmatpush1.msra.mxu0 0.0
        %4692 = vmatprep.subr.mxu0 0.0
        %4693 = vmatpush1.msra.mxu0 0.0
        %4694 = vmatprep.subr.mxu0 0.0
        %4695 = vmatpush1.msra.mxu0 0.0
        %4696 = vmatprep.subr.mxu0 0.0
        %4697 = vmatpush1.msra.mxu0 0.0
        %4698 = vmatprep.subr.mxu0 0.0
        %4699 = vmatpush1.msra.mxu0 0.0
        %4700 = vmatprep.subr.mxu0 0.0
        %4701 = vmatpush1.msra.mxu0 0.0
        %4702 = vmatprep.mubr.f32.mxu0 0.0
        %4703 = vmatmul.mubr.f32.gmra.mrb[0].mxu0 %v4037
        %v4704 = vpop.f32.mrb[0].mxu0
        %v4705 = vadd.f32 0.0, %v4704
        %v4706 = vpop.f32.mrb[0].mxu0
        %4707 = vdwg.mxu0
        %s4708 = scalar_lea.vmem [#allocation4], 64
        %4709 = vst [vmem:[%s4708] sm:$0xff] %v4705
        %s4710 = scalar_lea.vmem [#allocation3], 144
        %v4711 = vld [vmem:[%s4710] sm:$0xff]
        %v4712 = vld [vmem:[%s4710 + $0x8] sm:$0xff]
        %4713 = vmatprep.subr.mxu0 0.0
        %4714 = vmatpush1.msra.mxu0 %v4711
        %4715 = vmatprep.subr.mxu0 0.0
        %4716 = vmatpush1.msra.mxu0 %v4712
        %4717 = vmatprep.subr.mxu0 0.0
        %4718 = vmatpush1.msra.mxu0 0.0
        %4719 = vmatprep.subr.mxu0 0.0
        %4720 = vmatpush1.msra.mxu0 0.0
        %4721 = vmatprep.subr.mxu0 0.0
        %4722 = vmatpush1.msra.mxu0 0.0
        %4723 = vmatprep.subr.mxu0 0.0
        %4724 = vmatpush1.msra.mxu0 0.0
        %4725 = vmatprep.subr.mxu0 0.0
        %4726 = vmatpush1.msra.mxu0 0.0
        %4727 = vmatprep.subr.mxu0 0.0
        %4728 = vmatpush1.msra.mxu0 0.0
        %4729 = vmatprep.subr.mxu0 0.0
        %4730 = vmatpush1.msra.mxu0 0.0
        %4731 = vmatprep.subr.mxu0 0.0
        %4732 = vmatpush1.msra.mxu0 0.0
        %4733 = vmatprep.subr.mxu0 0.0
        %4734 = vmatpush1.msra.mxu0 0.0
        %4735 = vmatprep.subr.mxu0 0.0
        %4736 = vmatpush1.msra.mxu0 0.0
        %4737 = vmatprep.subr.mxu0 0.0
        %4738 = vmatpush1.msra.mxu0 0.0
        %4739 = vmatprep.subr.mxu0 0.0
        %4740 = vmatpush1.msra.mxu0 0.0
        %4741 = vmatprep.subr.mxu0 0.0
        %4742 = vmatpush1.msra.mxu0 0.0
        %4743 = vmatprep.subr.mxu0 0.0
        %4744 = vmatpush1.msra.mxu0 0.0
        %4745 = vmatprep.subr.mxu0 0.0
        %4746 = vmatpush1.msra.mxu0 0.0
        %4747 = vmatprep.subr.mxu0 0.0
        %4748 = vmatpush1.msra.mxu0 0.0
        %4749 = vmatprep.subr.mxu0 0.0
        %4750 = vmatpush1.msra.mxu0 0.0
        %4751 = vmatprep.subr.mxu0 0.0
        %4752 = vmatpush1.msra.mxu0 0.0
        %4753 = vmatprep.subr.mxu0 0.0
        %4754 = vmatpush1.msra.mxu0 0.0
        %4755 = vmatprep.subr.mxu0 0.0
        %4756 = vmatpush1.msra.mxu0 0.0
        %4757 = vmatprep.subr.mxu0 0.0
        %4758 = vmatpush1.msra.mxu0 0.0
        %4759 = vmatprep.subr.mxu0 0.0
        %4760 = vmatpush1.msra.mxu0 0.0
        %4761 = vmatprep.subr.mxu0 0.0
        %4762 = vmatpush1.msra.mxu0 0.0
        %4763 = vmatprep.subr.mxu0 0.0
        %4764 = vmatpush1.msra.mxu0 0.0
        %4765 = vmatprep.subr.mxu0 0.0
        %4766 = vmatpush1.msra.mxu0 0.0
        %4767 = vmatprep.subr.mxu0 0.0
        %4768 = vmatpush1.msra.mxu0 0.0
        %4769 = vmatprep.subr.mxu0 0.0
        %4770 = vmatpush1.msra.mxu0 0.0
        %4771 = vmatprep.subr.mxu0 0.0
        %4772 = vmatpush1.msra.mxu0 0.0
        %4773 = vmatprep.subr.mxu0 0.0
        %4774 = vmatpush1.msra.mxu0 0.0
        %4775 = vmatprep.subr.mxu0 0.0
        %4776 = vmatpush1.msra.mxu0 0.0
        %4777 = vmatprep.mubr.f32.mxu0 0.0
        %4778 = vmatmul.mubr.f32.gmra.mrb[0].mxu0 %v4037
        %v4779 = vpop.f32.mrb[0].mxu0
        %v4780 = vadd.f32 0.0, %v4779
        %v4781 = vpop.f32.mrb[0].mxu0
        %4782 = vdwg.mxu0
        %s4783 = scalar_lea.vmem [#allocation4], 72
        %4784 = vst [vmem:[%s4783] sm:$0xff] %v4780
        %s4785 = scalar_lea.vmem [#allocation3], 160
        %v4786 = vld [vmem:[%s4785] sm:$0xff]
        %v4787 = vld [vmem:[%s4785 + $0x8] sm:$0xff]
        %4788 = vmatprep.subr.mxu0 0.0
        %4789 = vmatpush1.msra.mxu0 %v4786
        %4790 = vmatprep.subr.mxu0 0.0
        %4791 = vmatpush1.msra.mxu0 %v4787
        %4792 = vmatprep.subr.mxu0 0.0
        %4793 = vmatpush1.msra.mxu0 0.0
        %4794 = vmatprep.subr.mxu0 0.0
        %4795 = vmatpush1.msra.mxu0 0.0
        %4796 = vmatprep.subr.mxu0 0.0
        %4797 = vmatpush1.msra.mxu0 0.0
        %4798 = vmatprep.subr.mxu0 0.0
        %4799 = vmatpush1.msra.mxu0 0.0
        %4800 = vmatprep.subr.mxu0 0.0
        %4801 = vmatpush1.msra.mxu0 0.0
        %4802 = vmatprep.subr.mxu0 0.0
        %4803 = vmatpush1.msra.mxu0 0.0
        %4804 = vmatprep.subr.mxu0 0.0
        %4805 = vmatpush1.msra.mxu0 0.0
        %4806 = vmatprep.subr.mxu0 0.0
        %4807 = vmatpush1.msra.mxu0 0.0
        %4808 = vmatprep.subr.mxu0 0.0
        %4809 = vmatpush1.msra.mxu0 0.0
        %4810 = vmatprep.subr.mxu0 0.0
        %4811 = vmatpush1.msra.mxu0 0.0
        %4812 = vmatprep.subr.mxu0 0.0
        %4813 = vmatpush1.msra.mxu0 0.0
        %4814 = vmatprep.subr.mxu0 0.0
        %4815 = vmatpush1.msra.mxu0 0.0
        %4816 = vmatprep.subr.mxu0 0.0
        %4817 = vmatpush1.msra.mxu0 0.0
        %4818 = vmatprep.subr.mxu0 0.0
        %4819 = vmatpush1.msra.mxu0 0.0
        %4820 = vmatprep.subr.mxu0 0.0
        %4821 = vmatpush1.msra.mxu0 0.0
        %4822 = vmatprep.subr.mxu0 0.0
        %4823 = vmatpush1.msra.mxu0 0.0
        %4824 = vmatprep.subr.mxu0 0.0
        %4825 = vmatpush1.msra.mxu0 0.0
        %4826 = vmatprep.subr.mxu0 0.0
        %4827 = vmatpush1.msra.mxu0 0.0
        %4828 = vmatprep.subr.mxu0 0.0
        %4829 = vmatpush1.msra.mxu0 0.0
        %4830 = vmatprep.subr.mxu0 0.0
        %4831 = vmatpush1.msra.mxu0 0.0
        %4832 = vmatprep.subr.mxu0 0.0
        %4833 = vmatpush1.msra.mxu0 0.0
        %4834 = vmatprep.subr.mxu0 0.0
        %4835 = vmatpush1.msra.mxu0 0.0
        %4836 = vmatprep.subr.mxu0 0.0
        %4837 = vmatpush1.msra.mxu0 0.0
        %4838 = vmatprep.subr.mxu0 0.0
        %4839 = vmatpush1.msra.mxu0 0.0
        %4840 = vmatprep.subr.mxu0 0.0
        %4841 = vmatpush1.msra.mxu0 0.0
        %4842 = vmatprep.subr.mxu0 0.0
        %4843 = vmatpush1.msra.mxu0 0.0
        %4844 = vmatprep.subr.mxu0 0.0
        %4845 = vmatpush1.msra.mxu0 0.0
        %4846 = vmatprep.subr.mxu0 0.0
        %4847 = vmatpush1.msra.mxu0 0.0
        %4848 = vmatprep.subr.mxu0 0.0
        %4849 = vmatpush1.msra.mxu0 0.0
        %4850 = vmatprep.subr.mxu0 0.0
        %4851 = vmatpush1.msra.mxu0 0.0
        %4852 = vmatprep.mubr.f32.mxu0 0.0
        %4853 = vmatmul.mubr.f32.gmra.mrb[0].mxu0 %v4037
        %v4854 = vpop.f32.mrb[0].mxu0
        %v4855 = vadd.f32 0.0, %v4854
        %v4856 = vpop.f32.mrb[0].mxu0
        %4857 = vdwg.mxu0
        %s4858 = scalar_lea.vmem [#allocation4], 80
        %4859 = vst [vmem:[%s4858] sm:$0xff] %v4855
        %s4860 = scalar_lea.vmem [#allocation3], 176
        %v4861 = vld [vmem:[%s4860] sm:$0xff]
        %v4862 = vld [vmem:[%s4860 + $0x8] sm:$0xff]
        %4863 = vmatprep.subr.mxu0 0.0
        %4864 = vmatpush1.msra.mxu0 %v4861
        %4865 = vmatprep.subr.mxu0 0.0
        %4866 = vmatpush1.msra.mxu0 %v4862
        %4867 = vmatprep.subr.mxu0 0.0
        %4868 = vmatpush1.msra.mxu0 0.0
        %4869 = vmatprep.subr.mxu0 0.0
        %4870 = vmatpush1.msra.mxu0 0.0
        %4871 = vmatprep.subr.mxu0 0.0
        %4872 = vmatpush1.msra.mxu0 0.0
        %4873 = vmatprep.subr.mxu0 0.0
        %4874 = vmatpush1.msra.mxu0 0.0
        %4875 = vmatprep.subr.mxu0 0.0
        %4876 = vmatpush1.msra.mxu0 0.0
        %4877 = vmatprep.subr.mxu0 0.0
        %4878 = vmatpush1.msra.mxu0 0.0
        %4879 = vmatprep.subr.mxu0 0.0
        %4880 = vmatpush1.msra.mxu0 0.0
        %4881 = vmatprep.subr.mxu0 0.0
        %4882 = vmatpush1.msra.mxu0 0.0
        %4883 = vmatprep.subr.mxu0 0.0
        %4884 = vmatpush1.msra.mxu0 0.0
        %4885 = vmatprep.subr.mxu0 0.0
        %4886 = vmatpush1.msra.mxu0 0.0
        %4887 = vmatprep.subr.mxu0 0.0
        %4888 = vmatpush1.msra.mxu0 0.0
        %4889 = vmatprep.subr.mxu0 0.0
        %4890 = vmatpush1.msra.mxu0 0.0
        %4891 = vmatprep.subr.mxu0 0.0
        %4892 = vmatpush1.msra.mxu0 0.0
        %4893 = vmatprep.subr.mxu0 0.0
        %4894 = vmatpush1.msra.mxu0 0.0
        %4895 = vmatprep.subr.mxu0 0.0
        %4896 = vmatpush1.msra.mxu0 0.0
        %4897 = vmatprep.subr.mxu0 0.0
        %4898 = vmatpush1.msra.mxu0 0.0
        %4899 = vmatprep.subr.mxu0 0.0
        %4900 = vmatpush1.msra.mxu0 0.0
        %4901 = vmatprep.subr.mxu0 0.0
        %4902 = vmatpush1.msra.mxu0 0.0
        %4903 = vmatprep.subr.mxu0 0.0
        %4904 = vmatpush1.msra.mxu0 0.0
        %4905 = vmatprep.subr.mxu0 0.0
        %4906 = vmatpush1.msra.mxu0 0.0
        %4907 = vmatprep.subr.mxu0 0.0
        %4908 = vmatpush1.msra.mxu0 0.0
        %4909 = vmatprep.subr.mxu0 0.0
        %4910 = vmatpush1.msra.mxu0 0.0
        %4911 = vmatprep.subr.mxu0 0.0
        %4912 = vmatpush1.msra.mxu0 0.0
        %4913 = vmatprep.subr.mxu0 0.0
        %4914 = vmatpush1.msra.mxu0 0.0
        %4915 = vmatprep.subr.mxu0 0.0
        %4916 = vmatpush1.msra.mxu0 0.0
        %4917 = vmatprep.subr.mxu0 0.0
        %4918 = vmatpush1.msra.mxu0 0.0
        %4919 = vmatprep.subr.mxu0 0.0
        %4920 = vmatpush1.msra.mxu0 0.0
        %4921 = vmatprep.subr.mxu0 0.0
        %4922 = vmatpush1.msra.mxu0 0.0
        %4923 = vmatprep.subr.mxu0 0.0
        %4924 = vmatpush1.msra.mxu0 0.0
        %4925 = vmatprep.subr.mxu0 0.0
        %4926 = vmatpush1.msra.mxu0 0.0
        %4927 = vmatprep.mubr.f32.mxu0 0.0
        %4928 = vmatmul.mubr.f32.gmra.mrb[0].mxu0 %v4037
        %v4929 = vpop.f32.mrb[0].mxu0
        %v4930 = vadd.f32 0.0, %v4929
        %v4931 = vpop.f32.mrb[0].mxu0
        %4932 = vdwg.mxu0
        %s4933 = scalar_lea.vmem [#allocation4], 88
        %4934 = vst [vmem:[%s4933] sm:$0xff] %v4930
        %s4935 = scalar_lea.vmem [#allocation3], 192
        %v4936 = vld [vmem:[%s4935] sm:$0xff]
        %v4937 = vld [vmem:[%s4935 + $0x8] sm:$0xff]
        %4938 = vmatprep.subr.mxu0 0.0
        %4939 = vmatpush1.msra.mxu0 %v4936
        %4940 = vmatprep.subr.mxu0 0.0
        %4941 = vmatpush1.msra.mxu0 %v4937
        %4942 = vmatprep.subr.mxu0 0.0
        %4943 = vmatpush1.msra.mxu0 0.0
        %4944 = vmatprep.subr.mxu0 0.0
        %4945 = vmatpush1.msra.mxu0 0.0
        %4946 = vmatprep.subr.mxu0 0.0
        %4947 = vmatpush1.msra.mxu0 0.0
        %4948 = vmatprep.subr.mxu0 0.0
        %4949 = vmatpush1.msra.mxu0 0.0
        %4950 = vmatprep.subr.mxu0 0.0
        %4951 = vmatpush1.msra.mxu0 0.0
        %4952 = vmatprep.subr.mxu0 0.0
        %4953 = vmatpush1.msra.mxu0 0.0
        %4954 = vmatprep.subr.mxu0 0.0
        %4955 = vmatpush1.msra.mxu0 0.0
        %4956 = vmatprep.subr.mxu0 0.0
        %4957 = vmatpush1.msra.mxu0 0.0
        %4958 = vmatprep.subr.mxu0 0.0
        %4959 = vmatpush1.msra.mxu0 0.0
        %4960 = vmatprep.subr.mxu0 0.0
        %4961 = vmatpush1.msra.mxu0 0.0
        %4962 = vmatprep.subr.mxu0 0.0
        %4963 = vmatpush1.msra.mxu0 0.0
        %4964 = vmatprep.subr.mxu0 0.0
        %4965 = vmatpush1.msra.mxu0 0.0
        %4966 = vmatprep.subr.mxu0 0.0
        %4967 = vmatpush1.msra.mxu0 0.0
        %4968 = vmatprep.subr.mxu0 0.0
        %4969 = vmatpush1.msra.mxu0 0.0
        %4970 = vmatprep.subr.mxu0 0.0
        %4971 = vmatpush1.msra.mxu0 0.0
        %4972 = vmatprep.subr.mxu0 0.0
        %4973 = vmatpush1.msra.mxu0 0.0
        %4974 = vmatprep.subr.mxu0 0.0
        %4975 = vmatpush1.msra.mxu0 0.0
        %4976 = vmatprep.subr.mxu0 0.0
        %4977 = vmatpush1.msra.mxu0 0.0
        %4978 = vmatprep.subr.mxu0 0.0
        %4979 = vmatpush1.msra.mxu0 0.0
        %4980 = vmatprep.subr.mxu0 0.0
        %4981 = vmatpush1.msra.mxu0 0.0
        %4982 = vmatprep.subr.mxu0 0.0
        %4983 = vmatpush1.msra.mxu0 0.0
        %4984 = vmatprep.subr.mxu0 0.0
        %4985 = vmatpush1.msra.mxu0 0.0
        %4986 = vmatprep.subr.mxu0 0.0
        %4987 = vmatpush1.msra.mxu0 0.0
        %4988 = vmatprep.subr.mxu0 0.0
        %4989 = vmatpush1.msra.mxu0 0.0
        %4990 = vmatprep.subr.mxu0 0.0
        %4991 = vmatpush1.msra.mxu0 0.0
        %4992 = vmatprep.subr.mxu0 0.0
        %4993 = vmatpush1.msra.mxu0 0.0
        %4994 = vmatprep.subr.mxu0 0.0
        %4995 = vmatpush1.msra.mxu0 0.0
        %4996 = vmatprep.subr.mxu0 0.0
        %4997 = vmatpush1.msra.mxu0 0.0
        %4998 = vmatprep.subr.mxu0 0.0
        %4999 = vmatpush1.msra.mxu0 0.0
        %5000 = vmatprep.subr.mxu0 0.0
        %5001 = vmatpush1.msra.mxu0 0.0
        %5002 = vmatprep.mubr.f32.mxu0 0.0
        %5003 = vmatmul.mubr.f32.gmra.mrb[0].mxu0 %v4037
        %v5004 = vpop.f32.mrb[0].mxu0
        %v5005 = vadd.f32 0.0, %v5004
        %v5006 = vpop.f32.mrb[0].mxu0
        %5007 = vdwg.mxu0
        %s5008 = scalar_lea.vmem [#allocation4], 96
        %5009 = vst [vmem:[%s5008] sm:$0xff] %v5005
        %s5010 = scalar_lea.vmem [#allocation3], 208
        %v5011 = vld [vmem:[%s5010] sm:$0xff]
        %v5012 = vld [vmem:[%s5010 + $0x8] sm:$0xff]
        %5013 = vmatprep.subr.mxu0 0.0
        %5014 = vmatpush1.msra.mxu0 %v5011
        %5015 = vmatprep.subr.mxu0 0.0
        %5016 = vmatpush1.msra.mxu0 %v5012
        %5017 = vmatprep.subr.mxu0 0.0
        %5018 = vmatpush1.msra.mxu0 0.0
        %5019 = vmatprep.subr.mxu0 0.0
        %5020 = vmatpush1.msra.mxu0 0.0
        %5021 = vmatprep.subr.mxu0 0.0
        %5022 = vmatpush1.msra.mxu0 0.0
        %5023 = vmatprep.subr.mxu0 0.0
        %5024 = vmatpush1.msra.mxu0 0.0
        %5025 = vmatprep.subr.mxu0 0.0
        %5026 = vmatpush1.msra.mxu0 0.0
        %5027 = vmatprep.subr.mxu0 0.0
        %5028 = vmatpush1.msra.mxu0 0.0
        %5029 = vmatprep.subr.mxu0 0.0
        %5030 = vmatpush1.msra.mxu0 0.0
        %5031 = vmatprep.subr.mxu0 0.0
        %5032 = vmatpush1.msra.mxu0 0.0
        %5033 = vmatprep.subr.mxu0 0.0
        %5034 = vmatpush1.msra.mxu0 0.0
        %5035 = vmatprep.subr.mxu0 0.0
        %5036 = vmatpush1.msra.mxu0 0.0
        %5037 = vmatprep.subr.mxu0 0.0
        %5038 = vmatpush1.msra.mxu0 0.0
        %5039 = vmatprep.subr.mxu0 0.0
        %5040 = vmatpush1.msra.mxu0 0.0
        %5041 = vmatprep.subr.mxu0 0.0
        %5042 = vmatpush1.msra.mxu0 0.0
        %5043 = vmatprep.subr.mxu0 0.0
        %5044 = vmatpush1.msra.mxu0 0.0
        %5045 = vmatprep.subr.mxu0 0.0
        %5046 = vmatpush1.msra.mxu0 0.0
        %5047 = vmatprep.subr.mxu0 0.0
        %5048 = vmatpush1.msra.mxu0 0.0
        %5049 = vmatprep.subr.mxu0 0.0
        %5050 = vmatpush1.msra.mxu0 0.0
        %5051 = vmatprep.subr.mxu0 0.0
        %5052 = vmatpush1.msra.mxu0 0.0
        %5053 = vmatprep.subr.mxu0 0.0
        %5054 = vmatpush1.msra.mxu0 0.0
        %5055 = vmatprep.subr.mxu0 0.0
        %5056 = vmatpush1.msra.mxu0 0.0
        %5057 = vmatprep.subr.mxu0 0.0
        %5058 = vmatpush1.msra.mxu0 0.0
        %5059 = vmatprep.subr.mxu0 0.0
        %5060 = vmatpush1.msra.mxu0 0.0
        %5061 = vmatprep.subr.mxu0 0.0
        %5062 = vmatpush1.msra.mxu0 0.0
        %5063 = vmatprep.subr.mxu0 0.0
        %5064 = vmatpush1.msra.mxu0 0.0
        %5065 = vmatprep.subr.mxu0 0.0
        %5066 = vmatpush1.msra.mxu0 0.0
        %5067 = vmatprep.subr.mxu0 0.0
        %5068 = vmatpush1.msra.mxu0 0.0
        %5069 = vmatprep.subr.mxu0 0.0
        %5070 = vmatpush1.msra.mxu0 0.0
        %5071 = vmatprep.subr.mxu0 0.0
        %5072 = vmatpush1.msra.mxu0 0.0
        %5073 = vmatprep.subr.mxu0 0.0
        %5074 = vmatpush1.msra.mxu0 0.0
        %5075 = vmatprep.subr.mxu0 0.0
        %5076 = vmatpush1.msra.mxu0 0.0
        %5077 = vmatprep.mubr.f32.mxu0 0.0
        %5078 = vmatmul.mubr.f32.gmra.mrb[0].mxu0 %v4037
        %v5079 = vpop.f32.mrb[0].mxu0
        %v5080 = vadd.f32 0.0, %v5079
        %v5081 = vpop.f32.mrb[0].mxu0
        %5082 = vdwg.mxu0
        %s5083 = scalar_lea.vmem [#allocation4], 104
        %5084 = vst [vmem:[%s5083] sm:$0xff] %v5080
        %s5085 = scalar_lea.vmem [#allocation3], 224
        %v5086 = vld [vmem:[%s5085] sm:$0xff]
        %v5087 = vld [vmem:[%s5085 + $0x8] sm:$0xff]
        %5088 = vmatprep.subr.mxu0 0.0
        %5089 = vmatpush1.msra.mxu0 %v5086
        %5090 = vmatprep.subr.mxu0 0.0
        %5091 = vmatpush1.msra.mxu0 %v5087
        %5092 = vmatprep.subr.mxu0 0.0
        %5093 = vmatpush1.msra.mxu0 0.0
        %5094 = vmatprep.subr.mxu0 0.0
        %5095 = vmatpush1.msra.mxu0 0.0
        %5096 = vmatprep.subr.mxu0 0.0
        %5097 = vmatpush1.msra.mxu0 0.0
        %5098 = vmatprep.subr.mxu0 0.0
        %5099 = vmatpush1.msra.mxu0 0.0
        %5100 = vmatprep.subr.mxu0 0.0
        %5101 = vmatpush1.msra.mxu0 0.0
        %5102 = vmatprep.subr.mxu0 0.0
        %5103 = vmatpush1.msra.mxu0 0.0
        %5104 = vmatprep.subr.mxu0 0.0
        %5105 = vmatpush1.msra.mxu0 0.0
        %5106 = vmatprep.subr.mxu0 0.0
        %5107 = vmatpush1.msra.mxu0 0.0
        %5108 = vmatprep.subr.mxu0 0.0
        %5109 = vmatpush1.msra.mxu0 0.0
        %5110 = vmatprep.subr.mxu0 0.0
        %5111 = vmatpush1.msra.mxu0 0.0
        %5112 = vmatprep.subr.mxu0 0.0
        %5113 = vmatpush1.msra.mxu0 0.0
        %5114 = vmatprep.subr.mxu0 0.0
        %5115 = vmatpush1.msra.mxu0 0.0
        %5116 = vmatprep.subr.mxu0 0.0
        %5117 = vmatpush1.msra.mxu0 0.0
        %5118 = vmatprep.subr.mxu0 0.0
        %5119 = vmatpush1.msra.mxu0 0.0
        %5120 = vmatprep.subr.mxu0 0.0
        %5121 = vmatpush1.msra.mxu0 0.0
        %5122 = vmatprep.subr.mxu0 0.0
        %5123 = vmatpush1.msra.mxu0 0.0
        %5124 = vmatprep.subr.mxu0 0.0
        %5125 = vmatpush1.msra.mxu0 0.0
        %5126 = vmatprep.subr.mxu0 0.0
        %5127 = vmatpush1.msra.mxu0 0.0
        %5128 = vmatprep.subr.mxu0 0.0
        %5129 = vmatpush1.msra.mxu0 0.0
        %5130 = vmatprep.subr.mxu0 0.0
        %5131 = vmatpush1.msra.mxu0 0.0
        %5132 = vmatprep.subr.mxu0 0.0
        %5133 = vmatpush1.msra.mxu0 0.0
        %5134 = vmatprep.subr.mxu0 0.0
        %5135 = vmatpush1.msra.mxu0 0.0
        %5136 = vmatprep.subr.mxu0 0.0
        %5137 = vmatpush1.msra.mxu0 0.0
        %5138 = vmatprep.subr.mxu0 0.0
        %5139 = vmatpush1.msra.mxu0 0.0
        %5140 = vmatprep.subr.mxu0 0.0
        %5141 = vmatpush1.msra.mxu0 0.0
        %5142 = vmatprep.subr.mxu0 0.0
        %5143 = vmatpush1.msra.mxu0 0.0
        %5144 = vmatprep.subr.mxu0 0.0
        %5145 = vmatpush1.msra.mxu0 0.0
        %5146 = vmatprep.subr.mxu0 0.0
        %5147 = vmatpush1.msra.mxu0 0.0
        %5148 = vmatprep.subr.mxu0 0.0
        %5149 = vmatpush1.msra.mxu0 0.0
        %5150 = vmatprep.subr.mxu0 0.0
        %5151 = vmatpush1.msra.mxu0 0.0
        %5152 = vmatprep.mubr.f32.mxu0 0.0
        %5153 = vmatmul.mubr.f32.gmra.mrb[0].mxu0 %v4037
        %v5154 = vpop.f32.mrb[0].mxu0
        %v5155 = vadd.f32 0.0, %v5154
        %v5156 = vpop.f32.mrb[0].mxu0
        %5157 = vdwg.mxu0
        %s5158 = scalar_lea.vmem [#allocation4], 112
        %5159 = vst [vmem:[%s5158] sm:$0xff] %v5155
        %s5160 = scalar_lea.vmem [#allocation3], 240
        %v5161 = vld [vmem:[%s5160] sm:$0xff]
        %v5162 = vld [vmem:[%s5160 + $0x8] sm:$0xff]
        %5163 = vmatprep.subr.mxu0 0.0
        %5164 = vmatpush1.msra.mxu0 %v5161
        %5165 = vmatprep.subr.mxu0 0.0
        %5166 = vmatpush1.msra.mxu0 %v5162
        %5167 = vmatprep.subr.mxu0 0.0
        %5168 = vmatpush1.msra.mxu0 0.0
        %5169 = vmatprep.subr.mxu0 0.0
        %5170 = vmatpush1.msra.mxu0 0.0
        %5171 = vmatprep.subr.mxu0 0.0
        %5172 = vmatpush1.msra.mxu0 0.0
        %5173 = vmatprep.subr.mxu0 0.0
        %5174 = vmatpush1.msra.mxu0 0.0
        %5175 = vmatprep.subr.mxu0 0.0
        %5176 = vmatpush1.msra.mxu0 0.0
        %5177 = vmatprep.subr.mxu0 0.0
        %5178 = vmatpush1.msra.mxu0 0.0
        %5179 = vmatprep.subr.mxu0 0.0
        %5180 = vmatpush1.msra.mxu0 0.0
        %5181 = vmatprep.subr.mxu0 0.0
        %5182 = vmatpush1.msra.mxu0 0.0
        %5183 = vmatprep.subr.mxu0 0.0
        %5184 = vmatpush1.msra.mxu0 0.0
        %5185 = vmatprep.subr.mxu0 0.0
        %5186 = vmatpush1.msra.mxu0 0.0
        %5187 = vmatprep.subr.mxu0 0.0
        %5188 = vmatpush1.msra.mxu0 0.0
        %5189 = vmatprep.subr.mxu0 0.0
        %5190 = vmatpush1.msra.mxu0 0.0
        %5191 = vmatprep.subr.mxu0 0.0
        %5192 = vmatpush1.msra.mxu0 0.0
        %5193 = vmatprep.subr.mxu0 0.0
        %5194 = vmatpush1.msra.mxu0 0.0
        %5195 = vmatprep.subr.mxu0 0.0
        %5196 = vmatpush1.msra.mxu0 0.0
        %5197 = vmatprep.subr.mxu0 0.0
        %5198 = vmatpush1.msra.mxu0 0.0
        %5199 = vmatprep.subr.mxu0 0.0
        %5200 = vmatpush1.msra.mxu0 0.0
        %5201 = vmatprep.subr.mxu0 0.0
        %5202 = vmatpush1.msra.mxu0 0.0
        %5203 = vmatprep.subr.mxu0 0.0
        %5204 = vmatpush1.msra.mxu0 0.0
        %5205 = vmatprep.subr.mxu0 0.0
        %5206 = vmatpush1.msra.mxu0 0.0
        %5207 = vmatprep.subr.mxu0 0.0
        %5208 = vmatpush1.msra.mxu0 0.0
        %5209 = vmatprep.subr.mxu0 0.0
        %5210 = vmatpush1.msra.mxu0 0.0
        %5211 = vmatprep.subr.mxu0 0.0
        %5212 = vmatpush1.msra.mxu0 0.0
        %5213 = vmatprep.subr.mxu0 0.0
        %5214 = vmatpush1.msra.mxu0 0.0
        %5215 = vmatprep.subr.mxu0 0.0
        %5216 = vmatpush1.msra.mxu0 0.0
        %5217 = vmatprep.subr.mxu0 0.0
        %5218 = vmatpush1.msra.mxu0 0.0
        %5219 = vmatprep.subr.mxu0 0.0
        %5220 = vmatpush1.msra.mxu0 0.0
        %5221 = vmatprep.subr.mxu0 0.0
        %5222 = vmatpush1.msra.mxu0 0.0
        %5223 = vmatprep.subr.mxu0 0.0
        %5224 = vmatpush1.msra.mxu0 0.0
        %5225 = vmatprep.subr.mxu0 0.0
        %5226 = vmatpush1.msra.mxu0 0.0
        %5227 = vmatprep.mubr.f32.mxu0 0.0
        %5228 = vmatmul.mubr.f32.gmra.mrb[0].mxu0 %v4037
        %v5229 = vpop.f32.mrb[0].mxu0
        %v5230 = vadd.f32 0.0, %v5229
        %v5231 = vpop.f32.mrb[0].mxu0
        %5232 = vdwg.mxu0
        %s5233 = scalar_lea.vmem [#allocation4], 120
        %5234 = vst [vmem:[%s5233] sm:$0xff] %v5230
        %v5235 = vld [vmem:[#allocation4] sm:$0xff]
        %v5236 = vmul.f32 %v5235, 0.5
        %v5237 = vadd.f32 %v5236, 0.0
        %v5238 = vld [vmem:[%s4183] sm:$0xff]
        %v5239 = vmul.f32 %v5238, 0.5
        %v5240 = vadd.f32 %v5237, %v5239
        %5241 = vst [vmem:[%s292] sm:$0xff] %v5240
        %v5242 = vld [vmem:[%s4183] sm:$0xff]
        %v5243 = vmul.f32 %v5242, 0.25
        %v5244 = vadd.f32 %v5243, 0.0
        %v5245 = vld [vmem:[%s4258] sm:$0xff]
        %v5246 = vmul.f32 %v5245, 0.5
        %v5247 = vadd.f32 %v5244, %v5246
        %v5248 = vld [vmem:[%s4333] sm:$0xff]
        %v5249 = vmul.f32 %v5248, 0.25
        %v5250 = vadd.f32 %v5247, %v5249
        %s5251 = scalar_lea.vmem %s292, 8
        %5252 = vst [vmem:[%s5251] sm:$0xff] %v5250
        %v5253 = vld [vmem:[%s4333] sm:$0xff]
        %v5254 = vmul.f32 %v5253, 0.25
        %v5255 = vadd.f32 %v5254, 0.0
        %v5256 = vld [vmem:[%s4408] sm:$0xff]
        %v5257 = vmul.f32 %v5256, 0.5
        %v5258 = vadd.f32 %v5255, %v5257
        %v5259 = vld [vmem:[%s4483] sm:$0xff]
        %v5260 = vmul.f32 %v5259, 0.25
        %v5261 = vadd.f32 %v5258, %v5260
        %s5262 = scalar_lea.vmem %s292, 16
        %5263 = vst [vmem:[%s5262] sm:$0xff] %v5261
        %v5264 = vld [vmem:[%s4483] sm:$0xff]
        %v5265 = vmul.f32 %v5264, 0.25
        %v5266 = vadd.f32 %v5265, 0.0
        %v5267 = vld [vmem:[%s4558] sm:$0xff]
        %v5268 = vmul.f32 %v5267, 0.5
        %v5269 = vadd.f32 %v5266, %v5268
        %v5270 = vld [vmem:[%s4633] sm:$0xff]
        %v5271 = vmul.f32 %v5270, 0.25
        %v5272 = vadd.f32 %v5269, %v5271
        %s5273 = scalar_lea.vmem %s292, 24
        %5274 = vst [vmem:[%s5273] sm:$0xff] %v5272
        %v5275 = vld [vmem:[%s4633] sm:$0xff]
        %v5276 = vmul.f32 %v5275, 0.25
        %v5277 = vadd.f32 %v5276, 0.0
        %v5278 = vld [vmem:[%s4708] sm:$0xff]
        %v5279 = vmul.f32 %v5278, 0.5
        %v5280 = vadd.f32 %v5277, %v5279
        %v5281 = vld [vmem:[%s4783] sm:$0xff]
        %v5282 = vmul.f32 %v5281, 0.25
        %v5283 = vadd.f32 %v5280, %v5282
        %s5284 = scalar_lea.vmem %s292, 32
        %5285 = vst [vmem:[%s5284] sm:$0xff] %v5283
        %v5286 = vld [vmem:[%s4783] sm:$0xff]
        %v5287 = vmul.f32 %v5286, 0.25
        %v5288 = vadd.f32 %v5287, 0.0
        %v5289 = vld [vmem:[%s4858] sm:$0xff]
        %v5290 = vmul.f32 %v5289, 0.5
        %v5291 = vadd.f32 %v5288, %v5290
        %v5292 = vld [vmem:[%s4933] sm:$0xff]
        %v5293 = vmul.f32 %v5292, 0.25
        %v5294 = vadd.f32 %v5291, %v5293
        %s5295 = scalar_lea.vmem %s292, 40
        %5296 = vst [vmem:[%s5295] sm:$0xff] %v5294
        %v5297 = vld [vmem:[%s4933] sm:$0xff]
        %v5298 = vmul.f32 %v5297, 0.25
        %v5299 = vadd.f32 %v5298, 0.0
        %v5300 = vld [vmem:[%s5008] sm:$0xff]
        %v5301 = vmul.f32 %v5300, 0.5
        %v5302 = vadd.f32 %v5299, %v5301
        %v5303 = vld [vmem:[%s5083] sm:$0xff]
        %v5304 = vmul.f32 %v5303, 0.25
        %v5305 = vadd.f32 %v5302, %v5304
        %s5306 = scalar_lea.vmem %s292, 48
        %5307 = vst [vmem:[%s5306] sm:$0xff] %v5305
        %v5308 = vld [vmem:[%s5083] sm:$0xff]
        %v5309 = vmul.f32 %v5308, 0.25
        %v5310 = vadd.f32 %v5309, 0.0
        %v5311 = vld [vmem:[%s5158] sm:$0xff]
        %v5312 = vmul.f32 %v5311, 0.5
        %v5313 = vadd.f32 %v5310, %v5312
        %v5314 = vld [vmem:[%s5233] sm:$0xff]
        %v5315 = vmul.f32 %v5314, 0.25
        %v5316 = vadd.f32 %v5313, %v5315
        %s5317 = scalar_lea.vmem %s292, 56
        %5318 = vst [vmem:[%s5317] sm:$0xff] %v5316
        %p5319 = scmp.lt.s32.totalorder %s19, 1
        %s5320 = scalar_select %p5319, %s19, 1
        %s5321 = smul.addr %s5320, 8
        %s5322 = smul.addr %s5321, 8
        %s5323 = scalar_lea.vmem %s7, %s5322
        // Predicated region
        $region53: #{residual_downsample_forward.1} parent=47 // pred_check
          %p5324 = pneg %p189
        $region54: #{residual_downsample_forward.1} parent=47 // pred_check_branch
          %5326 = sbr.rel (%p5324) target = $region56
        $region55: #{residual_downsample_forward.1} parent=47 // pred_region
          _
        $region56: #{residual_downsample_forward.1} parent=47 // pred_fallthru
          _
      $region48: #{residual_downsample_forward.1} parent=5 // pred_fallthru
        _
      %p5327 = scmp.le.s32.totalorder 2, %s14
      // Predicated region
      $region57: #{residual_downsample_forward.1} parent=5 // pred_check
        %p5328 = pneg %p5327
      $region58: #{residual_downsample_forward.1} parent=5 // pred_check_branch
        %5330 = sbr.rel (%p5328) target = $region60
      $region59: #{residual_downsample_forward.1} parent=5 // pred_region
        %s5331 = ssub.s32 %s14, 2
        // Predicated region
        $region61: #{residual_downsample_forward.1} parent=59 // pred_check
          %p5332 = pneg %p195
        $region62: #{residual_downsample_forward.1} parent=59 // pred_check_branch
          %5334 = sbr.rel (%p5332) target = $region64
        $region63: #{residual_downsample_forward.1} parent=59 // pred_region
          %p5335 = scmp.lt.s32.totalorder %s20, 1
          %s5336 = scalar_select %p5335, %s20, 1
          %s5337 = smul.addr %s5336, 8
          %s5338 = smul.addr %s5337, 8
          %s5339 = scalar_lea.vmem %s7, %s5338
        $region64: #{residual_downsample_forward.1} parent=59 // pred_fallthru
          _
      $region60: #{residual_downsample_forward.1} parent=5 // pred_fallthru
        _
    $region6: #{residual_downsample_forward.1} parent=1 // loop_footer
      %s18 = sadd.s32 1, %s14
    $region7: #{residual_downsample_forward.1} parent=1 // loop_footer_branch
      %13 = sbr.rel target = $region3
    $region8: #{residual_downsample_forward.1} parent=1 // loop_exit
      _
    %5340 = vsyncpa [#allocation6], 1
    %s5341 = scalar_lea.sflag [#allocation6], 1
    %5342 = vsyncpa %s5341, 1

</llo_original>
